<compile_context>
chip_gen: v7x
topology: tpu7x:2x2x1
jax: 0.10.0
libtpu: 0.0.40
codegen_flags: <defaults>
</compile_context>

<pallas_src>
import functools

import jax
import jax.numpy as jnp
from jax import lax
from jax.experimental import pallas as pl
from jax.experimental.pallas import tpu as pltpu

NUM_ANCHORS = (4, 6, 6, 6, 6, 4, 4)   # per-level anchors, from FPNSSD512.__init__
FEAT_CH = 256                          # in_channels of every head conv


def _round_up(x, m):
    return (x + m - 1) // m * m


# ----------------------------------------------------------------------------- Pallas kernel
def _head_kernel(TH, W, x_ref, w_ref, b_ref, o_ref, acc_ref):
    """Fused 3x3 loc+cls head for one (image, row-tile) grid cell.

    x_ref:   (H+2, W+2, C) bf16  -- zero-padded feature map, resident per image
    w_ref:   (9, C, Cpad) bf16   -- per-tap weights (index ky*3+kx), lane-padded out chans
    b_ref:   (1, Cpad) f32
    o_ref:   (TH*W, Cpad) bf16   -- lane-dense output tile
    acc_ref: (TH*W, Cpad) f32    -- VMEM scratch accumulator
    """
    t = pl.program_id(1)
    row0 = t * TH
    C = x_ref.shape[-1]

    first = True
    for dy in range(3):                         # static 9-tap loop, unrolled
        for dx in range(3):
            win = x_ref[pl.ds(row0 + dy, TH), pl.ds(dx, W), :]          # (TH, W, C) bf16
            part = jnp.dot(win.reshape(TH * W, C), w_ref[dy * 3 + dx],
                           preferred_element_type=jnp.float32)
            if first:
                acc_ref[...] = part
                first = False
            else:
                acc_ref[...] += part
    o_ref[...] = (acc_ref[...] + b_ref[...]).astype(o_ref.dtype)


def conv3x3_head_pallas(feat_nhwc, w_k_bf16, b_row_f32, *, tile_pixels=1024):
    """3x3 (pad=1) conv head as Pallas MXU dots.  feat: (N,H,W,C) f32 -> (N,H*W,Cpad) bf16."""
    N, H, W, C = feat_nhwc.shape
    Cpad = w_k_bf16.shape[-1]
    assert W % 8 == 0 and C % 128 == 0 and Cpad % 128 == 0

    # Only the raw padded map goes to HBM (bf16): no im2col / column-shift expansion.
    xp = jnp.pad(feat_nhwc.astype(jnp.bfloat16), ((0, 0), (1, 1), (1, 1), (0, 0)))

    # largest row-tile that divides H with at most ~tile_pixels output rows per matmul
    TH = 1
    for cand in range(min(H, max(1, tile_pixels // W)), 0, -1):
        if H % cand == 0:
            TH = cand
            break
    T = H // TH

    kernel = functools.partial(_head_kernel, TH, W)
    out = pl.pallas_call(
        kernel,
        out_shape=jax.ShapeDtypeStruct((N, H * W, Cpad), jnp.bfloat16),
        grid=(N, T),
        in_specs=[
            # whole padded map per image, resident across row tiles (index const along t)
            pl.BlockSpec((None, H + 2, W + 2, C), lambda n, t: (n, 0, 0, 0)),
            # weights / bias are grid-invariant (one small resident copy)
            pl.BlockSpec((9, C, Cpad), lambda n, t: (0, 0, 0)),
            pl.BlockSpec((1, Cpad), lambda n, t: (0, 0)),
        ],
        out_specs=pl.BlockSpec((None, TH * W, Cpad), lambda n, t: (n, t, 0)),
        scratch_shapes=[pltpu.VMEM((TH * W, Cpad), jnp.float32)],
        compiler_params=pltpu.CompilerParams(
            # batch parallel only: keeps the per-image input block resident on one core
            # under megacore sharding (v7x); row-tile axis is sequential.
            dimension_semantics=("parallel", "arbitrary"),
            vmem_limit_bytes=24 * 1024 * 1024,
        ),
    )(xp, w_k_bf16, b_row_f32)
    return out


# ----------------------------------------------------------------------------- glue
def standin_fpn_features(x_nchw, proj_params, fm_sizes):
    # TODO(synk): FPN50 (ResNet-50 backbone + feature pyramid) is not part of the provided
    # source; replaced by a deterministic avg-pool + 1x1-conv + ReLU pyramid with the same
    # interface (one 256-channel NHWC map per level).  Runs under XLA; the module's own
    # layers (the 3x3 loc/cls heads) run in the Pallas kernel above.
    N, C, H, W = x_nchw.shape
    x_nhwc = jnp.transpose(x_nchw, (0, 2, 3, 1))
    feats = []
    for (h, w), (pw, pb) in zip(fm_sizes, proj_params):
        fh, fw = H // h, W // w
        pooled = x_nhwc.reshape(N, h, fh, w, fw, C).mean(axis=(2, 4))   # (N, h, w, C)
        proj = jax.nn.relu(jnp.einsum("nhwc,cf->nhwf", pooled, pw) + pb)
        feats.append(proj)                                              # (N, h, w, 256)
    return feats


def _fuse_head_weights(loc_w, loc_b, cls_w, cls_b):
    """HWIO loc/cls weights -> fused HWIO weight (3,3,256,Cout) and bias (Cout,)."""
    w_fused = jnp.concatenate([loc_w, cls_w], axis=-1)
    b_fused = jnp.concatenate([loc_b, cls_b])
    return w_fused, b_fused


def _pack_head_weights(w_fused, b_fused, c_out, c_pad):
    """Pad out-channels to lane width and flatten taps: (9, C, Cpad) bf16, (1, Cpad) f32."""
    w_k = jnp.pad(w_fused, ((0, 0), (0, 0), (0, 0), (0, c_pad - c_out)))
    w_k = w_k.reshape(9, FEAT_CH, c_pad).astype(jnp.bfloat16)
    b_k = jnp.pad(b_fused, (0, c_pad - c_out)).reshape(1, c_pad).astype(jnp.float32)
    return w_k, b_k


def fpnssd512_forward(x_nchw, params, num_classes, fm_sizes):
    N = x_nchw.shape[0]
    feats = standin_fpn_features(x_nchw, params["proj"], fm_sizes)
    loc_preds, cls_preds = [], []
    for i, feat in enumerate(feats):
        h, w = fm_sizes[i]
        A = NUM_ANCHORS[i]
        c_loc, c_cls = A * 4, A * num_classes
        c_out = c_loc + c_cls
        w_fused, b_fused = _fuse_head_weights(
            params["loc_w"][i], params["loc_b"][i], params["cls_w"][i], params["cls_b"][i])

        if h * w >= 256 and w % 8 == 0:
            # Pallas path (real FPNSSD512 levels 64/32/16 take this branch)
            c_pad = _round_up(c_out, 128)                   # minimal lane-dense padding
            w_k, b_k = _pack_head_weights(w_fused, b_fused, c_out, c_pad)
            out = conv3x3_head_pallas(feat, w_k, b_k)       # (N, h*w, c_pad) bf16
        else:
            # small pyramid levels: plain XLA conv, launch overhead would dominate Pallas
            y = lax.conv_general_dilated(
                feat, w_fused, window_strides=(1, 1), padding="SAME",
                dimension_numbers=("NHWC", "HWIO", "NHWC")) + b_fused
            out = y.reshape(N, h * w, c_out)

        # matches: conv -> permute(0,2,3,1) -> view(N, -1, 4 / num_classes)
        # slice loc/cls directly from the (possibly padded) slab; cast back to f32 here.
        loc_preds.append(
            out[:, :, :c_loc].astype(jnp.float32).reshape(N, h * w * A, 4))
        cls_preds.append(
            out[:, :, c_loc:c_out].astype(jnp.float32).reshape(N, h * w * A, num_classes))
    return jnp.concatenate(loc_preds, axis=1), jnp.concatenate(cls_preds, axis=1)


# ----------------------------------------------------------------------------- params
def init_params(key, num_classes, in_ch=3):
    n = len(NUM_ANCHORS)
    keys = jax.random.split(key, 3 * n)
    params = {"proj": [], "loc_w": [], "loc_b": [], "cls_w": [], "cls_b": []}
    for i in range(n):
        A = NUM_ANCHORS[i]
        pw = 0.1 * jax.random.normal(keys[3 * i + 0], (in_ch, FEAT_CH), jnp.float32)
        pb = jnp.zeros((FEAT_CH,), jnp.float32)
        lw = 0.05 * jax.random.normal(keys[3 * i + 1], (3, 3, FEAT_CH, A * 4), jnp.float32)
        lb = jnp.zeros((A * 4,), jnp.float32)
        cw = 0.05 * jax.random.normal(
            keys[3 * i + 2], (3, 3, FEAT_CH, A * num_classes), jnp.float32)
        cb = jnp.zeros((A * num_classes,), jnp.float32)
        params["proj"].append((pw, pb))
        params["loc_w"].append(lw)
        params["loc_b"].append(lb)
        params["cls_w"].append(cw)
        params["cls_b"].append(cb)
    return params


# ----------------------------------------------------------------------------- main
if __name__ == "__main__":
    num_classes = 6
    img = 128   # small analogue of the 512x512 input (level 0 -> 16x16, takes Pallas path)
    # small analogue of fm_sizes=(64,32,16,8,4,2,1): stride-8 level then /2 per level, floor 1
    fm_sizes = [(max(img // (8 * 2 ** i), 1),) * 2 for i in range(len(NUM_ANCHORS))]

    key = jax.random.PRNGKey(0)
    kx, kp = jax.random.split(key)
    x = jax.random.normal(kx, (2, 3, img, img), jnp.float32)
    params = init_params(kp, num_classes)

    fwd = jax.jit(lambda inp: fpnssd512_forward(inp, params, num_classes, fm_sizes))
    loc_preds, cls_preds = fwd(x)
    jax.block_until_ready((loc_preds, cls_preds))

    total_anchors = sum(h * w * a for (h, w), a in zip(fm_sizes, NUM_ANCHORS))
    assert loc_preds.shape == (2, total_anchors, 4), loc_preds.shape
    assert cls_preds.shape == (2, total_anchors, num_classes), cls_preds.shape

    # spot-check the fused Pallas head (level 0) against an XLA conv reference computed on
    # the same bf16-rounded inputs (kernel uses bf16 operands, f32 accumulation, bf16 store)
    feat0 = standin_fpn_features(x, params["proj"], fm_sizes)[0]          # (2, 16, 16, 256)
    A0 = NUM_ANCHORS[0]
    c_out0 = A0 * 4 + A0 * num_classes
    w_f, b_f = _fuse_head_weights(
        params["loc_w"][0], params["loc_b"][0], params["cls_w"][0], params["cls_b"][0])
    c_pad0 = _round_up(c_out0, 128)
    w_k0, b_k0 = _pack_head_weights(w_f, b_f, c_out0, c_pad0)
    got = conv3x3_head_pallas(feat0, w_k0, b_k0)[:, :, :c_out0].astype(jnp.float32)

    feat0_bf = feat0.astype(jnp.bfloat16).astype(jnp.float32)
    w_f_bf = w_f.astype(jnp.bfloat16).astype(jnp.float32)
    ref = lax.conv_general_dilated(
        feat0_bf, w_f_bf, window_strides=(1, 1), padding="SAME",
        dimension_numbers=("NHWC", "HWIO", "NHWC")) + b_f
    h0, w0 = fm_sizes[0]
    assert jnp.allclose(got.reshape(2, h0, w0, c_out0), ref, atol=3e-2, rtol=3e-2)

    print("KERNEL_OK")
</pallas_src>

<mosaic_0001>
module attributes {stable_mosaic.version = 11 : i64} {
  func.func @_head_kernel(%arg0: i32, %arg1: i32, %arg2: memref<1x18x18x256xbf16, #tpu.memory_space<vmem>>, %arg3: memref<9x256x128xbf16, #tpu.memory_space<vmem>>, %arg4: memref<1x128xf32, #tpu.memory_space<vmem>>, %arg5: memref<1x256x128xbf16, #tpu.memory_space<vmem>>, %arg6: memref<256x128xf32, #tpu.memory_space<vmem>>) attributes {dimension_semantics = [#tpu.dimension_semantics<parallel>, #tpu.dimension_semantics<arbitrary>], iteration_bounds = array<i64: 2, 1>, scalar_prefetch = 0 : i64, scratch_operands = 1 : i64, tpu.core_type = #tpu.core_type<tc>, window_params = [{transform_indices = @transform_0, window_bounds = array<i64: 1, 18, 18, 256>}, {pipeline_mode = #tpu.pipeline_mode<synchronous>, transform_indices = @transform_1, window_bounds = array<i64: 9, 256, 128>}, {pipeline_mode = #tpu.pipeline_mode<synchronous>, transform_indices = @transform_2, window_bounds = array<i64: 1, 128>}, {transform_indices = @transform_3, window_bounds = array<i64: 1, 256, 128>}]} {
    %c16_i32 = arith.constant 16 : i32
    %0 = arith.muli %arg1, %c16_i32 : i32
    %c0_i32 = arith.constant 0 : i32
    %1 = arith.addi %0, %c0_i32 : i32
    %c0 = arith.constant 0 : index
    %2 = arith.index_cast %1 : i32 to index
    %c0_0 = arith.constant 0 : index
    %c0_1 = arith.constant 0 : index
    %3 = vector.load %arg2[%c0, %2, %c0_0, %c0_1] : memref<1x18x18x256xbf16, #tpu.memory_space<vmem>>, vector<1x16x16x256xbf16>
    %4 = vector.shape_cast %3 : vector<1x16x16x256xbf16> to vector<16x16x256xbf16>
    %5 = vector.shape_cast %4 : vector<16x16x256xbf16> to vector<256x256xbf16>
    %c0_2 = arith.constant 0 : index
    %c0_3 = arith.constant 0 : index
    %c0_4 = arith.constant 0 : index
    %6 = vector.load %arg3[%c0_2, %c0_3, %c0_4] : memref<9x256x128xbf16, #tpu.memory_space<vmem>>, vector<1x256x128xbf16>
    %7 = vector.shape_cast %6 : vector<1x256x128xbf16> to vector<256x128xbf16>
    %cst = arith.constant dense<0.000000e+00> : vector<256x128xf32>
    %8 = tpu.matmul %5, %7, %cst {dimension_numbers = #tpu.dot_dimension_numbers<[1], [0], [0], [1], [0, 0, 1, 1], [], []>} : vector<256x256xbf16>, vector<256x128xbf16>, vector<256x128xf32> -> vector<256x128xf32>
    %c0_5 = arith.constant 0 : index
    %c0_6 = arith.constant 0 : index
    %9 = vector.load %arg6[%c0_5, %c0_6] : memref<256x128xf32, #tpu.memory_space<vmem>>, vector<256x128xf32>
    tpu.vector_store %arg6[%c0_5, %c0_6], %8 {strides = array<i32>} : memref<256x128xf32, #tpu.memory_space<vmem>>, vector<256x128xf32>,
    %c0_i32_7 = arith.constant 0 : i32
    %10 = arith.addi %0, %c0_i32_7 : i32
    %c0_8 = arith.constant 0 : index
    %11 = arith.index_cast %10 : i32 to index
    %c1 = arith.constant 1 : index
    %c0_9 = arith.constant 0 : index
    %12 = vector.load %arg2[%c0_8, %11, %c1, %c0_9] : memref<1x18x18x256xbf16, #tpu.memory_space<vmem>>, vector<1x16x16x256xbf16>
    %13 = vector.shape_cast %12 : vector<1x16x16x256xbf16> to vector<16x16x256xbf16>
    %14 = vector.shape_cast %13 : vector<16x16x256xbf16> to vector<256x256xbf16>
    %c1_10 = arith.constant 1 : index
    %c0_11 = arith.constant 0 : index
    %c0_12 = arith.constant 0 : index
    %15 = vector.load %arg3[%c1_10, %c0_11, %c0_12] : memref<9x256x128xbf16, #tpu.memory_space<vmem>>, vector<1x256x128xbf16>
    %16 = vector.shape_cast %15 : vector<1x256x128xbf16> to vector<256x128xbf16>
    %cst_13 = arith.constant dense<0.000000e+00> : vector<256x128xf32>
    %17 = tpu.matmul %14, %16, %cst_13 {dimension_numbers = #tpu.dot_dimension_numbers<[1], [0], [0], [1], [0, 0, 1, 1], [], []>} : vector<256x256xbf16>, vector<256x128xbf16>, vector<256x128xf32> -> vector<256x128xf32>
    %c0_14 = arith.constant 0 : index
    %c0_15 = arith.constant 0 : index
    %18 = vector.load %arg6[%c0_14, %c0_15] : memref<256x128xf32, #tpu.memory_space<vmem>>, vector<256x128xf32>
    %19 = arith.addf %18, %17 : vector<256x128xf32>
    %c0_16 = arith.constant 0 : index
    %c0_17 = arith.constant 0 : index
    %20 = vector.load %arg6[%c0_16, %c0_17] : memref<256x128xf32, #tpu.memory_space<vmem>>, vector<256x128xf32>
    tpu.vector_store %arg6[%c0_16, %c0_17], %19 {strides = array<i32>} : memref<256x128xf32, #tpu.memory_space<vmem>>, vector<256x128xf32>,
    %c0_i32_18 = arith.constant 0 : i32
    %21 = arith.addi %0, %c0_i32_18 : i32
    %c0_19 = arith.constant 0 : index
    %22 = arith.index_cast %21 : i32 to index
    %c2 = arith.constant 2 : index
    %c0_20 = arith.constant 0 : index
    %23 = vector.load %arg2[%c0_19, %22, %c2, %c0_20] : memref<1x18x18x256xbf16, #tpu.memory_space<vmem>>, vector<1x16x16x256xbf16>
    %24 = vector.shape_cast %23 : vector<1x16x16x256xbf16> to vector<16x16x256xbf16>
    %25 = vector.shape_cast %24 : vector<16x16x256xbf16> to vector<256x256xbf16>
    %c2_21 = arith.constant 2 : index
    %c0_22 = arith.constant 0 : index
    %c0_23 = arith.constant 0 : index
    %26 = vector.load %arg3[%c2_21, %c0_22, %c0_23] : memref<9x256x128xbf16, #tpu.memory_space<vmem>>, vector<1x256x128xbf16>
    %27 = vector.shape_cast %26 : vector<1x256x128xbf16> to vector<256x128xbf16>
    %cst_24 = arith.constant dense<0.000000e+00> : vector<256x128xf32>
    %28 = tpu.matmul %25, %27, %cst_24 {dimension_numbers = #tpu.dot_dimension_numbers<[1], [0], [0], [1], [0, 0, 1, 1], [], []>} : vector<256x256xbf16>, vector<256x128xbf16>, vector<256x128xf32> -> vector<256x128xf32>
    %c0_25 = arith.constant 0 : index
    %c0_26 = arith.constant 0 : index
    %29 = vector.load %arg6[%c0_25, %c0_26] : memref<256x128xf32, #tpu.memory_space<vmem>>, vector<256x128xf32>
    %30 = arith.addf %29, %28 : vector<256x128xf32>
    %c0_27 = arith.constant 0 : index
    %c0_28 = arith.constant 0 : index
    %31 = vector.load %arg6[%c0_27, %c0_28] : memref<256x128xf32, #tpu.memory_space<vmem>>, vector<256x128xf32>
    tpu.vector_store %arg6[%c0_27, %c0_28], %30 {strides = array<i32>} : memref<256x128xf32, #tpu.memory_space<vmem>>, vector<256x128xf32>,
    %c1_i32 = arith.constant 1 : i32
    %32 = arith.addi %0, %c1_i32 : i32
    %c0_29 = arith.constant 0 : index
    %33 = arith.index_cast %32 : i32 to index
    %c0_30 = arith.constant 0 : index
    %c0_31 = arith.constant 0 : index
    %34 = vector.load %arg2[%c0_29, %33, %c0_30, %c0_31] : memref<1x18x18x256xbf16, #tpu.memory_space<vmem>>, vector<1x16x16x256xbf16>
    %35 = vector.shape_cast %34 : vector<1x16x16x256xbf16> to vector<16x16x256xbf16>
    %36 = vector.shape_cast %35 : vector<16x16x256xbf16> to vector<256x256xbf16>
    %c3 = arith.constant 3 : index
    %c0_32 = arith.constant 0 : index
    %c0_33 = arith.constant 0 : index
    %37 = vector.load %arg3[%c3, %c0_32, %c0_33] : memref<9x256x128xbf16, #tpu.memory_space<vmem>>, vector<1x256x128xbf16>
    %38 = vector.shape_cast %37 : vector<1x256x128xbf16> to vector<256x128xbf16>
    %cst_34 = arith.constant dense<0.000000e+00> : vector<256x128xf32>
    %39 = tpu.matmul %36, %38, %cst_34 {dimension_numbers = #tpu.dot_dimension_numbers<[1], [0], [0], [1], [0, 0, 1, 1], [], []>} : vector<256x256xbf16>, vector<256x128xbf16>, vector<256x128xf32> -> vector<256x128xf32>
    %c0_35 = arith.constant 0 : index
    %c0_36 = arith.constant 0 : index
    %40 = vector.load %arg6[%c0_35, %c0_36] : memref<256x128xf32, #tpu.memory_space<vmem>>, vector<256x128xf32>
    %41 = arith.addf %40, %39 : vector<256x128xf32>
    %c0_37 = arith.constant 0 : index
    %c0_38 = arith.constant 0 : index
    %42 = vector.load %arg6[%c0_37, %c0_38] : memref<256x128xf32, #tpu.memory_space<vmem>>, vector<256x128xf32>
    tpu.vector_store %arg6[%c0_37, %c0_38], %41 {strides = array<i32>} : memref<256x128xf32, #tpu.memory_space<vmem>>, vector<256x128xf32>,
    %c1_i32_39 = arith.constant 1 : i32
    %43 = arith.addi %0, %c1_i32_39 : i32
    %c0_40 = arith.constant 0 : index
    %44 = arith.index_cast %43 : i32 to index
    %c1_41 = arith.constant 1 : index
    %c0_42 = arith.constant 0 : index
    %45 = vector.load %arg2[%c0_40, %44, %c1_41, %c0_42] : memref<1x18x18x256xbf16, #tpu.memory_space<vmem>>, vector<1x16x16x256xbf16>
    %46 = vector.shape_cast %45 : vector<1x16x16x256xbf16> to vector<16x16x256xbf16>
    %47 = vector.shape_cast %46 : vector<16x16x256xbf16> to vector<256x256xbf16>
    %c4 = arith.constant 4 : index
    %c0_43 = arith.constant 0 : index
    %c0_44 = arith.constant 0 : index
    %48 = vector.load %arg3[%c4, %c0_43, %c0_44] : memref<9x256x128xbf16, #tpu.memory_space<vmem>>, vector<1x256x128xbf16>
    %49 = vector.shape_cast %48 : vector<1x256x128xbf16> to vector<256x128xbf16>
    %cst_45 = arith.constant dense<0.000000e+00> : vector<256x128xf32>
    %50 = tpu.matmul %47, %49, %cst_45 {dimension_numbers = #tpu.dot_dimension_numbers<[1], [0], [0], [1], [0, 0, 1, 1], [], []>} : vector<256x256xbf16>, vector<256x128xbf16>, vector<256x128xf32> -> vector<256x128xf32>
    %c0_46 = arith.constant 0 : index
    %c0_47 = arith.constant 0 : index
    %51 = vector.load %arg6[%c0_46, %c0_47] : memref<256x128xf32, #tpu.memory_space<vmem>>, vector<256x128xf32>
    %52 = arith.addf %51, %50 : vector<256x128xf32>
    %c0_48 = arith.constant 0 : index
    %c0_49 = arith.constant 0 : index
    %53 = vector.load %arg6[%c0_48, %c0_49] : memref<256x128xf32, #tpu.memory_space<vmem>>, vector<256x128xf32>
    tpu.vector_store %arg6[%c0_48, %c0_49], %52 {strides = array<i32>} : memref<256x128xf32, #tpu.memory_space<vmem>>, vector<256x128xf32>,
    %c1_i32_50 = arith.constant 1 : i32
    %54 = arith.addi %0, %c1_i32_50 : i32
    %c0_51 = arith.constant 0 : index
    %55 = arith.index_cast %54 : i32 to index
    %c2_52 = arith.constant 2 : index
    %c0_53 = arith.constant 0 : index
    %56 = vector.load %arg2[%c0_51, %55, %c2_52, %c0_53] : memref<1x18x18x256xbf16, #tpu.memory_space<vmem>>, vector<1x16x16x256xbf16>
    %57 = vector.shape_cast %56 : vector<1x16x16x256xbf16> to vector<16x16x256xbf16>
    %58 = vector.shape_cast %57 : vector<16x16x256xbf16> to vector<256x256xbf16>
    %c5 = arith.constant 5 : index
    %c0_54 = arith.constant 0 : index
    %c0_55 = arith.constant 0 : index
    %59 = vector.load %arg3[%c5, %c0_54, %c0_55] : memref<9x256x128xbf16, #tpu.memory_space<vmem>>, vector<1x256x128xbf16>
    %60 = vector.shape_cast %59 : vector<1x256x128xbf16> to vector<256x128xbf16>
    %cst_56 = arith.constant dense<0.000000e+00> : vector<256x128xf32>
    %61 = tpu.matmul %58, %60, %cst_56 {dimension_numbers = #tpu.dot_dimension_numbers<[1], [0], [0], [1], [0, 0, 1, 1], [], []>} : vector<256x256xbf16>, vector<256x128xbf16>, vector<256x128xf32> -> vector<256x128xf32>
    %c0_57 = arith.constant 0 : index
    %c0_58 = arith.constant 0 : index
    %62 = vector.load %arg6[%c0_57, %c0_58] : memref<256x128xf32, #tpu.memory_space<vmem>>, vector<256x128xf32>
    %63 = arith.addf %62, %61 : vector<256x128xf32>
    %c0_59 = arith.constant 0 : index
    %c0_60 = arith.constant 0 : index
    %64 = vector.load %arg6[%c0_59, %c0_60] : memref<256x128xf32, #tpu.memory_space<vmem>>, vector<256x128xf32>
    tpu.vector_store %arg6[%c0_59, %c0_60], %63 {strides = array<i32>} : memref<256x128xf32, #tpu.memory_space<vmem>>, vector<256x128xf32>,
    %c2_i32 = arith.constant 2 : i32
    %65 = arith.addi %0, %c2_i32 : i32
    %c0_61 = arith.constant 0 : index
    %66 = arith.index_cast %65 : i32 to index
    %c0_62 = arith.constant 0 : index
    %c0_63 = arith.constant 0 : index
    %67 = vector.load %arg2[%c0_61, %66, %c0_62, %c0_63] : memref<1x18x18x256xbf16, #tpu.memory_space<vmem>>, vector<1x16x16x256xbf16>
    %68 = vector.shape_cast %67 : vector<1x16x16x256xbf16> to vector<16x16x256xbf16>
    %69 = vector.shape_cast %68 : vector<16x16x256xbf16> to vector<256x256xbf16>
    %c6 = arith.constant 6 : index
    %c0_64 = arith.constant 0 : index
    %c0_65 = arith.constant 0 : index
    %70 = vector.load %arg3[%c6, %c0_64, %c0_65] : memref<9x256x128xbf16, #tpu.memory_space<vmem>>, vector<1x256x128xbf16>
    %71 = vector.shape_cast %70 : vector<1x256x128xbf16> to vector<256x128xbf16>
    %cst_66 = arith.constant dense<0.000000e+00> : vector<256x128xf32>
    %72 = tpu.matmul %69, %71, %cst_66 {dimension_numbers = #tpu.dot_dimension_numbers<[1], [0], [0], [1], [0, 0, 1, 1], [], []>} : vector<256x256xbf16>, vector<256x128xbf16>, vector<256x128xf32> -> vector<256x128xf32>
    %c0_67 = arith.constant 0 : index
    %c0_68 = arith.constant 0 : index
    %73 = vector.load %arg6[%c0_67, %c0_68] : memref<256x128xf32, #tpu.memory_space<vmem>>, vector<256x128xf32>
    %74 = arith.addf %73, %72 : vector<256x128xf32>
    %c0_69 = arith.constant 0 : index
    %c0_70 = arith.constant 0 : index
    %75 = vector.load %arg6[%c0_69, %c0_70] : memref<256x128xf32, #tpu.memory_space<vmem>>, vector<256x128xf32>
    tpu.vector_store %arg6[%c0_69, %c0_70], %74 {strides = array<i32>} : memref<256x128xf32, #tpu.memory_space<vmem>>, vector<256x128xf32>,
    %c2_i32_71 = arith.constant 2 : i32
    %76 = arith.addi %0, %c2_i32_71 : i32
    %c0_72 = arith.constant 0 : index
    %77 = arith.index_cast %76 : i32 to index
    %c1_73 = arith.constant 1 : index
    %c0_74 = arith.constant 0 : index
    %78 = vector.load %arg2[%c0_72, %77, %c1_73, %c0_74] : memref<1x18x18x256xbf16, #tpu.memory_space<vmem>>, vector<1x16x16x256xbf16>
    %79 = vector.shape_cast %78 : vector<1x16x16x256xbf16> to vector<16x16x256xbf16>
    %80 = vector.shape_cast %79 : vector<16x16x256xbf16> to vector<256x256xbf16>
    %c7 = arith.constant 7 : index
    %c0_75 = arith.constant 0 : index
    %c0_76 = arith.constant 0 : index
    %81 = vector.load %arg3[%c7, %c0_75, %c0_76] : memref<9x256x128xbf16, #tpu.memory_space<vmem>>, vector<1x256x128xbf16>
    %82 = vector.shape_cast %81 : vector<1x256x128xbf16> to vector<256x128xbf16>
    %cst_77 = arith.constant dense<0.000000e+00> : vector<256x128xf32>
    %83 = tpu.matmul %80, %82, %cst_77 {dimension_numbers = #tpu.dot_dimension_numbers<[1], [0], [0], [1], [0, 0, 1, 1], [], []>} : vector<256x256xbf16>, vector<256x128xbf16>, vector<256x128xf32> -> vector<256x128xf32>
    %c0_78 = arith.constant 0 : index
    %c0_79 = arith.constant 0 : index
    %84 = vector.load %arg6[%c0_78, %c0_79] : memref<256x128xf32, #tpu.memory_space<vmem>>, vector<256x128xf32>
    %85 = arith.addf %84, %83 : vector<256x128xf32>
    %c0_80 = arith.constant 0 : index
    %c0_81 = arith.constant 0 : index
    %86 = vector.load %arg6[%c0_80, %c0_81] : memref<256x128xf32, #tpu.memory_space<vmem>>, vector<256x128xf32>
    tpu.vector_store %arg6[%c0_80, %c0_81], %85 {strides = array<i32>} : memref<256x128xf32, #tpu.memory_space<vmem>>, vector<256x128xf32>,
    %c2_i32_82 = arith.constant 2 : i32
    %87 = arith.addi %0, %c2_i32_82 : i32
    %c0_83 = arith.constant 0 : index
    %88 = arith.index_cast %87 : i32 to index
    %c2_84 = arith.constant 2 : index
    %c0_85 = arith.constant 0 : index
    %89 = vector.load %arg2[%c0_83, %88, %c2_84, %c0_85] : memref<1x18x18x256xbf16, #tpu.memory_space<vmem>>, vector<1x16x16x256xbf16>
    %90 = vector.shape_cast %89 : vector<1x16x16x256xbf16> to vector<16x16x256xbf16>
    %91 = vector.shape_cast %90 : vector<16x16x256xbf16> to vector<256x256xbf16>
    %c8 = arith.constant 8 : index
    %c0_86 = arith.constant 0 : index
    %c0_87 = arith.constant 0 : index
    %92 = vector.load %arg3[%c8, %c0_86, %c0_87] : memref<9x256x128xbf16, #tpu.memory_space<vmem>>, vector<1x256x128xbf16>
    %93 = vector.shape_cast %92 : vector<1x256x128xbf16> to vector<256x128xbf16>
    %cst_88 = arith.constant dense<0.000000e+00> : vector<256x128xf32>
    %94 = tpu.matmul %91, %93, %cst_88 {dimension_numbers = #tpu.dot_dimension_numbers<[1], [0], [0], [1], [0, 0, 1, 1], [], []>} : vector<256x256xbf16>, vector<256x128xbf16>, vector<256x128xf32> -> vector<256x128xf32>
    %c0_89 = arith.constant 0 : index
    %c0_90 = arith.constant 0 : index
    %95 = vector.load %arg6[%c0_89, %c0_90] : memref<256x128xf32, #tpu.memory_space<vmem>>, vector<256x128xf32>
    %96 = arith.addf %95, %94 : vector<256x128xf32>
    %c0_91 = arith.constant 0 : index
    %c0_92 = arith.constant 0 : index
    %97 = vector.load %arg6[%c0_91, %c0_92] : memref<256x128xf32, #tpu.memory_space<vmem>>, vector<256x128xf32>
    tpu.vector_store %arg6[%c0_91, %c0_92], %96 {strides = array<i32>} : memref<256x128xf32, #tpu.memory_space<vmem>>, vector<256x128xf32>,
    %c0_93 = arith.constant 0 : index
    %c0_94 = arith.constant 0 : index
    %98 = vector.load %arg6[%c0_93, %c0_94] : memref<256x128xf32, #tpu.memory_space<vmem>>, vector<256x128xf32>
    %c0_95 = arith.constant 0 : index
    %c0_96 = arith.constant 0 : index
    %99 = vector.load %arg4[%c0_95, %c0_96] : memref<1x128xf32, #tpu.memory_space<vmem>>, vector<1x128xf32>
    %100 = vector.broadcast %99 : vector<1x128xf32> to vector<256x128xf32>
    %101 = arith.addf %98, %100 : vector<256x128xf32>
    %102 = arith.truncf %101 : vector<256x128xf32> to vector<256x128xbf16>
    %c0_97 = arith.constant 0 : index
    %c0_98 = arith.constant 0 : index
    %c0_99 = arith.constant 0 : index
    %103 = vector.load %arg5[%c0_97, %c0_98, %c0_99] : memref<1x256x128xbf16, #tpu.memory_space<vmem>>, vector<1x256x128xbf16>
    %104 = vector.shape_cast %103 : vector<1x256x128xbf16> to vector<256x128xbf16>
    %105 = vector.shape_cast %102 : vector<256x128xbf16> to vector<1x256x128xbf16>
    tpu.vector_store %arg5[%c0_97, %c0_98, %c0_99], %105 {strides = array<i32>} : memref<1x256x128xbf16, #tpu.memory_space<vmem>>, vector<1x256x128xbf16>,
    return
  }
  func.func @transform_0(%arg0: i32, %arg1: i32) -> (i32, i32, i32, i32) {
    %c0_i32 = arith.constant 0 : i32
    %c0_i32_0 = arith.constant 0 : i32
    %c0_i32_1 = arith.constant 0 : i32
    %c0_i32_2 = arith.constant 0 : i32
    return %arg0, %c0_i32, %c0_i32_0, %c0_i32_1 : i32, i32, i32, i32
  }
  func.func @transform_1(%arg0: i32, %arg1: i32) -> (i32, i32, i32) {
    %c0_i32 = arith.constant 0 : i32
    %c0_i32_0 = arith.constant 0 : i32
    %c0_i32_1 = arith.constant 0 : i32
    %c0_i32_2 = arith.constant 0 : i32
    return %c0_i32, %c0_i32_0, %c0_i32_1 : i32, i32, i32
  }
  func.func @transform_2(%arg0: i32, %arg1: i32) -> (i32, i32) {
    %c0_i32 = arith.constant 0 : i32
    %c0_i32_0 = arith.constant 0 : i32
    %c0_i32_1 = arith.constant 0 : i32
    return %c0_i32, %c0_i32_0 : i32, i32
  }
  func.func @transform_3(%arg0: i32, %arg1: i32) -> (i32, i32, i32) {
    %c0_i32 = arith.constant 0 : i32
    %c0_i32_0 = arith.constant 0 : i32
    return %arg0, %arg1, %c0_i32 : i32, i32, i32
  }
}

</mosaic_0001>

<llo_original>
// kernel: _lambda_.1
$region0: #{_lambda_.1}
  #allocation0 [shape = 'u32[]', space=smem, size = 0x4, offset = 0x4, fixed_abs, tag = 'smem constant byte address 0x4 - core index']
  #allocation1 [shape = 'u32[144,128]{1,0:T(1,128)}', space=vmem, size = 0x12000, scoped, tag = 'internal scratch']
  #allocation2 [shape = 'f32[256,128]{1,0:T(8,128)}', space=vmem, size = 0x20000, scoped, tag = 'scratch operand']
  %s0 = inlined_call_operand.vmem [shape: bf16[2,18,18,256], index: 0, kind: input, shape index: {}]
  %s1 = inlined_call_operand.vmem [shape: bf16[9,256,128], index: 1, kind: input, shape index: {}]
  %s2 = inlined_call_operand.vmem [shape: f32[1,128], index: 2, kind: input, shape index: {}]
  %s3 = inlined_call_operand.vmem [shape: bf16[2,256,128], index: 3, kind: output, shape index: {}]
  %s4 = sld [smem:[#allocation0]]
  $region45: #{_lambda_.1} parent=0
    _
  %s6 = ssub.s32 1, %s4
  %s7 = scalar_select 0, %s6, %s4
  loop: start=0, step=1, limit=4
  $region2: #{_lambda_.1} parent=0 // loop_pre_header
    _
  $region3: #{_lambda_.1} parent=0 // loop_header
    %s9 = sphi 0, %s13
    %p10 = scmp.ge.s32.totalorder %s9, 4
    %s16 = sphi 0, %s28
    %s17 = sphi 0, %s24
    %s18 = sphi 0, %s16
    %s19 = sphi 0, %s17
    %s20 = sphi 0, %s18
    %s21 = sphi 0, %s19
    %s31 = sphi 0, %s33
    %s34 = sphi 0, %s31
    %s35 = sphi 0, %s34
    %s51 = sphi 0, %s35
    %s55 = sphi 0, %s55
    %s57 = sphi 0, %s55
    %s58 = sphi 0, %s57
    %s72 = sphi 0, %s58
    %s76 = sphi 0, %s76
    %s78 = sphi 0, %s76
    %s79 = sphi 0, %s78
    %s93 = sphi 0, %s79
    %s101 = sphi 0, %s103
    %s104 = sphi 0, %s101
    %s105 = sphi 0, %s104
    %s121 = sphi 0, %s105
  $region4: #{_lambda_.1} parent=0 // loop_header_branch
    %12 = sbr.rel (%p10) target = $region8
  $region5: #{_lambda_.1} parent=0 // loop_body
    %s14 = ssub.s32 %s9, 1
    %s15 = ssub.s32 %s9, 2
    %s22 = sadd.s32 1, %s17
    %p23 = scmp.ge.s32.totalorder %s22, 1
    %s24 = scalar_select %p23, 0, %s22
    %s25 = sadd.s32 1, %s16
    %s26 = scalar_select %p23, %s25, %s16
    %p27 = scmp.ge.s32.totalorder %s26, 2
    %s28 = scalar_select %p27, 0, %s26
    %s29 = ssub.s32 %s16, %s28
    %p30 = scmp.eq.s32.totalorder %s29, 0
    %s32 = sadd.s32 %s31, 1
    %s33 = scalar_select %p30, %s31, %s32
    %p36 = pneg %p30
    %p37 = scmp.eq.s32.totalorder %s9, 1
    %p38 = por %p36, %p37
    %p39 = scmp.ne.s32.totalorder %s31, %s34
    %p40 = scmp.eq.s32.totalorder %s9, 0
    %p41 = por %p39, %p40
    %p42 = scmp.ne.s32.totalorder %s31, %s34
    %p43 = scmp.eq.s32.totalorder %s14, 1
    %p44 = por %p42, %p43
    %p45 = scmp.ne.s32.totalorder %s34, %s35
    %p46 = scmp.eq.s32.totalorder %s14, 0
    %p47 = por %p45, %p46
    %p48 = scmp.ne.s32.totalorder %s34, %s35
    %p49 = scmp.eq.s32.totalorder %s15, 1
    %p50 = por %p48, %p49
    %p52 = scmp.ne.s32.totalorder %s35, %s51
    %p53 = scmp.eq.s32.totalorder %s15, 0
    %p54 = por %p52, %p53
    %s56 = sadd.s32 %s55, 1
    %p59 = scmp.eq.s32.totalorder %s9, 1
    %p60 = scmp.ne.s32.totalorder %s55, %s57
    %p61 = scmp.eq.s32.totalorder %s9, 0
    %p62 = por %p60, %p61
    %p63 = scmp.ne.s32.totalorder %s55, %s57
    %p64 = scmp.eq.s32.totalorder %s14, 1
    %p65 = por %p63, %p64
    %p66 = scmp.ne.s32.totalorder %s57, %s58
    %p67 = scmp.eq.s32.totalorder %s14, 0
    %p68 = por %p66, %p67
    %p69 = scmp.ne.s32.totalorder %s57, %s58
    %p70 = scmp.eq.s32.totalorder %s15, 1
    %p71 = por %p69, %p70
    %p73 = scmp.ne.s32.totalorder %s58, %s72
    %p74 = scmp.eq.s32.totalorder %s15, 0
    %p75 = por %p73, %p74
    %s77 = sadd.s32 %s76, 1
    %p80 = scmp.eq.s32.totalorder %s9, 1
    %p81 = scmp.ne.s32.totalorder %s76, %s78
    %p82 = scmp.eq.s32.totalorder %s9, 0
    %p83 = por %p81, %p82
    %p84 = scmp.ne.s32.totalorder %s76, %s78
    %p85 = scmp.eq.s32.totalorder %s14, 1
    %p86 = por %p84, %p85
    %p87 = scmp.ne.s32.totalorder %s78, %s79
    %p88 = scmp.eq.s32.totalorder %s14, 0
    %p89 = por %p87, %p88
    %p90 = scmp.ne.s32.totalorder %s78, %s79
    %p91 = scmp.eq.s32.totalorder %s15, 1
    %p92 = por %p90, %p91
    %p94 = scmp.ne.s32.totalorder %s79, %s93
    %p95 = scmp.eq.s32.totalorder %s15, 0
    %p96 = por %p94, %p95
    %s97 = ssub.s32 %s16, %s28
    %s98 = ssub.s32 %s17, %s24
    %s99 = sor.u32 %s97, %s98
    %p100 = scmp.eq.s32.totalorder %s99, 0
    %s102 = sadd.s32 %s101, 1
    %s103 = scalar_select %p100, %s101, %s102
    %p106 = pneg %p100
    %p107 = scmp.eq.s32.totalorder %s9, 1
    %p108 = por %p106, %p107
    %p109 = scmp.ne.s32.totalorder %s101, %s104
    %p110 = scmp.eq.s32.totalorder %s9, 0
    %p111 = por %p109, %p110
    %p112 = scmp.ne.s32.totalorder %s101, %s104
    %p113 = scmp.eq.s32.totalorder %s14, 1
    %p114 = por %p112, %p113
    %p115 = scmp.ne.s32.totalorder %s104, %s105
    %p116 = scmp.eq.s32.totalorder %s14, 0
    %p117 = por %p115, %p116
    %p118 = scmp.ne.s32.totalorder %s104, %s105
    %p119 = scmp.eq.s32.totalorder %s15, 1
    %p120 = por %p118, %p119
    %p122 = scmp.ne.s32.totalorder %s105, %s121
    %p123 = scmp.eq.s32.totalorder %s15, 0
    %p124 = por %p122, %p123
    %p125 = scmp.le.s32.totalorder 1, %s9
    %p126 = scmp.lt.s32.totalorder %s9, 3
    %p127 = pnand %p125, %p126
    %p128 = pneg %p127
    // Predicated region
    $region9: #{_lambda_.1} parent=5 // pred_check
      _
    $region10: #{_lambda_.1} parent=5 // pred_check_branch
      %130 = sbr.rel (%p127) target = $region12
    $region11: #{_lambda_.1} parent=5 // pred_region
      %s131 = ssub.s32 %s9, 1
      // Predicated region
      $region13: #{_lambda_.1} parent=11 // pred_check
        %p132 = pneg %p68
      $region14: #{_lambda_.1} parent=11 // pred_check_branch
        %134 = sbr.rel (%p132) target = $region16
      $region15: #{_lambda_.1} parent=11 // pred_region
        _
      $region16: #{_lambda_.1} parent=11 // pred_fallthru
        _
      // Predicated region
      $region17: #{_lambda_.1} parent=11 // pred_check
        %p135 = pneg %p89
      $region18: #{_lambda_.1} parent=11 // pred_check_branch
        %137 = sbr.rel (%p135) target = $region20
      $region19: #{_lambda_.1} parent=11 // pred_region
        _
      $region20: #{_lambda_.1} parent=11 // pred_fallthru
        _
    $region12: #{_lambda_.1} parent=5 // pred_fallthru
      _
    %p138 = scmp.lt.s32.totalorder %s9, 2
    // Predicated region
    $region21: #{_lambda_.1} parent=5 // pred_check
      %p139 = pneg %p138
    $region22: #{_lambda_.1} parent=5 // pred_check_branch
      %141 = sbr.rel (%p139) target = $region24
    $region23: #{_lambda_.1} parent=5 // pred_region
      // Predicated region
      $region25: #{_lambda_.1} parent=23 // pred_check
        %p142 = pneg %p41
      $region26: #{_lambda_.1} parent=23 // pred_check_branch
        %144 = sbr.rel (%p142) target = $region28
      $region27: #{_lambda_.1} parent=23 // pred_region
        %p145 = scmp.lt.s32.totalorder %s16, 1
        %s146 = scalar_select %p145, %s16, 1
        %s147 = smul.addr %s146, 108
        %s148 = smul.addr %s147, 4
        %s149 = scalar_lea.vmem %s0, %s148
      $region28: #{_lambda_.1} parent=23 // pred_fallthru
        _
    $region24: #{_lambda_.1} parent=5 // pred_fallthru
      _
    %p150 = scmp.le.s32.totalorder 1, %s9
    %p151 = scmp.lt.s32.totalorder %s9, 3
    %p152 = pnand %p150, %p151
    %p153 = pneg %p152
    // Predicated region
    $region29: #{_lambda_.1} parent=5 // pred_check
      _
    $region30: #{_lambda_.1} parent=5 // pred_check_branch
      %155 = sbr.rel (%p152) target = $region32
    $region31: #{_lambda_.1} parent=5 // pred_region
      %s156 = ssub.s32 %s9, 1
      %p157 = scmp.lt.s32.totalorder %s18, 1
      %s158 = scalar_select %p157, %s18, 1
      %s159 = smul.addr %s158, 108
      %s160 = smul.addr %s159, 4
      %s161 = scalar_lea.vmem %s0, %s160
      %p162 = pneg %p47
      %p163 = pneg %p44
      %p164 = pneg %p68
      %p165 = pneg %p65
      %p166 = pneg %p89
      %p167 = pneg %p86
      %p168 = pneg %p117
      %p169 = pneg %p114
      %s170 = smul.u32 32, %s19
      %p171 = scmp.lt.s32.totalorder %s18, 1
      %s172 = scalar_select %p171, %s18, 1
      %p173 = scmp.lt.s32.totalorder %s170, 31
      %s174 = scalar_select %p173, %s170, 31
      %s175 = smul.addr %s172, 32
      %s176 = sadd.s32 %s174, %s175
      %s177 = smul.addr %s176, 4
      %s178 = scalar_lea.vmem %s3, %s177
      %p179 = scmp.lt.s32.totalorder %s18, 1
      %s180 = scalar_select %p179, %s18, 1
      %s181 = smul.addr %s180, 108
      %s182 = smul.addr %s181, 4
      %s183 = scalar_lea.vmem %s0, %s182
      %s184 = smul.u32 32, %s19
      %p185 = scmp.lt.s32.totalorder %s18, 1
      %s186 = scalar_select %p185, %s18, 1
      %p187 = scmp.lt.s32.totalorder %s184, 31
      %s188 = scalar_select %p187, %s184, 31
      %s189 = smul.addr %s186, 32
      %s190 = sadd.s32 %s188, %s189
      %s191 = smul.addr %s190, 4
      %s192 = scalar_lea.vmem %s3, %s191
      %s193 = smul.u32 32, %s19
      %s195 = smul.u32 %s19, 16
      %s196 = smul.u32 %s195, 6
      %s197 = smul.addr %s196, 4
      %s198 = scalar_lea.vmem %s183, %s197
      %v199 = vld [vmem:[%s198] sm:$0xff]
      %v200 = vld [vmem:[%s198 + $0x8] sm:$0xff]
      %v201 = vld [vmem:[%s198 + $0x18] sm:$0xff]
      %v202 = vld [vmem:[%s198 + $0x20] sm:$0xff]
      %v203 = vld [vmem:[%s198 + $0x30] sm:$0xff]
      %v204 = vld [vmem:[%s198 + $0x38] sm:$0xff]
      %v205 = vld [vmem:[%s198 + $0x48] sm:$0xff]
      %v206 = vld [vmem:[%s198 + $0x50] sm:$0xff]
      %v207 = vld [vmem:[%s198 + $0x60] sm:$0xff]
      %v208 = vld [vmem:[%s198 + $0x68] sm:$0xff]
      %v209 = vld [vmem:[%s198 + $0x78] sm:$0xff]
      %v210 = vld [vmem:[%s198 + $0x80] sm:$0xff]
      %v211 = vld [vmem:[%s198 + $0x90] sm:$0xff]
      %v212 = vld [vmem:[%s198 + $0x98] sm:$0xff]
      %v213 = vld [vmem:[%s198 + $0xa8] sm:$0xff]
      %v214 = vld [vmem:[%s198 + $0xb0] sm:$0xff]
      %v215 = vld [vmem:[%s198 + $0xc0] sm:$0xff]
      %v216 = vld [vmem:[%s198 + $0xc8] sm:$0xff]
      %v217 = vld [vmem:[%s198 + $0xd8] sm:$0xff]
      %v218 = vld [vmem:[%s198 + $0xe0] sm:$0xff]
      %v219 = vld [vmem:[%s198 + $0xf0] sm:$0xff]
      %v220 = vld [vmem:[%s198 + $0xf8] sm:$0xff]
      %v221 = vld [vmem:[%s198 + $0x108] sm:$0xff]
      %v222 = vld [vmem:[%s198 + $0x110] sm:$0xff]
      %v223 = vld [vmem:[%s198 + $0x120] sm:$0xff]
      %v224 = vld [vmem:[%s198 + $0x128] sm:$0xff]
      %v225 = vld [vmem:[%s198 + $0x138] sm:$0xff]
      %v226 = vld [vmem:[%s198 + $0x140] sm:$0xff]
      %v227 = vld [vmem:[%s198 + $0x150] sm:$0xff]
      %v228 = vld [vmem:[%s198 + $0x158] sm:$0xff]
      %v229 = vld [vmem:[%s198 + $0x168] sm:$0xff]
      %v230 = vld [vmem:[%s198 + $0x170] sm:$0xff]
      %v231 = vld [vmem:[%s1] sm:$0xf]
      %v232 = vld [vmem:[%s1 + $0x4] sm:$0xf]
      %v233 = vld [vmem:[%s1 + $0x8] sm:$0xf]
      %v234 = vld [vmem:[%s1 + $0xc] sm:$0xf]
      %v235 = vld [vmem:[%s1 + $0x10] sm:$0xf]
      %v236 = vld [vmem:[%s1 + $0x14] sm:$0xf]
      %v237 = vld [vmem:[%s1 + $0x18] sm:$0xf]
      %v238 = vld [vmem:[%s1 + $0x1c] sm:$0xf]
      %v239 = vld [vmem:[%s1 + $0x20] sm:$0xf]
      %v240 = vld [vmem:[%s1 + $0x24] sm:$0xf]
      %v241 = vld [vmem:[%s1 + $0x28] sm:$0xf]
      %v242 = vld [vmem:[%s1 + $0x2c] sm:$0xf]
      %v243 = vld [vmem:[%s1 + $0x30] sm:$0xf]
      %v244 = vld [vmem:[%s1 + $0x34] sm:$0xf]
      %v245 = vld [vmem:[%s1 + $0x38] sm:$0xf]
      %v246 = vld [vmem:[%s1 + $0x3c] sm:$0xf]
      %v247 = vld [vmem:[%s1 + $0x40] sm:$0xf]
      %v248 = vld [vmem:[%s1 + $0x44] sm:$0xf]
      %v249 = vld [vmem:[%s1 + $0x48] sm:$0xf]
      %v250 = vld [vmem:[%s1 + $0x4c] sm:$0xf]
      %v251 = vld [vmem:[%s1 + $0x50] sm:$0xf]
      %v252 = vld [vmem:[%s1 + $0x54] sm:$0xf]
      %v253 = vld [vmem:[%s1 + $0x58] sm:$0xf]
      %v254 = vld [vmem:[%s1 + $0x5c] sm:$0xf]
      %v255 = vld [vmem:[%s1 + $0x60] sm:$0xf]
      %v256 = vld [vmem:[%s1 + $0x64] sm:$0xf]
      %v257 = vld [vmem:[%s1 + $0x68] sm:$0xf]
      %v258 = vld [vmem:[%s1 + $0x6c] sm:$0xf]
      %v259 = vld [vmem:[%s1 + $0x70] sm:$0xf]
      %v260 = vld [vmem:[%s1 + $0x74] sm:$0xf]
      %v261 = vld [vmem:[%s1 + $0x78] sm:$0xf]
      %v262 = vld [vmem:[%s1 + $0x7c] sm:$0xf]
      %v295 = vunpack.c.l.b16 %v199
      %v296 = vunpack.c.h.b16 %v199
      %v297 = vunpack.c.l.b16 %v200
      %v298 = vunpack.c.h.b16 %v200
      %v299 = vunpack.c.l.b16 %v201
      %v300 = vunpack.c.h.b16 %v201
      %v301 = vunpack.c.l.b16 %v202
      %v302 = vunpack.c.h.b16 %v202
      %v303 = vunpack.c.l.b16 %v203
      %v304 = vunpack.c.h.b16 %v203
      %v305 = vunpack.c.l.b16 %v204
      %v306 = vunpack.c.h.b16 %v204
      %v307 = vunpack.c.l.b16 %v205
      %v308 = vunpack.c.h.b16 %v205
      %v309 = vunpack.c.l.b16 %v206
      %v310 = vunpack.c.h.b16 %v206
      %v311 = vunpack.c.l.b16 %v207
      %v312 = vunpack.c.h.b16 %v207
      %v313 = vunpack.c.l.b16 %v208
      %v314 = vunpack.c.h.b16 %v208
      %v315 = vunpack.c.l.b16 %v209
      %v316 = vunpack.c.h.b16 %v209
      %v317 = vunpack.c.l.b16 %v210
      %v318 = vunpack.c.h.b16 %v210
      %v319 = vunpack.c.l.b16 %v211
      %v320 = vunpack.c.h.b16 %v211
      %v321 = vunpack.c.l.b16 %v212
      %v322 = vunpack.c.h.b16 %v212
      %v323 = vunpack.c.l.b16 %v213
      %v324 = vunpack.c.h.b16 %v213
      %v325 = vunpack.c.l.b16 %v214
      %v326 = vunpack.c.h.b16 %v214
      %v327 = vunpack.c.l.b16 %v215
      %v328 = vunpack.c.h.b16 %v215
      %v329 = vunpack.c.l.b16 %v216
      %v330 = vunpack.c.h.b16 %v216
      %v331 = vunpack.c.l.b16 %v217
      %v332 = vunpack.c.h.b16 %v217
      %v333 = vunpack.c.l.b16 %v218
      %v334 = vunpack.c.h.b16 %v218
      %v335 = vunpack.c.l.b16 %v219
      %v336 = vunpack.c.h.b16 %v219
      %v337 = vunpack.c.l.b16 %v220
      %v338 = vunpack.c.h.b16 %v220
      %v339 = vunpack.c.l.b16 %v221
      %v340 = vunpack.c.h.b16 %v221
      %v341 = vunpack.c.l.b16 %v222
      %v342 = vunpack.c.h.b16 %v222
      %v343 = vunpack.c.l.b16 %v223
      %v344 = vunpack.c.h.b16 %v223
      %v345 = vunpack.c.l.b16 %v224
      %v346 = vunpack.c.h.b16 %v224
      %v347 = vunpack.c.l.b16 %v225
      %v348 = vunpack.c.h.b16 %v225
      %v349 = vunpack.c.l.b16 %v226
      %v350 = vunpack.c.h.b16 %v226
      %v351 = vunpack.c.l.b16 %v227
      %v352 = vunpack.c.h.b16 %v227
      %v353 = vunpack.c.l.b16 %v228
      %v354 = vunpack.c.h.b16 %v228
      %v355 = vunpack.c.l.b16 %v229
      %v356 = vunpack.c.h.b16 %v229
      %v357 = vunpack.c.l.b16 %v230
      %v358 = vunpack.c.h.b16 %v230
      %v359 = vpack.c.b16 %v297, %v295
      %v360 = vpack.c.b16 %v298, %v296
      %v361 = vpack.c.b16 %v301, %v299
      %v362 = vpack.c.b16 %v302, %v300
      %v363 = vpack.c.b16 %v305, %v303
      %v364 = vpack.c.b16 %v306, %v304
      %v365 = vpack.c.b16 %v309, %v307
      %v366 = vpack.c.b16 %v310, %v308
      %v367 = vpack.c.b16 %v313, %v311
      %v368 = vpack.c.b16 %v314, %v312
      %v369 = vpack.c.b16 %v317, %v315
      %v370 = vpack.c.b16 %v318, %v316
      %v371 = vpack.c.b16 %v321, %v319
      %v372 = vpack.c.b16 %v322, %v320
      %v373 = vpack.c.b16 %v325, %v323
      %v374 = vpack.c.b16 %v326, %v324
      %v375 = vpack.c.b16 %v329, %v327
      %v376 = vpack.c.b16 %v330, %v328
      %v377 = vpack.c.b16 %v333, %v331
      %v378 = vpack.c.b16 %v334, %v332
      %v379 = vpack.c.b16 %v337, %v335
      %v380 = vpack.c.b16 %v338, %v336
      %v381 = vpack.c.b16 %v341, %v339
      %v382 = vpack.c.b16 %v342, %v340
      %v383 = vpack.c.b16 %v345, %v343
      %v384 = vpack.c.b16 %v346, %v344
      %v385 = vpack.c.b16 %v349, %v347
      %v386 = vpack.c.b16 %v350, %v348
      %v387 = vpack.c.b16 %v353, %v351
      %v388 = vpack.c.b16 %v354, %v352
      %v389 = vpack.c.b16 %v357, %v355
      %v390 = vpack.c.b16 %v358, %v356
      %v455 = vunpack.c.l.b16 %v231
      %v456 = vunpack.c.l.b16 %v232
      %v457 = vunpack.c.l.b16 %v233
      %v458 = vunpack.c.l.b16 %v234
      %v459 = vunpack.c.l.b16 %v235
      %v460 = vunpack.c.l.b16 %v236
      %v461 = vunpack.c.l.b16 %v237
      %v462 = vunpack.c.l.b16 %v238
      %v463 = vunpack.c.l.b16 %v239
      %v464 = vunpack.c.l.b16 %v240
      %v465 = vunpack.c.l.b16 %v241
      %v466 = vunpack.c.l.b16 %v242
      %v467 = vunpack.c.l.b16 %v243
      %v468 = vunpack.c.l.b16 %v244
      %v469 = vunpack.c.l.b16 %v245
      %v470 = vunpack.c.l.b16 %v246
      %v471 = vunpack.c.l.b16 %v247
      %v472 = vunpack.c.l.b16 %v248
      %v473 = vunpack.c.l.b16 %v249
      %v474 = vunpack.c.l.b16 %v250
      %v475 = vunpack.c.l.b16 %v251
      %v476 = vunpack.c.l.b16 %v252
      %v477 = vunpack.c.l.b16 %v253
      %v478 = vunpack.c.l.b16 %v254
      %v479 = vunpack.c.l.b16 %v255
      %v480 = vunpack.c.l.b16 %v256
      %v481 = vunpack.c.l.b16 %v257
      %v482 = vunpack.c.l.b16 %v258
      %v483 = vunpack.c.l.b16 %v259
      %v484 = vunpack.c.l.b16 %v260
      %v485 = vunpack.c.l.b16 %v261
      %v486 = vunpack.c.l.b16 %v262
      %v487 = vpack.c.b16 %v456, %v455
      %v488 = vpack.c.b16 %v458, %v457
      %v489 = vpack.c.b16 %v460, %v459
      %v490 = vpack.c.b16 %v462, %v461
      %v491 = vpack.c.b16 %v464, %v463
      %v492 = vpack.c.b16 %v466, %v465
      %v493 = vpack.c.b16 %v468, %v467
      %v494 = vpack.c.b16 %v470, %v469
      %v495 = vpack.c.b16 %v472, %v471
      %v496 = vpack.c.b16 %v474, %v473
      %v497 = vpack.c.b16 %v476, %v475
      %v498 = vpack.c.b16 %v478, %v477
      %v499 = vpack.c.b16 %v480, %v479
      %v500 = vpack.c.b16 %v482, %v481
      %v501 = vpack.c.b16 %v484, %v483
      %v502 = vpack.c.b16 %v486, %v485
      %519 = vmatprep.subr.bf16.mxu0 0
      %520 = vmatpush1.bf16.msra.mxu0 %v487
      %521 = vmatprep.subr.bf16.mxu0 0
      %522 = vmatpush1.bf16.msra.mxu0 %v488
      %523 = vmatprep.subr.bf16.mxu0 0
      %524 = vmatpush1.bf16.msra.mxu0 %v489
      %525 = vmatprep.subr.bf16.mxu0 0
      %526 = vmatpush1.bf16.msra.mxu0 %v490
      %527 = vmatprep.subr.bf16.mxu0 0
      %528 = vmatpush1.bf16.msra.mxu0 %v491
      %529 = vmatprep.subr.bf16.mxu0 0
      %530 = vmatpush1.bf16.msra.mxu0 %v492
      %531 = vmatprep.subr.bf16.mxu0 0
      %532 = vmatpush1.bf16.msra.mxu0 %v493
      %533 = vmatprep.subr.bf16.mxu0 0
      %534 = vmatpush1.bf16.msra.mxu0 %v494
      %535 = vmatprep.subr.bf16.mxu0 0
      %536 = vmatpush1.bf16.msra.mxu0 %v495
      %537 = vmatprep.subr.bf16.mxu0 0
      %538 = vmatpush1.bf16.msra.mxu0 %v496
      %539 = vmatprep.subr.bf16.mxu0 0
      %540 = vmatpush1.bf16.msra.mxu0 %v497
      %541 = vmatprep.subr.bf16.mxu0 0
      %542 = vmatpush1.bf16.msra.mxu0 %v498
      %543 = vmatprep.subr.bf16.mxu0 0
      %544 = vmatpush1.bf16.msra.mxu0 %v499
      %545 = vmatprep.subr.bf16.mxu0 0
      %546 = vmatpush1.bf16.msra.mxu0 %v500
      %547 = vmatprep.subr.bf16.mxu0 0
      %548 = vmatpush1.bf16.msra.mxu0 %v501
      %549 = vmatprep.subr.bf16.mxu0 0
      %550 = vmatpush1.bf16.msra.mxu0 %v502
      %551 = vmatprep.mubr.bf16.mxu0 %v360
      %552 = vmatmul.mubr.bf16.gmra.mrb[0].mxu0 %v359
      %v553 = vpop.f32.mrb[0].mxu0
      %v554 = vadd.f32 0.0, %v553
      %v555 = vpop.f32.mrb[0].mxu0
      %v556 = vpop.f32.mrb[0].mxu0
      %v557 = vadd.f32 0.0, %v556
      %v558 = vpop.f32.mrb[0].mxu0
      %559 = vmatprep.mubr.bf16.mxu0 %v362
      %560 = vmatmul.mubr.bf16.gmra.mrb[0].mxu0 %v361
      %v561 = vpop.f32.mrb[0].mxu0
      %v562 = vadd.f32 0.0, %v561
      %v563 = vpop.f32.mrb[0].mxu0
      %v564 = vpop.f32.mrb[0].mxu0
      %v565 = vadd.f32 0.0, %v564
      %v566 = vpop.f32.mrb[0].mxu0
      %567 = vmatprep.mubr.bf16.mxu0 %v364
      %568 = vmatmul.mubr.bf16.gmra.mrb[0].mxu0 %v363
      %v569 = vpop.f32.mrb[0].mxu0
      %v570 = vadd.f32 0.0, %v569
      %v571 = vpop.f32.mrb[0].mxu0
      %v572 = vpop.f32.mrb[0].mxu0
      %v573 = vadd.f32 0.0, %v572
      %v574 = vpop.f32.mrb[0].mxu0
      %575 = vmatprep.mubr.bf16.mxu0 %v366
      %576 = vmatmul.mubr.bf16.gmra.mrb[0].mxu0 %v365
      %v577 = vpop.f32.mrb[0].mxu0
      %v578 = vadd.f32 0.0, %v577
      %v579 = vpop.f32.mrb[0].mxu0
      %v580 = vpop.f32.mrb[0].mxu0
      %v581 = vadd.f32 0.0, %v580
      %v582 = vpop.f32.mrb[0].mxu0
      %583 = vmatprep.mubr.bf16.mxu0 %v368
      %584 = vmatmul.mubr.bf16.gmra.mrb[0].mxu0 %v367
      %v585 = vpop.f32.mrb[0].mxu0
      %v586 = vadd.f32 0.0, %v585
      %v587 = vpop.f32.mrb[0].mxu0
      %v588 = vpop.f32.mrb[0].mxu0
      %v589 = vadd.f32 0.0, %v588
      %v590 = vpop.f32.mrb[0].mxu0
      %591 = vmatprep.mubr.bf16.mxu0 %v370
      %592 = vmatmul.mubr.bf16.gmra.mrb[0].mxu0 %v369
      %v593 = vpop.f32.mrb[0].mxu0
      %v594 = vadd.f32 0.0, %v593
      %v595 = vpop.f32.mrb[0].mxu0
      %v596 = vpop.f32.mrb[0].mxu0
      %v597 = vadd.f32 0.0, %v596
      %v598 = vpop.f32.mrb[0].mxu0
      %599 = vmatprep.mubr.bf16.mxu0 %v372
      %600 = vmatmul.mubr.bf16.gmra.mrb[0].mxu0 %v371
      %v601 = vpop.f32.mrb[0].mxu0
      %v602 = vadd.f32 0.0, %v601
      %v603 = vpop.f32.mrb[0].mxu0
      %v604 = vpop.f32.mrb[0].mxu0
      %v605 = vadd.f32 0.0, %v604
      %v606 = vpop.f32.mrb[0].mxu0
      %607 = vmatprep.mubr.bf16.mxu0 %v374
      %608 = vmatmul.mubr.bf16.gmra.mrb[0].mxu0 %v373
      %v609 = vpop.f32.mrb[0].mxu0
      %v610 = vadd.f32 0.0, %v609
      %v611 = vpop.f32.mrb[0].mxu0
      %v612 = vpop.f32.mrb[0].mxu0
      %v613 = vadd.f32 0.0, %v612
      %v614 = vpop.f32.mrb[0].mxu0
      %615 = vmatprep.mubr.bf16.mxu0 %v376
      %616 = vmatmul.mubr.bf16.gmra.mrb[0].mxu0 %v375
      %v617 = vpop.f32.mrb[0].mxu0
      %v618 = vadd.f32 0.0, %v617
      %v619 = vpop.f32.mrb[0].mxu0
      %v620 = vpop.f32.mrb[0].mxu0
      %v621 = vadd.f32 0.0, %v620
      %v622 = vpop.f32.mrb[0].mxu0
      %623 = vmatprep.mubr.bf16.mxu0 %v378
      %624 = vmatmul.mubr.bf16.gmra.mrb[0].mxu0 %v377
      %v625 = vpop.f32.mrb[0].mxu0
      %v626 = vadd.f32 0.0, %v625
      %v627 = vpop.f32.mrb[0].mxu0
      %v628 = vpop.f32.mrb[0].mxu0
      %v629 = vadd.f32 0.0, %v628
      %v630 = vpop.f32.mrb[0].mxu0
      %631 = vmatprep.mubr.bf16.mxu0 %v380
      %632 = vmatmul.mubr.bf16.gmra.mrb[0].mxu0 %v379
      %v633 = vpop.f32.mrb[0].mxu0
      %v634 = vadd.f32 0.0, %v633
      %v635 = vpop.f32.mrb[0].mxu0
      %v636 = vpop.f32.mrb[0].mxu0
      %v637 = vadd.f32 0.0, %v636
      %v638 = vpop.f32.mrb[0].mxu0
      %639 = vmatprep.mubr.bf16.mxu0 %v382
      %640 = vmatmul.mubr.bf16.gmra.mrb[0].mxu0 %v381
      %v641 = vpop.f32.mrb[0].mxu0
      %v642 = vadd.f32 0.0, %v641
      %v643 = vpop.f32.mrb[0].mxu0
      %v644 = vpop.f32.mrb[0].mxu0
      %v645 = vadd.f32 0.0, %v644
      %v646 = vpop.f32.mrb[0].mxu0
      %647 = vmatprep.mubr.bf16.mxu0 %v384
      %648 = vmatmul.mubr.bf16.gmra.mrb[0].mxu0 %v383
      %v649 = vpop.f32.mrb[0].mxu0
      %v650 = vadd.f32 0.0, %v649
      %v651 = vpop.f32.mrb[0].mxu0
      %v652 = vpop.f32.mrb[0].mxu0
      %v653 = vadd.f32 0.0, %v652
      %v654 = vpop.f32.mrb[0].mxu0
      %655 = vmatprep.mubr.bf16.mxu0 %v386
      %656 = vmatmul.mubr.bf16.gmra.mrb[0].mxu0 %v385
      %v657 = vpop.f32.mrb[0].mxu0
      %v658 = vadd.f32 0.0, %v657
      %v659 = vpop.f32.mrb[0].mxu0
      %v660 = vpop.f32.mrb[0].mxu0
      %v661 = vadd.f32 0.0, %v660
      %v662 = vpop.f32.mrb[0].mxu0
      %663 = vmatprep.mubr.bf16.mxu0 %v388
      %664 = vmatmul.mubr.bf16.gmra.mrb[0].mxu0 %v387
      %v665 = vpop.f32.mrb[0].mxu0
      %v666 = vadd.f32 0.0, %v665
      %v667 = vpop.f32.mrb[0].mxu0
      %v668 = vpop.f32.mrb[0].mxu0
      %v669 = vadd.f32 0.0, %v668
      %v670 = vpop.f32.mrb[0].mxu0
      %671 = vmatprep.mubr.bf16.mxu0 %v390
      %672 = vmatmul.mubr.bf16.gmra.mrb[0].mxu0 %v389
      %v673 = vpop.f32.mrb[0].mxu0
      %v674 = vadd.f32 0.0, %v673
      %v675 = vpop.f32.mrb[0].mxu0
      %v676 = vpop.f32.mrb[0].mxu0
      %v677 = vadd.f32 0.0, %v676
      %v678 = vpop.f32.mrb[0].mxu0
      %679 = vdwg.mxu0
      %680 = vst [vmem:[#allocation2] sm:$0xff] %v554
      %681 = vst [vmem:[#allocation2 + $0x8] sm:$0xff] %v557
      %682 = vst [vmem:[#allocation2 + $0x10] sm:$0xff] %v562
      %683 = vst [vmem:[#allocation2 + $0x18] sm:$0xff] %v565
      %684 = vst [vmem:[#allocation2 + $0x20] sm:$0xff] %v570
      %685 = vst [vmem:[#allocation2 + $0x28] sm:$0xff] %v573
      %686 = vst [vmem:[#allocation2 + $0x30] sm:$0xff] %v578
      %687 = vst [vmem:[#allocation2 + $0x38] sm:$0xff] %v581
      %688 = vst [vmem:[#allocation2 + $0x40] sm:$0xff] %v586
      %689 = vst [vmem:[#allocation2 + $0x48] sm:$0xff] %v589
      %690 = vst [vmem:[#allocation2 + $0x50] sm:$0xff] %v594
      %691 = vst [vmem:[#allocation2 + $0x58] sm:$0xff] %v597
      %692 = vst [vmem:[#allocation2 + $0x60] sm:$0xff] %v602
      %693 = vst [vmem:[#allocation2 + $0x68] sm:$0xff] %v605
      %694 = vst [vmem:[#allocation2 + $0x70] sm:$0xff] %v610
      %695 = vst [vmem:[#allocation2 + $0x78] sm:$0xff] %v613
      %696 = vst [vmem:[#allocation2 + $0x80] sm:$0xff] %v618
      %697 = vst [vmem:[#allocation2 + $0x88] sm:$0xff] %v621
      %698 = vst [vmem:[#allocation2 + $0x90] sm:$0xff] %v626
      %699 = vst [vmem:[#allocation2 + $0x98] sm:$0xff] %v629
      %700 = vst [vmem:[#allocation2 + $0xa0] sm:$0xff] %v634
      %701 = vst [vmem:[#allocation2 + $0xa8] sm:$0xff] %v637
      %702 = vst [vmem:[#allocation2 + $0xb0] sm:$0xff] %v642
      %703 = vst [vmem:[#allocation2 + $0xb8] sm:$0xff] %v645
      %704 = vst [vmem:[#allocation2 + $0xc0] sm:$0xff] %v650
      %705 = vst [vmem:[#allocation2 + $0xc8] sm:$0xff] %v653
      %706 = vst [vmem:[#allocation2 + $0xd0] sm:$0xff] %v658
      %707 = vst [vmem:[#allocation2 + $0xd8] sm:$0xff] %v661
      %708 = vst [vmem:[#allocation2 + $0xe0] sm:$0xff] %v666
      %709 = vst [vmem:[#allocation2 + $0xe8] sm:$0xff] %v669
      %710 = vst [vmem:[#allocation2 + $0xf0] sm:$0xff] %v674
      %711 = vst [vmem:[#allocation2 + $0xf8] sm:$0xff] %v677
      %v712 = vld [vmem:[%s198] sm:$0xff]
      %v713 = vld [vmem:[%s198 + $0x8] sm:$0xff]
      %v714 = vld [vmem:[%s198 + $0x10] sm:$0x11]
      %v715 = vld [vmem:[%s198 + $0x18] sm:$0xff]
      %v716 = vld [vmem:[%s198 + $0x20] sm:$0xff]
      %v717 = vld [vmem:[%s198 + $0x28] sm:$0x11]
      %v718 = vld [vmem:[%s198 + $0x30] sm:$0xff]
      %v719 = vld [vmem:[%s198 + $0x38] sm:$0xff]
      %v720 = vld [vmem:[%s198 + $0x40] sm:$0x11]
      %v721 = vld [vmem:[%s198 + $0x48] sm:$0xff]
      %v722 = vld [vmem:[%s198 + $0x50] sm:$0xff]
      %v723 = vld [vmem:[%s198 + $0x58] sm:$0x11]
      %v724 = vld [vmem:[%s198 + $0x60] sm:$0xff]
      %v725 = vld [vmem:[%s198 + $0x68] sm:$0xff]
      %v726 = vld [vmem:[%s198 + $0x70] sm:$0x11]
      %v727 = vld [vmem:[%s198 + $0x78] sm:$0xff]
      %v728 = vld [vmem:[%s198 + $0x80] sm:$0xff]
      %v729 = vld [vmem:[%s198 + $0x88] sm:$0x11]
      %v730 = vld [vmem:[%s198 + $0x90] sm:$0xff]
      %v731 = vld [vmem:[%s198 + $0x98] sm:$0xff]
      %v732 = vld [vmem:[%s198 + $0xa0] sm:$0x11]
      %v733 = vld [vmem:[%s198 + $0xa8] sm:$0xff]
      %v734 = vld [vmem:[%s198 + $0xb0] sm:$0xff]
      %v735 = vld [vmem:[%s198 + $0xb8] sm:$0x11]
      %v736 = vld [vmem:[%s198 + $0xc0] sm:$0xff]
      %v737 = vld [vmem:[%s198 + $0xc8] sm:$0xff]
      %v738 = vld [vmem:[%s198 + $0xd0] sm:$0x11]
      %v739 = vld [vmem:[%s198 + $0xd8] sm:$0xff]
      %v740 = vld [vmem:[%s198 + $0xe0] sm:$0xff]
      %v741 = vld [vmem:[%s198 + $0xe8] sm:$0x11]
      %v742 = vld [vmem:[%s198 + $0xf0] sm:$0xff]
      %v743 = vld [vmem:[%s198 + $0xf8] sm:$0xff]
      %v744 = vld [vmem:[%s198 + $0x100] sm:$0x11]
      %v745 = vld [vmem:[%s198 + $0x108] sm:$0xff]
      %v746 = vld [vmem:[%s198 + $0x110] sm:$0xff]
      %v747 = vld [vmem:[%s198 + $0x118] sm:$0x11]
      %v748 = vld [vmem:[%s198 + $0x120] sm:$0xff]
      %v749 = vld [vmem:[%s198 + $0x128] sm:$0xff]
      %v750 = vld [vmem:[%s198 + $0x130] sm:$0x11]
      %v751 = vld [vmem:[%s198 + $0x138] sm:$0xff]
      %v752 = vld [vmem:[%s198 + $0x140] sm:$0xff]
      %v753 = vld [vmem:[%s198 + $0x148] sm:$0x11]
      %v754 = vld [vmem:[%s198 + $0x150] sm:$0xff]
      %v755 = vld [vmem:[%s198 + $0x158] sm:$0xff]
      %v756 = vld [vmem:[%s198 + $0x160] sm:$0x11]
      %v757 = vld [vmem:[%s198 + $0x168] sm:$0xff]
      %v758 = vld [vmem:[%s198 + $0x170] sm:$0xff]
      %v759 = vld [vmem:[%s198 + $0x178] sm:$0x11]
      %vm760 = vsmask.f32 3328
      %vm761 = vsmask.f32 7440
      %vm762 = vmor %vm760, %vm761
      %v764 = vshrl.u32 %v712, 16
      %v766 = vrot.slane %v764, 4
      %v767 = vshll.u32 %v712, 16
      %v769 = vrot.slane %v767, 5
      %v770 = vor.u32 %v766, %v769
      %v771 = vrot.slane %v770, 4
      %v773 = vshll.u32 %v713, 16
      %v775 = vrot.slane %v773, 5
      %v776 = vsel %vm762, %v771, %v775
      %v777 = vshrl.u32 %v713, 16
      %v779 = vrot.slane %v777, 4
      %v780 = vor.u32 %v779, %v775
      %v781 = vrot.slane %v780, 4
      %v783 = vshll.u32 %v714, 16
      %v785 = vrot.slane %v783, 5
      %v786 = vsel %vm762, %v781, %v785
      %v788 = vshrl.u32 %v715, 16
      %v790 = vrot.slane %v788, 4
      %v791 = vshll.u32 %v715, 16
      %v793 = vrot.slane %v791, 5
      %v794 = vor.u32 %v790, %v793
      %v795 = vrot.slane %v794, 4
      %v797 = vshll.u32 %v716, 16
      %v799 = vrot.slane %v797, 5
      %v800 = vsel %vm762, %v795, %v799
      %v801 = vshrl.u32 %v716, 16
      %v803 = vrot.slane %v801, 4
      %v804 = vor.u32 %v803, %v799
      %v805 = vrot.slane %v804, 4
      %v807 = vshll.u32 %v717, 16
      %v809 = vrot.slane %v807, 5
      %v810 = vsel %vm762, %v805, %v809
      %v812 = vshrl.u32 %v718, 16
      %v814 = vrot.slane %v812, 4
      %v815 = vshll.u32 %v718, 16
      %v817 = vrot.slane %v815, 5
      %v818 = vor.u32 %v814, %v817
      %v819 = vrot.slane %v818, 4
      %v821 = vshll.u32 %v719, 16
      %v823 = vrot.slane %v821, 5
      %v824 = vsel %vm762, %v819, %v823
      %v825 = vshrl.u32 %v719, 16
      %v827 = vrot.slane %v825, 4
      %v828 = vor.u32 %v827, %v823
      %v829 = vrot.slane %v828, 4
      %v831 = vshll.u32 %v720, 16
      %v833 = vrot.slane %v831, 5
      %v834 = vsel %vm762, %v829, %v833
      %v836 = vshrl.u32 %v721, 16
      %v838 = vrot.slane %v836, 4
      %v839 = vshll.u32 %v721, 16
      %v841 = vrot.slane %v839, 5
      %v842 = vor.u32 %v838, %v841
      %v843 = vrot.slane %v842, 4
      %v845 = vshll.u32 %v722, 16
      %v847 = vrot.slane %v845, 5
      %v848 = vsel %vm762, %v843, %v847
      %v849 = vshrl.u32 %v722, 16
      %v851 = vrot.slane %v849, 4
      %v852 = vor.u32 %v851, %v847
      %v853 = vrot.slane %v852, 4
      %v855 = vshll.u32 %v723, 16
      %v857 = vrot.slane %v855, 5
      %v858 = vsel %vm762, %v853, %v857
      %v860 = vshrl.u32 %v724, 16
      %v862 = vrot.slane %v860, 4
      %v863 = vshll.u32 %v724, 16
      %v865 = vrot.slane %v863, 5
      %v866 = vor.u32 %v862, %v865
      %v867 = vrot.slane %v866, 4
      %v869 = vshll.u32 %v725, 16
      %v871 = vrot.slane %v869, 5
      %v872 = vsel %vm762, %v867, %v871
      %v873 = vshrl.u32 %v725, 16
      %v875 = vrot.slane %v873, 4
      %v876 = vor.u32 %v875, %v871
      %v877 = vrot.slane %v876, 4
      %v879 = vshll.u32 %v726, 16
      %v881 = vrot.slane %v879, 5
      %v882 = vsel %vm762, %v877, %v881
      %v884 = vshrl.u32 %v727, 16
      %v886 = vrot.slane %v884, 4
      %v887 = vshll.u32 %v727, 16
      %v889 = vrot.slane %v887, 5
      %v890 = vor.u32 %v886, %v889
      %v891 = vrot.slane %v890, 4
      %v893 = vshll.u32 %v728, 16
      %v895 = vrot.slane %v893, 5
      %v896 = vsel %vm762, %v891, %v895
      %v897 = vshrl.u32 %v728, 16
      %v899 = vrot.slane %v897, 4
      %v900 = vor.u32 %v899, %v895
      %v901 = vrot.slane %v900, 4
      %v903 = vshll.u32 %v729, 16
      %v905 = vrot.slane %v903, 5
      %v906 = vsel %vm762, %v901, %v905
      %v908 = vshrl.u32 %v730, 16
      %v910 = vrot.slane %v908, 4
      %v911 = vshll.u32 %v730, 16
      %v913 = vrot.slane %v911, 5
      %v914 = vor.u32 %v910, %v913
      %v915 = vrot.slane %v914, 4
      %v917 = vshll.u32 %v731, 16
      %v919 = vrot.slane %v917, 5
      %v920 = vsel %vm762, %v915, %v919
      %v921 = vshrl.u32 %v731, 16
      %v923 = vrot.slane %v921, 4
      %v924 = vor.u32 %v923, %v919
      %v925 = vrot.slane %v924, 4
      %v927 = vshll.u32 %v732, 16
      %v929 = vrot.slane %v927, 5
      %v930 = vsel %vm762, %v925, %v929
      %v932 = vshrl.u32 %v733, 16
      %v934 = vrot.slane %v932, 4
      %v935 = vshll.u32 %v733, 16
      %v937 = vrot.slane %v935, 5
      %v938 = vor.u32 %v934, %v937
      %v939 = vrot.slane %v938, 4
      %v941 = vshll.u32 %v734, 16
      %v943 = vrot.slane %v941, 5
      %v944 = vsel %vm762, %v939, %v943
      %v945 = vshrl.u32 %v734, 16
      %v947 = vrot.slane %v945, 4
      %v948 = vor.u32 %v947, %v943
      %v949 = vrot.slane %v948, 4
      %v951 = vshll.u32 %v735, 16
      %v953 = vrot.slane %v951, 5
      %v954 = vsel %vm762, %v949, %v953
      %v956 = vshrl.u32 %v736, 16
      %v958 = vrot.slane %v956, 4
      %v959 = vshll.u32 %v736, 16
      %v961 = vrot.slane %v959, 5
      %v962 = vor.u32 %v958, %v961
      %v963 = vrot.slane %v962, 4
      %v965 = vshll.u32 %v737, 16
      %v967 = vrot.slane %v965, 5
      %v968 = vsel %vm762, %v963, %v967
      %v969 = vshrl.u32 %v737, 16
      %v971 = vrot.slane %v969, 4
      %v972 = vor.u32 %v971, %v967
      %v973 = vrot.slane %v972, 4
      %v975 = vshll.u32 %v738, 16
      %v977 = vrot.slane %v975, 5
      %v978 = vsel %vm762, %v973, %v977
      %v980 = vshrl.u32 %v739, 16
      %v982 = vrot.slane %v980, 4
      %v983 = vshll.u32 %v739, 16
      %v985 = vrot.slane %v983, 5
      %v986 = vor.u32 %v982, %v985
      %v987 = vrot.slane %v986, 4
      %v989 = vshll.u32 %v740, 16
      %v991 = vrot.slane %v989, 5
      %v992 = vsel %vm762, %v987, %v991
      %v993 = vshrl.u32 %v740, 16
      %v995 = vrot.slane %v993, 4
      %v996 = vor.u32 %v995, %v991
      %v997 = vrot.slane %v996, 4
      %v999 = vshll.u32 %v741, 16
      %v1001 = vrot.slane %v999, 5
      %v1002 = vsel %vm762, %v997, %v1001
      %v1004 = vshrl.u32 %v742, 16
      %v1006 = vrot.slane %v1004, 4
      %v1007 = vshll.u32 %v742, 16
      %v1009 = vrot.slane %v1007, 5
      %v1010 = vor.u32 %v1006, %v1009
      %v1011 = vrot.slane %v1010, 4
      %v1013 = vshll.u32 %v743, 16
      %v1015 = vrot.slane %v1013, 5
      %v1016 = vsel %vm762, %v1011, %v1015
      %v1017 = vshrl.u32 %v743, 16
      %v1019 = vrot.slane %v1017, 4
      %v1020 = vor.u32 %v1019, %v1015
      %v1021 = vrot.slane %v1020, 4
      %v1023 = vshll.u32 %v744, 16
      %v1025 = vrot.slane %v1023, 5
      %v1026 = vsel %vm762, %v1021, %v1025
      %v1028 = vshrl.u32 %v745, 16
      %v1030 = vrot.slane %v1028, 4
      %v1031 = vshll.u32 %v745, 16
      %v1033 = vrot.slane %v1031, 5
      %v1034 = vor.u32 %v1030, %v1033
      %v1035 = vrot.slane %v1034, 4
      %v1037 = vshll.u32 %v746, 16
      %v1039 = vrot.slane %v1037, 5
      %v1040 = vsel %vm762, %v1035, %v1039
      %v1041 = vshrl.u32 %v746, 16
      %v1043 = vrot.slane %v1041, 4
      %v1044 = vor.u32 %v1043, %v1039
      %v1045 = vrot.slane %v1044, 4
      %v1047 = vshll.u32 %v747, 16
      %v1049 = vrot.slane %v1047, 5
      %v1050 = vsel %vm762, %v1045, %v1049
      %v1052 = vshrl.u32 %v748, 16
      %v1054 = vrot.slane %v1052, 4
      %v1055 = vshll.u32 %v748, 16
      %v1057 = vrot.slane %v1055, 5
      %v1058 = vor.u32 %v1054, %v1057
      %v1059 = vrot.slane %v1058, 4
      %v1061 = vshll.u32 %v749, 16
      %v1063 = vrot.slane %v1061, 5
      %v1064 = vsel %vm762, %v1059, %v1063
      %v1065 = vshrl.u32 %v749, 16
      %v1067 = vrot.slane %v1065, 4
      %v1068 = vor.u32 %v1067, %v1063
      %v1069 = vrot.slane %v1068, 4
      %v1071 = vshll.u32 %v750, 16
      %v1073 = vrot.slane %v1071, 5
      %v1074 = vsel %vm762, %v1069, %v1073
      %v1076 = vshrl.u32 %v751, 16
      %v1078 = vrot.slane %v1076, 4
      %v1079 = vshll.u32 %v751, 16
      %v1081 = vrot.slane %v1079, 5
      %v1082 = vor.u32 %v1078, %v1081
      %v1083 = vrot.slane %v1082, 4
      %v1085 = vshll.u32 %v752, 16
      %v1087 = vrot.slane %v1085, 5
      %v1088 = vsel %vm762, %v1083, %v1087
      %v1089 = vshrl.u32 %v752, 16
      %v1091 = vrot.slane %v1089, 4
      %v1092 = vor.u32 %v1091, %v1087
      %v1093 = vrot.slane %v1092, 4
      %v1095 = vshll.u32 %v753, 16
      %v1097 = vrot.slane %v1095, 5
      %v1098 = vsel %vm762, %v1093, %v1097
      %v1100 = vshrl.u32 %v754, 16
      %v1102 = vrot.slane %v1100, 4
      %v1103 = vshll.u32 %v754, 16
      %v1105 = vrot.slane %v1103, 5
      %v1106 = vor.u32 %v1102, %v1105
      %v1107 = vrot.slane %v1106, 4
      %v1109 = vshll.u32 %v755, 16
      %v1111 = vrot.slane %v1109, 5
      %v1112 = vsel %vm762, %v1107, %v1111
      %v1113 = vshrl.u32 %v755, 16
      %v1115 = vrot.slane %v1113, 4
      %v1116 = vor.u32 %v1115, %v1111
      %v1117 = vrot.slane %v1116, 4
      %v1119 = vshll.u32 %v756, 16
      %v1121 = vrot.slane %v1119, 5
      %v1122 = vsel %vm762, %v1117, %v1121
      %v1124 = vshrl.u32 %v757, 16
      %v1126 = vrot.slane %v1124, 4
      %v1127 = vshll.u32 %v757, 16
      %v1129 = vrot.slane %v1127, 5
      %v1130 = vor.u32 %v1126, %v1129
      %v1131 = vrot.slane %v1130, 4
      %v1133 = vshll.u32 %v758, 16
      %v1135 = vrot.slane %v1133, 5
      %v1136 = vsel %vm762, %v1131, %v1135
      %v1137 = vshrl.u32 %v758, 16
      %v1139 = vrot.slane %v1137, 4
      %v1140 = vor.u32 %v1139, %v1135
      %v1141 = vrot.slane %v1140, 4
      %v1143 = vshll.u32 %v759, 16
      %v1145 = vrot.slane %v1143, 5
      %v1146 = vsel %vm762, %v1141, %v1145
      %s1147 = scalar_lea.vmem %s1, 128
      %v1148 = vld [vmem:[%s1147] sm:$0xf]
      %v1149 = vld [vmem:[%s1147 + $0x4] sm:$0xf]
      %v1150 = vld [vmem:[%s1147 + $0x8] sm:$0xf]
      %v1151 = vld [vmem:[%s1147 + $0xc] sm:$0xf]
      %v1152 = vld [vmem:[%s1147 + $0x10] sm:$0xf]
      %v1153 = vld [vmem:[%s1147 + $0x14] sm:$0xf]
      %v1154 = vld [vmem:[%s1147 + $0x18] sm:$0xf]
      %v1155 = vld [vmem:[%s1147 + $0x1c] sm:$0xf]
      %v1156 = vld [vmem:[%s1147 + $0x20] sm:$0xf]
      %v1157 = vld [vmem:[%s1147 + $0x24] sm:$0xf]
      %v1158 = vld [vmem:[%s1147 + $0x28] sm:$0xf]
      %v1159 = vld [vmem:[%s1147 + $0x2c] sm:$0xf]
      %v1160 = vld [vmem:[%s1147 + $0x30] sm:$0xf]
      %v1161 = vld [vmem:[%s1147 + $0x34] sm:$0xf]
      %v1162 = vld [vmem:[%s1147 + $0x38] sm:$0xf]
      %v1163 = vld [vmem:[%s1147 + $0x3c] sm:$0xf]
      %v1164 = vld [vmem:[%s1147 + $0x40] sm:$0xf]
      %v1165 = vld [vmem:[%s1147 + $0x44] sm:$0xf]
      %v1166 = vld [vmem:[%s1147 + $0x48] sm:$0xf]
      %v1167 = vld [vmem:[%s1147 + $0x4c] sm:$0xf]
      %v1168 = vld [vmem:[%s1147 + $0x50] sm:$0xf]
      %v1169 = vld [vmem:[%s1147 + $0x54] sm:$0xf]
      %v1170 = vld [vmem:[%s1147 + $0x58] sm:$0xf]
      %v1171 = vld [vmem:[%s1147 + $0x5c] sm:$0xf]
      %v1172 = vld [vmem:[%s1147 + $0x60] sm:$0xf]
      %v1173 = vld [vmem:[%s1147 + $0x64] sm:$0xf]
      %v1174 = vld [vmem:[%s1147 + $0x68] sm:$0xf]
      %v1175 = vld [vmem:[%s1147 + $0x6c] sm:$0xf]
      %v1176 = vld [vmem:[%s1147 + $0x70] sm:$0xf]
      %v1177 = vld [vmem:[%s1147 + $0x74] sm:$0xf]
      %v1178 = vld [vmem:[%s1147 + $0x78] sm:$0xf]
      %v1179 = vld [vmem:[%s1147 + $0x7c] sm:$0xf]
      %v1180 = vunpack.c.l.b16 %v776
      %v1181 = vunpack.c.h.b16 %v776
      %v1182 = vunpack.c.l.b16 %v786
      %v1183 = vunpack.c.h.b16 %v786
      %v1184 = vunpack.c.l.b16 %v800
      %v1185 = vunpack.c.h.b16 %v800
      %v1186 = vunpack.c.l.b16 %v810
      %v1187 = vunpack.c.h.b16 %v810
      %v1188 = vunpack.c.l.b16 %v824
      %v1189 = vunpack.c.h.b16 %v824
      %v1190 = vunpack.c.l.b16 %v834
      %v1191 = vunpack.c.h.b16 %v834
      %v1192 = vunpack.c.l.b16 %v848
      %v1193 = vunpack.c.h.b16 %v848
      %v1194 = vunpack.c.l.b16 %v858
      %v1195 = vunpack.c.h.b16 %v858
      %v1196 = vunpack.c.l.b16 %v872
      %v1197 = vunpack.c.h.b16 %v872
      %v1198 = vunpack.c.l.b16 %v882
      %v1199 = vunpack.c.h.b16 %v882
      %v1200 = vunpack.c.l.b16 %v896
      %v1201 = vunpack.c.h.b16 %v896
      %v1202 = vunpack.c.l.b16 %v906
      %v1203 = vunpack.c.h.b16 %v906
      %v1204 = vunpack.c.l.b16 %v920
      %v1205 = vunpack.c.h.b16 %v920
      %v1206 = vunpack.c.l.b16 %v930
      %v1207 = vunpack.c.h.b16 %v930
      %v1208 = vunpack.c.l.b16 %v944
      %v1209 = vunpack.c.h.b16 %v944
      %v1210 = vunpack.c.l.b16 %v954
      %v1211 = vunpack.c.h.b16 %v954
      %v1212 = vunpack.c.l.b16 %v968
      %v1213 = vunpack.c.h.b16 %v968
      %v1214 = vunpack.c.l.b16 %v978
      %v1215 = vunpack.c.h.b16 %v978
      %v1216 = vunpack.c.l.b16 %v992
      %v1217 = vunpack.c.h.b16 %v992
      %v1218 = vunpack.c.l.b16 %v1002
      %v1219 = vunpack.c.h.b16 %v1002
      %v1220 = vunpack.c.l.b16 %v1016
      %v1221 = vunpack.c.h.b16 %v1016
      %v1222 = vunpack.c.l.b16 %v1026
      %v1223 = vunpack.c.h.b16 %v1026
      %v1224 = vunpack.c.l.b16 %v1040
      %v1225 = vunpack.c.h.b16 %v1040
      %v1226 = vunpack.c.l.b16 %v1050
      %v1227 = vunpack.c.h.b16 %v1050
      %v1228 = vunpack.c.l.b16 %v1064
      %v1229 = vunpack.c.h.b16 %v1064
      %v1230 = vunpack.c.l.b16 %v1074
      %v1231 = vunpack.c.h.b16 %v1074
      %v1232 = vunpack.c.l.b16 %v1088
      %v1233 = vunpack.c.h.b16 %v1088
      %v1234 = vunpack.c.l.b16 %v1098
      %v1235 = vunpack.c.h.b16 %v1098
      %v1236 = vunpack.c.l.b16 %v1112
      %v1237 = vunpack.c.h.b16 %v1112
      %v1238 = vunpack.c.l.b16 %v1122
      %v1239 = vunpack.c.h.b16 %v1122
      %v1240 = vunpack.c.l.b16 %v1136
      %v1241 = vunpack.c.h.b16 %v1136
      %v1242 = vunpack.c.l.b16 %v1146
      %v1243 = vunpack.c.h.b16 %v1146
      %v1244 = vpack.c.b16 %v1182, %v1180
      %v1245 = vpack.c.b16 %v1183, %v1181
      %v1246 = vpack.c.b16 %v1186, %v1184
      %v1247 = vpack.c.b16 %v1187, %v1185
      %v1248 = vpack.c.b16 %v1190, %v1188
      %v1249 = vpack.c.b16 %v1191, %v1189
      %v1250 = vpack.c.b16 %v1194, %v1192
      %v1251 = vpack.c.b16 %v1195, %v1193
      %v1252 = vpack.c.b16 %v1198, %v1196
      %v1253 = vpack.c.b16 %v1199, %v1197
      %v1254 = vpack.c.b16 %v1202, %v1200
      %v1255 = vpack.c.b16 %v1203, %v1201
      %v1256 = vpack.c.b16 %v1206, %v1204
      %v1257 = vpack.c.b16 %v1207, %v1205
      %v1258 = vpack.c.b16 %v1210, %v1208
      %v1259 = vpack.c.b16 %v1211, %v1209
      %v1260 = vpack.c.b16 %v1214, %v1212
      %v1261 = vpack.c.b16 %v1215, %v1213
      %v1262 = vpack.c.b16 %v1218, %v1216
      %v1263 = vpack.c.b16 %v1219, %v1217
      %v1264 = vpack.c.b16 %v1222, %v1220
      %v1265 = vpack.c.b16 %v1223, %v1221
      %v1266 = vpack.c.b16 %v1226, %v1224
      %v1267 = vpack.c.b16 %v1227, %v1225
      %v1268 = vpack.c.b16 %v1230, %v1228
      %v1269 = vpack.c.b16 %v1231, %v1229
      %v1270 = vpack.c.b16 %v1234, %v1232
      %v1271 = vpack.c.b16 %v1235, %v1233
      %v1272 = vpack.c.b16 %v1238, %v1236
      %v1273 = vpack.c.b16 %v1239, %v1237
      %v1274 = vpack.c.b16 %v1242, %v1240
      %v1275 = vpack.c.b16 %v1243, %v1241
      %v1340 = vunpack.c.l.b16 %v1148
      %v1341 = vunpack.c.l.b16 %v1149
      %v1342 = vunpack.c.l.b16 %v1150
      %v1343 = vunpack.c.l.b16 %v1151
      %v1344 = vunpack.c.l.b16 %v1152
      %v1345 = vunpack.c.l.b16 %v1153
      %v1346 = vunpack.c.l.b16 %v1154
      %v1347 = vunpack.c.l.b16 %v1155
      %v1348 = vunpack.c.l.b16 %v1156
      %v1349 = vunpack.c.l.b16 %v1157
      %v1350 = vunpack.c.l.b16 %v1158
      %v1351 = vunpack.c.l.b16 %v1159
      %v1352 = vunpack.c.l.b16 %v1160
      %v1353 = vunpack.c.l.b16 %v1161
      %v1354 = vunpack.c.l.b16 %v1162
      %v1355 = vunpack.c.l.b16 %v1163
      %v1356 = vunpack.c.l.b16 %v1164
      %v1357 = vunpack.c.l.b16 %v1165
      %v1358 = vunpack.c.l.b16 %v1166
      %v1359 = vunpack.c.l.b16 %v1167
      %v1360 = vunpack.c.l.b16 %v1168
      %v1361 = vunpack.c.l.b16 %v1169
      %v1362 = vunpack.c.l.b16 %v1170
      %v1363 = vunpack.c.l.b16 %v1171
      %v1364 = vunpack.c.l.b16 %v1172
      %v1365 = vunpack.c.l.b16 %v1173
      %v1366 = vunpack.c.l.b16 %v1174
      %v1367 = vunpack.c.l.b16 %v1175
      %v1368 = vunpack.c.l.b16 %v1176
      %v1369 = vunpack.c.l.b16 %v1177
      %v1370 = vunpack.c.l.b16 %v1178
      %v1371 = vunpack.c.l.b16 %v1179
      %v1372 = vpack.c.b16 %v1341, %v1340
      %v1373 = vpack.c.b16 %v1343, %v1342
      %v1374 = vpack.c.b16 %v1345, %v1344
      %v1375 = vpack.c.b16 %v1347, %v1346
      %v1376 = vpack.c.b16 %v1349, %v1348
      %v1377 = vpack.c.b16 %v1351, %v1350
      %v1378 = vpack.c.b16 %v1353, %v1352
      %v1379 = vpack.c.b16 %v1355, %v1354
      %v1380 = vpack.c.b16 %v1357, %v1356
      %v1381 = vpack.c.b16 %v1359, %v1358
      %v1382 = vpack.c.b16 %v1361, %v1360
      %v1383 = vpack.c.b16 %v1363, %v1362
      %v1384 = vpack.c.b16 %v1365, %v1364
      %v1385 = vpack.c.b16 %v1367, %v1366
      %v1386 = vpack.c.b16 %v1369, %v1368
      %v1387 = vpack.c.b16 %v1371, %v1370
      %1404 = vmatprep.subr.bf16.mxu0 0
      %1405 = vmatpush1.bf16.msra.mxu0 %v1372
      %1406 = vmatprep.subr.bf16.mxu0 0
      %1407 = vmatpush1.bf16.msra.mxu0 %v1373
      %1408 = vmatprep.subr.bf16.mxu0 0
      %1409 = vmatpush1.bf16.msra.mxu0 %v1374
      %1410 = vmatprep.subr.bf16.mxu0 0
      %1411 = vmatpush1.bf16.msra.mxu0 %v1375
      %1412 = vmatprep.subr.bf16.mxu0 0
      %1413 = vmatpush1.bf16.msra.mxu0 %v1376
      %1414 = vmatprep.subr.bf16.mxu0 0
      %1415 = vmatpush1.bf16.msra.mxu0 %v1377
      %1416 = vmatprep.subr.bf16.mxu0 0
      %1417 = vmatpush1.bf16.msra.mxu0 %v1378
      %1418 = vmatprep.subr.bf16.mxu0 0
      %1419 = vmatpush1.bf16.msra.mxu0 %v1379
      %1420 = vmatprep.subr.bf16.mxu0 0
      %1421 = vmatpush1.bf16.msra.mxu0 %v1380
      %1422 = vmatprep.subr.bf16.mxu0 0
      %1423 = vmatpush1.bf16.msra.mxu0 %v1381
      %1424 = vmatprep.subr.bf16.mxu0 0
      %1425 = vmatpush1.bf16.msra.mxu0 %v1382
      %1426 = vmatprep.subr.bf16.mxu0 0
      %1427 = vmatpush1.bf16.msra.mxu0 %v1383
      %1428 = vmatprep.subr.bf16.mxu0 0
      %1429 = vmatpush1.bf16.msra.mxu0 %v1384
      %1430 = vmatprep.subr.bf16.mxu0 0
      %1431 = vmatpush1.bf16.msra.mxu0 %v1385
      %1432 = vmatprep.subr.bf16.mxu0 0
      %1433 = vmatpush1.bf16.msra.mxu0 %v1386
      %1434 = vmatprep.subr.bf16.mxu0 0
      %1435 = vmatpush1.bf16.msra.mxu0 %v1387
      %1436 = vmatprep.mubr.bf16.mxu0 %v1245
      %1437 = vmatmul.mubr.bf16.gmra.mrb[0].mxu0 %v1244
      %v1438 = vpop.f32.mrb[0].mxu0
      %v1439 = vadd.f32 0.0, %v1438
      %v1440 = vpop.f32.mrb[0].mxu0
      %v1441 = vpop.f32.mrb[0].mxu0
      %v1442 = vadd.f32 0.0, %v1441
      %v1443 = vpop.f32.mrb[0].mxu0
      %1444 = vmatprep.mubr.bf16.mxu0 %v1247
      %1445 = vmatmul.mubr.bf16.gmra.mrb[0].mxu0 %v1246
      %v1446 = vpop.f32.mrb[0].mxu0
      %v1447 = vadd.f32 0.0, %v1446
      %v1448 = vpop.f32.mrb[0].mxu0
      %v1449 = vpop.f32.mrb[0].mxu0
      %v1450 = vadd.f32 0.0, %v1449
      %v1451 = vpop.f32.mrb[0].mxu0
      %1452 = vmatprep.mubr.bf16.mxu0 %v1249
      %1453 = vmatmul.mubr.bf16.gmra.mrb[0].mxu0 %v1248
      %v1454 = vpop.f32.mrb[0].mxu0
      %v1455 = vadd.f32 0.0, %v1454
      %v1456 = vpop.f32.mrb[0].mxu0
      %v1457 = vpop.f32.mrb[0].mxu0
      %v1458 = vadd.f32 0.0, %v1457
      %v1459 = vpop.f32.mrb[0].mxu0
      %1460 = vmatprep.mubr.bf16.mxu0 %v1251
      %1461 = vmatmul.mubr.bf16.gmra.mrb[0].mxu0 %v1250
      %v1462 = vpop.f32.mrb[0].mxu0
      %v1463 = vadd.f32 0.0, %v1462
      %v1464 = vpop.f32.mrb[0].mxu0
      %v1465 = vpop.f32.mrb[0].mxu0
      %v1466 = vadd.f32 0.0, %v1465
      %v1467 = vpop.f32.mrb[0].mxu0
      %1468 = vmatprep.mubr.bf16.mxu0 %v1253
      %1469 = vmatmul.mubr.bf16.gmra.mrb[0].mxu0 %v1252
      %v1470 = vpop.f32.mrb[0].mxu0
      %v1471 = vadd.f32 0.0, %v1470
      %v1472 = vpop.f32.mrb[0].mxu0
      %v1473 = vpop.f32.mrb[0].mxu0
      %v1474 = vadd.f32 0.0, %v1473
      %v1475 = vpop.f32.mrb[0].mxu0
      %1476 = vmatprep.mubr.bf16.mxu0 %v1255
      %1477 = vmatmul.mubr.bf16.gmra.mrb[0].mxu0 %v1254
      %v1478 = vpop.f32.mrb[0].mxu0
      %v1479 = vadd.f32 0.0, %v1478
      %v1480 = vpop.f32.mrb[0].mxu0
      %v1481 = vpop.f32.mrb[0].mxu0
      %v1482 = vadd.f32 0.0, %v1481
      %v1483 = vpop.f32.mrb[0].mxu0
      %1484 = vmatprep.mubr.bf16.mxu0 %v1257
      %1485 = vmatmul.mubr.bf16.gmra.mrb[0].mxu0 %v1256
      %v1486 = vpop.f32.mrb[0].mxu0
      %v1487 = vadd.f32 0.0, %v1486
      %v1488 = vpop.f32.mrb[0].mxu0
      %v1489 = vpop.f32.mrb[0].mxu0
      %v1490 = vadd.f32 0.0, %v1489
      %v1491 = vpop.f32.mrb[0].mxu0
      %1492 = vmatprep.mubr.bf16.mxu0 %v1259
      %1493 = vmatmul.mubr.bf16.gmra.mrb[0].mxu0 %v1258
      %v1494 = vpop.f32.mrb[0].mxu0
      %v1495 = vadd.f32 0.0, %v1494
      %v1496 = vpop.f32.mrb[0].mxu0
      %v1497 = vpop.f32.mrb[0].mxu0
      %v1498 = vadd.f32 0.0, %v1497
      %v1499 = vpop.f32.mrb[0].mxu0
      %1500 = vmatprep.mubr.bf16.mxu0 %v1261
      %1501 = vmatmul.mubr.bf16.gmra.mrb[0].mxu0 %v1260
      %v1502 = vpop.f32.mrb[0].mxu0
      %v1503 = vadd.f32 0.0, %v1502
      %v1504 = vpop.f32.mrb[0].mxu0
      %v1505 = vpop.f32.mrb[0].mxu0
      %v1506 = vadd.f32 0.0, %v1505
      %v1507 = vpop.f32.mrb[0].mxu0
      %1508 = vmatprep.mubr.bf16.mxu0 %v1263
      %1509 = vmatmul.mubr.bf16.gmra.mrb[0].mxu0 %v1262
      %v1510 = vpop.f32.mrb[0].mxu0
      %v1511 = vadd.f32 0.0, %v1510
      %v1512 = vpop.f32.mrb[0].mxu0
      %v1513 = vpop.f32.mrb[0].mxu0
      %v1514 = vadd.f32 0.0, %v1513
      %v1515 = vpop.f32.mrb[0].mxu0
      %1516 = vmatprep.mubr.bf16.mxu0 %v1265
      %1517 = vmatmul.mubr.bf16.gmra.mrb[0].mxu0 %v1264
      %v1518 = vpop.f32.mrb[0].mxu0
      %v1519 = vadd.f32 0.0, %v1518
      %v1520 = vpop.f32.mrb[0].mxu0
      %v1521 = vpop.f32.mrb[0].mxu0
      %v1522 = vadd.f32 0.0, %v1521
      %v1523 = vpop.f32.mrb[0].mxu0
      %1524 = vmatprep.mubr.bf16.mxu0 %v1267
      %1525 = vmatmul.mubr.bf16.gmra.mrb[0].mxu0 %v1266
      %v1526 = vpop.f32.mrb[0].mxu0
      %v1527 = vadd.f32 0.0, %v1526
      %v1528 = vpop.f32.mrb[0].mxu0
      %v1529 = vpop.f32.mrb[0].mxu0
      %v1530 = vadd.f32 0.0, %v1529
      %v1531 = vpop.f32.mrb[0].mxu0
      %1532 = vmatprep.mubr.bf16.mxu0 %v1269
      %1533 = vmatmul.mubr.bf16.gmra.mrb[0].mxu0 %v1268
      %v1534 = vpop.f32.mrb[0].mxu0
      %v1535 = vadd.f32 0.0, %v1534
      %v1536 = vpop.f32.mrb[0].mxu0
      %v1537 = vpop.f32.mrb[0].mxu0
      %v1538 = vadd.f32 0.0, %v1537
      %v1539 = vpop.f32.mrb[0].mxu0
      %1540 = vmatprep.mubr.bf16.mxu0 %v1271
      %1541 = vmatmul.mubr.bf16.gmra.mrb[0].mxu0 %v1270
      %v1542 = vpop.f32.mrb[0].mxu0
      %v1543 = vadd.f32 0.0, %v1542
      %v1544 = vpop.f32.mrb[0].mxu0
      %v1545 = vpop.f32.mrb[0].mxu0
      %v1546 = vadd.f32 0.0, %v1545
      %v1547 = vpop.f32.mrb[0].mxu0
      %1548 = vmatprep.mubr.bf16.mxu0 %v1273
      %1549 = vmatmul.mubr.bf16.gmra.mrb[0].mxu0 %v1272
      %v1550 = vpop.f32.mrb[0].mxu0
      %v1551 = vadd.f32 0.0, %v1550
      %v1552 = vpop.f32.mrb[0].mxu0
      %v1553 = vpop.f32.mrb[0].mxu0
      %v1554 = vadd.f32 0.0, %v1553
      %v1555 = vpop.f32.mrb[0].mxu0
      %1556 = vmatprep.mubr.bf16.mxu0 %v1275
      %1557 = vmatmul.mubr.bf16.gmra.mrb[0].mxu0 %v1274
      %v1558 = vpop.f32.mrb[0].mxu0
      %v1559 = vadd.f32 0.0, %v1558
      %v1560 = vpop.f32.mrb[0].mxu0
      %v1561 = vpop.f32.mrb[0].mxu0
      %v1562 = vadd.f32 0.0, %v1561
      %v1563 = vpop.f32.mrb[0].mxu0
      %1564 = vdwg.mxu0
      %v1565 = vld [vmem:[#allocation2] sm:$0xff]
      %v1566 = vld [vmem:[#allocation2 + $0x8] sm:$0xff]
      %v1567 = vld [vmem:[#allocation2 + $0x10] sm:$0xff]
      %v1568 = vld [vmem:[#allocation2 + $0x18] sm:$0xff]
      %v1569 = vld [vmem:[#allocation2 + $0x20] sm:$0xff]
      %v1570 = vld [vmem:[#allocation2 + $0x28] sm:$0xff]
      %v1571 = vld [vmem:[#allocation2 + $0x30] sm:$0xff]
      %v1572 = vld [vmem:[#allocation2 + $0x38] sm:$0xff]
      %v1573 = vld [vmem:[#allocation2 + $0x40] sm:$0xff]
      %v1574 = vld [vmem:[#allocation2 + $0x48] sm:$0xff]
      %v1575 = vld [vmem:[#allocation2 + $0x50] sm:$0xff]
      %v1576 = vld [vmem:[#allocation2 + $0x58] sm:$0xff]
      %v1577 = vld [vmem:[#allocation2 + $0x60] sm:$0xff]
      %v1578 = vld [vmem:[#allocation2 + $0x68] sm:$0xff]
      %v1579 = vld [vmem:[#allocation2 + $0x70] sm:$0xff]
      %v1580 = vld [vmem:[#allocation2 + $0x78] sm:$0xff]
      %v1581 = vld [vmem:[#allocation2 + $0x80] sm:$0xff]
      %v1582 = vld [vmem:[#allocation2 + $0x88] sm:$0xff]
      %v1583 = vld [vmem:[#allocation2 + $0x90] sm:$0xff]
      %v1584 = vld [vmem:[#allocation2 + $0x98] sm:$0xff]
      %v1585 = vld [vmem:[#allocation2 + $0xa0] sm:$0xff]
      %v1586 = vld [vmem:[#allocation2 + $0xa8] sm:$0xff]
      %v1587 = vld [vmem:[#allocation2 + $0xb0] sm:$0xff]
      %v1588 = vld [vmem:[#allocation2 + $0xb8] sm:$0xff]
      %v1589 = vld [vmem:[#allocation2 + $0xc0] sm:$0xff]
      %v1590 = vld [vmem:[#allocation2 + $0xc8] sm:$0xff]
      %v1591 = vld [vmem:[#allocation2 + $0xd0] sm:$0xff]
      %v1592 = vld [vmem:[#allocation2 + $0xd8] sm:$0xff]
      %v1593 = vld [vmem:[#allocation2 + $0xe0] sm:$0xff]
      %v1594 = vld [vmem:[#allocation2 + $0xe8] sm:$0xff]
      %v1595 = vld [vmem:[#allocation2 + $0xf0] sm:$0xff]
      %v1596 = vld [vmem:[#allocation2 + $0xf8] sm:$0xff]
      %v1597 = vadd.f32 %v1565, %v1439
      %v1598 = vadd.f32 %v1566, %v1442
      %v1599 = vadd.f32 %v1567, %v1447
      %v1600 = vadd.f32 %v1568, %v1450
      %v1601 = vadd.f32 %v1569, %v1455
      %v1602 = vadd.f32 %v1570, %v1458
      %v1603 = vadd.f32 %v1571, %v1463
      %v1604 = vadd.f32 %v1572, %v1466
      %v1605 = vadd.f32 %v1573, %v1471
      %v1606 = vadd.f32 %v1574, %v1474
      %v1607 = vadd.f32 %v1575, %v1479
      %v1608 = vadd.f32 %v1576, %v1482
      %v1609 = vadd.f32 %v1577, %v1487
      %v1610 = vadd.f32 %v1578, %v1490
      %v1611 = vadd.f32 %v1579, %v1495
      %v1612 = vadd.f32 %v1580, %v1498
      %v1613 = vadd.f32 %v1581, %v1503
      %v1614 = vadd.f32 %v1582, %v1506
      %v1615 = vadd.f32 %v1583, %v1511
      %v1616 = vadd.f32 %v1584, %v1514
      %v1617 = vadd.f32 %v1585, %v1519
      %v1618 = vadd.f32 %v1586, %v1522
      %v1619 = vadd.f32 %v1587, %v1527
      %v1620 = vadd.f32 %v1588, %v1530
      %v1621 = vadd.f32 %v1589, %v1535
      %v1622 = vadd.f32 %v1590, %v1538
      %v1623 = vadd.f32 %v1591, %v1543
      %v1624 = vadd.f32 %v1592, %v1546
      %v1625 = vadd.f32 %v1593, %v1551
      %v1626 = vadd.f32 %v1594, %v1554
      %v1627 = vadd.f32 %v1595, %v1559
      %v1628 = vadd.f32 %v1596, %v1562
      %1629 = vst [vmem:[#allocation2] sm:$0xff] %v1597
      %1630 = vst [vmem:[#allocation2 + $0x8] sm:$0xff] %v1598
      %1631 = vst [vmem:[#allocation2 + $0x10] sm:$0xff] %v1599
      %1632 = vst [vmem:[#allocation2 + $0x18] sm:$0xff] %v1600
      %1633 = vst [vmem:[#allocation2 + $0x20] sm:$0xff] %v1601
      %1634 = vst [vmem:[#allocation2 + $0x28] sm:$0xff] %v1602
      %1635 = vst [vmem:[#allocation2 + $0x30] sm:$0xff] %v1603
      %1636 = vst [vmem:[#allocation2 + $0x38] sm:$0xff] %v1604
      %1637 = vst [vmem:[#allocation2 + $0x40] sm:$0xff] %v1605
      %1638 = vst [vmem:[#allocation2 + $0x48] sm:$0xff] %v1606
      %1639 = vst [vmem:[#allocation2 + $0x50] sm:$0xff] %v1607
      %1640 = vst [vmem:[#allocation2 + $0x58] sm:$0xff] %v1608
      %1641 = vst [vmem:[#allocation2 + $0x60] sm:$0xff] %v1609
      %1642 = vst [vmem:[#allocation2 + $0x68] sm:$0xff] %v1610
      %1643 = vst [vmem:[#allocation2 + $0x70] sm:$0xff] %v1611
      %1644 = vst [vmem:[#allocation2 + $0x78] sm:$0xff] %v1612
      %1645 = vst [vmem:[#allocation2 + $0x80] sm:$0xff] %v1613
      %1646 = vst [vmem:[#allocation2 + $0x88] sm:$0xff] %v1614
      %1647 = vst [vmem:[#allocation2 + $0x90] sm:$0xff] %v1615
      %1648 = vst [vmem:[#allocation2 + $0x98] sm:$0xff] %v1616
      %1649 = vst [vmem:[#allocation2 + $0xa0] sm:$0xff] %v1617
      %1650 = vst [vmem:[#allocation2 + $0xa8] sm:$0xff] %v1618
      %1651 = vst [vmem:[#allocation2 + $0xb0] sm:$0xff] %v1619
      %1652 = vst [vmem:[#allocation2 + $0xb8] sm:$0xff] %v1620
      %1653 = vst [vmem:[#allocation2 + $0xc0] sm:$0xff] %v1621
      %1654 = vst [vmem:[#allocation2 + $0xc8] sm:$0xff] %v1622
      %1655 = vst [vmem:[#allocation2 + $0xd0] sm:$0xff] %v1623
      %1656 = vst [vmem:[#allocation2 + $0xd8] sm:$0xff] %v1624
      %1657 = vst [vmem:[#allocation2 + $0xe0] sm:$0xff] %v1625
      %1658 = vst [vmem:[#allocation2 + $0xe8] sm:$0xff] %v1626
      %1659 = vst [vmem:[#allocation2 + $0xf0] sm:$0xff] %v1627
      %1660 = vst [vmem:[#allocation2 + $0xf8] sm:$0xff] %v1628
      %v1661 = vld [vmem:[%s198] sm:$0xee]
      %v1662 = vld [vmem:[%s198 + $0x8] sm:$0xff]
      %v1663 = vld [vmem:[%s198 + $0x10] sm:$0x11]
      %v1664 = vld [vmem:[%s198 + $0x18] sm:$0xee]
      %v1665 = vld [vmem:[%s198 + $0x20] sm:$0xff]
      %v1666 = vld [vmem:[%s198 + $0x28] sm:$0x11]
      %v1667 = vld [vmem:[%s198 + $0x30] sm:$0xee]
      %v1668 = vld [vmem:[%s198 + $0x38] sm:$0xff]
      %v1669 = vld [vmem:[%s198 + $0x40] sm:$0x11]
      %v1670 = vld [vmem:[%s198 + $0x48] sm:$0xee]
      %v1671 = vld [vmem:[%s198 + $0x50] sm:$0xff]
      %v1672 = vld [vmem:[%s198 + $0x58] sm:$0x11]
      %v1673 = vld [vmem:[%s198 + $0x60] sm:$0xee]
      %v1674 = vld [vmem:[%s198 + $0x68] sm:$0xff]
      %v1675 = vld [vmem:[%s198 + $0x70] sm:$0x11]
      %v1676 = vld [vmem:[%s198 + $0x78] sm:$0xee]
      %v1677 = vld [vmem:[%s198 + $0x80] sm:$0xff]
      %v1678 = vld [vmem:[%s198 + $0x88] sm:$0x11]
      %v1679 = vld [vmem:[%s198 + $0x90] sm:$0xee]
      %v1680 = vld [vmem:[%s198 + $0x98] sm:$0xff]
      %v1681 = vld [vmem:[%s198 + $0xa0] sm:$0x11]
      %v1682 = vld [vmem:[%s198 + $0xa8] sm:$0xee]
      %v1683 = vld [vmem:[%s198 + $0xb0] sm:$0xff]
      %v1684 = vld [vmem:[%s198 + $0xb8] sm:$0x11]
      %v1685 = vld [vmem:[%s198 + $0xc0] sm:$0xee]
      %v1686 = vld [vmem:[%s198 + $0xc8] sm:$0xff]
      %v1687 = vld [vmem:[%s198 + $0xd0] sm:$0x11]
      %v1688 = vld [vmem:[%s198 + $0xd8] sm:$0xee]
      %v1689 = vld [vmem:[%s198 + $0xe0] sm:$0xff]
      %v1690 = vld [vmem:[%s198 + $0xe8] sm:$0x11]
      %v1691 = vld [vmem:[%s198 + $0xf0] sm:$0xee]
      %v1692 = vld [vmem:[%s198 + $0xf8] sm:$0xff]
      %v1693 = vld [vmem:[%s198 + $0x100] sm:$0x11]
      %v1694 = vld [vmem:[%s198 + $0x108] sm:$0xee]
      %v1695 = vld [vmem:[%s198 + $0x110] sm:$0xff]
      %v1696 = vld [vmem:[%s198 + $0x118] sm:$0x11]
      %v1697 = vld [vmem:[%s198 + $0x120] sm:$0xee]
      %v1698 = vld [vmem:[%s198 + $0x128] sm:$0xff]
      %v1699 = vld [vmem:[%s198 + $0x130] sm:$0x11]
      %v1700 = vld [vmem:[%s198 + $0x138] sm:$0xee]
      %v1701 = vld [vmem:[%s198 + $0x140] sm:$0xff]
      %v1702 = vld [vmem:[%s198 + $0x148] sm:$0x11]
      %v1703 = vld [vmem:[%s198 + $0x150] sm:$0xee]
      %v1704 = vld [vmem:[%s198 + $0x158] sm:$0xff]
      %v1705 = vld [vmem:[%s198 + $0x160] sm:$0x11]
      %v1706 = vld [vmem:[%s198 + $0x168] sm:$0xee]
      %v1707 = vld [vmem:[%s198 + $0x170] sm:$0xff]
      %v1708 = vld [vmem:[%s198 + $0x178] sm:$0x11]
      %vm1757 = vcmask 1042432
      %vm1758 = vcmask 1046532
      %vm1759 = vmor %vm1757, %vm1758
      %v1760 = vrot.slane %v1661, 5
      %v1761 = vrot.slane %v1760, 4
      %v1762 = vrot.slane %v1662, 5
      %v1763 = vsel %vm1759, %v1761, %v1762
      %v1764 = vrot.slane %v1762, 4
      %v1765 = vrot.slane %v1663, 5
      %v1766 = vsel %vm1759, %v1764, %v1765
      %v1767 = vrot.slane %v1664, 5
      %v1768 = vrot.slane %v1767, 4
      %v1769 = vrot.slane %v1665, 5
      %v1770 = vsel %vm1759, %v1768, %v1769
      %v1771 = vrot.slane %v1769, 4
      %v1772 = vrot.slane %v1666, 5
      %v1773 = vsel %vm1759, %v1771, %v1772
      %v1774 = vrot.slane %v1667, 5
      %v1775 = vrot.slane %v1774, 4
      %v1776 = vrot.slane %v1668, 5
      %v1777 = vsel %vm1759, %v1775, %v1776
      %v1778 = vrot.slane %v1776, 4
      %v1779 = vrot.slane %v1669, 5
      %v1780 = vsel %vm1759, %v1778, %v1779
      %v1781 = vrot.slane %v1670, 5
      %v1782 = vrot.slane %v1781, 4
      %v1783 = vrot.slane %v1671, 5
      %v1784 = vsel %vm1759, %v1782, %v1783
      %v1785 = vrot.slane %v1783, 4
      %v1786 = vrot.slane %v1672, 5
      %v1787 = vsel %vm1759, %v1785, %v1786
      %v1788 = vrot.slane %v1673, 5
      %v1789 = vrot.slane %v1788, 4
      %v1790 = vrot.slane %v1674, 5
      %v1791 = vsel %vm1759, %v1789, %v1790
      %v1792 = vrot.slane %v1790, 4
      %v1793 = vrot.slane %v1675, 5
      %v1794 = vsel %vm1759, %v1792, %v1793
      %v1795 = vrot.slane %v1676, 5
      %v1796 = vrot.slane %v1795, 4
      %v1797 = vrot.slane %v1677, 5
      %v1798 = vsel %vm1759, %v1796, %v1797
      %v1799 = vrot.slane %v1797, 4
      %v1800 = vrot.slane %v1678, 5
      %v1801 = vsel %vm1759, %v1799, %v1800
      %v1802 = vrot.slane %v1679, 5
      %v1803 = vrot.slane %v1802, 4
      %v1804 = vrot.slane %v1680, 5
      %v1805 = vsel %vm1759, %v1803, %v1804
      %v1806 = vrot.slane %v1804, 4
      %v1807 = vrot.slane %v1681, 5
      %v1808 = vsel %vm1759, %v1806, %v1807
      %v1809 = vrot.slane %v1682, 5
      %v1810 = vrot.slane %v1809, 4
      %v1811 = vrot.slane %v1683, 5
      %v1812 = vsel %vm1759, %v1810, %v1811
      %v1813 = vrot.slane %v1811, 4
      %v1814 = vrot.slane %v1684, 5
      %v1815 = vsel %vm1759, %v1813, %v1814
      %v1816 = vrot.slane %v1685, 5
      %v1817 = vrot.slane %v1816, 4
      %v1818 = vrot.slane %v1686, 5
      %v1819 = vsel %vm1759, %v1817, %v1818
      %v1820 = vrot.slane %v1818, 4
      %v1821 = vrot.slane %v1687, 5
      %v1822 = vsel %vm1759, %v1820, %v1821
      %v1823 = vrot.slane %v1688, 5
      %v1824 = vrot.slane %v1823, 4
      %v1825 = vrot.slane %v1689, 5
      %v1826 = vsel %vm1759, %v1824, %v1825
      %v1827 = vrot.slane %v1825, 4
      %v1828 = vrot.slane %v1690, 5
      %v1829 = vsel %vm1759, %v1827, %v1828
      %v1830 = vrot.slane %v1691, 5
      %v1831 = vrot.slane %v1830, 4
      %v1832 = vrot.slane %v1692, 5
      %v1833 = vsel %vm1759, %v1831, %v1832
      %v1834 = vrot.slane %v1832, 4
      %v1835 = vrot.slane %v1693, 5
      %v1836 = vsel %vm1759, %v1834, %v1835
      %v1837 = vrot.slane %v1694, 5
      %v1838 = vrot.slane %v1837, 4
      %v1839 = vrot.slane %v1695, 5
      %v1840 = vsel %vm1759, %v1838, %v1839
      %v1841 = vrot.slane %v1839, 4
      %v1842 = vrot.slane %v1696, 5
      %v1843 = vsel %vm1759, %v1841, %v1842
      %v1844 = vrot.slane %v1697, 5
      %v1845 = vrot.slane %v1844, 4
      %v1846 = vrot.slane %v1698, 5
      %v1847 = vsel %vm1759, %v1845, %v1846
      %v1848 = vrot.slane %v1846, 4
      %v1849 = vrot.slane %v1699, 5
      %v1850 = vsel %vm1759, %v1848, %v1849
      %v1851 = vrot.slane %v1700, 5
      %v1852 = vrot.slane %v1851, 4
      %v1853 = vrot.slane %v1701, 5
      %v1854 = vsel %vm1759, %v1852, %v1853
      %v1855 = vrot.slane %v1853, 4
      %v1856 = vrot.slane %v1702, 5
      %v1857 = vsel %vm1759, %v1855, %v1856
      %v1858 = vrot.slane %v1703, 5
      %v1859 = vrot.slane %v1858, 4
      %v1860 = vrot.slane %v1704, 5
      %v1861 = vsel %vm1759, %v1859, %v1860
      %v1862 = vrot.slane %v1860, 4
      %v1863 = vrot.slane %v1705, 5
      %v1864 = vsel %vm1759, %v1862, %v1863
      %v1865 = vrot.slane %v1706, 5
      %v1866 = vrot.slane %v1865, 4
      %v1867 = vrot.slane %v1707, 5
      %v1868 = vsel %vm1759, %v1866, %v1867
      %v1869 = vrot.slane %v1867, 4
      %v1870 = vrot.slane %v1708, 5
      %v1871 = vsel %vm1759, %v1869, %v1870
      %s1872 = scalar_lea.vmem %s1, 256
      %v1873 = vld [vmem:[%s1872] sm:$0xf]
      %v1874 = vld [vmem:[%s1872 + $0x4] sm:$0xf]
      %v1875 = vld [vmem:[%s1872 + $0x8] sm:$0xf]
      %v1876 = vld [vmem:[%s1872 + $0xc] sm:$0xf]
      %v1877 = vld [vmem:[%s1872 + $0x10] sm:$0xf]
      %v1878 = vld [vmem:[%s1872 + $0x14] sm:$0xf]
      %v1879 = vld [vmem:[%s1872 + $0x18] sm:$0xf]
      %v1880 = vld [vmem:[%s1872 + $0x1c] sm:$0xf]
      %v1881 = vld [vmem:[%s1872 + $0x20] sm:$0xf]
      %v1882 = vld [vmem:[%s1872 + $0x24] sm:$0xf]
      %v1883 = vld [vmem:[%s1872 + $0x28] sm:$0xf]
      %v1884 = vld [vmem:[%s1872 + $0x2c] sm:$0xf]
      %v1885 = vld [vmem:[%s1872 + $0x30] sm:$0xf]
      %v1886 = vld [vmem:[%s1872 + $0x34] sm:$0xf]
      %v1887 = vld [vmem:[%s1872 + $0x38] sm:$0xf]
      %v1888 = vld [vmem:[%s1872 + $0x3c] sm:$0xf]
      %v1889 = vld [vmem:[%s1872 + $0x40] sm:$0xf]
      %v1890 = vld [vmem:[%s1872 + $0x44] sm:$0xf]
      %v1891 = vld [vmem:[%s1872 + $0x48] sm:$0xf]
      %v1892 = vld [vmem:[%s1872 + $0x4c] sm:$0xf]
      %v1893 = vld [vmem:[%s1872 + $0x50] sm:$0xf]
      %v1894 = vld [vmem:[%s1872 + $0x54] sm:$0xf]
      %v1895 = vld [vmem:[%s1872 + $0x58] sm:$0xf]
      %v1896 = vld [vmem:[%s1872 + $0x5c] sm:$0xf]
      %v1897 = vld [vmem:[%s1872 + $0x60] sm:$0xf]
      %v1898 = vld [vmem:[%s1872 + $0x64] sm:$0xf]
      %v1899 = vld [vmem:[%s1872 + $0x68] sm:$0xf]
      %v1900 = vld [vmem:[%s1872 + $0x6c] sm:$0xf]
      %v1901 = vld [vmem:[%s1872 + $0x70] sm:$0xf]
      %v1902 = vld [vmem:[%s1872 + $0x74] sm:$0xf]
      %v1903 = vld [vmem:[%s1872 + $0x78] sm:$0xf]
      %v1904 = vld [vmem:[%s1872 + $0x7c] sm:$0xf]
      %v1905 = vunpack.c.l.b16 %v1763
      %v1906 = vunpack.c.h.b16 %v1763
      %v1907 = vunpack.c.l.b16 %v1766
      %v1908 = vunpack.c.h.b16 %v1766
      %v1909 = vunpack.c.l.b16 %v1770
      %v1910 = vunpack.c.h.b16 %v1770
      %v1911 = vunpack.c.l.b16 %v1773
      %v1912 = vunpack.c.h.b16 %v1773
      %v1913 = vunpack.c.l.b16 %v1777
      %v1914 = vunpack.c.h.b16 %v1777
      %v1915 = vunpack.c.l.b16 %v1780
      %v1916 = vunpack.c.h.b16 %v1780
      %v1917 = vunpack.c.l.b16 %v1784
      %v1918 = vunpack.c.h.b16 %v1784
      %v1919 = vunpack.c.l.b16 %v1787
      %v1920 = vunpack.c.h.b16 %v1787
      %v1921 = vunpack.c.l.b16 %v1791
      %v1922 = vunpack.c.h.b16 %v1791
      %v1923 = vunpack.c.l.b16 %v1794
      %v1924 = vunpack.c.h.b16 %v1794
      %v1925 = vunpack.c.l.b16 %v1798
      %v1926 = vunpack.c.h.b16 %v1798
      %v1927 = vunpack.c.l.b16 %v1801
      %v1928 = vunpack.c.h.b16 %v1801
      %v1929 = vunpack.c.l.b16 %v1805
      %v1930 = vunpack.c.h.b16 %v1805
      %v1931 = vunpack.c.l.b16 %v1808
      %v1932 = vunpack.c.h.b16 %v1808
      %v1933 = vunpack.c.l.b16 %v1812
      %v1934 = vunpack.c.h.b16 %v1812
      %v1935 = vunpack.c.l.b16 %v1815
      %v1936 = vunpack.c.h.b16 %v1815
      %v1937 = vunpack.c.l.b16 %v1819
      %v1938 = vunpack.c.h.b16 %v1819
      %v1939 = vunpack.c.l.b16 %v1822
      %v1940 = vunpack.c.h.b16 %v1822
      %v1941 = vunpack.c.l.b16 %v1826
      %v1942 = vunpack.c.h.b16 %v1826
      %v1943 = vunpack.c.l.b16 %v1829
      %v1944 = vunpack.c.h.b16 %v1829
      %v1945 = vunpack.c.l.b16 %v1833
      %v1946 = vunpack.c.h.b16 %v1833
      %v1947 = vunpack.c.l.b16 %v1836
      %v1948 = vunpack.c.h.b16 %v1836
      %v1949 = vunpack.c.l.b16 %v1840
      %v1950 = vunpack.c.h.b16 %v1840
      %v1951 = vunpack.c.l.b16 %v1843
      %v1952 = vunpack.c.h.b16 %v1843
      %v1953 = vunpack.c.l.b16 %v1847
      %v1954 = vunpack.c.h.b16 %v1847
      %v1955 = vunpack.c.l.b16 %v1850
      %v1956 = vunpack.c.h.b16 %v1850
      %v1957 = vunpack.c.l.b16 %v1854
      %v1958 = vunpack.c.h.b16 %v1854
      %v1959 = vunpack.c.l.b16 %v1857
      %v1960 = vunpack.c.h.b16 %v1857
      %v1961 = vunpack.c.l.b16 %v1861
      %v1962 = vunpack.c.h.b16 %v1861
      %v1963 = vunpack.c.l.b16 %v1864
      %v1964 = vunpack.c.h.b16 %v1864
      %v1965 = vunpack.c.l.b16 %v1868
      %v1966 = vunpack.c.h.b16 %v1868
      %v1967 = vunpack.c.l.b16 %v1871
      %v1968 = vunpack.c.h.b16 %v1871
      %v1969 = vpack.c.b16 %v1907, %v1905
      %v1970 = vpack.c.b16 %v1908, %v1906
      %v1971 = vpack.c.b16 %v1911, %v1909
      %v1972 = vpack.c.b16 %v1912, %v1910
      %v1973 = vpack.c.b16 %v1915, %v1913
      %v1974 = vpack.c.b16 %v1916, %v1914
      %v1975 = vpack.c.b16 %v1919, %v1917
      %v1976 = vpack.c.b16 %v1920, %v1918
      %v1977 = vpack.c.b16 %v1923, %v1921
      %v1978 = vpack.c.b16 %v1924, %v1922
      %v1979 = vpack.c.b16 %v1927, %v1925
      %v1980 = vpack.c.b16 %v1928, %v1926
      %v1981 = vpack.c.b16 %v1931, %v1929
      %v1982 = vpack.c.b16 %v1932, %v1930
      %v1983 = vpack.c.b16 %v1935, %v1933
      %v1984 = vpack.c.b16 %v1936, %v1934
      %v1985 = vpack.c.b16 %v1939, %v1937
      %v1986 = vpack.c.b16 %v1940, %v1938
      %v1987 = vpack.c.b16 %v1943, %v1941
      %v1988 = vpack.c.b16 %v1944, %v1942
      %v1989 = vpack.c.b16 %v1947, %v1945
      %v1990 = vpack.c.b16 %v1948, %v1946
      %v1991 = vpack.c.b16 %v1951, %v1949
      %v1992 = vpack.c.b16 %v1952, %v1950
      %v1993 = vpack.c.b16 %v1955, %v1953
      %v1994 = vpack.c.b16 %v1956, %v1954
      %v1995 = vpack.c.b16 %v1959, %v1957
      %v1996 = vpack.c.b16 %v1960, %v1958
      %v1997 = vpack.c.b16 %v1963, %v1961
      %v1998 = vpack.c.b16 %v1964, %v1962
      %v1999 = vpack.c.b16 %v1967, %v1965
      %v2000 = vpack.c.b16 %v1968, %v1966
      %v2065 = vunpack.c.l.b16 %v1873
      %v2066 = vunpack.c.l.b16 %v1874
      %v2067 = vunpack.c.l.b16 %v1875
      %v2068 = vunpack.c.l.b16 %v1876
      %v2069 = vunpack.c.l.b16 %v1877
      %v2070 = vunpack.c.l.b16 %v1878
      %v2071 = vunpack.c.l.b16 %v1879
      %v2072 = vunpack.c.l.b16 %v1880
      %v2073 = vunpack.c.l.b16 %v1881
      %v2074 = vunpack.c.l.b16 %v1882
      %v2075 = vunpack.c.l.b16 %v1883
      %v2076 = vunpack.c.l.b16 %v1884
      %v2077 = vunpack.c.l.b16 %v1885
      %v2078 = vunpack.c.l.b16 %v1886
      %v2079 = vunpack.c.l.b16 %v1887
      %v2080 = vunpack.c.l.b16 %v1888
      %v2081 = vunpack.c.l.b16 %v1889
      %v2082 = vunpack.c.l.b16 %v1890
      %v2083 = vunpack.c.l.b16 %v1891
      %v2084 = vunpack.c.l.b16 %v1892
      %v2085 = vunpack.c.l.b16 %v1893
      %v2086 = vunpack.c.l.b16 %v1894
      %v2087 = vunpack.c.l.b16 %v1895
      %v2088 = vunpack.c.l.b16 %v1896
      %v2089 = vunpack.c.l.b16 %v1897
      %v2090 = vunpack.c.l.b16 %v1898
      %v2091 = vunpack.c.l.b16 %v1899
      %v2092 = vunpack.c.l.b16 %v1900
      %v2093 = vunpack.c.l.b16 %v1901
      %v2094 = vunpack.c.l.b16 %v1902
      %v2095 = vunpack.c.l.b16 %v1903
      %v2096 = vunpack.c.l.b16 %v1904
      %v2097 = vpack.c.b16 %v2066, %v2065
      %v2098 = vpack.c.b16 %v2068, %v2067
      %v2099 = vpack.c.b16 %v2070, %v2069
      %v2100 = vpack.c.b16 %v2072, %v2071
      %v2101 = vpack.c.b16 %v2074, %v2073
      %v2102 = vpack.c.b16 %v2076, %v2075
      %v2103 = vpack.c.b16 %v2078, %v2077
      %v2104 = vpack.c.b16 %v2080, %v2079
      %v2105 = vpack.c.b16 %v2082, %v2081
      %v2106 = vpack.c.b16 %v2084, %v2083
      %v2107 = vpack.c.b16 %v2086, %v2085
      %v2108 = vpack.c.b16 %v2088, %v2087
      %v2109 = vpack.c.b16 %v2090, %v2089
      %v2110 = vpack.c.b16 %v2092, %v2091
      %v2111 = vpack.c.b16 %v2094, %v2093
      %v2112 = vpack.c.b16 %v2096, %v2095
      %2129 = vmatprep.subr.bf16.mxu0 0
      %2130 = vmatpush1.bf16.msra.mxu0 %v2097
      %2131 = vmatprep.subr.bf16.mxu0 0
      %2132 = vmatpush1.bf16.msra.mxu0 %v2098
      %2133 = vmatprep.subr.bf16.mxu0 0
      %2134 = vmatpush1.bf16.msra.mxu0 %v2099
      %2135 = vmatprep.subr.bf16.mxu0 0
      %2136 = vmatpush1.bf16.msra.mxu0 %v2100
      %2137 = vmatprep.subr.bf16.mxu0 0
      %2138 = vmatpush1.bf16.msra.mxu0 %v2101
      %2139 = vmatprep.subr.bf16.mxu0 0
      %2140 = vmatpush1.bf16.msra.mxu0 %v2102
      %2141 = vmatprep.subr.bf16.mxu0 0
      %2142 = vmatpush1.bf16.msra.mxu0 %v2103
      %2143 = vmatprep.subr.bf16.mxu0 0
      %2144 = vmatpush1.bf16.msra.mxu0 %v2104
      %2145 = vmatprep.subr.bf16.mxu0 0
      %2146 = vmatpush1.bf16.msra.mxu0 %v2105
      %2147 = vmatprep.subr.bf16.mxu0 0
      %2148 = vmatpush1.bf16.msra.mxu0 %v2106
      %2149 = vmatprep.subr.bf16.mxu0 0
      %2150 = vmatpush1.bf16.msra.mxu0 %v2107
      %2151 = vmatprep.subr.bf16.mxu0 0
      %2152 = vmatpush1.bf16.msra.mxu0 %v2108
      %2153 = vmatprep.subr.bf16.mxu0 0
      %2154 = vmatpush1.bf16.msra.mxu0 %v2109
      %2155 = vmatprep.subr.bf16.mxu0 0
      %2156 = vmatpush1.bf16.msra.mxu0 %v2110
      %2157 = vmatprep.subr.bf16.mxu0 0
      %2158 = vmatpush1.bf16.msra.mxu0 %v2111
      %2159 = vmatprep.subr.bf16.mxu0 0
      %2160 = vmatpush1.bf16.msra.mxu0 %v2112
      %2161 = vmatprep.mubr.bf16.mxu0 %v1970
      %2162 = vmatmul.mubr.bf16.gmra.mrb[0].mxu0 %v1969
      %v2163 = vpop.f32.mrb[0].mxu0
      %v2164 = vadd.f32 0.0, %v2163
      %v2165 = vpop.f32.mrb[0].mxu0
      %v2166 = vpop.f32.mrb[0].mxu0
      %v2167 = vadd.f32 0.0, %v2166
      %v2168 = vpop.f32.mrb[0].mxu0
      %2169 = vmatprep.mubr.bf16.mxu0 %v1972
      %2170 = vmatmul.mubr.bf16.gmra.mrb[0].mxu0 %v1971
      %v2171 = vpop.f32.mrb[0].mxu0
      %v2172 = vadd.f32 0.0, %v2171
      %v2173 = vpop.f32.mrb[0].mxu0
      %v2174 = vpop.f32.mrb[0].mxu0
      %v2175 = vadd.f32 0.0, %v2174
      %v2176 = vpop.f32.mrb[0].mxu0
      %2177 = vmatprep.mubr.bf16.mxu0 %v1974
      %2178 = vmatmul.mubr.bf16.gmra.mrb[0].mxu0 %v1973
      %v2179 = vpop.f32.mrb[0].mxu0
      %v2180 = vadd.f32 0.0, %v2179
      %v2181 = vpop.f32.mrb[0].mxu0
      %v2182 = vpop.f32.mrb[0].mxu0
      %v2183 = vadd.f32 0.0, %v2182
      %v2184 = vpop.f32.mrb[0].mxu0
      %2185 = vmatprep.mubr.bf16.mxu0 %v1976
      %2186 = vmatmul.mubr.bf16.gmra.mrb[0].mxu0 %v1975
      %v2187 = vpop.f32.mrb[0].mxu0
      %v2188 = vadd.f32 0.0, %v2187
      %v2189 = vpop.f32.mrb[0].mxu0
      %v2190 = vpop.f32.mrb[0].mxu0
      %v2191 = vadd.f32 0.0, %v2190
      %v2192 = vpop.f32.mrb[0].mxu0
      %2193 = vmatprep.mubr.bf16.mxu0 %v1978
      %2194 = vmatmul.mubr.bf16.gmra.mrb[0].mxu0 %v1977
      %v2195 = vpop.f32.mrb[0].mxu0
      %v2196 = vadd.f32 0.0, %v2195
      %v2197 = vpop.f32.mrb[0].mxu0
      %v2198 = vpop.f32.mrb[0].mxu0
      %v2199 = vadd.f32 0.0, %v2198
      %v2200 = vpop.f32.mrb[0].mxu0
      %2201 = vmatprep.mubr.bf16.mxu0 %v1980
      %2202 = vmatmul.mubr.bf16.gmra.mrb[0].mxu0 %v1979
      %v2203 = vpop.f32.mrb[0].mxu0
      %v2204 = vadd.f32 0.0, %v2203
      %v2205 = vpop.f32.mrb[0].mxu0
      %v2206 = vpop.f32.mrb[0].mxu0
      %v2207 = vadd.f32 0.0, %v2206
      %v2208 = vpop.f32.mrb[0].mxu0
      %2209 = vmatprep.mubr.bf16.mxu0 %v1982
      %2210 = vmatmul.mubr.bf16.gmra.mrb[0].mxu0 %v1981
      %v2211 = vpop.f32.mrb[0].mxu0
      %v2212 = vadd.f32 0.0, %v2211
      %v2213 = vpop.f32.mrb[0].mxu0
      %v2214 = vpop.f32.mrb[0].mxu0
      %v2215 = vadd.f32 0.0, %v2214
      %v2216 = vpop.f32.mrb[0].mxu0
      %2217 = vmatprep.mubr.bf16.mxu0 %v1984
      %2218 = vmatmul.mubr.bf16.gmra.mrb[0].mxu0 %v1983
      %v2219 = vpop.f32.mrb[0].mxu0
      %v2220 = vadd.f32 0.0, %v2219
      %v2221 = vpop.f32.mrb[0].mxu0
      %v2222 = vpop.f32.mrb[0].mxu0
      %v2223 = vadd.f32 0.0, %v2222
      %v2224 = vpop.f32.mrb[0].mxu0
      %2225 = vmatprep.mubr.bf16.mxu0 %v1986
      %2226 = vmatmul.mubr.bf16.gmra.mrb[0].mxu0 %v1985
      %v2227 = vpop.f32.mrb[0].mxu0
      %v2228 = vadd.f32 0.0, %v2227
      %v2229 = vpop.f32.mrb[0].mxu0
      %v2230 = vpop.f32.mrb[0].mxu0
      %v2231 = vadd.f32 0.0, %v2230
      %v2232 = vpop.f32.mrb[0].mxu0
      %2233 = vmatprep.mubr.bf16.mxu0 %v1988
      %2234 = vmatmul.mubr.bf16.gmra.mrb[0].mxu0 %v1987
      %v2235 = vpop.f32.mrb[0].mxu0
      %v2236 = vadd.f32 0.0, %v2235
      %v2237 = vpop.f32.mrb[0].mxu0
      %v2238 = vpop.f32.mrb[0].mxu0
      %v2239 = vadd.f32 0.0, %v2238
      %v2240 = vpop.f32.mrb[0].mxu0
      %2241 = vmatprep.mubr.bf16.mxu0 %v1990
      %2242 = vmatmul.mubr.bf16.gmra.mrb[0].mxu0 %v1989
      %v2243 = vpop.f32.mrb[0].mxu0
      %v2244 = vadd.f32 0.0, %v2243
      %v2245 = vpop.f32.mrb[0].mxu0
      %v2246 = vpop.f32.mrb[0].mxu0
      %v2247 = vadd.f32 0.0, %v2246
      %v2248 = vpop.f32.mrb[0].mxu0
      %2249 = vmatprep.mubr.bf16.mxu0 %v1992
      %2250 = vmatmul.mubr.bf16.gmra.mrb[0].mxu0 %v1991
      %v2251 = vpop.f32.mrb[0].mxu0
      %v2252 = vadd.f32 0.0, %v2251
      %v2253 = vpop.f32.mrb[0].mxu0
      %v2254 = vpop.f32.mrb[0].mxu0
      %v2255 = vadd.f32 0.0, %v2254
      %v2256 = vpop.f32.mrb[0].mxu0
      %2257 = vmatprep.mubr.bf16.mxu0 %v1994
      %2258 = vmatmul.mubr.bf16.gmra.mrb[0].mxu0 %v1993
      %v2259 = vpop.f32.mrb[0].mxu0
      %v2260 = vadd.f32 0.0, %v2259
      %v2261 = vpop.f32.mrb[0].mxu0
      %v2262 = vpop.f32.mrb[0].mxu0
      %v2263 = vadd.f32 0.0, %v2262
      %v2264 = vpop.f32.mrb[0].mxu0
      %2265 = vmatprep.mubr.bf16.mxu0 %v1996
      %2266 = vmatmul.mubr.bf16.gmra.mrb[0].mxu0 %v1995
      %v2267 = vpop.f32.mrb[0].mxu0
      %v2268 = vadd.f32 0.0, %v2267
      %v2269 = vpop.f32.mrb[0].mxu0
      %v2270 = vpop.f32.mrb[0].mxu0
      %v2271 = vadd.f32 0.0, %v2270
      %v2272 = vpop.f32.mrb[0].mxu0
      %2273 = vmatprep.mubr.bf16.mxu0 %v1998
      %2274 = vmatmul.mubr.bf16.gmra.mrb[0].mxu0 %v1997
      %v2275 = vpop.f32.mrb[0].mxu0
      %v2276 = vadd.f32 0.0, %v2275
      %v2277 = vpop.f32.mrb[0].mxu0
      %v2278 = vpop.f32.mrb[0].mxu0
      %v2279 = vadd.f32 0.0, %v2278
      %v2280 = vpop.f32.mrb[0].mxu0
      %2281 = vmatprep.mubr.bf16.mxu0 %v2000
      %2282 = vmatmul.mubr.bf16.gmra.mrb[0].mxu0 %v1999
      %v2283 = vpop.f32.mrb[0].mxu0
      %v2284 = vadd.f32 0.0, %v2283
      %v2285 = vpop.f32.mrb[0].mxu0
      %v2286 = vpop.f32.mrb[0].mxu0
      %v2287 = vadd.f32 0.0, %v2286
      %v2288 = vpop.f32.mrb[0].mxu0
      %2289 = vdwg.mxu0
      %v2290 = vld [vmem:[#allocation2] sm:$0xff]
      %v2291 = vld [vmem:[#allocation2 + $0x8] sm:$0xff]
      %v2292 = vld [vmem:[#allocation2 + $0x10] sm:$0xff]
      %v2293 = vld [vmem:[#allocation2 + $0x18] sm:$0xff]
      %v2294 = vld [vmem:[#allocation2 + $0x20] sm:$0xff]
      %v2295 = vld [vmem:[#allocation2 + $0x28] sm:$0xff]
      %v2296 = vld [vmem:[#allocation2 + $0x30] sm:$0xff]
      %v2297 = vld [vmem:[#allocation2 + $0x38] sm:$0xff]
      %v2298 = vld [vmem:[#allocation2 + $0x40] sm:$0xff]
      %v2299 = vld [vmem:[#allocation2 + $0x48] sm:$0xff]
      %v2300 = vld [vmem:[#allocation2 + $0x50] sm:$0xff]
      %v2301 = vld [vmem:[#allocation2 + $0x58] sm:$0xff]
      %v2302 = vld [vmem:[#allocation2 + $0x60] sm:$0xff]
      %v2303 = vld [vmem:[#allocation2 + $0x68] sm:$0xff]
      %v2304 = vld [vmem:[#allocation2 + $0x70] sm:$0xff]
      %v2305 = vld [vmem:[#allocation2 + $0x78] sm:$0xff]
      %v2306 = vld [vmem:[#allocation2 + $0x80] sm:$0xff]
      %v2307 = vld [vmem:[#allocation2 + $0x88] sm:$0xff]
      %v2308 = vld [vmem:[#allocation2 + $0x90] sm:$0xff]
      %v2309 = vld [vmem:[#allocation2 + $0x98] sm:$0xff]
      %v2310 = vld [vmem:[#allocation2 + $0xa0] sm:$0xff]
      %v2311 = vld [vmem:[#allocation2 + $0xa8] sm:$0xff]
      %v2312 = vld [vmem:[#allocation2 + $0xb0] sm:$0xff]
      %v2313 = vld [vmem:[#allocation2 + $0xb8] sm:$0xff]
      %v2314 = vld [vmem:[#allocation2 + $0xc0] sm:$0xff]
      %v2315 = vld [vmem:[#allocation2 + $0xc8] sm:$0xff]
      %v2316 = vld [vmem:[#allocation2 + $0xd0] sm:$0xff]
      %v2317 = vld [vmem:[#allocation2 + $0xd8] sm:$0xff]
      %v2318 = vld [vmem:[#allocation2 + $0xe0] sm:$0xff]
      %v2319 = vld [vmem:[#allocation2 + $0xe8] sm:$0xff]
      %v2320 = vld [vmem:[#allocation2 + $0xf0] sm:$0xff]
      %v2321 = vld [vmem:[#allocation2 + $0xf8] sm:$0xff]
      %v2322 = vadd.f32 %v2290, %v2164
      %v2323 = vadd.f32 %v2291, %v2167
      %v2324 = vadd.f32 %v2292, %v2172
      %v2325 = vadd.f32 %v2293, %v2175
      %v2326 = vadd.f32 %v2294, %v2180
      %v2327 = vadd.f32 %v2295, %v2183
      %v2328 = vadd.f32 %v2296, %v2188
      %v2329 = vadd.f32 %v2297, %v2191
      %v2330 = vadd.f32 %v2298, %v2196
      %v2331 = vadd.f32 %v2299, %v2199
      %v2332 = vadd.f32 %v2300, %v2204
      %v2333 = vadd.f32 %v2301, %v2207
      %v2334 = vadd.f32 %v2302, %v2212
      %v2335 = vadd.f32 %v2303, %v2215
      %v2336 = vadd.f32 %v2304, %v2220
      %v2337 = vadd.f32 %v2305, %v2223
      %v2338 = vadd.f32 %v2306, %v2228
      %v2339 = vadd.f32 %v2307, %v2231
      %v2340 = vadd.f32 %v2308, %v2236
      %v2341 = vadd.f32 %v2309, %v2239
      %v2342 = vadd.f32 %v2310, %v2244
      %v2343 = vadd.f32 %v2311, %v2247
      %v2344 = vadd.f32 %v2312, %v2252
      %v2345 = vadd.f32 %v2313, %v2255
      %v2346 = vadd.f32 %v2314, %v2260
      %v2347 = vadd.f32 %v2315, %v2263
      %v2348 = vadd.f32 %v2316, %v2268
      %v2349 = vadd.f32 %v2317, %v2271
      %v2350 = vadd.f32 %v2318, %v2276
      %v2351 = vadd.f32 %v2319, %v2279
      %v2352 = vadd.f32 %v2320, %v2284
      %v2353 = vadd.f32 %v2321, %v2287
      %2354 = vst [vmem:[#allocation2] sm:$0xff] %v2322
      %2355 = vst [vmem:[#allocation2 + $0x8] sm:$0xff] %v2323
      %2356 = vst [vmem:[#allocation2 + $0x10] sm:$0xff] %v2324
      %2357 = vst [vmem:[#allocation2 + $0x18] sm:$0xff] %v2325
      %2358 = vst [vmem:[#allocation2 + $0x20] sm:$0xff] %v2326
      %2359 = vst [vmem:[#allocation2 + $0x28] sm:$0xff] %v2327
      %2360 = vst [vmem:[#allocation2 + $0x30] sm:$0xff] %v2328
      %2361 = vst [vmem:[#allocation2 + $0x38] sm:$0xff] %v2329
      %2362 = vst [vmem:[#allocation2 + $0x40] sm:$0xff] %v2330
      %2363 = vst [vmem:[#allocation2 + $0x48] sm:$0xff] %v2331
      %2364 = vst [vmem:[#allocation2 + $0x50] sm:$0xff] %v2332
      %2365 = vst [vmem:[#allocation2 + $0x58] sm:$0xff] %v2333
      %2366 = vst [vmem:[#allocation2 + $0x60] sm:$0xff] %v2334
      %2367 = vst [vmem:[#allocation2 + $0x68] sm:$0xff] %v2335
      %2368 = vst [vmem:[#allocation2 + $0x70] sm:$0xff] %v2336
      %2369 = vst [vmem:[#allocation2 + $0x78] sm:$0xff] %v2337
      %2370 = vst [vmem:[#allocation2 + $0x80] sm:$0xff] %v2338
      %2371 = vst [vmem:[#allocation2 + $0x88] sm:$0xff] %v2339
      %2372 = vst [vmem:[#allocation2 + $0x90] sm:$0xff] %v2340
      %2373 = vst [vmem:[#allocation2 + $0x98] sm:$0xff] %v2341
      %2374 = vst [vmem:[#allocation2 + $0xa0] sm:$0xff] %v2342
      %2375 = vst [vmem:[#allocation2 + $0xa8] sm:$0xff] %v2343
      %2376 = vst [vmem:[#allocation2 + $0xb0] sm:$0xff] %v2344
      %2377 = vst [vmem:[#allocation2 + $0xb8] sm:$0xff] %v2345
      %2378 = vst [vmem:[#allocation2 + $0xc0] sm:$0xff] %v2346
      %2379 = vst [vmem:[#allocation2 + $0xc8] sm:$0xff] %v2347
      %2380 = vst [vmem:[#allocation2 + $0xd0] sm:$0xff] %v2348
      %2381 = vst [vmem:[#allocation2 + $0xd8] sm:$0xff] %v2349
      %2382 = vst [vmem:[#allocation2 + $0xe0] sm:$0xff] %v2350
      %2383 = vst [vmem:[#allocation2 + $0xe8] sm:$0xff] %v2351
      %2384 = vst [vmem:[#allocation2 + $0xf0] sm:$0xff] %v2352
      %2385 = vst [vmem:[#allocation2 + $0xf8] sm:$0xff] %v2353
      %s2386 = sadd.s32 %s195, 1
      %s2387 = smul.u32 %s2386, 6
      %s2388 = smul.addr %s2387, 4
      %s2389 = scalar_lea.vmem %s183, %s2388
      %v2390 = vld [vmem:[%s2389] sm:$0xff]
      %v2391 = vld [vmem:[%s2389 + $0x8] sm:$0xff]
      %v2392 = vld [vmem:[%s2389 + $0x18] sm:$0xff]
      %v2393 = vld [vmem:[%s2389 + $0x20] sm:$0xff]
      %v2394 = vld [vmem:[%s2389 + $0x30] sm:$0xff]
      %v2395 = vld [vmem:[%s2389 + $0x38] sm:$0xff]
      %v2396 = vld [vmem:[%s2389 + $0x48] sm:$0xff]
      %v2397 = vld [vmem:[%s2389 + $0x50] sm:$0xff]
      %v2398 = vld [vmem:[%s2389 + $0x60] sm:$0xff]
      %v2399 = vld [vmem:[%s2389 + $0x68] sm:$0xff]
      %v2400 = vld [vmem:[%s2389 + $0x78] sm:$0xff]
      %v2401 = vld [vmem:[%s2389 + $0x80] sm:$0xff]
      %v2402 = vld [vmem:[%s2389 + $0x90] sm:$0xff]
      %v2403 = vld [vmem:[%s2389 + $0x98] sm:$0xff]
      %v2404 = vld [vmem:[%s2389 + $0xa8] sm:$0xff]
      %v2405 = vld [vmem:[%s2389 + $0xb0] sm:$0xff]
      %v2406 = vld [vmem:[%s2389 + $0xc0] sm:$0xff]
      %v2407 = vld [vmem:[%s2389 + $0xc8] sm:$0xff]
      %v2408 = vld [vmem:[%s2389 + $0xd8] sm:$0xff]
      %v2409 = vld [vmem:[%s2389 + $0xe0] sm:$0xff]
      %v2410 = vld [vmem:[%s2389 + $0xf0] sm:$0xff]
      %v2411 = vld [vmem:[%s2389 + $0xf8] sm:$0xff]
      %v2412 = vld [vmem:[%s2389 + $0x108] sm:$0xff]
      %v2413 = vld [vmem:[%s2389 + $0x110] sm:$0xff]
      %v2414 = vld [vmem:[%s2389 + $0x120] sm:$0xff]
      %v2415 = vld [vmem:[%s2389 + $0x128] sm:$0xff]
      %v2416 = vld [vmem:[%s2389 + $0x138] sm:$0xff]
      %v2417 = vld [vmem:[%s2389 + $0x140] sm:$0xff]
      %v2418 = vld [vmem:[%s2389 + $0x150] sm:$0xff]
      %v2419 = vld [vmem:[%s2389 + $0x158] sm:$0xff]
      %v2420 = vld [vmem:[%s2389 + $0x168] sm:$0xff]
      %v2421 = vld [vmem:[%s2389 + $0x170] sm:$0xff]
      %s2422 = scalar_lea.vmem %s1, 384
      %v2423 = vld [vmem:[%s2422] sm:$0xf]
      %v2424 = vld [vmem:[%s2422 + $0x4] sm:$0xf]
      %v2425 = vld [vmem:[%s2422 + $0x8] sm:$0xf]
      %v2426 = vld [vmem:[%s2422 + $0xc] sm:$0xf]
      %v2427 = vld [vmem:[%s2422 + $0x10] sm:$0xf]
      %v2428 = vld [vmem:[%s2422 + $0x14] sm:$0xf]
      %v2429 = vld [vmem:[%s2422 + $0x18] sm:$0xf]
      %v2430 = vld [vmem:[%s2422 + $0x1c] sm:$0xf]
      %v2431 = vld [vmem:[%s2422 + $0x20] sm:$0xf]
      %v2432 = vld [vmem:[%s2422 + $0x24] sm:$0xf]
      %v2433 = vld [vmem:[%s2422 + $0x28] sm:$0xf]
      %v2434 = vld [vmem:[%s2422 + $0x2c] sm:$0xf]
      %v2435 = vld [vmem:[%s2422 + $0x30] sm:$0xf]
      %v2436 = vld [vmem:[%s2422 + $0x34] sm:$0xf]
      %v2437 = vld [vmem:[%s2422 + $0x38] sm:$0xf]
      %v2438 = vld [vmem:[%s2422 + $0x3c] sm:$0xf]
      %v2439 = vld [vmem:[%s2422 + $0x40] sm:$0xf]
      %v2440 = vld [vmem:[%s2422 + $0x44] sm:$0xf]
      %v2441 = vld [vmem:[%s2422 + $0x48] sm:$0xf]
      %v2442 = vld [vmem:[%s2422 + $0x4c] sm:$0xf]
      %v2443 = vld [vmem:[%s2422 + $0x50] sm:$0xf]
      %v2444 = vld [vmem:[%s2422 + $0x54] sm:$0xf]
      %v2445 = vld [vmem:[%s2422 + $0x58] sm:$0xf]
      %v2446 = vld [vmem:[%s2422 + $0x5c] sm:$0xf]
      %v2447 = vld [vmem:[%s2422 + $0x60] sm:$0xf]
      %v2448 = vld [vmem:[%s2422 + $0x64] sm:$0xf]
      %v2449 = vld [vmem:[%s2422 + $0x68] sm:$0xf]
      %v2450 = vld [vmem:[%s2422 + $0x6c] sm:$0xf]
      %v2451 = vld [vmem:[%s2422 + $0x70] sm:$0xf]
      %v2452 = vld [vmem:[%s2422 + $0x74] sm:$0xf]
      %v2453 = vld [vmem:[%s2422 + $0x78] sm:$0xf]
      %v2454 = vld [vmem:[%s2422 + $0x7c] sm:$0xf]
      %v2487 = vunpack.c.l.b16 %v2390
      %v2488 = vunpack.c.h.b16 %v2390
      %v2489 = vunpack.c.l.b16 %v2391
      %v2490 = vunpack.c.h.b16 %v2391
      %v2491 = vunpack.c.l.b16 %v2392
      %v2492 = vunpack.c.h.b16 %v2392
      %v2493 = vunpack.c.l.b16 %v2393
      %v2494 = vunpack.c.h.b16 %v2393
      %v2495 = vunpack.c.l.b16 %v2394
      %v2496 = vunpack.c.h.b16 %v2394
      %v2497 = vunpack.c.l.b16 %v2395
      %v2498 = vunpack.c.h.b16 %v2395
      %v2499 = vunpack.c.l.b16 %v2396
      %v2500 = vunpack.c.h.b16 %v2396
      %v2501 = vunpack.c.l.b16 %v2397
      %v2502 = vunpack.c.h.b16 %v2397
      %v2503 = vunpack.c.l.b16 %v2398
      %v2504 = vunpack.c.h.b16 %v2398
      %v2505 = vunpack.c.l.b16 %v2399
      %v2506 = vunpack.c.h.b16 %v2399
      %v2507 = vunpack.c.l.b16 %v2400
      %v2508 = vunpack.c.h.b16 %v2400
      %v2509 = vunpack.c.l.b16 %v2401
      %v2510 = vunpack.c.h.b16 %v2401
      %v2511 = vunpack.c.l.b16 %v2402
      %v2512 = vunpack.c.h.b16 %v2402
      %v2513 = vunpack.c.l.b16 %v2403
      %v2514 = vunpack.c.h.b16 %v2403
      %v2515 = vunpack.c.l.b16 %v2404
      %v2516 = vunpack.c.h.b16 %v2404
      %v2517 = vunpack.c.l.b16 %v2405
      %v2518 = vunpack.c.h.b16 %v2405
      %v2519 = vunpack.c.l.b16 %v2406
      %v2520 = vunpack.c.h.b16 %v2406
      %v2521 = vunpack.c.l.b16 %v2407
      %v2522 = vunpack.c.h.b16 %v2407
      %v2523 = vunpack.c.l.b16 %v2408
      %v2524 = vunpack.c.h.b16 %v2408
      %v2525 = vunpack.c.l.b16 %v2409
      %v2526 = vunpack.c.h.b16 %v2409
      %v2527 = vunpack.c.l.b16 %v2410
      %v2528 = vunpack.c.h.b16 %v2410
      %v2529 = vunpack.c.l.b16 %v2411
      %v2530 = vunpack.c.h.b16 %v2411
      %v2531 = vunpack.c.l.b16 %v2412
      %v2532 = vunpack.c.h.b16 %v2412
      %v2533 = vunpack.c.l.b16 %v2413
      %v2534 = vunpack.c.h.b16 %v2413
      %v2535 = vunpack.c.l.b16 %v2414
      %v2536 = vunpack.c.h.b16 %v2414
      %v2537 = vunpack.c.l.b16 %v2415
      %v2538 = vunpack.c.h.b16 %v2415
      %v2539 = vunpack.c.l.b16 %v2416
      %v2540 = vunpack.c.h.b16 %v2416
      %v2541 = vunpack.c.l.b16 %v2417
      %v2542 = vunpack.c.h.b16 %v2417
      %v2543 = vunpack.c.l.b16 %v2418
      %v2544 = vunpack.c.h.b16 %v2418
      %v2545 = vunpack.c.l.b16 %v2419
      %v2546 = vunpack.c.h.b16 %v2419
      %v2547 = vunpack.c.l.b16 %v2420
      %v2548 = vunpack.c.h.b16 %v2420
      %v2549 = vunpack.c.l.b16 %v2421
      %v2550 = vunpack.c.h.b16 %v2421
      %v2551 = vpack.c.b16 %v2489, %v2487
      %v2552 = vpack.c.b16 %v2490, %v2488
      %v2553 = vpack.c.b16 %v2493, %v2491
      %v2554 = vpack.c.b16 %v2494, %v2492
      %v2555 = vpack.c.b16 %v2497, %v2495
      %v2556 = vpack.c.b16 %v2498, %v2496
      %v2557 = vpack.c.b16 %v2501, %v2499
      %v2558 = vpack.c.b16 %v2502, %v2500
      %v2559 = vpack.c.b16 %v2505, %v2503
      %v2560 = vpack.c.b16 %v2506, %v2504
      %v2561 = vpack.c.b16 %v2509, %v2507
      %v2562 = vpack.c.b16 %v2510, %v2508
      %v2563 = vpack.c.b16 %v2513, %v2511
      %v2564 = vpack.c.b16 %v2514, %v2512
      %v2565 = vpack.c.b16 %v2517, %v2515
      %v2566 = vpack.c.b16 %v2518, %v2516
      %v2567 = vpack.c.b16 %v2521, %v2519
      %v2568 = vpack.c.b16 %v2522, %v2520
      %v2569 = vpack.c.b16 %v2525, %v2523
      %v2570 = vpack.c.b16 %v2526, %v2524
      %v2571 = vpack.c.b16 %v2529, %v2527
      %v2572 = vpack.c.b16 %v2530, %v2528
      %v2573 = vpack.c.b16 %v2533, %v2531
      %v2574 = vpack.c.b16 %v2534, %v2532
      %v2575 = vpack.c.b16 %v2537, %v2535
      %v2576 = vpack.c.b16 %v2538, %v2536
      %v2577 = vpack.c.b16 %v2541, %v2539
      %v2578 = vpack.c.b16 %v2542, %v2540
      %v2579 = vpack.c.b16 %v2545, %v2543
      %v2580 = vpack.c.b16 %v2546, %v2544
      %v2581 = vpack.c.b16 %v2549, %v2547
      %v2582 = vpack.c.b16 %v2550, %v2548
      %v2647 = vunpack.c.l.b16 %v2423
      %v2648 = vunpack.c.l.b16 %v2424
      %v2649 = vunpack.c.l.b16 %v2425
      %v2650 = vunpack.c.l.b16 %v2426
      %v2651 = vunpack.c.l.b16 %v2427
      %v2652 = vunpack.c.l.b16 %v2428
      %v2653 = vunpack.c.l.b16 %v2429
      %v2654 = vunpack.c.l.b16 %v2430
      %v2655 = vunpack.c.l.b16 %v2431
      %v2656 = vunpack.c.l.b16 %v2432
      %v2657 = vunpack.c.l.b16 %v2433
      %v2658 = vunpack.c.l.b16 %v2434
      %v2659 = vunpack.c.l.b16 %v2435
      %v2660 = vunpack.c.l.b16 %v2436
      %v2661 = vunpack.c.l.b16 %v2437
      %v2662 = vunpack.c.l.b16 %v2438
      %v2663 = vunpack.c.l.b16 %v2439
      %v2664 = vunpack.c.l.b16 %v2440
      %v2665 = vunpack.c.l.b16 %v2441
      %v2666 = vunpack.c.l.b16 %v2442
      %v2667 = vunpack.c.l.b16 %v2443
      %v2668 = vunpack.c.l.b16 %v2444
      %v2669 = vunpack.c.l.b16 %v2445
      %v2670 = vunpack.c.l.b16 %v2446
      %v2671 = vunpack.c.l.b16 %v2447
      %v2672 = vunpack.c.l.b16 %v2448
      %v2673 = vunpack.c.l.b16 %v2449
      %v2674 = vunpack.c.l.b16 %v2450
      %v2675 = vunpack.c.l.b16 %v2451
      %v2676 = vunpack.c.l.b16 %v2452
      %v2677 = vunpack.c.l.b16 %v2453
      %v2678 = vunpack.c.l.b16 %v2454
      %v2679 = vpack.c.b16 %v2648, %v2647
      %v2680 = vpack.c.b16 %v2650, %v2649
      %v2681 = vpack.c.b16 %v2652, %v2651
      %v2682 = vpack.c.b16 %v2654, %v2653
      %v2683 = vpack.c.b16 %v2656, %v2655
      %v2684 = vpack.c.b16 %v2658, %v2657
      %v2685 = vpack.c.b16 %v2660, %v2659
      %v2686 = vpack.c.b16 %v2662, %v2661
      %v2687 = vpack.c.b16 %v2664, %v2663
      %v2688 = vpack.c.b16 %v2666, %v2665
      %v2689 = vpack.c.b16 %v2668, %v2667
      %v2690 = vpack.c.b16 %v2670, %v2669
      %v2691 = vpack.c.b16 %v2672, %v2671
      %v2692 = vpack.c.b16 %v2674, %v2673
      %v2693 = vpack.c.b16 %v2676, %v2675
      %v2694 = vpack.c.b16 %v2678, %v2677
      %2711 = vmatprep.subr.bf16.mxu0 0
      %2712 = vmatpush1.bf16.msra.mxu0 %v2679
      %2713 = vmatprep.subr.bf16.mxu0 0
      %2714 = vmatpush1.bf16.msra.mxu0 %v2680
      %2715 = vmatprep.subr.bf16.mxu0 0
      %2716 = vmatpush1.bf16.msra.mxu0 %v2681
      %2717 = vmatprep.subr.bf16.mxu0 0
      %2718 = vmatpush1.bf16.msra.mxu0 %v2682
      %2719 = vmatprep.subr.bf16.mxu0 0
      %2720 = vmatpush1.bf16.msra.mxu0 %v2683
      %2721 = vmatprep.subr.bf16.mxu0 0
      %2722 = vmatpush1.bf16.msra.mxu0 %v2684
      %2723 = vmatprep.subr.bf16.mxu0 0
      %2724 = vmatpush1.bf16.msra.mxu0 %v2685
      %2725 = vmatprep.subr.bf16.mxu0 0
      %2726 = vmatpush1.bf16.msra.mxu0 %v2686
      %2727 = vmatprep.subr.bf16.mxu0 0
      %2728 = vmatpush1.bf16.msra.mxu0 %v2687
      %2729 = vmatprep.subr.bf16.mxu0 0
      %2730 = vmatpush1.bf16.msra.mxu0 %v2688
      %2731 = vmatprep.subr.bf16.mxu0 0
      %2732 = vmatpush1.bf16.msra.mxu0 %v2689
      %2733 = vmatprep.subr.bf16.mxu0 0
      %2734 = vmatpush1.bf16.msra.mxu0 %v2690
      %2735 = vmatprep.subr.bf16.mxu0 0
      %2736 = vmatpush1.bf16.msra.mxu0 %v2691
      %2737 = vmatprep.subr.bf16.mxu0 0
      %2738 = vmatpush1.bf16.msra.mxu0 %v2692
      %2739 = vmatprep.subr.bf16.mxu0 0
      %2740 = vmatpush1.bf16.msra.mxu0 %v2693
      %2741 = vmatprep.subr.bf16.mxu0 0
      %2742 = vmatpush1.bf16.msra.mxu0 %v2694
      %2743 = vmatprep.mubr.bf16.mxu0 %v2552
      %2744 = vmatmul.mubr.bf16.gmra.mrb[0].mxu0 %v2551
      %v2745 = vpop.f32.mrb[0].mxu0
      %v2746 = vadd.f32 0.0, %v2745
      %v2747 = vpop.f32.mrb[0].mxu0
      %v2748 = vpop.f32.mrb[0].mxu0
      %v2749 = vadd.f32 0.0, %v2748
      %v2750 = vpop.f32.mrb[0].mxu0
      %2751 = vmatprep.mubr.bf16.mxu0 %v2554
      %2752 = vmatmul.mubr.bf16.gmra.mrb[0].mxu0 %v2553
      %v2753 = vpop.f32.mrb[0].mxu0
      %v2754 = vadd.f32 0.0, %v2753
      %v2755 = vpop.f32.mrb[0].mxu0
      %v2756 = vpop.f32.mrb[0].mxu0
      %v2757 = vadd.f32 0.0, %v2756
      %v2758 = vpop.f32.mrb[0].mxu0
      %2759 = vmatprep.mubr.bf16.mxu0 %v2556
      %2760 = vmatmul.mubr.bf16.gmra.mrb[0].mxu0 %v2555
      %v2761 = vpop.f32.mrb[0].mxu0
      %v2762 = vadd.f32 0.0, %v2761
      %v2763 = vpop.f32.mrb[0].mxu0
      %v2764 = vpop.f32.mrb[0].mxu0
      %v2765 = vadd.f32 0.0, %v2764
      %v2766 = vpop.f32.mrb[0].mxu0
      %2767 = vmatprep.mubr.bf16.mxu0 %v2558
      %2768 = vmatmul.mubr.bf16.gmra.mrb[0].mxu0 %v2557
      %v2769 = vpop.f32.mrb[0].mxu0
      %v2770 = vadd.f32 0.0, %v2769
      %v2771 = vpop.f32.mrb[0].mxu0
      %v2772 = vpop.f32.mrb[0].mxu0
      %v2773 = vadd.f32 0.0, %v2772
      %v2774 = vpop.f32.mrb[0].mxu0
      %2775 = vmatprep.mubr.bf16.mxu0 %v2560
      %2776 = vmatmul.mubr.bf16.gmra.mrb[0].mxu0 %v2559
      %v2777 = vpop.f32.mrb[0].mxu0
      %v2778 = vadd.f32 0.0, %v2777
      %v2779 = vpop.f32.mrb[0].mxu0
      %v2780 = vpop.f32.mrb[0].mxu0
      %v2781 = vadd.f32 0.0, %v2780
      %v2782 = vpop.f32.mrb[0].mxu0
      %2783 = vmatprep.mubr.bf16.mxu0 %v2562
      %2784 = vmatmul.mubr.bf16.gmra.mrb[0].mxu0 %v2561
      %v2785 = vpop.f32.mrb[0].mxu0
      %v2786 = vadd.f32 0.0, %v2785
      %v2787 = vpop.f32.mrb[0].mxu0
      %v2788 = vpop.f32.mrb[0].mxu0
      %v2789 = vadd.f32 0.0, %v2788
      %v2790 = vpop.f32.mrb[0].mxu0
      %2791 = vmatprep.mubr.bf16.mxu0 %v2564
      %2792 = vmatmul.mubr.bf16.gmra.mrb[0].mxu0 %v2563
      %v2793 = vpop.f32.mrb[0].mxu0
      %v2794 = vadd.f32 0.0, %v2793
      %v2795 = vpop.f32.mrb[0].mxu0
      %v2796 = vpop.f32.mrb[0].mxu0
      %v2797 = vadd.f32 0.0, %v2796
      %v2798 = vpop.f32.mrb[0].mxu0
      %2799 = vmatprep.mubr.bf16.mxu0 %v2566
      %2800 = vmatmul.mubr.bf16.gmra.mrb[0].mxu0 %v2565
      %v2801 = vpop.f32.mrb[0].mxu0
      %v2802 = vadd.f32 0.0, %v2801
      %v2803 = vpop.f32.mrb[0].mxu0
      %v2804 = vpop.f32.mrb[0].mxu0
      %v2805 = vadd.f32 0.0, %v2804
      %v2806 = vpop.f32.mrb[0].mxu0
      %2807 = vmatprep.mubr.bf16.mxu0 %v2568
      %2808 = vmatmul.mubr.bf16.gmra.mrb[0].mxu0 %v2567
      %v2809 = vpop.f32.mrb[0].mxu0
      %v2810 = vadd.f32 0.0, %v2809
      %v2811 = vpop.f32.mrb[0].mxu0
      %v2812 = vpop.f32.mrb[0].mxu0
      %v2813 = vadd.f32 0.0, %v2812
      %v2814 = vpop.f32.mrb[0].mxu0
      %2815 = vmatprep.mubr.bf16.mxu0 %v2570
      %2816 = vmatmul.mubr.bf16.gmra.mrb[0].mxu0 %v2569
      %v2817 = vpop.f32.mrb[0].mxu0
      %v2818 = vadd.f32 0.0, %v2817
      %v2819 = vpop.f32.mrb[0].mxu0
      %v2820 = vpop.f32.mrb[0].mxu0
      %v2821 = vadd.f32 0.0, %v2820
      %v2822 = vpop.f32.mrb[0].mxu0
      %2823 = vmatprep.mubr.bf16.mxu0 %v2572
      %2824 = vmatmul.mubr.bf16.gmra.mrb[0].mxu0 %v2571
      %v2825 = vpop.f32.mrb[0].mxu0
      %v2826 = vadd.f32 0.0, %v2825
      %v2827 = vpop.f32.mrb[0].mxu0
      %v2828 = vpop.f32.mrb[0].mxu0
      %v2829 = vadd.f32 0.0, %v2828
      %v2830 = vpop.f32.mrb[0].mxu0
      %2831 = vmatprep.mubr.bf16.mxu0 %v2574
      %2832 = vmatmul.mubr.bf16.gmra.mrb[0].mxu0 %v2573
      %v2833 = vpop.f32.mrb[0].mxu0
      %v2834 = vadd.f32 0.0, %v2833
      %v2835 = vpop.f32.mrb[0].mxu0
      %v2836 = vpop.f32.mrb[0].mxu0
      %v2837 = vadd.f32 0.0, %v2836
      %v2838 = vpop.f32.mrb[0].mxu0
      %2839 = vmatprep.mubr.bf16.mxu0 %v2576
      %2840 = vmatmul.mubr.bf16.gmra.mrb[0].mxu0 %v2575
      %v2841 = vpop.f32.mrb[0].mxu0
      %v2842 = vadd.f32 0.0, %v2841
      %v2843 = vpop.f32.mrb[0].mxu0
      %v2844 = vpop.f32.mrb[0].mxu0
      %v2845 = vadd.f32 0.0, %v2844
      %v2846 = vpop.f32.mrb[0].mxu0
      %2847 = vmatprep.mubr.bf16.mxu0 %v2578
      %2848 = vmatmul.mubr.bf16.gmra.mrb[0].mxu0 %v2577
      %v2849 = vpop.f32.mrb[0].mxu0
      %v2850 = vadd.f32 0.0, %v2849
      %v2851 = vpop.f32.mrb[0].mxu0
      %v2852 = vpop.f32.mrb[0].mxu0
      %v2853 = vadd.f32 0.0, %v2852
      %v2854 = vpop.f32.mrb[0].mxu0
      %2855 = vmatprep.mubr.bf16.mxu0 %v2580
      %2856 = vmatmul.mubr.bf16.gmra.mrb[0].mxu0 %v2579
      %v2857 = vpop.f32.mrb[0].mxu0
      %v2858 = vadd.f32 0.0, %v2857
      %v2859 = vpop.f32.mrb[0].mxu0
      %v2860 = vpop.f32.mrb[0].mxu0
      %v2861 = vadd.f32 0.0, %v2860
      %v2862 = vpop.f32.mrb[0].mxu0
      %2863 = vmatprep.mubr.bf16.mxu0 %v2582
      %2864 = vmatmul.mubr.bf16.gmra.mrb[0].mxu0 %v2581
      %v2865 = vpop.f32.mrb[0].mxu0
      %v2866 = vadd.f32 0.0, %v2865
      %v2867 = vpop.f32.mrb[0].mxu0
      %v2868 = vpop.f32.mrb[0].mxu0
      %v2869 = vadd.f32 0.0, %v2868
      %v2870 = vpop.f32.mrb[0].mxu0
      %2871 = vdwg.mxu0
      %v2872 = vld [vmem:[#allocation2] sm:$0xff]
      %v2873 = vld [vmem:[#allocation2 + $0x8] sm:$0xff]
      %v2874 = vld [vmem:[#allocation2 + $0x10] sm:$0xff]
      %v2875 = vld [vmem:[#allocation2 + $0x18] sm:$0xff]
      %v2876 = vld [vmem:[#allocation2 + $0x20] sm:$0xff]
      %v2877 = vld [vmem:[#allocation2 + $0x28] sm:$0xff]
      %v2878 = vld [vmem:[#allocation2 + $0x30] sm:$0xff]
      %v2879 = vld [vmem:[#allocation2 + $0x38] sm:$0xff]
      %v2880 = vld [vmem:[#allocation2 + $0x40] sm:$0xff]
      %v2881 = vld [vmem:[#allocation2 + $0x48] sm:$0xff]
      %v2882 = vld [vmem:[#allocation2 + $0x50] sm:$0xff]
      %v2883 = vld [vmem:[#allocation2 + $0x58] sm:$0xff]
      %v2884 = vld [vmem:[#allocation2 + $0x60] sm:$0xff]
      %v2885 = vld [vmem:[#allocation2 + $0x68] sm:$0xff]
      %v2886 = vld [vmem:[#allocation2 + $0x70] sm:$0xff]
      %v2887 = vld [vmem:[#allocation2 + $0x78] sm:$0xff]
      %v2888 = vld [vmem:[#allocation2 + $0x80] sm:$0xff]
      %v2889 = vld [vmem:[#allocation2 + $0x88] sm:$0xff]
      %v2890 = vld [vmem:[#allocation2 + $0x90] sm:$0xff]
      %v2891 = vld [vmem:[#allocation2 + $0x98] sm:$0xff]
      %v2892 = vld [vmem:[#allocation2 + $0xa0] sm:$0xff]
      %v2893 = vld [vmem:[#allocation2 + $0xa8] sm:$0xff]
      %v2894 = vld [vmem:[#allocation2 + $0xb0] sm:$0xff]
      %v2895 = vld [vmem:[#allocation2 + $0xb8] sm:$0xff]
      %v2896 = vld [vmem:[#allocation2 + $0xc0] sm:$0xff]
      %v2897 = vld [vmem:[#allocation2 + $0xc8] sm:$0xff]
      %v2898 = vld [vmem:[#allocation2 + $0xd0] sm:$0xff]
      %v2899 = vld [vmem:[#allocation2 + $0xd8] sm:$0xff]
      %v2900 = vld [vmem:[#allocation2 + $0xe0] sm:$0xff]
      %v2901 = vld [vmem:[#allocation2 + $0xe8] sm:$0xff]
      %v2902 = vld [vmem:[#allocation2 + $0xf0] sm:$0xff]
      %v2903 = vld [vmem:[#allocation2 + $0xf8] sm:$0xff]
      %v2904 = vadd.f32 %v2872, %v2746
      %v2905 = vadd.f32 %v2873, %v2749
      %v2906 = vadd.f32 %v2874, %v2754
      %v2907 = vadd.f32 %v2875, %v2757
      %v2908 = vadd.f32 %v2876, %v2762
      %v2909 = vadd.f32 %v2877, %v2765
      %v2910 = vadd.f32 %v2878, %v2770
      %v2911 = vadd.f32 %v2879, %v2773
      %v2912 = vadd.f32 %v2880, %v2778
      %v2913 = vadd.f32 %v2881, %v2781
      %v2914 = vadd.f32 %v2882, %v2786
      %v2915 = vadd.f32 %v2883, %v2789
      %v2916 = vadd.f32 %v2884, %v2794
      %v2917 = vadd.f32 %v2885, %v2797
      %v2918 = vadd.f32 %v2886, %v2802
      %v2919 = vadd.f32 %v2887, %v2805
      %v2920 = vadd.f32 %v2888, %v2810
      %v2921 = vadd.f32 %v2889, %v2813
      %v2922 = vadd.f32 %v2890, %v2818
      %v2923 = vadd.f32 %v2891, %v2821
      %v2924 = vadd.f32 %v2892, %v2826
      %v2925 = vadd.f32 %v2893, %v2829
      %v2926 = vadd.f32 %v2894, %v2834
      %v2927 = vadd.f32 %v2895, %v2837
      %v2928 = vadd.f32 %v2896, %v2842
      %v2929 = vadd.f32 %v2897, %v2845
      %v2930 = vadd.f32 %v2898, %v2850
      %v2931 = vadd.f32 %v2899, %v2853
      %v2932 = vadd.f32 %v2900, %v2858
      %v2933 = vadd.f32 %v2901, %v2861
      %v2934 = vadd.f32 %v2902, %v2866
      %v2935 = vadd.f32 %v2903, %v2869
      %2936 = vst [vmem:[#allocation2] sm:$0xff] %v2904
      %2937 = vst [vmem:[#allocation2 + $0x8] sm:$0xff] %v2905
      %2938 = vst [vmem:[#allocation2 + $0x10] sm:$0xff] %v2906
      %2939 = vst [vmem:[#allocation2 + $0x18] sm:$0xff] %v2907
      %2940 = vst [vmem:[#allocation2 + $0x20] sm:$0xff] %v2908
      %2941 = vst [vmem:[#allocation2 + $0x28] sm:$0xff] %v2909
      %2942 = vst [vmem:[#allocation2 + $0x30] sm:$0xff] %v2910
      %2943 = vst [vmem:[#allocation2 + $0x38] sm:$0xff] %v2911
      %2944 = vst [vmem:[#allocation2 + $0x40] sm:$0xff] %v2912
      %2945 = vst [vmem:[#allocation2 + $0x48] sm:$0xff] %v2913
      %2946 = vst [vmem:[#allocation2 + $0x50] sm:$0xff] %v2914
      %2947 = vst [vmem:[#allocation2 + $0x58] sm:$0xff] %v2915
      %2948 = vst [vmem:[#allocation2 + $0x60] sm:$0xff] %v2916
      %2949 = vst [vmem:[#allocation2 + $0x68] sm:$0xff] %v2917
      %2950 = vst [vmem:[#allocation2 + $0x70] sm:$0xff] %v2918
      %2951 = vst [vmem:[#allocation2 + $0x78] sm:$0xff] %v2919
      %2952 = vst [vmem:[#allocation2 + $0x80] sm:$0xff] %v2920
      %2953 = vst [vmem:[#allocation2 + $0x88] sm:$0xff] %v2921
      %2954 = vst [vmem:[#allocation2 + $0x90] sm:$0xff] %v2922
      %2955 = vst [vmem:[#allocation2 + $0x98] sm:$0xff] %v2923
      %2956 = vst [vmem:[#allocation2 + $0xa0] sm:$0xff] %v2924
      %2957 = vst [vmem:[#allocation2 + $0xa8] sm:$0xff] %v2925
      %2958 = vst [vmem:[#allocation2 + $0xb0] sm:$0xff] %v2926
      %2959 = vst [vmem:[#allocation2 + $0xb8] sm:$0xff] %v2927
      %2960 = vst [vmem:[#allocation2 + $0xc0] sm:$0xff] %v2928
      %2961 = vst [vmem:[#allocation2 + $0xc8] sm:$0xff] %v2929
      %2962 = vst [vmem:[#allocation2 + $0xd0] sm:$0xff] %v2930
      %2963 = vst [vmem:[#allocation2 + $0xd8] sm:$0xff] %v2931
      %2964 = vst [vmem:[#allocation2 + $0xe0] sm:$0xff] %v2932
      %2965 = vst [vmem:[#allocation2 + $0xe8] sm:$0xff] %v2933
      %2966 = vst [vmem:[#allocation2 + $0xf0] sm:$0xff] %v2934
      %2967 = vst [vmem:[#allocation2 + $0xf8] sm:$0xff] %v2935
      %v2968 = vld [vmem:[%s2389] sm:$0xff]
      %v2969 = vld [vmem:[%s2389 + $0x8] sm:$0xff]
      %v2970 = vld [vmem:[%s2389 + $0x10] sm:$0x11]
      %v2971 = vld [vmem:[%s2389 + $0x18] sm:$0xff]
      %v2972 = vld [vmem:[%s2389 + $0x20] sm:$0xff]
      %v2973 = vld [vmem:[%s2389 + $0x28] sm:$0x11]
      %v2974 = vld [vmem:[%s2389 + $0x30] sm:$0xff]
      %v2975 = vld [vmem:[%s2389 + $0x38] sm:$0xff]
      %v2976 = vld [vmem:[%s2389 + $0x40] sm:$0x11]
      %v2977 = vld [vmem:[%s2389 + $0x48] sm:$0xff]
      %v2978 = vld [vmem:[%s2389 + $0x50] sm:$0xff]
      %v2979 = vld [vmem:[%s2389 + $0x58] sm:$0x11]
      %v2980 = vld [vmem:[%s2389 + $0x60] sm:$0xff]
      %v2981 = vld [vmem:[%s2389 + $0x68] sm:$0xff]
      %v2982 = vld [vmem:[%s2389 + $0x70] sm:$0x11]
      %v2983 = vld [vmem:[%s2389 + $0x78] sm:$0xff]
      %v2984 = vld [vmem:[%s2389 + $0x80] sm:$0xff]
      %v2985 = vld [vmem:[%s2389 + $0x88] sm:$0x11]
      %v2986 = vld [vmem:[%s2389 + $0x90] sm:$0xff]
      %v2987 = vld [vmem:[%s2389 + $0x98] sm:$0xff]
      %v2988 = vld [vmem:[%s2389 + $0xa0] sm:$0x11]
      %v2989 = vld [vmem:[%s2389 + $0xa8] sm:$0xff]
      %v2990 = vld [vmem:[%s2389 + $0xb0] sm:$0xff]
      %v2991 = vld [vmem:[%s2389 + $0xb8] sm:$0x11]
      %v2992 = vld [vmem:[%s2389 + $0xc0] sm:$0xff]
      %v2993 = vld [vmem:[%s2389 + $0xc8] sm:$0xff]
      %v2994 = vld [vmem:[%s2389 + $0xd0] sm:$0x11]
      %v2995 = vld [vmem:[%s2389 + $0xd8] sm:$0xff]
      %v2996 = vld [vmem:[%s2389 + $0xe0] sm:$0xff]
      %v2997 = vld [vmem:[%s2389 + $0xe8] sm:$0x11]
      %v2998 = vld [vmem:[%s2389 + $0xf0] sm:$0xff]
      %v2999 = vld [vmem:[%s2389 + $0xf8] sm:$0xff]
      %v3000 = vld [vmem:[%s2389 + $0x100] sm:$0x11]
      %v3001 = vld [vmem:[%s2389 + $0x108] sm:$0xff]
      %v3002 = vld [vmem:[%s2389 + $0x110] sm:$0xff]
      %v3003 = vld [vmem:[%s2389 + $0x118] sm:$0x11]
      %v3004 = vld [vmem:[%s2389 + $0x120] sm:$0xff]
      %v3005 = vld [vmem:[%s2389 + $0x128] sm:$0xff]
      %v3006 = vld [vmem:[%s2389 + $0x130] sm:$0x11]
      %v3007 = vld [vmem:[%s2389 + $0x138] sm:$0xff]
      %v3008 = vld [vmem:[%s2389 + $0x140] sm:$0xff]
      %v3009 = vld [vmem:[%s2389 + $0x148] sm:$0x11]
      %v3010 = vld [vmem:[%s2389 + $0x150] sm:$0xff]
      %v3011 = vld [vmem:[%s2389 + $0x158] sm:$0xff]
      %v3012 = vld [vmem:[%s2389 + $0x160] sm:$0x11]
      %v3013 = vld [vmem:[%s2389 + $0x168] sm:$0xff]
      %v3014 = vld [vmem:[%s2389 + $0x170] sm:$0xff]
      %v3015 = vld [vmem:[%s2389 + $0x178] sm:$0x11]
      %v3017 = vshrl.u32 %v2968, 16
      %v3019 = vrot.slane %v3017, 4
      %v3020 = vshll.u32 %v2968, 16
      %v3022 = vrot.slane %v3020, 5
      %v3023 = vor.u32 %v3019, %v3022
      %v3024 = vrot.slane %v3023, 4
      %v3026 = vshll.u32 %v2969, 16
      %v3028 = vrot.slane %v3026, 5
      %v3029 = vsel %vm762, %v3024, %v3028
      %v3030 = vshrl.u32 %v2969, 16
      %v3032 = vrot.slane %v3030, 4
      %v3033 = vor.u32 %v3032, %v3028
      %v3034 = vrot.slane %v3033, 4
      %v3036 = vshll.u32 %v2970, 16
      %v3038 = vrot.slane %v3036, 5
      %v3039 = vsel %vm762, %v3034, %v3038
      %v3041 = vshrl.u32 %v2971, 16
      %v3043 = vrot.slane %v3041, 4
      %v3044 = vshll.u32 %v2971, 16
      %v3046 = vrot.slane %v3044, 5
      %v3047 = vor.u32 %v3043, %v3046
      %v3048 = vrot.slane %v3047, 4
      %v3050 = vshll.u32 %v2972, 16
      %v3052 = vrot.slane %v3050, 5
      %v3053 = vsel %vm762, %v3048, %v3052
      %v3054 = vshrl.u32 %v2972, 16
      %v3056 = vrot.slane %v3054, 4
      %v3057 = vor.u32 %v3056, %v3052
      %v3058 = vrot.slane %v3057, 4
      %v3060 = vshll.u32 %v2973, 16
      %v3062 = vrot.slane %v3060, 5
      %v3063 = vsel %vm762, %v3058, %v3062
      %v3065 = vshrl.u32 %v2974, 16
      %v3067 = vrot.slane %v3065, 4
      %v3068 = vshll.u32 %v2974, 16
      %v3070 = vrot.slane %v3068, 5
      %v3071 = vor.u32 %v3067, %v3070
      %v3072 = vrot.slane %v3071, 4
      %v3074 = vshll.u32 %v2975, 16
      %v3076 = vrot.slane %v3074, 5
      %v3077 = vsel %vm762, %v3072, %v3076
      %v3078 = vshrl.u32 %v2975, 16
      %v3080 = vrot.slane %v3078, 4
      %v3081 = vor.u32 %v3080, %v3076
      %v3082 = vrot.slane %v3081, 4
      %v3084 = vshll.u32 %v2976, 16
      %v3086 = vrot.slane %v3084, 5
      %v3087 = vsel %vm762, %v3082, %v3086
      %v3089 = vshrl.u32 %v2977, 16
      %v3091 = vrot.slane %v3089, 4
      %v3092 = vshll.u32 %v2977, 16
      %v3094 = vrot.slane %v3092, 5
      %v3095 = vor.u32 %v3091, %v3094
      %v3096 = vrot.slane %v3095, 4
      %v3098 = vshll.u32 %v2978, 16
      %v3100 = vrot.slane %v3098, 5
      %v3101 = vsel %vm762, %v3096, %v3100
      %v3102 = vshrl.u32 %v2978, 16
      %v3104 = vrot.slane %v3102, 4
      %v3105 = vor.u32 %v3104, %v3100
      %v3106 = vrot.slane %v3105, 4
      %v3108 = vshll.u32 %v2979, 16
      %v3110 = vrot.slane %v3108, 5
      %v3111 = vsel %vm762, %v3106, %v3110
      %v3113 = vshrl.u32 %v2980, 16
      %v3115 = vrot.slane %v3113, 4
      %v3116 = vshll.u32 %v2980, 16
      %v3118 = vrot.slane %v3116, 5
      %v3119 = vor.u32 %v3115, %v3118
      %v3120 = vrot.slane %v3119, 4
      %v3122 = vshll.u32 %v2981, 16
      %v3124 = vrot.slane %v3122, 5
      %v3125 = vsel %vm762, %v3120, %v3124
      %v3126 = vshrl.u32 %v2981, 16
      %v3128 = vrot.slane %v3126, 4
      %v3129 = vor.u32 %v3128, %v3124
      %v3130 = vrot.slane %v3129, 4
      %v3132 = vshll.u32 %v2982, 16
      %v3134 = vrot.slane %v3132, 5
      %v3135 = vsel %vm762, %v3130, %v3134
      %v3137 = vshrl.u32 %v2983, 16
      %v3139 = vrot.slane %v3137, 4
      %v3140 = vshll.u32 %v2983, 16
      %v3142 = vrot.slane %v3140, 5
      %v3143 = vor.u32 %v3139, %v3142
      %v3144 = vrot.slane %v3143, 4
      %v3146 = vshll.u32 %v2984, 16
      %v3148 = vrot.slane %v3146, 5
      %v3149 = vsel %vm762, %v3144, %v3148
      %v3150 = vshrl.u32 %v2984, 16
      %v3152 = vrot.slane %v3150, 4
      %v3153 = vor.u32 %v3152, %v3148
      %v3154 = vrot.slane %v3153, 4
      %v3156 = vshll.u32 %v2985, 16
      %v3158 = vrot.slane %v3156, 5
      %v3159 = vsel %vm762, %v3154, %v3158
      %v3161 = vshrl.u32 %v2986, 16
      %v3163 = vrot.slane %v3161, 4
      %v3164 = vshll.u32 %v2986, 16
      %v3166 = vrot.slane %v3164, 5
      %v3167 = vor.u32 %v3163, %v3166
      %v3168 = vrot.slane %v3167, 4
      %v3170 = vshll.u32 %v2987, 16
      %v3172 = vrot.slane %v3170, 5
      %v3173 = vsel %vm762, %v3168, %v3172
      %v3174 = vshrl.u32 %v2987, 16
      %v3176 = vrot.slane %v3174, 4
      %v3177 = vor.u32 %v3176, %v3172
      %v3178 = vrot.slane %v3177, 4
      %v3180 = vshll.u32 %v2988, 16
      %v3182 = vrot.slane %v3180, 5
      %v3183 = vsel %vm762, %v3178, %v3182
      %v3185 = vshrl.u32 %v2989, 16
      %v3187 = vrot.slane %v3185, 4
      %v3188 = vshll.u32 %v2989, 16
      %v3190 = vrot.slane %v3188, 5
      %v3191 = vor.u32 %v3187, %v3190
      %v3192 = vrot.slane %v3191, 4
      %v3194 = vshll.u32 %v2990, 16
      %v3196 = vrot.slane %v3194, 5
      %v3197 = vsel %vm762, %v3192, %v3196
      %v3198 = vshrl.u32 %v2990, 16
      %v3200 = vrot.slane %v3198, 4
      %v3201 = vor.u32 %v3200, %v3196
      %v3202 = vrot.slane %v3201, 4
      %v3204 = vshll.u32 %v2991, 16
      %v3206 = vrot.slane %v3204, 5
      %v3207 = vsel %vm762, %v3202, %v3206
      %v3209 = vshrl.u32 %v2992, 16
      %v3211 = vrot.slane %v3209, 4
      %v3212 = vshll.u32 %v2992, 16
      %v3214 = vrot.slane %v3212, 5
      %v3215 = vor.u32 %v3211, %v3214
      %v3216 = vrot.slane %v3215, 4
      %v3218 = vshll.u32 %v2993, 16
      %v3220 = vrot.slane %v3218, 5
      %v3221 = vsel %vm762, %v3216, %v3220
      %v3222 = vshrl.u32 %v2993, 16
      %v3224 = vrot.slane %v3222, 4
      %v3225 = vor.u32 %v3224, %v3220
      %v3226 = vrot.slane %v3225, 4
      %v3228 = vshll.u32 %v2994, 16
      %v3230 = vrot.slane %v3228, 5
      %v3231 = vsel %vm762, %v3226, %v3230
      %v3233 = vshrl.u32 %v2995, 16
      %v3235 = vrot.slane %v3233, 4
      %v3236 = vshll.u32 %v2995, 16
      %v3238 = vrot.slane %v3236, 5
      %v3239 = vor.u32 %v3235, %v3238
      %v3240 = vrot.slane %v3239, 4
      %v3242 = vshll.u32 %v2996, 16
      %v3244 = vrot.slane %v3242, 5
      %v3245 = vsel %vm762, %v3240, %v3244
      %v3246 = vshrl.u32 %v2996, 16
      %v3248 = vrot.slane %v3246, 4
      %v3249 = vor.u32 %v3248, %v3244
      %v3250 = vrot.slane %v3249, 4
      %v3252 = vshll.u32 %v2997, 16
      %v3254 = vrot.slane %v3252, 5
      %v3255 = vsel %vm762, %v3250, %v3254
      %v3257 = vshrl.u32 %v2998, 16
      %v3259 = vrot.slane %v3257, 4
      %v3260 = vshll.u32 %v2998, 16
      %v3262 = vrot.slane %v3260, 5
      %v3263 = vor.u32 %v3259, %v3262
      %v3264 = vrot.slane %v3263, 4
      %v3266 = vshll.u32 %v2999, 16
      %v3268 = vrot.slane %v3266, 5
      %v3269 = vsel %vm762, %v3264, %v3268
      %v3270 = vshrl.u32 %v2999, 16
      %v3272 = vrot.slane %v3270, 4
      %v3273 = vor.u32 %v3272, %v3268
      %v3274 = vrot.slane %v3273, 4
      %v3276 = vshll.u32 %v3000, 16
      %v3278 = vrot.slane %v3276, 5
      %v3279 = vsel %vm762, %v3274, %v3278
      %v3281 = vshrl.u32 %v3001, 16
      %v3283 = vrot.slane %v3281, 4
      %v3284 = vshll.u32 %v3001, 16
      %v3286 = vrot.slane %v3284, 5
      %v3287 = vor.u32 %v3283, %v3286
      %v3288 = vrot.slane %v3287, 4
      %v3290 = vshll.u32 %v3002, 16
      %v3292 = vrot.slane %v3290, 5
      %v3293 = vsel %vm762, %v3288, %v3292
      %v3294 = vshrl.u32 %v3002, 16
      %v3296 = vrot.slane %v3294, 4
      %v3297 = vor.u32 %v3296, %v3292
      %v3298 = vrot.slane %v3297, 4
      %v3300 = vshll.u32 %v3003, 16
      %v3302 = vrot.slane %v3300, 5
      %v3303 = vsel %vm762, %v3298, %v3302
      %v3305 = vshrl.u32 %v3004, 16
      %v3307 = vrot.slane %v3305, 4
      %v3308 = vshll.u32 %v3004, 16
      %v3310 = vrot.slane %v3308, 5
      %v3311 = vor.u32 %v3307, %v3310
      %v3312 = vrot.slane %v3311, 4
      %v3314 = vshll.u32 %v3005, 16
      %v3316 = vrot.slane %v3314, 5
      %v3317 = vsel %vm762, %v3312, %v3316
      %v3318 = vshrl.u32 %v3005, 16
      %v3320 = vrot.slane %v3318, 4
      %v3321 = vor.u32 %v3320, %v3316
      %v3322 = vrot.slane %v3321, 4
      %v3324 = vshll.u32 %v3006, 16
      %v3326 = vrot.slane %v3324, 5
      %v3327 = vsel %vm762, %v3322, %v3326
      %v3329 = vshrl.u32 %v3007, 16
      %v3331 = vrot.slane %v3329, 4
      %v3332 = vshll.u32 %v3007, 16
      %v3334 = vrot.slane %v3332, 5
      %v3335 = vor.u32 %v3331, %v3334
      %v3336 = vrot.slane %v3335, 4
      %v3338 = vshll.u32 %v3008, 16
      %v3340 = vrot.slane %v3338, 5
      %v3341 = vsel %vm762, %v3336, %v3340
      %v3342 = vshrl.u32 %v3008, 16
      %v3344 = vrot.slane %v3342, 4
      %v3345 = vor.u32 %v3344, %v3340
      %v3346 = vrot.slane %v3345, 4
      %v3348 = vshll.u32 %v3009, 16
      %v3350 = vrot.slane %v3348, 5
      %v3351 = vsel %vm762, %v3346, %v3350
      %v3353 = vshrl.u32 %v3010, 16
      %v3355 = vrot.slane %v3353, 4
      %v3356 = vshll.u32 %v3010, 16
      %v3358 = vrot.slane %v3356, 5
      %v3359 = vor.u32 %v3355, %v3358
      %v3360 = vrot.slane %v3359, 4
      %v3362 = vshll.u32 %v3011, 16
      %v3364 = vrot.slane %v3362, 5
      %v3365 = vsel %vm762, %v3360, %v3364
      %v3366 = vshrl.u32 %v3011, 16
      %v3368 = vrot.slane %v3366, 4
      %v3369 = vor.u32 %v3368, %v3364
      %v3370 = vrot.slane %v3369, 4
      %v3372 = vshll.u32 %v3012, 16
      %v3374 = vrot.slane %v3372, 5
      %v3375 = vsel %vm762, %v3370, %v3374
      %v3377 = vshrl.u32 %v3013, 16
      %v3379 = vrot.slane %v3377, 4
      %v3380 = vshll.u32 %v3013, 16
      %v3382 = vrot.slane %v3380, 5
      %v3383 = vor.u32 %v3379, %v3382
      %v3384 = vrot.slane %v3383, 4
      %v3386 = vshll.u32 %v3014, 16
      %v3388 = vrot.slane %v3386, 5
      %v3389 = vsel %vm762, %v3384, %v3388
      %v3390 = vshrl.u32 %v3014, 16
      %v3392 = vrot.slane %v3390, 4
      %v3393 = vor.u32 %v3392, %v3388
      %v3394 = vrot.slane %v3393, 4
      %v3396 = vshll.u32 %v3015, 16
      %v3398 = vrot.slane %v3396, 5
      %v3399 = vsel %vm762, %v3394, %v3398
      %s3400 = scalar_lea.vmem %s1, 512
      %v3401 = vld [vmem:[%s3400] sm:$0xf]
      %v3402 = vld [vmem:[%s3400 + $0x4] sm:$0xf]
      %v3403 = vld [vmem:[%s3400 + $0x8] sm:$0xf]
      %v3404 = vld [vmem:[%s3400 + $0xc] sm:$0xf]
      %v3405 = vld [vmem:[%s3400 + $0x10] sm:$0xf]
      %v3406 = vld [vmem:[%s3400 + $0x14] sm:$0xf]
      %v3407 = vld [vmem:[%s3400 + $0x18] sm:$0xf]
      %v3408 = vld [vmem:[%s3400 + $0x1c] sm:$0xf]
      %v3409 = vld [vmem:[%s3400 + $0x20] sm:$0xf]
      %v3410 = vld [vmem:[%s3400 + $0x24] sm:$0xf]
      %v3411 = vld [vmem:[%s3400 + $0x28] sm:$0xf]
      %v3412 = vld [vmem:[%s3400 + $0x2c] sm:$0xf]
      %v3413 = vld [vmem:[%s3400 + $0x30] sm:$0xf]
      %v3414 = vld [vmem:[%s3400 + $0x34] sm:$0xf]
      %v3415 = vld [vmem:[%s3400 + $0x38] sm:$0xf]
      %v3416 = vld [vmem:[%s3400 + $0x3c] sm:$0xf]
      %v3417 = vld [vmem:[%s3400 + $0x40] sm:$0xf]
      %v3418 = vld [vmem:[%s3400 + $0x44] sm:$0xf]
      %v3419 = vld [vmem:[%s3400 + $0x48] sm:$0xf]
      %v3420 = vld [vmem:[%s3400 + $0x4c] sm:$0xf]
      %v3421 = vld [vmem:[%s3400 + $0x50] sm:$0xf]
      %v3422 = vld [vmem:[%s3400 + $0x54] sm:$0xf]
      %v3423 = vld [vmem:[%s3400 + $0x58] sm:$0xf]
      %v3424 = vld [vmem:[%s3400 + $0x5c] sm:$0xf]
      %v3425 = vld [vmem:[%s3400 + $0x60] sm:$0xf]
      %v3426 = vld [vmem:[%s3400 + $0x64] sm:$0xf]
      %v3427 = vld [vmem:[%s3400 + $0x68] sm:$0xf]
      %v3428 = vld [vmem:[%s3400 + $0x6c] sm:$0xf]
      %v3429 = vld [vmem:[%s3400 + $0x70] sm:$0xf]
      %v3430 = vld [vmem:[%s3400 + $0x74] sm:$0xf]
      %v3431 = vld [vmem:[%s3400 + $0x78] sm:$0xf]
      %v3432 = vld [vmem:[%s3400 + $0x7c] sm:$0xf]
      %v3433 = vunpack.c.l.b16 %v3029
      %v3434 = vunpack.c.h.b16 %v3029
      %v3435 = vunpack.c.l.b16 %v3039
      %v3436 = vunpack.c.h.b16 %v3039
      %v3437 = vunpack.c.l.b16 %v3053
      %v3438 = vunpack.c.h.b16 %v3053
      %v3439 = vunpack.c.l.b16 %v3063
      %v3440 = vunpack.c.h.b16 %v3063
      %v3441 = vunpack.c.l.b16 %v3077
      %v3442 = vunpack.c.h.b16 %v3077
      %v3443 = vunpack.c.l.b16 %v3087
      %v3444 = vunpack.c.h.b16 %v3087
      %v3445 = vunpack.c.l.b16 %v3101
      %v3446 = vunpack.c.h.b16 %v3101
      %v3447 = vunpack.c.l.b16 %v3111
      %v3448 = vunpack.c.h.b16 %v3111
      %v3449 = vunpack.c.l.b16 %v3125
      %v3450 = vunpack.c.h.b16 %v3125
      %v3451 = vunpack.c.l.b16 %v3135
      %v3452 = vunpack.c.h.b16 %v3135
      %v3453 = vunpack.c.l.b16 %v3149
      %v3454 = vunpack.c.h.b16 %v3149
      %v3455 = vunpack.c.l.b16 %v3159
      %v3456 = vunpack.c.h.b16 %v3159
      %v3457 = vunpack.c.l.b16 %v3173
      %v3458 = vunpack.c.h.b16 %v3173
      %v3459 = vunpack.c.l.b16 %v3183
      %v3460 = vunpack.c.h.b16 %v3183
      %v3461 = vunpack.c.l.b16 %v3197
      %v3462 = vunpack.c.h.b16 %v3197
      %v3463 = vunpack.c.l.b16 %v3207
      %v3464 = vunpack.c.h.b16 %v3207
      %v3465 = vunpack.c.l.b16 %v3221
      %v3466 = vunpack.c.h.b16 %v3221
      %v3467 = vunpack.c.l.b16 %v3231
      %v3468 = vunpack.c.h.b16 %v3231
      %v3469 = vunpack.c.l.b16 %v3245
      %v3470 = vunpack.c.h.b16 %v3245
      %v3471 = vunpack.c.l.b16 %v3255
      %v3472 = vunpack.c.h.b16 %v3255
      %v3473 = vunpack.c.l.b16 %v3269
      %v3474 = vunpack.c.h.b16 %v3269
      %v3475 = vunpack.c.l.b16 %v3279
      %v3476 = vunpack.c.h.b16 %v3279
      %v3477 = vunpack.c.l.b16 %v3293
      %v3478 = vunpack.c.h.b16 %v3293
      %v3479 = vunpack.c.l.b16 %v3303
      %v3480 = vunpack.c.h.b16 %v3303
      %v3481 = vunpack.c.l.b16 %v3317
      %v3482 = vunpack.c.h.b16 %v3317
      %v3483 = vunpack.c.l.b16 %v3327
      %v3484 = vunpack.c.h.b16 %v3327
      %v3485 = vunpack.c.l.b16 %v3341
      %v3486 = vunpack.c.h.b16 %v3341
      %v3487 = vunpack.c.l.b16 %v3351
      %v3488 = vunpack.c.h.b16 %v3351
      %v3489 = vunpack.c.l.b16 %v3365
      %v3490 = vunpack.c.h.b16 %v3365
      %v3491 = vunpack.c.l.b16 %v3375
      %v3492 = vunpack.c.h.b16 %v3375
      %v3493 = vunpack.c.l.b16 %v3389
      %v3494 = vunpack.c.h.b16 %v3389
      %v3495 = vunpack.c.l.b16 %v3399
      %v3496 = vunpack.c.h.b16 %v3399
      %v3497 = vpack.c.b16 %v3435, %v3433
      %v3498 = vpack.c.b16 %v3436, %v3434
      %v3499 = vpack.c.b16 %v3439, %v3437
      %v3500 = vpack.c.b16 %v3440, %v3438
      %v3501 = vpack.c.b16 %v3443, %v3441
      %v3502 = vpack.c.b16 %v3444, %v3442
      %v3503 = vpack.c.b16 %v3447, %v3445
      %v3504 = vpack.c.b16 %v3448, %v3446
      %v3505 = vpack.c.b16 %v3451, %v3449
      %v3506 = vpack.c.b16 %v3452, %v3450
      %v3507 = vpack.c.b16 %v3455, %v3453
      %v3508 = vpack.c.b16 %v3456, %v3454
      %v3509 = vpack.c.b16 %v3459, %v3457
      %v3510 = vpack.c.b16 %v3460, %v3458
      %v3511 = vpack.c.b16 %v3463, %v3461
      %v3512 = vpack.c.b16 %v3464, %v3462
      %v3513 = vpack.c.b16 %v3467, %v3465
      %v3514 = vpack.c.b16 %v3468, %v3466
      %v3515 = vpack.c.b16 %v3471, %v3469
      %v3516 = vpack.c.b16 %v3472, %v3470
      %v3517 = vpack.c.b16 %v3475, %v3473
      %v3518 = vpack.c.b16 %v3476, %v3474
      %v3519 = vpack.c.b16 %v3479, %v3477
      %v3520 = vpack.c.b16 %v3480, %v3478
      %v3521 = vpack.c.b16 %v3483, %v3481
      %v3522 = vpack.c.b16 %v3484, %v3482
      %v3523 = vpack.c.b16 %v3487, %v3485
      %v3524 = vpack.c.b16 %v3488, %v3486
      %v3525 = vpack.c.b16 %v3491, %v3489
      %v3526 = vpack.c.b16 %v3492, %v3490
      %v3527 = vpack.c.b16 %v3495, %v3493
      %v3528 = vpack.c.b16 %v3496, %v3494
      %v3593 = vunpack.c.l.b16 %v3401
      %v3594 = vunpack.c.l.b16 %v3402
      %v3595 = vunpack.c.l.b16 %v3403
      %v3596 = vunpack.c.l.b16 %v3404
      %v3597 = vunpack.c.l.b16 %v3405
      %v3598 = vunpack.c.l.b16 %v3406
      %v3599 = vunpack.c.l.b16 %v3407
      %v3600 = vunpack.c.l.b16 %v3408
      %v3601 = vunpack.c.l.b16 %v3409
      %v3602 = vunpack.c.l.b16 %v3410
      %v3603 = vunpack.c.l.b16 %v3411
      %v3604 = vunpack.c.l.b16 %v3412
      %v3605 = vunpack.c.l.b16 %v3413
      %v3606 = vunpack.c.l.b16 %v3414
      %v3607 = vunpack.c.l.b16 %v3415
      %v3608 = vunpack.c.l.b16 %v3416
      %v3609 = vunpack.c.l.b16 %v3417
      %v3610 = vunpack.c.l.b16 %v3418
      %v3611 = vunpack.c.l.b16 %v3419
      %v3612 = vunpack.c.l.b16 %v3420
      %v3613 = vunpack.c.l.b16 %v3421
      %v3614 = vunpack.c.l.b16 %v3422
      %v3615 = vunpack.c.l.b16 %v3423
      %v3616 = vunpack.c.l.b16 %v3424
      %v3617 = vunpack.c.l.b16 %v3425
      %v3618 = vunpack.c.l.b16 %v3426
      %v3619 = vunpack.c.l.b16 %v3427
      %v3620 = vunpack.c.l.b16 %v3428
      %v3621 = vunpack.c.l.b16 %v3429
      %v3622 = vunpack.c.l.b16 %v3430
      %v3623 = vunpack.c.l.b16 %v3431
      %v3624 = vunpack.c.l.b16 %v3432
      %v3625 = vpack.c.b16 %v3594, %v3593
      %v3626 = vpack.c.b16 %v3596, %v3595
      %v3627 = vpack.c.b16 %v3598, %v3597
      %v3628 = vpack.c.b16 %v3600, %v3599
      %v3629 = vpack.c.b16 %v3602, %v3601
      %v3630 = vpack.c.b16 %v3604, %v3603
      %v3631 = vpack.c.b16 %v3606, %v3605
      %v3632 = vpack.c.b16 %v3608, %v3607
      %v3633 = vpack.c.b16 %v3610, %v3609
      %v3634 = vpack.c.b16 %v3612, %v3611
      %v3635 = vpack.c.b16 %v3614, %v3613
      %v3636 = vpack.c.b16 %v3616, %v3615
      %v3637 = vpack.c.b16 %v3618, %v3617
      %v3638 = vpack.c.b16 %v3620, %v3619
      %v3639 = vpack.c.b16 %v3622, %v3621
      %v3640 = vpack.c.b16 %v3624, %v3623
      %3657 = vmatprep.subr.bf16.mxu0 0
      %3658 = vmatpush1.bf16.msra.mxu0 %v3625
      %3659 = vmatprep.subr.bf16.mxu0 0
      %3660 = vmatpush1.bf16.msra.mxu0 %v3626
      %3661 = vmatprep.subr.bf16.mxu0 0
      %3662 = vmatpush1.bf16.msra.mxu0 %v3627
      %3663 = vmatprep.subr.bf16.mxu0 0
      %3664 = vmatpush1.bf16.msra.mxu0 %v3628
      %3665 = vmatprep.subr.bf16.mxu0 0
      %3666 = vmatpush1.bf16.msra.mxu0 %v3629
      %3667 = vmatprep.subr.bf16.mxu0 0
      %3668 = vmatpush1.bf16.msra.mxu0 %v3630
      %3669 = vmatprep.subr.bf16.mxu0 0
      %3670 = vmatpush1.bf16.msra.mxu0 %v3631
      %3671 = vmatprep.subr.bf16.mxu0 0
      %3672 = vmatpush1.bf16.msra.mxu0 %v3632
      %3673 = vmatprep.subr.bf16.mxu0 0
      %3674 = vmatpush1.bf16.msra.mxu0 %v3633
      %3675 = vmatprep.subr.bf16.mxu0 0
      %3676 = vmatpush1.bf16.msra.mxu0 %v3634
      %3677 = vmatprep.subr.bf16.mxu0 0
      %3678 = vmatpush1.bf16.msra.mxu0 %v3635
      %3679 = vmatprep.subr.bf16.mxu0 0
      %3680 = vmatpush1.bf16.msra.mxu0 %v3636
      %3681 = vmatprep.subr.bf16.mxu0 0
      %3682 = vmatpush1.bf16.msra.mxu0 %v3637
      %3683 = vmatprep.subr.bf16.mxu0 0
      %3684 = vmatpush1.bf16.msra.mxu0 %v3638
      %3685 = vmatprep.subr.bf16.mxu0 0
      %3686 = vmatpush1.bf16.msra.mxu0 %v3639
      %3687 = vmatprep.subr.bf16.mxu0 0
      %3688 = vmatpush1.bf16.msra.mxu0 %v3640
      %3689 = vmatprep.mubr.bf16.mxu0 %v3498
      %3690 = vmatmul.mubr.bf16.gmra.mrb[0].mxu0 %v3497
      %v3691 = vpop.f32.mrb[0].mxu0
      %v3692 = vadd.f32 0.0, %v3691
      %v3693 = vpop.f32.mrb[0].mxu0
      %v3694 = vpop.f32.mrb[0].mxu0
      %v3695 = vadd.f32 0.0, %v3694
      %v3696 = vpop.f32.mrb[0].mxu0
      %3697 = vmatprep.mubr.bf16.mxu0 %v3500
      %3698 = vmatmul.mubr.bf16.gmra.mrb[0].mxu0 %v3499
      %v3699 = vpop.f32.mrb[0].mxu0
      %v3700 = vadd.f32 0.0, %v3699
      %v3701 = vpop.f32.mrb[0].mxu0
      %v3702 = vpop.f32.mrb[0].mxu0
      %v3703 = vadd.f32 0.0, %v3702
      %v3704 = vpop.f32.mrb[0].mxu0
      %3705 = vmatprep.mubr.bf16.mxu0 %v3502
      %3706 = vmatmul.mubr.bf16.gmra.mrb[0].mxu0 %v3501
      %v3707 = vpop.f32.mrb[0].mxu0
      %v3708 = vadd.f32 0.0, %v3707
      %v3709 = vpop.f32.mrb[0].mxu0
      %v3710 = vpop.f32.mrb[0].mxu0
      %v3711 = vadd.f32 0.0, %v3710
      %v3712 = vpop.f32.mrb[0].mxu0
      %3713 = vmatprep.mubr.bf16.mxu0 %v3504
      %3714 = vmatmul.mubr.bf16.gmra.mrb[0].mxu0 %v3503
      %v3715 = vpop.f32.mrb[0].mxu0
      %v3716 = vadd.f32 0.0, %v3715
      %v3717 = vpop.f32.mrb[0].mxu0
      %v3718 = vpop.f32.mrb[0].mxu0
      %v3719 = vadd.f32 0.0, %v3718
      %v3720 = vpop.f32.mrb[0].mxu0
      %3721 = vmatprep.mubr.bf16.mxu0 %v3506
      %3722 = vmatmul.mubr.bf16.gmra.mrb[0].mxu0 %v3505
      %v3723 = vpop.f32.mrb[0].mxu0
      %v3724 = vadd.f32 0.0, %v3723
      %v3725 = vpop.f32.mrb[0].mxu0
      %v3726 = vpop.f32.mrb[0].mxu0
      %v3727 = vadd.f32 0.0, %v3726
      %v3728 = vpop.f32.mrb[0].mxu0
      %3729 = vmatprep.mubr.bf16.mxu0 %v3508
      %3730 = vmatmul.mubr.bf16.gmra.mrb[0].mxu0 %v3507
      %v3731 = vpop.f32.mrb[0].mxu0
      %v3732 = vadd.f32 0.0, %v3731
      %v3733 = vpop.f32.mrb[0].mxu0
      %v3734 = vpop.f32.mrb[0].mxu0
      %v3735 = vadd.f32 0.0, %v3734
      %v3736 = vpop.f32.mrb[0].mxu0
      %3737 = vmatprep.mubr.bf16.mxu0 %v3510
      %3738 = vmatmul.mubr.bf16.gmra.mrb[0].mxu0 %v3509
      %v3739 = vpop.f32.mrb[0].mxu0
      %v3740 = vadd.f32 0.0, %v3739
      %v3741 = vpop.f32.mrb[0].mxu0
      %v3742 = vpop.f32.mrb[0].mxu0
      %v3743 = vadd.f32 0.0, %v3742
      %v3744 = vpop.f32.mrb[0].mxu0
      %3745 = vmatprep.mubr.bf16.mxu0 %v3512
      %3746 = vmatmul.mubr.bf16.gmra.mrb[0].mxu0 %v3511
      %v3747 = vpop.f32.mrb[0].mxu0
      %v3748 = vadd.f32 0.0, %v3747
      %v3749 = vpop.f32.mrb[0].mxu0
      %v3750 = vpop.f32.mrb[0].mxu0
      %v3751 = vadd.f32 0.0, %v3750
      %v3752 = vpop.f32.mrb[0].mxu0
      %3753 = vmatprep.mubr.bf16.mxu0 %v3514
      %3754 = vmatmul.mubr.bf16.gmra.mrb[0].mxu0 %v3513
      %v3755 = vpop.f32.mrb[0].mxu0
      %v3756 = vadd.f32 0.0, %v3755
      %v3757 = vpop.f32.mrb[0].mxu0
      %v3758 = vpop.f32.mrb[0].mxu0
      %v3759 = vadd.f32 0.0, %v3758
      %v3760 = vpop.f32.mrb[0].mxu0
      %3761 = vmatprep.mubr.bf16.mxu0 %v3516
      %3762 = vmatmul.mubr.bf16.gmra.mrb[0].mxu0 %v3515
      %v3763 = vpop.f32.mrb[0].mxu0
      %v3764 = vadd.f32 0.0, %v3763
      %v3765 = vpop.f32.mrb[0].mxu0
      %v3766 = vpop.f32.mrb[0].mxu0
      %v3767 = vadd.f32 0.0, %v3766
      %v3768 = vpop.f32.mrb[0].mxu0
      %3769 = vmatprep.mubr.bf16.mxu0 %v3518
      %3770 = vmatmul.mubr.bf16.gmra.mrb[0].mxu0 %v3517
      %v3771 = vpop.f32.mrb[0].mxu0
      %v3772 = vadd.f32 0.0, %v3771
      %v3773 = vpop.f32.mrb[0].mxu0
      %v3774 = vpop.f32.mrb[0].mxu0
      %v3775 = vadd.f32 0.0, %v3774
      %v3776 = vpop.f32.mrb[0].mxu0
      %3777 = vmatprep.mubr.bf16.mxu0 %v3520
      %3778 = vmatmul.mubr.bf16.gmra.mrb[0].mxu0 %v3519
      %v3779 = vpop.f32.mrb[0].mxu0
      %v3780 = vadd.f32 0.0, %v3779
      %v3781 = vpop.f32.mrb[0].mxu0
      %v3782 = vpop.f32.mrb[0].mxu0
      %v3783 = vadd.f32 0.0, %v3782
      %v3784 = vpop.f32.mrb[0].mxu0
      %3785 = vmatprep.mubr.bf16.mxu0 %v3522
      %3786 = vmatmul.mubr.bf16.gmra.mrb[0].mxu0 %v3521
      %v3787 = vpop.f32.mrb[0].mxu0
      %v3788 = vadd.f32 0.0, %v3787
      %v3789 = vpop.f32.mrb[0].mxu0
      %v3790 = vpop.f32.mrb[0].mxu0
      %v3791 = vadd.f32 0.0, %v3790
      %v3792 = vpop.f32.mrb[0].mxu0
      %3793 = vmatprep.mubr.bf16.mxu0 %v3524
      %3794 = vmatmul.mubr.bf16.gmra.mrb[0].mxu0 %v3523
      %v3795 = vpop.f32.mrb[0].mxu0
      %v3796 = vadd.f32 0.0, %v3795
      %v3797 = vpop.f32.mrb[0].mxu0
      %v3798 = vpop.f32.mrb[0].mxu0
      %v3799 = vadd.f32 0.0, %v3798
      %v3800 = vpop.f32.mrb[0].mxu0
      %3801 = vmatprep.mubr.bf16.mxu0 %v3526
      %3802 = vmatmul.mubr.bf16.gmra.mrb[0].mxu0 %v3525
      %v3803 = vpop.f32.mrb[0].mxu0
      %v3804 = vadd.f32 0.0, %v3803
      %v3805 = vpop.f32.mrb[0].mxu0
      %v3806 = vpop.f32.mrb[0].mxu0
      %v3807 = vadd.f32 0.0, %v3806
      %v3808 = vpop.f32.mrb[0].mxu0
      %3809 = vmatprep.mubr.bf16.mxu0 %v3528
      %3810 = vmatmul.mubr.bf16.gmra.mrb[0].mxu0 %v3527
      %v3811 = vpop.f32.mrb[0].mxu0
      %v3812 = vadd.f32 0.0, %v3811
      %v3813 = vpop.f32.mrb[0].mxu0
      %v3814 = vpop.f32.mrb[0].mxu0
      %v3815 = vadd.f32 0.0, %v3814
      %v3816 = vpop.f32.mrb[0].mxu0
      %3817 = vdwg.mxu0
      %v3818 = vld [vmem:[#allocation2] sm:$0xff]
      %v3819 = vld [vmem:[#allocation2 + $0x8] sm:$0xff]
      %v3820 = vld [vmem:[#allocation2 + $0x10] sm:$0xff]
      %v3821 = vld [vmem:[#allocation2 + $0x18] sm:$0xff]
      %v3822 = vld [vmem:[#allocation2 + $0x20] sm:$0xff]
      %v3823 = vld [vmem:[#allocation2 + $0x28] sm:$0xff]
      %v3824 = vld [vmem:[#allocation2 + $0x30] sm:$0xff]
      %v3825 = vld [vmem:[#allocation2 + $0x38] sm:$0xff]
      %v3826 = vld [vmem:[#allocation2 + $0x40] sm:$0xff]
      %v3827 = vld [vmem:[#allocation2 + $0x48] sm:$0xff]
      %v3828 = vld [vmem:[#allocation2 + $0x50] sm:$0xff]
      %v3829 = vld [vmem:[#allocation2 + $0x58] sm:$0xff]
      %v3830 = vld [vmem:[#allocation2 + $0x60] sm:$0xff]
      %v3831 = vld [vmem:[#allocation2 + $0x68] sm:$0xff]
      %v3832 = vld [vmem:[#allocation2 + $0x70] sm:$0xff]
      %v3833 = vld [vmem:[#allocation2 + $0x78] sm:$0xff]
      %v3834 = vld [vmem:[#allocation2 + $0x80] sm:$0xff]
      %v3835 = vld [vmem:[#allocation2 + $0x88] sm:$0xff]
      %v3836 = vld [vmem:[#allocation2 + $0x90] sm:$0xff]
      %v3837 = vld [vmem:[#allocation2 + $0x98] sm:$0xff]
      %v3838 = vld [vmem:[#allocation2 + $0xa0] sm:$0xff]
      %v3839 = vld [vmem:[#allocation2 + $0xa8] sm:$0xff]
      %v3840 = vld [vmem:[#allocation2 + $0xb0] sm:$0xff]
      %v3841 = vld [vmem:[#allocation2 + $0xb8] sm:$0xff]
      %v3842 = vld [vmem:[#allocation2 + $0xc0] sm:$0xff]
      %v3843 = vld [vmem:[#allocation2 + $0xc8] sm:$0xff]
      %v3844 = vld [vmem:[#allocation2 + $0xd0] sm:$0xff]
      %v3845 = vld [vmem:[#allocation2 + $0xd8] sm:$0xff]
      %v3846 = vld [vmem:[#allocation2 + $0xe0] sm:$0xff]
      %v3847 = vld [vmem:[#allocation2 + $0xe8] sm:$0xff]
      %v3848 = vld [vmem:[#allocation2 + $0xf0] sm:$0xff]
      %v3849 = vld [vmem:[#allocation2 + $0xf8] sm:$0xff]
      %v3850 = vadd.f32 %v3818, %v3692
      %v3851 = vadd.f32 %v3819, %v3695
      %v3852 = vadd.f32 %v3820, %v3700
      %v3853 = vadd.f32 %v3821, %v3703
      %v3854 = vadd.f32 %v3822, %v3708
      %v3855 = vadd.f32 %v3823, %v3711
      %v3856 = vadd.f32 %v3824, %v3716
      %v3857 = vadd.f32 %v3825, %v3719
      %v3858 = vadd.f32 %v3826, %v3724
      %v3859 = vadd.f32 %v3827, %v3727
      %v3860 = vadd.f32 %v3828, %v3732
      %v3861 = vadd.f32 %v3829, %v3735
      %v3862 = vadd.f32 %v3830, %v3740
      %v3863 = vadd.f32 %v3831, %v3743
      %v3864 = vadd.f32 %v3832, %v3748
      %v3865 = vadd.f32 %v3833, %v3751
      %v3866 = vadd.f32 %v3834, %v3756
      %v3867 = vadd.f32 %v3835, %v3759
      %v3868 = vadd.f32 %v3836, %v3764
      %v3869 = vadd.f32 %v3837, %v3767
      %v3870 = vadd.f32 %v3838, %v3772
      %v3871 = vadd.f32 %v3839, %v3775
      %v3872 = vadd.f32 %v3840, %v3780
      %v3873 = vadd.f32 %v3841, %v3783
      %v3874 = vadd.f32 %v3842, %v3788
      %v3875 = vadd.f32 %v3843, %v3791
      %v3876 = vadd.f32 %v3844, %v3796
      %v3877 = vadd.f32 %v3845, %v3799
      %v3878 = vadd.f32 %v3846, %v3804
      %v3879 = vadd.f32 %v3847, %v3807
      %v3880 = vadd.f32 %v3848, %v3812
      %v3881 = vadd.f32 %v3849, %v3815
      %3882 = vst [vmem:[#allocation2] sm:$0xff] %v3850
      %3883 = vst [vmem:[#allocation2 + $0x8] sm:$0xff] %v3851
      %3884 = vst [vmem:[#allocation2 + $0x10] sm:$0xff] %v3852
      %3885 = vst [vmem:[#allocation2 + $0x18] sm:$0xff] %v3853
      %3886 = vst [vmem:[#allocation2 + $0x20] sm:$0xff] %v3854
      %3887 = vst [vmem:[#allocation2 + $0x28] sm:$0xff] %v3855
      %3888 = vst [vmem:[#allocation2 + $0x30] sm:$0xff] %v3856
      %3889 = vst [vmem:[#allocation2 + $0x38] sm:$0xff] %v3857
      %3890 = vst [vmem:[#allocation2 + $0x40] sm:$0xff] %v3858
      %3891 = vst [vmem:[#allocation2 + $0x48] sm:$0xff] %v3859
      %3892 = vst [vmem:[#allocation2 + $0x50] sm:$0xff] %v3860
      %3893 = vst [vmem:[#allocation2 + $0x58] sm:$0xff] %v3861
      %3894 = vst [vmem:[#allocation2 + $0x60] sm:$0xff] %v3862
      %3895 = vst [vmem:[#allocation2 + $0x68] sm:$0xff] %v3863
      %3896 = vst [vmem:[#allocation2 + $0x70] sm:$0xff] %v3864
      %3897 = vst [vmem:[#allocation2 + $0x78] sm:$0xff] %v3865
      %3898 = vst [vmem:[#allocation2 + $0x80] sm:$0xff] %v3866
      %3899 = vst [vmem:[#allocation2 + $0x88] sm:$0xff] %v3867
      %3900 = vst [vmem:[#allocation2 + $0x90] sm:$0xff] %v3868
      %3901 = vst [vmem:[#allocation2 + $0x98] sm:$0xff] %v3869
      %3902 = vst [vmem:[#allocation2 + $0xa0] sm:$0xff] %v3870
      %3903 = vst [vmem:[#allocation2 + $0xa8] sm:$0xff] %v3871
      %3904 = vst [vmem:[#allocation2 + $0xb0] sm:$0xff] %v3872
      %3905 = vst [vmem:[#allocation2 + $0xb8] sm:$0xff] %v3873
      %3906 = vst [vmem:[#allocation2 + $0xc0] sm:$0xff] %v3874
      %3907 = vst [vmem:[#allocation2 + $0xc8] sm:$0xff] %v3875
      %3908 = vst [vmem:[#allocation2 + $0xd0] sm:$0xff] %v3876
      %3909 = vst [vmem:[#allocation2 + $0xd8] sm:$0xff] %v3877
      %3910 = vst [vmem:[#allocation2 + $0xe0] sm:$0xff] %v3878
      %3911 = vst [vmem:[#allocation2 + $0xe8] sm:$0xff] %v3879
      %3912 = vst [vmem:[#allocation2 + $0xf0] sm:$0xff] %v3880
      %3913 = vst [vmem:[#allocation2 + $0xf8] sm:$0xff] %v3881
      %v3914 = vld [vmem:[%s2389] sm:$0xee]
      %v3915 = vld [vmem:[%s2389 + $0x8] sm:$0xff]
      %v3916 = vld [vmem:[%s2389 + $0x10] sm:$0x11]
      %v3917 = vld [vmem:[%s2389 + $0x18] sm:$0xee]
      %v3918 = vld [vmem:[%s2389 + $0x20] sm:$0xff]
      %v3919 = vld [vmem:[%s2389 + $0x28] sm:$0x11]
      %v3920 = vld [vmem:[%s2389 + $0x30] sm:$0xee]
      %v3921 = vld [vmem:[%s2389 + $0x38] sm:$0xff]
      %v3922 = vld [vmem:[%s2389 + $0x40] sm:$0x11]
      %v3923 = vld [vmem:[%s2389 + $0x48] sm:$0xee]
      %v3924 = vld [vmem:[%s2389 + $0x50] sm:$0xff]
      %v3925 = vld [vmem:[%s2389 + $0x58] sm:$0x11]
      %v3926 = vld [vmem:[%s2389 + $0x60] sm:$0xee]
      %v3927 = vld [vmem:[%s2389 + $0x68] sm:$0xff]
      %v3928 = vld [vmem:[%s2389 + $0x70] sm:$0x11]
      %v3929 = vld [vmem:[%s2389 + $0x78] sm:$0xee]
      %v3930 = vld [vmem:[%s2389 + $0x80] sm:$0xff]
      %v3931 = vld [vmem:[%s2389 + $0x88] sm:$0x11]
      %v3932 = vld [vmem:[%s2389 + $0x90] sm:$0xee]
      %v3933 = vld [vmem:[%s2389 + $0x98] sm:$0xff]
      %v3934 = vld [vmem:[%s2389 + $0xa0] sm:$0x11]
      %v3935 = vld [vmem:[%s2389 + $0xa8] sm:$0xee]
      %v3936 = vld [vmem:[%s2389 + $0xb0] sm:$0xff]
      %v3937 = vld [vmem:[%s2389 + $0xb8] sm:$0x11]
      %v3938 = vld [vmem:[%s2389 + $0xc0] sm:$0xee]
      %v3939 = vld [vmem:[%s2389 + $0xc8] sm:$0xff]
      %v3940 = vld [vmem:[%s2389 + $0xd0] sm:$0x11]
      %v3941 = vld [vmem:[%s2389 + $0xd8] sm:$0xee]
      %v3942 = vld [vmem:[%s2389 + $0xe0] sm:$0xff]
      %v3943 = vld [vmem:[%s2389 + $0xe8] sm:$0x11]
      %v3944 = vld [vmem:[%s2389 + $0xf0] sm:$0xee]
      %v3945 = vld [vmem:[%s2389 + $0xf8] sm:$0xff]
      %v3946 = vld [vmem:[%s2389 + $0x100] sm:$0x11]
      %v3947 = vld [vmem:[%s2389 + $0x108] sm:$0xee]
      %v3948 = vld [vmem:[%s2389 + $0x110] sm:$0xff]
      %v3949 = vld [vmem:[%s2389 + $0x118] sm:$0x11]
      %v3950 = vld [vmem:[%s2389 + $0x120] sm:$0xee]
      %v3951 = vld [vmem:[%s2389 + $0x128] sm:$0xff]
      %v3952 = vld [vmem:[%s2389 + $0x130] sm:$0x11]
      %v3953 = vld [vmem:[%s2389 + $0x138] sm:$0xee]
      %v3954 = vld [vmem:[%s2389 + $0x140] sm:$0xff]
      %v3955 = vld [vmem:[%s2389 + $0x148] sm:$0x11]
      %v3956 = vld [vmem:[%s2389 + $0x150] sm:$0xee]
      %v3957 = vld [vmem:[%s2389 + $0x158] sm:$0xff]
      %v3958 = vld [vmem:[%s2389 + $0x160] sm:$0x11]
      %v3959 = vld [vmem:[%s2389 + $0x168] sm:$0xee]
      %v3960 = vld [vmem:[%s2389 + $0x170] sm:$0xff]
      %v3961 = vld [vmem:[%s2389 + $0x178] sm:$0x11]
      %v4010 = vrot.slane %v3914, 5
      %v4011 = vrot.slane %v4010, 4
      %v4012 = vrot.slane %v3915, 5
      %v4013 = vsel %vm1759, %v4011, %v4012
      %v4014 = vrot.slane %v4012, 4
      %v4015 = vrot.slane %v3916, 5
      %v4016 = vsel %vm1759, %v4014, %v4015
      %v4017 = vrot.slane %v3917, 5
      %v4018 = vrot.slane %v4017, 4
      %v4019 = vrot.slane %v3918, 5
      %v4020 = vsel %vm1759, %v4018, %v4019
      %v4021 = vrot.slane %v4019, 4
      %v4022 = vrot.slane %v3919, 5
      %v4023 = vsel %vm1759, %v4021, %v4022
      %v4024 = vrot.slane %v3920, 5
      %v4025 = vrot.slane %v4024, 4
      %v4026 = vrot.slane %v3921, 5
      %v4027 = vsel %vm1759, %v4025, %v4026
      %v4028 = vrot.slane %v4026, 4
      %v4029 = vrot.slane %v3922, 5
      %v4030 = vsel %vm1759, %v4028, %v4029
      %v4031 = vrot.slane %v3923, 5
      %v4032 = vrot.slane %v4031, 4
      %v4033 = vrot.slane %v3924, 5
      %v4034 = vsel %vm1759, %v4032, %v4033
      %v4035 = vrot.slane %v4033, 4
      %v4036 = vrot.slane %v3925, 5
      %v4037 = vsel %vm1759, %v4035, %v4036
      %v4038 = vrot.slane %v3926, 5
      %v4039 = vrot.slane %v4038, 4
      %v4040 = vrot.slane %v3927, 5
      %v4041 = vsel %vm1759, %v4039, %v4040
      %v4042 = vrot.slane %v4040, 4
      %v4043 = vrot.slane %v3928, 5
      %v4044 = vsel %vm1759, %v4042, %v4043
      %v4045 = vrot.slane %v3929, 5
      %v4046 = vrot.slane %v4045, 4
      %v4047 = vrot.slane %v3930, 5
      %v4048 = vsel %vm1759, %v4046, %v4047
      %v4049 = vrot.slane %v4047, 4
      %v4050 = vrot.slane %v3931, 5
      %v4051 = vsel %vm1759, %v4049, %v4050
      %v4052 = vrot.slane %v3932, 5
      %v4053 = vrot.slane %v4052, 4
      %v4054 = vrot.slane %v3933, 5
      %v4055 = vsel %vm1759, %v4053, %v4054
      %v4056 = vrot.slane %v4054, 4
      %v4057 = vrot.slane %v3934, 5
      %v4058 = vsel %vm1759, %v4056, %v4057
      %v4059 = vrot.slane %v3935, 5
      %v4060 = vrot.slane %v4059, 4
      %v4061 = vrot.slane %v3936, 5
      %v4062 = vsel %vm1759, %v4060, %v4061
      %v4063 = vrot.slane %v4061, 4
      %v4064 = vrot.slane %v3937, 5
      %v4065 = vsel %vm1759, %v4063, %v4064
      %v4066 = vrot.slane %v3938, 5
      %v4067 = vrot.slane %v4066, 4
      %v4068 = vrot.slane %v3939, 5
      %v4069 = vsel %vm1759, %v4067, %v4068
      %v4070 = vrot.slane %v4068, 4
      %v4071 = vrot.slane %v3940, 5
      %v4072 = vsel %vm1759, %v4070, %v4071
      %v4073 = vrot.slane %v3941, 5
      %v4074 = vrot.slane %v4073, 4
      %v4075 = vrot.slane %v3942, 5
      %v4076 = vsel %vm1759, %v4074, %v4075
      %v4077 = vrot.slane %v4075, 4
      %v4078 = vrot.slane %v3943, 5
      %v4079 = vsel %vm1759, %v4077, %v4078
      %v4080 = vrot.slane %v3944, 5
      %v4081 = vrot.slane %v4080, 4
      %v4082 = vrot.slane %v3945, 5
      %v4083 = vsel %vm1759, %v4081, %v4082
      %v4084 = vrot.slane %v4082, 4
      %v4085 = vrot.slane %v3946, 5
      %v4086 = vsel %vm1759, %v4084, %v4085
      %v4087 = vrot.slane %v3947, 5
      %v4088 = vrot.slane %v4087, 4
      %v4089 = vrot.slane %v3948, 5
      %v4090 = vsel %vm1759, %v4088, %v4089
      %v4091 = vrot.slane %v4089, 4
      %v4092 = vrot.slane %v3949, 5
      %v4093 = vsel %vm1759, %v4091, %v4092
      %v4094 = vrot.slane %v3950, 5
      %v4095 = vrot.slane %v4094, 4
      %v4096 = vrot.slane %v3951, 5
      %v4097 = vsel %vm1759, %v4095, %v4096
      %v4098 = vrot.slane %v4096, 4
      %v4099 = vrot.slane %v3952, 5
      %v4100 = vsel %vm1759, %v4098, %v4099
      %v4101 = vrot.slane %v3953, 5
      %v4102 = vrot.slane %v4101, 4
      %v4103 = vrot.slane %v3954, 5
      %v4104 = vsel %vm1759, %v4102, %v4103
      %v4105 = vrot.slane %v4103, 4
      %v4106 = vrot.slane %v3955, 5
      %v4107 = vsel %vm1759, %v4105, %v4106
      %v4108 = vrot.slane %v3956, 5
      %v4109 = vrot.slane %v4108, 4
      %v4110 = vrot.slane %v3957, 5
      %v4111 = vsel %vm1759, %v4109, %v4110
      %v4112 = vrot.slane %v4110, 4
      %v4113 = vrot.slane %v3958, 5
      %v4114 = vsel %vm1759, %v4112, %v4113
      %v4115 = vrot.slane %v3959, 5
      %v4116 = vrot.slane %v4115, 4
      %v4117 = vrot.slane %v3960, 5
      %v4118 = vsel %vm1759, %v4116, %v4117
      %v4119 = vrot.slane %v4117, 4
      %v4120 = vrot.slane %v3961, 5
      %v4121 = vsel %vm1759, %v4119, %v4120
      %s4122 = scalar_lea.vmem %s1, 640
      %v4123 = vld [vmem:[%s4122] sm:$0xf]
      %v4124 = vld [vmem:[%s4122 + $0x4] sm:$0xf]
      %v4125 = vld [vmem:[%s4122 + $0x8] sm:$0xf]
      %v4126 = vld [vmem:[%s4122 + $0xc] sm:$0xf]
      %v4127 = vld [vmem:[%s4122 + $0x10] sm:$0xf]
      %v4128 = vld [vmem:[%s4122 + $0x14] sm:$0xf]
      %v4129 = vld [vmem:[%s4122 + $0x18] sm:$0xf]
      %v4130 = vld [vmem:[%s4122 + $0x1c] sm:$0xf]
      %v4131 = vld [vmem:[%s4122 + $0x20] sm:$0xf]
      %v4132 = vld [vmem:[%s4122 + $0x24] sm:$0xf]
      %v4133 = vld [vmem:[%s4122 + $0x28] sm:$0xf]
      %v4134 = vld [vmem:[%s4122 + $0x2c] sm:$0xf]
      %v4135 = vld [vmem:[%s4122 + $0x30] sm:$0xf]
      %v4136 = vld [vmem:[%s4122 + $0x34] sm:$0xf]
      %v4137 = vld [vmem:[%s4122 + $0x38] sm:$0xf]
      %v4138 = vld [vmem:[%s4122 + $0x3c] sm:$0xf]
      %v4139 = vld [vmem:[%s4122 + $0x40] sm:$0xf]
      %v4140 = vld [vmem:[%s4122 + $0x44] sm:$0xf]
      %v4141 = vld [vmem:[%s4122 + $0x48] sm:$0xf]
      %v4142 = vld [vmem:[%s4122 + $0x4c] sm:$0xf]
      %v4143 = vld [vmem:[%s4122 + $0x50] sm:$0xf]
      %v4144 = vld [vmem:[%s4122 + $0x54] sm:$0xf]
      %v4145 = vld [vmem:[%s4122 + $0x58] sm:$0xf]
      %v4146 = vld [vmem:[%s4122 + $0x5c] sm:$0xf]
      %v4147 = vld [vmem:[%s4122 + $0x60] sm:$0xf]
      %v4148 = vld [vmem:[%s4122 + $0x64] sm:$0xf]
      %v4149 = vld [vmem:[%s4122 + $0x68] sm:$0xf]
      %v4150 = vld [vmem:[%s4122 + $0x6c] sm:$0xf]
      %v4151 = vld [vmem:[%s4122 + $0x70] sm:$0xf]
      %v4152 = vld [vmem:[%s4122 + $0x74] sm:$0xf]
      %v4153 = vld [vmem:[%s4122 + $0x78] sm:$0xf]
      %v4154 = vld [vmem:[%s4122 + $0x7c] sm:$0xf]
      %v4155 = vunpack.c.l.b16 %v4013
      %v4156 = vunpack.c.h.b16 %v4013
      %v4157 = vunpack.c.l.b16 %v4016
      %v4158 = vunpack.c.h.b16 %v4016
      %v4159 = vunpack.c.l.b16 %v4020
      %v4160 = vunpack.c.h.b16 %v4020
      %v4161 = vunpack.c.l.b16 %v4023
      %v4162 = vunpack.c.h.b16 %v4023
      %v4163 = vunpack.c.l.b16 %v4027
      %v4164 = vunpack.c.h.b16 %v4027
      %v4165 = vunpack.c.l.b16 %v4030
      %v4166 = vunpack.c.h.b16 %v4030
      %v4167 = vunpack.c.l.b16 %v4034
      %v4168 = vunpack.c.h.b16 %v4034
      %v4169 = vunpack.c.l.b16 %v4037
      %v4170 = vunpack.c.h.b16 %v4037
      %v4171 = vunpack.c.l.b16 %v4041
      %v4172 = vunpack.c.h.b16 %v4041
      %v4173 = vunpack.c.l.b16 %v4044
      %v4174 = vunpack.c.h.b16 %v4044
      %v4175 = vunpack.c.l.b16 %v4048
      %v4176 = vunpack.c.h.b16 %v4048
      %v4177 = vunpack.c.l.b16 %v4051
      %v4178 = vunpack.c.h.b16 %v4051
      %v4179 = vunpack.c.l.b16 %v4055
      %v4180 = vunpack.c.h.b16 %v4055
      %v4181 = vunpack.c.l.b16 %v4058
      %v4182 = vunpack.c.h.b16 %v4058
      %v4183 = vunpack.c.l.b16 %v4062
      %v4184 = vunpack.c.h.b16 %v4062
      %v4185 = vunpack.c.l.b16 %v4065
      %v4186 = vunpack.c.h.b16 %v4065
      %v4187 = vunpack.c.l.b16 %v4069
      %v4188 = vunpack.c.h.b16 %v4069
      %v4189 = vunpack.c.l.b16 %v4072
      %v4190 = vunpack.c.h.b16 %v4072
      %v4191 = vunpack.c.l.b16 %v4076
      %v4192 = vunpack.c.h.b16 %v4076
      %v4193 = vunpack.c.l.b16 %v4079
      %v4194 = vunpack.c.h.b16 %v4079
      %v4195 = vunpack.c.l.b16 %v4083
      %v4196 = vunpack.c.h.b16 %v4083
      %v4197 = vunpack.c.l.b16 %v4086
      %v4198 = vunpack.c.h.b16 %v4086
      %v4199 = vunpack.c.l.b16 %v4090
      %v4200 = vunpack.c.h.b16 %v4090
      %v4201 = vunpack.c.l.b16 %v4093
      %v4202 = vunpack.c.h.b16 %v4093
      %v4203 = vunpack.c.l.b16 %v4097
      %v4204 = vunpack.c.h.b16 %v4097
      %v4205 = vunpack.c.l.b16 %v4100
      %v4206 = vunpack.c.h.b16 %v4100
      %v4207 = vunpack.c.l.b16 %v4104
      %v4208 = vunpack.c.h.b16 %v4104
      %v4209 = vunpack.c.l.b16 %v4107
      %v4210 = vunpack.c.h.b16 %v4107
      %v4211 = vunpack.c.l.b16 %v4111
      %v4212 = vunpack.c.h.b16 %v4111
      %v4213 = vunpack.c.l.b16 %v4114
      %v4214 = vunpack.c.h.b16 %v4114
      %v4215 = vunpack.c.l.b16 %v4118
      %v4216 = vunpack.c.h.b16 %v4118
      %v4217 = vunpack.c.l.b16 %v4121
      %v4218 = vunpack.c.h.b16 %v4121
      %v4219 = vpack.c.b16 %v4157, %v4155
      %v4220 = vpack.c.b16 %v4158, %v4156
      %v4221 = vpack.c.b16 %v4161, %v4159
      %v4222 = vpack.c.b16 %v4162, %v4160
      %v4223 = vpack.c.b16 %v4165, %v4163
      %v4224 = vpack.c.b16 %v4166, %v4164
      %v4225 = vpack.c.b16 %v4169, %v4167
      %v4226 = vpack.c.b16 %v4170, %v4168
      %v4227 = vpack.c.b16 %v4173, %v4171
      %v4228 = vpack.c.b16 %v4174, %v4172
      %v4229 = vpack.c.b16 %v4177, %v4175
      %v4230 = vpack.c.b16 %v4178, %v4176
      %v4231 = vpack.c.b16 %v4181, %v4179
      %v4232 = vpack.c.b16 %v4182, %v4180
      %v4233 = vpack.c.b16 %v4185, %v4183
      %v4234 = vpack.c.b16 %v4186, %v4184
      %v4235 = vpack.c.b16 %v4189, %v4187
      %v4236 = vpack.c.b16 %v4190, %v4188
      %v4237 = vpack.c.b16 %v4193, %v4191
      %v4238 = vpack.c.b16 %v4194, %v4192
      %v4239 = vpack.c.b16 %v4197, %v4195
      %v4240 = vpack.c.b16 %v4198, %v4196
      %v4241 = vpack.c.b16 %v4201, %v4199
      %v4242 = vpack.c.b16 %v4202, %v4200
      %v4243 = vpack.c.b16 %v4205, %v4203
      %v4244 = vpack.c.b16 %v4206, %v4204
      %v4245 = vpack.c.b16 %v4209, %v4207
      %v4246 = vpack.c.b16 %v4210, %v4208
      %v4247 = vpack.c.b16 %v4213, %v4211
      %v4248 = vpack.c.b16 %v4214, %v4212
      %v4249 = vpack.c.b16 %v4217, %v4215
      %v4250 = vpack.c.b16 %v4218, %v4216
      %v4315 = vunpack.c.l.b16 %v4123
      %v4316 = vunpack.c.l.b16 %v4124
      %v4317 = vunpack.c.l.b16 %v4125
      %v4318 = vunpack.c.l.b16 %v4126
      %v4319 = vunpack.c.l.b16 %v4127
      %v4320 = vunpack.c.l.b16 %v4128
      %v4321 = vunpack.c.l.b16 %v4129
      %v4322 = vunpack.c.l.b16 %v4130
      %v4323 = vunpack.c.l.b16 %v4131
      %v4324 = vunpack.c.l.b16 %v4132
      %v4325 = vunpack.c.l.b16 %v4133
      %v4326 = vunpack.c.l.b16 %v4134
      %v4327 = vunpack.c.l.b16 %v4135
      %v4328 = vunpack.c.l.b16 %v4136
      %v4329 = vunpack.c.l.b16 %v4137
      %v4330 = vunpack.c.l.b16 %v4138
      %v4331 = vunpack.c.l.b16 %v4139
      %v4332 = vunpack.c.l.b16 %v4140
      %v4333 = vunpack.c.l.b16 %v4141
      %v4334 = vunpack.c.l.b16 %v4142
      %v4335 = vunpack.c.l.b16 %v4143
      %v4336 = vunpack.c.l.b16 %v4144
      %v4337 = vunpack.c.l.b16 %v4145
      %v4338 = vunpack.c.l.b16 %v4146
      %v4339 = vunpack.c.l.b16 %v4147
      %v4340 = vunpack.c.l.b16 %v4148
      %v4341 = vunpack.c.l.b16 %v4149
      %v4342 = vunpack.c.l.b16 %v4150
      %v4343 = vunpack.c.l.b16 %v4151
      %v4344 = vunpack.c.l.b16 %v4152
      %v4345 = vunpack.c.l.b16 %v4153
      %v4346 = vunpack.c.l.b16 %v4154
      %v4347 = vpack.c.b16 %v4316, %v4315
      %v4348 = vpack.c.b16 %v4318, %v4317
      %v4349 = vpack.c.b16 %v4320, %v4319
      %v4350 = vpack.c.b16 %v4322, %v4321
      %v4351 = vpack.c.b16 %v4324, %v4323
      %v4352 = vpack.c.b16 %v4326, %v4325
      %v4353 = vpack.c.b16 %v4328, %v4327
      %v4354 = vpack.c.b16 %v4330, %v4329
      %v4355 = vpack.c.b16 %v4332, %v4331
      %v4356 = vpack.c.b16 %v4334, %v4333
      %v4357 = vpack.c.b16 %v4336, %v4335
      %v4358 = vpack.c.b16 %v4338, %v4337
      %v4359 = vpack.c.b16 %v4340, %v4339
      %v4360 = vpack.c.b16 %v4342, %v4341
      %v4361 = vpack.c.b16 %v4344, %v4343
      %v4362 = vpack.c.b16 %v4346, %v4345
      %4379 = vmatprep.subr.bf16.mxu0 0
      %4380 = vmatpush1.bf16.msra.mxu0 %v4347
      %4381 = vmatprep.subr.bf16.mxu0 0
      %4382 = vmatpush1.bf16.msra.mxu0 %v4348
      %4383 = vmatprep.subr.bf16.mxu0 0
      %4384 = vmatpush1.bf16.msra.mxu0 %v4349
      %4385 = vmatprep.subr.bf16.mxu0 0
      %4386 = vmatpush1.bf16.msra.mxu0 %v4350
      %4387 = vmatprep.subr.bf16.mxu0 0
      %4388 = vmatpush1.bf16.msra.mxu0 %v4351
      %4389 = vmatprep.subr.bf16.mxu0 0
      %4390 = vmatpush1.bf16.msra.mxu0 %v4352
      %4391 = vmatprep.subr.bf16.mxu0 0
      %4392 = vmatpush1.bf16.msra.mxu0 %v4353
      %4393 = vmatprep.subr.bf16.mxu0 0
      %4394 = vmatpush1.bf16.msra.mxu0 %v4354
      %4395 = vmatprep.subr.bf16.mxu0 0
      %4396 = vmatpush1.bf16.msra.mxu0 %v4355
      %4397 = vmatprep.subr.bf16.mxu0 0
      %4398 = vmatpush1.bf16.msra.mxu0 %v4356
      %4399 = vmatprep.subr.bf16.mxu0 0
      %4400 = vmatpush1.bf16.msra.mxu0 %v4357
      %4401 = vmatprep.subr.bf16.mxu0 0
      %4402 = vmatpush1.bf16.msra.mxu0 %v4358
      %4403 = vmatprep.subr.bf16.mxu0 0
      %4404 = vmatpush1.bf16.msra.mxu0 %v4359
      %4405 = vmatprep.subr.bf16.mxu0 0
      %4406 = vmatpush1.bf16.msra.mxu0 %v4360
      %4407 = vmatprep.subr.bf16.mxu0 0
      %4408 = vmatpush1.bf16.msra.mxu0 %v4361
      %4409 = vmatprep.subr.bf16.mxu0 0
      %4410 = vmatpush1.bf16.msra.mxu0 %v4362
      %4411 = vmatprep.mubr.bf16.mxu0 %v4220
      %4412 = vmatmul.mubr.bf16.gmra.mrb[0].mxu0 %v4219
      %v4413 = vpop.f32.mrb[0].mxu0
      %v4414 = vadd.f32 0.0, %v4413
      %v4415 = vpop.f32.mrb[0].mxu0
      %v4416 = vpop.f32.mrb[0].mxu0
      %v4417 = vadd.f32 0.0, %v4416
      %v4418 = vpop.f32.mrb[0].mxu0
      %4419 = vmatprep.mubr.bf16.mxu0 %v4222
      %4420 = vmatmul.mubr.bf16.gmra.mrb[0].mxu0 %v4221
      %v4421 = vpop.f32.mrb[0].mxu0
      %v4422 = vadd.f32 0.0, %v4421
      %v4423 = vpop.f32.mrb[0].mxu0
      %v4424 = vpop.f32.mrb[0].mxu0
      %v4425 = vadd.f32 0.0, %v4424
      %v4426 = vpop.f32.mrb[0].mxu0
      %4427 = vmatprep.mubr.bf16.mxu0 %v4224
      %4428 = vmatmul.mubr.bf16.gmra.mrb[0].mxu0 %v4223
      %v4429 = vpop.f32.mrb[0].mxu0
      %v4430 = vadd.f32 0.0, %v4429
      %v4431 = vpop.f32.mrb[0].mxu0
      %v4432 = vpop.f32.mrb[0].mxu0
      %v4433 = vadd.f32 0.0, %v4432
      %v4434 = vpop.f32.mrb[0].mxu0
      %4435 = vmatprep.mubr.bf16.mxu0 %v4226
      %4436 = vmatmul.mubr.bf16.gmra.mrb[0].mxu0 %v4225
      %v4437 = vpop.f32.mrb[0].mxu0
      %v4438 = vadd.f32 0.0, %v4437
      %v4439 = vpop.f32.mrb[0].mxu0
      %v4440 = vpop.f32.mrb[0].mxu0
      %v4441 = vadd.f32 0.0, %v4440
      %v4442 = vpop.f32.mrb[0].mxu0
      %4443 = vmatprep.mubr.bf16.mxu0 %v4228
      %4444 = vmatmul.mubr.bf16.gmra.mrb[0].mxu0 %v4227
      %v4445 = vpop.f32.mrb[0].mxu0
      %v4446 = vadd.f32 0.0, %v4445
      %v4447 = vpop.f32.mrb[0].mxu0
      %v4448 = vpop.f32.mrb[0].mxu0
      %v4449 = vadd.f32 0.0, %v4448
      %v4450 = vpop.f32.mrb[0].mxu0
      %4451 = vmatprep.mubr.bf16.mxu0 %v4230
      %4452 = vmatmul.mubr.bf16.gmra.mrb[0].mxu0 %v4229
      %v4453 = vpop.f32.mrb[0].mxu0
      %v4454 = vadd.f32 0.0, %v4453
      %v4455 = vpop.f32.mrb[0].mxu0
      %v4456 = vpop.f32.mrb[0].mxu0
      %v4457 = vadd.f32 0.0, %v4456
      %v4458 = vpop.f32.mrb[0].mxu0
      %4459 = vmatprep.mubr.bf16.mxu0 %v4232
      %4460 = vmatmul.mubr.bf16.gmra.mrb[0].mxu0 %v4231
      %v4461 = vpop.f32.mrb[0].mxu0
      %v4462 = vadd.f32 0.0, %v4461
      %v4463 = vpop.f32.mrb[0].mxu0
      %v4464 = vpop.f32.mrb[0].mxu0
      %v4465 = vadd.f32 0.0, %v4464
      %v4466 = vpop.f32.mrb[0].mxu0
      %4467 = vmatprep.mubr.bf16.mxu0 %v4234
      %4468 = vmatmul.mubr.bf16.gmra.mrb[0].mxu0 %v4233
      %v4469 = vpop.f32.mrb[0].mxu0
      %v4470 = vadd.f32 0.0, %v4469
      %v4471 = vpop.f32.mrb[0].mxu0
      %v4472 = vpop.f32.mrb[0].mxu0
      %v4473 = vadd.f32 0.0, %v4472
      %v4474 = vpop.f32.mrb[0].mxu0
      %4475 = vmatprep.mubr.bf16.mxu0 %v4236
      %4476 = vmatmul.mubr.bf16.gmra.mrb[0].mxu0 %v4235
      %v4477 = vpop.f32.mrb[0].mxu0
      %v4478 = vadd.f32 0.0, %v4477
      %v4479 = vpop.f32.mrb[0].mxu0
      %v4480 = vpop.f32.mrb[0].mxu0
      %v4481 = vadd.f32 0.0, %v4480
      %v4482 = vpop.f32.mrb[0].mxu0
      %4483 = vmatprep.mubr.bf16.mxu0 %v4238
      %4484 = vmatmul.mubr.bf16.gmra.mrb[0].mxu0 %v4237
      %v4485 = vpop.f32.mrb[0].mxu0
      %v4486 = vadd.f32 0.0, %v4485
      %v4487 = vpop.f32.mrb[0].mxu0
      %v4488 = vpop.f32.mrb[0].mxu0
      %v4489 = vadd.f32 0.0, %v4488
      %v4490 = vpop.f32.mrb[0].mxu0
      %4491 = vmatprep.mubr.bf16.mxu0 %v4240
      %4492 = vmatmul.mubr.bf16.gmra.mrb[0].mxu0 %v4239
      %v4493 = vpop.f32.mrb[0].mxu0
      %v4494 = vadd.f32 0.0, %v4493
      %v4495 = vpop.f32.mrb[0].mxu0
      %v4496 = vpop.f32.mrb[0].mxu0
      %v4497 = vadd.f32 0.0, %v4496
      %v4498 = vpop.f32.mrb[0].mxu0
      %4499 = vmatprep.mubr.bf16.mxu0 %v4242
      %4500 = vmatmul.mubr.bf16.gmra.mrb[0].mxu0 %v4241
      %v4501 = vpop.f32.mrb[0].mxu0
      %v4502 = vadd.f32 0.0, %v4501
      %v4503 = vpop.f32.mrb[0].mxu0
      %v4504 = vpop.f32.mrb[0].mxu0
      %v4505 = vadd.f32 0.0, %v4504
      %v4506 = vpop.f32.mrb[0].mxu0
      %4507 = vmatprep.mubr.bf16.mxu0 %v4244
      %4508 = vmatmul.mubr.bf16.gmra.mrb[0].mxu0 %v4243
      %v4509 = vpop.f32.mrb[0].mxu0
      %v4510 = vadd.f32 0.0, %v4509
      %v4511 = vpop.f32.mrb[0].mxu0
      %v4512 = vpop.f32.mrb[0].mxu0
      %v4513 = vadd.f32 0.0, %v4512
      %v4514 = vpop.f32.mrb[0].mxu0
      %4515 = vmatprep.mubr.bf16.mxu0 %v4246
      %4516 = vmatmul.mubr.bf16.gmra.mrb[0].mxu0 %v4245
      %v4517 = vpop.f32.mrb[0].mxu0
      %v4518 = vadd.f32 0.0, %v4517
      %v4519 = vpop.f32.mrb[0].mxu0
      %v4520 = vpop.f32.mrb[0].mxu0
      %v4521 = vadd.f32 0.0, %v4520
      %v4522 = vpop.f32.mrb[0].mxu0
      %4523 = vmatprep.mubr.bf16.mxu0 %v4248
      %4524 = vmatmul.mubr.bf16.gmra.mrb[0].mxu0 %v4247
      %v4525 = vpop.f32.mrb[0].mxu0
      %v4526 = vadd.f32 0.0, %v4525
      %v4527 = vpop.f32.mrb[0].mxu0
      %v4528 = vpop.f32.mrb[0].mxu0
      %v4529 = vadd.f32 0.0, %v4528
      %v4530 = vpop.f32.mrb[0].mxu0
      %4531 = vmatprep.mubr.bf16.mxu0 %v4250
      %4532 = vmatmul.mubr.bf16.gmra.mrb[0].mxu0 %v4249
      %v4533 = vpop.f32.mrb[0].mxu0
      %v4534 = vadd.f32 0.0, %v4533
      %v4535 = vpop.f32.mrb[0].mxu0
      %v4536 = vpop.f32.mrb[0].mxu0
      %v4537 = vadd.f32 0.0, %v4536
      %v4538 = vpop.f32.mrb[0].mxu0
      %4539 = vdwg.mxu0
      %v4540 = vld [vmem:[#allocation2] sm:$0xff]
      %v4541 = vld [vmem:[#allocation2 + $0x8] sm:$0xff]
      %v4542 = vld [vmem:[#allocation2 + $0x10] sm:$0xff]
      %v4543 = vld [vmem:[#allocation2 + $0x18] sm:$0xff]
      %v4544 = vld [vmem:[#allocation2 + $0x20] sm:$0xff]
      %v4545 = vld [vmem:[#allocation2 + $0x28] sm:$0xff]
      %v4546 = vld [vmem:[#allocation2 + $0x30] sm:$0xff]
      %v4547 = vld [vmem:[#allocation2 + $0x38] sm:$0xff]
      %v4548 = vld [vmem:[#allocation2 + $0x40] sm:$0xff]
      %v4549 = vld [vmem:[#allocation2 + $0x48] sm:$0xff]
      %v4550 = vld [vmem:[#allocation2 + $0x50] sm:$0xff]
      %v4551 = vld [vmem:[#allocation2 + $0x58] sm:$0xff]
      %v4552 = vld [vmem:[#allocation2 + $0x60] sm:$0xff]
      %v4553 = vld [vmem:[#allocation2 + $0x68] sm:$0xff]
      %v4554 = vld [vmem:[#allocation2 + $0x70] sm:$0xff]
      %v4555 = vld [vmem:[#allocation2 + $0x78] sm:$0xff]
      %v4556 = vld [vmem:[#allocation2 + $0x80] sm:$0xff]
      %v4557 = vld [vmem:[#allocation2 + $0x88] sm:$0xff]
      %v4558 = vld [vmem:[#allocation2 + $0x90] sm:$0xff]
      %v4559 = vld [vmem:[#allocation2 + $0x98] sm:$0xff]
      %v4560 = vld [vmem:[#allocation2 + $0xa0] sm:$0xff]
      %v4561 = vld [vmem:[#allocation2 + $0xa8] sm:$0xff]
      %v4562 = vld [vmem:[#allocation2 + $0xb0] sm:$0xff]
      %v4563 = vld [vmem:[#allocation2 + $0xb8] sm:$0xff]
      %v4564 = vld [vmem:[#allocation2 + $0xc0] sm:$0xff]
      %v4565 = vld [vmem:[#allocation2 + $0xc8] sm:$0xff]
      %v4566 = vld [vmem:[#allocation2 + $0xd0] sm:$0xff]
      %v4567 = vld [vmem:[#allocation2 + $0xd8] sm:$0xff]
      %v4568 = vld [vmem:[#allocation2 + $0xe0] sm:$0xff]
      %v4569 = vld [vmem:[#allocation2 + $0xe8] sm:$0xff]
      %v4570 = vld [vmem:[#allocation2 + $0xf0] sm:$0xff]
      %v4571 = vld [vmem:[#allocation2 + $0xf8] sm:$0xff]
      %v4572 = vadd.f32 %v4540, %v4414
      %v4573 = vadd.f32 %v4541, %v4417
      %v4574 = vadd.f32 %v4542, %v4422
      %v4575 = vadd.f32 %v4543, %v4425
      %v4576 = vadd.f32 %v4544, %v4430
      %v4577 = vadd.f32 %v4545, %v4433
      %v4578 = vadd.f32 %v4546, %v4438
      %v4579 = vadd.f32 %v4547, %v4441
      %v4580 = vadd.f32 %v4548, %v4446
      %v4581 = vadd.f32 %v4549, %v4449
      %v4582 = vadd.f32 %v4550, %v4454
      %v4583 = vadd.f32 %v4551, %v4457
      %v4584 = vadd.f32 %v4552, %v4462
      %v4585 = vadd.f32 %v4553, %v4465
      %v4586 = vadd.f32 %v4554, %v4470
      %v4587 = vadd.f32 %v4555, %v4473
      %v4588 = vadd.f32 %v4556, %v4478
      %v4589 = vadd.f32 %v4557, %v4481
      %v4590 = vadd.f32 %v4558, %v4486
      %v4591 = vadd.f32 %v4559, %v4489
      %v4592 = vadd.f32 %v4560, %v4494
      %v4593 = vadd.f32 %v4561, %v4497
      %v4594 = vadd.f32 %v4562, %v4502
      %v4595 = vadd.f32 %v4563, %v4505
      %v4596 = vadd.f32 %v4564, %v4510
      %v4597 = vadd.f32 %v4565, %v4513
      %v4598 = vadd.f32 %v4566, %v4518
      %v4599 = vadd.f32 %v4567, %v4521
      %v4600 = vadd.f32 %v4568, %v4526
      %v4601 = vadd.f32 %v4569, %v4529
      %v4602 = vadd.f32 %v4570, %v4534
      %v4603 = vadd.f32 %v4571, %v4537
      %4604 = vst [vmem:[#allocation2] sm:$0xff] %v4572
      %4605 = vst [vmem:[#allocation2 + $0x8] sm:$0xff] %v4573
      %4606 = vst [vmem:[#allocation2 + $0x10] sm:$0xff] %v4574
      %4607 = vst [vmem:[#allocation2 + $0x18] sm:$0xff] %v4575
      %4608 = vst [vmem:[#allocation2 + $0x20] sm:$0xff] %v4576
      %4609 = vst [vmem:[#allocation2 + $0x28] sm:$0xff] %v4577
      %4610 = vst [vmem:[#allocation2 + $0x30] sm:$0xff] %v4578
      %4611 = vst [vmem:[#allocation2 + $0x38] sm:$0xff] %v4579
      %4612 = vst [vmem:[#allocation2 + $0x40] sm:$0xff] %v4580
      %4613 = vst [vmem:[#allocation2 + $0x48] sm:$0xff] %v4581
      %4614 = vst [vmem:[#allocation2 + $0x50] sm:$0xff] %v4582
      %4615 = vst [vmem:[#allocation2 + $0x58] sm:$0xff] %v4583
      %4616 = vst [vmem:[#allocation2 + $0x60] sm:$0xff] %v4584
      %4617 = vst [vmem:[#allocation2 + $0x68] sm:$0xff] %v4585
      %4618 = vst [vmem:[#allocation2 + $0x70] sm:$0xff] %v4586
      %4619 = vst [vmem:[#allocation2 + $0x78] sm:$0xff] %v4587
      %4620 = vst [vmem:[#allocation2 + $0x80] sm:$0xff] %v4588
      %4621 = vst [vmem:[#allocation2 + $0x88] sm:$0xff] %v4589
      %4622 = vst [vmem:[#allocation2 + $0x90] sm:$0xff] %v4590
      %4623 = vst [vmem:[#allocation2 + $0x98] sm:$0xff] %v4591
      %4624 = vst [vmem:[#allocation2 + $0xa0] sm:$0xff] %v4592
      %4625 = vst [vmem:[#allocation2 + $0xa8] sm:$0xff] %v4593
      %4626 = vst [vmem:[#allocation2 + $0xb0] sm:$0xff] %v4594
      %4627 = vst [vmem:[#allocation2 + $0xb8] sm:$0xff] %v4595
      %4628 = vst [vmem:[#allocation2 + $0xc0] sm:$0xff] %v4596
      %4629 = vst [vmem:[#allocation2 + $0xc8] sm:$0xff] %v4597
      %4630 = vst [vmem:[#allocation2 + $0xd0] sm:$0xff] %v4598
      %4631 = vst [vmem:[#allocation2 + $0xd8] sm:$0xff] %v4599
      %4632 = vst [vmem:[#allocation2 + $0xe0] sm:$0xff] %v4600
      %4633 = vst [vmem:[#allocation2 + $0xe8] sm:$0xff] %v4601
      %4634 = vst [vmem:[#allocation2 + $0xf0] sm:$0xff] %v4602
      %4635 = vst [vmem:[#allocation2 + $0xf8] sm:$0xff] %v4603
      %s4636 = sadd.s32 %s195, 2
      %s4637 = smul.u32 %s4636, 6
      %s4638 = smul.addr %s4637, 4
      %s4639 = scalar_lea.vmem %s183, %s4638
      %v4640 = vld [vmem:[%s4639] sm:$0xff]
      %v4641 = vld [vmem:[%s4639 + $0x8] sm:$0xff]
      %v4642 = vld [vmem:[%s4639 + $0x18] sm:$0xff]
      %v4643 = vld [vmem:[%s4639 + $0x20] sm:$0xff]
      %v4644 = vld [vmem:[%s4639 + $0x30] sm:$0xff]
      %v4645 = vld [vmem:[%s4639 + $0x38] sm:$0xff]
      %v4646 = vld [vmem:[%s4639 + $0x48] sm:$0xff]
      %v4647 = vld [vmem:[%s4639 + $0x50] sm:$0xff]
      %v4648 = vld [vmem:[%s4639 + $0x60] sm:$0xff]
      %v4649 = vld [vmem:[%s4639 + $0x68] sm:$0xff]
      %v4650 = vld [vmem:[%s4639 + $0x78] sm:$0xff]
      %v4651 = vld [vmem:[%s4639 + $0x80] sm:$0xff]
      %v4652 = vld [vmem:[%s4639 + $0x90] sm:$0xff]
      %v4653 = vld [vmem:[%s4639 + $0x98] sm:$0xff]
      %v4654 = vld [vmem:[%s4639 + $0xa8] sm:$0xff]
      %v4655 = vld [vmem:[%s4639 + $0xb0] sm:$0xff]
      %v4656 = vld [vmem:[%s4639 + $0xc0] sm:$0xff]
      %v4657 = vld [vmem:[%s4639 + $0xc8] sm:$0xff]
      %v4658 = vld [vmem:[%s4639 + $0xd8] sm:$0xff]
      %v4659 = vld [vmem:[%s4639 + $0xe0] sm:$0xff]
      %v4660 = vld [vmem:[%s4639 + $0xf0] sm:$0xff]
      %v4661 = vld [vmem:[%s4639 + $0xf8] sm:$0xff]
      %v4662 = vld [vmem:[%s4639 + $0x108] sm:$0xff]
      %v4663 = vld [vmem:[%s4639 + $0x110] sm:$0xff]
      %v4664 = vld [vmem:[%s4639 + $0x120] sm:$0xff]
      %v4665 = vld [vmem:[%s4639 + $0x128] sm:$0xff]
      %v4666 = vld [vmem:[%s4639 + $0x138] sm:$0xff]
      %v4667 = vld [vmem:[%s4639 + $0x140] sm:$0xff]
      %v4668 = vld [vmem:[%s4639 + $0x150] sm:$0xff]
      %v4669 = vld [vmem:[%s4639 + $0x158] sm:$0xff]
      %v4670 = vld [vmem:[%s4639 + $0x168] sm:$0xff]
      %v4671 = vld [vmem:[%s4639 + $0x170] sm:$0xff]
      %s4672 = scalar_lea.vmem %s1, 768
      %v4673 = vld [vmem:[%s4672] sm:$0xf]
      %v4674 = vld [vmem:[%s4672 + $0x4] sm:$0xf]
      %v4675 = vld [vmem:[%s4672 + $0x8] sm:$0xf]
      %v4676 = vld [vmem:[%s4672 + $0xc] sm:$0xf]
      %v4677 = vld [vmem:[%s4672 + $0x10] sm:$0xf]
      %v4678 = vld [vmem:[%s4672 + $0x14] sm:$0xf]
      %v4679 = vld [vmem:[%s4672 + $0x18] sm:$0xf]
      %v4680 = vld [vmem:[%s4672 + $0x1c] sm:$0xf]
      %v4681 = vld [vmem:[%s4672 + $0x20] sm:$0xf]
      %v4682 = vld [vmem:[%s4672 + $0x24] sm:$0xf]
      %v4683 = vld [vmem:[%s4672 + $0x28] sm:$0xf]
      %v4684 = vld [vmem:[%s4672 + $0x2c] sm:$0xf]
      %v4685 = vld [vmem:[%s4672 + $0x30] sm:$0xf]
      %v4686 = vld [vmem:[%s4672 + $0x34] sm:$0xf]
      %v4687 = vld [vmem:[%s4672 + $0x38] sm:$0xf]
      %v4688 = vld [vmem:[%s4672 + $0x3c] sm:$0xf]
      %v4689 = vld [vmem:[%s4672 + $0x40] sm:$0xf]
      %v4690 = vld [vmem:[%s4672 + $0x44] sm:$0xf]
      %v4691 = vld [vmem:[%s4672 + $0x48] sm:$0xf]
      %v4692 = vld [vmem:[%s4672 + $0x4c] sm:$0xf]
      %v4693 = vld [vmem:[%s4672 + $0x50] sm:$0xf]
      %v4694 = vld [vmem:[%s4672 + $0x54] sm:$0xf]
      %v4695 = vld [vmem:[%s4672 + $0x58] sm:$0xf]
      %v4696 = vld [vmem:[%s4672 + $0x5c] sm:$0xf]
      %v4697 = vld [vmem:[%s4672 + $0x60] sm:$0xf]
      %v4698 = vld [vmem:[%s4672 + $0x64] sm:$0xf]
      %v4699 = vld [vmem:[%s4672 + $0x68] sm:$0xf]
      %v4700 = vld [vmem:[%s4672 + $0x6c] sm:$0xf]
      %v4701 = vld [vmem:[%s4672 + $0x70] sm:$0xf]
      %v4702 = vld [vmem:[%s4672 + $0x74] sm:$0xf]
      %v4703 = vld [vmem:[%s4672 + $0x78] sm:$0xf]
      %v4704 = vld [vmem:[%s4672 + $0x7c] sm:$0xf]
      %v4737 = vunpack.c.l.b16 %v4640
      %v4738 = vunpack.c.h.b16 %v4640
      %v4739 = vunpack.c.l.b16 %v4641
      %v4740 = vunpack.c.h.b16 %v4641
      %v4741 = vunpack.c.l.b16 %v4642
      %v4742 = vunpack.c.h.b16 %v4642
      %v4743 = vunpack.c.l.b16 %v4643
      %v4744 = vunpack.c.h.b16 %v4643
      %v4745 = vunpack.c.l.b16 %v4644
      %v4746 = vunpack.c.h.b16 %v4644
      %v4747 = vunpack.c.l.b16 %v4645
      %v4748 = vunpack.c.h.b16 %v4645
      %v4749 = vunpack.c.l.b16 %v4646
      %v4750 = vunpack.c.h.b16 %v4646
      %v4751 = vunpack.c.l.b16 %v4647
      %v4752 = vunpack.c.h.b16 %v4647
      %v4753 = vunpack.c.l.b16 %v4648
      %v4754 = vunpack.c.h.b16 %v4648
      %v4755 = vunpack.c.l.b16 %v4649
      %v4756 = vunpack.c.h.b16 %v4649
      %v4757 = vunpack.c.l.b16 %v4650
      %v4758 = vunpack.c.h.b16 %v4650
      %v4759 = vunpack.c.l.b16 %v4651
      %v4760 = vunpack.c.h.b16 %v4651
      %v4761 = vunpack.c.l.b16 %v4652
      %v4762 = vunpack.c.h.b16 %v4652
      %v4763 = vunpack.c.l.b16 %v4653
      %v4764 = vunpack.c.h.b16 %v4653
      %v4765 = vunpack.c.l.b16 %v4654
      %v4766 = vunpack.c.h.b16 %v4654
      %v4767 = vunpack.c.l.b16 %v4655
      %v4768 = vunpack.c.h.b16 %v4655
      %v4769 = vunpack.c.l.b16 %v4656
      %v4770 = vunpack.c.h.b16 %v4656
      %v4771 = vunpack.c.l.b16 %v4657
      %v4772 = vunpack.c.h.b16 %v4657
      %v4773 = vunpack.c.l.b16 %v4658
      %v4774 = vunpack.c.h.b16 %v4658
      %v4775 = vunpack.c.l.b16 %v4659
      %v4776 = vunpack.c.h.b16 %v4659
      %v4777 = vunpack.c.l.b16 %v4660
      %v4778 = vunpack.c.h.b16 %v4660
      %v4779 = vunpack.c.l.b16 %v4661
      %v4780 = vunpack.c.h.b16 %v4661
      %v4781 = vunpack.c.l.b16 %v4662
      %v4782 = vunpack.c.h.b16 %v4662
      %v4783 = vunpack.c.l.b16 %v4663
      %v4784 = vunpack.c.h.b16 %v4663
      %v4785 = vunpack.c.l.b16 %v4664
      %v4786 = vunpack.c.h.b16 %v4664
      %v4787 = vunpack.c.l.b16 %v4665
      %v4788 = vunpack.c.h.b16 %v4665
      %v4789 = vunpack.c.l.b16 %v4666
      %v4790 = vunpack.c.h.b16 %v4666
      %v4791 = vunpack.c.l.b16 %v4667
      %v4792 = vunpack.c.h.b16 %v4667
      %v4793 = vunpack.c.l.b16 %v4668
      %v4794 = vunpack.c.h.b16 %v4668
      %v4795 = vunpack.c.l.b16 %v4669
      %v4796 = vunpack.c.h.b16 %v4669
      %v4797 = vunpack.c.l.b16 %v4670
      %v4798 = vunpack.c.h.b16 %v4670
      %v4799 = vunpack.c.l.b16 %v4671
      %v4800 = vunpack.c.h.b16 %v4671
      %v4801 = vpack.c.b16 %v4739, %v4737
      %v4802 = vpack.c.b16 %v4740, %v4738
      %v4803 = vpack.c.b16 %v4743, %v4741
      %v4804 = vpack.c.b16 %v4744, %v4742
      %v4805 = vpack.c.b16 %v4747, %v4745
      %v4806 = vpack.c.b16 %v4748, %v4746
      %v4807 = vpack.c.b16 %v4751, %v4749
      %v4808 = vpack.c.b16 %v4752, %v4750
      %v4809 = vpack.c.b16 %v4755, %v4753
      %v4810 = vpack.c.b16 %v4756, %v4754
      %v4811 = vpack.c.b16 %v4759, %v4757
      %v4812 = vpack.c.b16 %v4760, %v4758
      %v4813 = vpack.c.b16 %v4763, %v4761
      %v4814 = vpack.c.b16 %v4764, %v4762
      %v4815 = vpack.c.b16 %v4767, %v4765
      %v4816 = vpack.c.b16 %v4768, %v4766
      %v4817 = vpack.c.b16 %v4771, %v4769
      %v4818 = vpack.c.b16 %v4772, %v4770
      %v4819 = vpack.c.b16 %v4775, %v4773
      %v4820 = vpack.c.b16 %v4776, %v4774
      %v4821 = vpack.c.b16 %v4779, %v4777
      %v4822 = vpack.c.b16 %v4780, %v4778
      %v4823 = vpack.c.b16 %v4783, %v4781
      %v4824 = vpack.c.b16 %v4784, %v4782
      %v4825 = vpack.c.b16 %v4787, %v4785
      %v4826 = vpack.c.b16 %v4788, %v4786
      %v4827 = vpack.c.b16 %v4791, %v4789
      %v4828 = vpack.c.b16 %v4792, %v4790
      %v4829 = vpack.c.b16 %v4795, %v4793
      %v4830 = vpack.c.b16 %v4796, %v4794
      %v4831 = vpack.c.b16 %v4799, %v4797
      %v4832 = vpack.c.b16 %v4800, %v4798
      %v4897 = vunpack.c.l.b16 %v4673
      %v4898 = vunpack.c.l.b16 %v4674
      %v4899 = vunpack.c.l.b16 %v4675
      %v4900 = vunpack.c.l.b16 %v4676
      %v4901 = vunpack.c.l.b16 %v4677
      %v4902 = vunpack.c.l.b16 %v4678
      %v4903 = vunpack.c.l.b16 %v4679
      %v4904 = vunpack.c.l.b16 %v4680
      %v4905 = vunpack.c.l.b16 %v4681
      %v4906 = vunpack.c.l.b16 %v4682
      %v4907 = vunpack.c.l.b16 %v4683
      %v4908 = vunpack.c.l.b16 %v4684
      %v4909 = vunpack.c.l.b16 %v4685
      %v4910 = vunpack.c.l.b16 %v4686
      %v4911 = vunpack.c.l.b16 %v4687
      %v4912 = vunpack.c.l.b16 %v4688
      %v4913 = vunpack.c.l.b16 %v4689
      %v4914 = vunpack.c.l.b16 %v4690
      %v4915 = vunpack.c.l.b16 %v4691
      %v4916 = vunpack.c.l.b16 %v4692
      %v4917 = vunpack.c.l.b16 %v4693
      %v4918 = vunpack.c.l.b16 %v4694
      %v4919 = vunpack.c.l.b16 %v4695
      %v4920 = vunpack.c.l.b16 %v4696
      %v4921 = vunpack.c.l.b16 %v4697
      %v4922 = vunpack.c.l.b16 %v4698
      %v4923 = vunpack.c.l.b16 %v4699
      %v4924 = vunpack.c.l.b16 %v4700
      %v4925 = vunpack.c.l.b16 %v4701
      %v4926 = vunpack.c.l.b16 %v4702
      %v4927 = vunpack.c.l.b16 %v4703
      %v4928 = vunpack.c.l.b16 %v4704
      %v4929 = vpack.c.b16 %v4898, %v4897
      %v4930 = vpack.c.b16 %v4900, %v4899
      %v4931 = vpack.c.b16 %v4902, %v4901
      %v4932 = vpack.c.b16 %v4904, %v4903
      %v4933 = vpack.c.b16 %v4906, %v4905
      %v4934 = vpack.c.b16 %v4908, %v4907
      %v4935 = vpack.c.b16 %v4910, %v4909
      %v4936 = vpack.c.b16 %v4912, %v4911
      %v4937 = vpack.c.b16 %v4914, %v4913
      %v4938 = vpack.c.b16 %v4916, %v4915
      %v4939 = vpack.c.b16 %v4918, %v4917
      %v4940 = vpack.c.b16 %v4920, %v4919
      %v4941 = vpack.c.b16 %v4922, %v4921
      %v4942 = vpack.c.b16 %v4924, %v4923
      %v4943 = vpack.c.b16 %v4926, %v4925
      %v4944 = vpack.c.b16 %v4928, %v4927
      %4961 = vmatprep.subr.bf16.mxu0 0
      %4962 = vmatpush1.bf16.msra.mxu0 %v4929
      %4963 = vmatprep.subr.bf16.mxu0 0
      %4964 = vmatpush1.bf16.msra.mxu0 %v4930
      %4965 = vmatprep.subr.bf16.mxu0 0
      %4966 = vmatpush1.bf16.msra.mxu0 %v4931
      %4967 = vmatprep.subr.bf16.mxu0 0
      %4968 = vmatpush1.bf16.msra.mxu0 %v4932
      %4969 = vmatprep.subr.bf16.mxu0 0
      %4970 = vmatpush1.bf16.msra.mxu0 %v4933
      %4971 = vmatprep.subr.bf16.mxu0 0
      %4972 = vmatpush1.bf16.msra.mxu0 %v4934
      %4973 = vmatprep.subr.bf16.mxu0 0
      %4974 = vmatpush1.bf16.msra.mxu0 %v4935
      %4975 = vmatprep.subr.bf16.mxu0 0
      %4976 = vmatpush1.bf16.msra.mxu0 %v4936
      %4977 = vmatprep.subr.bf16.mxu0 0
      %4978 = vmatpush1.bf16.msra.mxu0 %v4937
      %4979 = vmatprep.subr.bf16.mxu0 0
      %4980 = vmatpush1.bf16.msra.mxu0 %v4938
      %4981 = vmatprep.subr.bf16.mxu0 0
      %4982 = vmatpush1.bf16.msra.mxu0 %v4939
      %4983 = vmatprep.subr.bf16.mxu0 0
      %4984 = vmatpush1.bf16.msra.mxu0 %v4940
      %4985 = vmatprep.subr.bf16.mxu0 0
      %4986 = vmatpush1.bf16.msra.mxu0 %v4941
      %4987 = vmatprep.subr.bf16.mxu0 0
      %4988 = vmatpush1.bf16.msra.mxu0 %v4942
      %4989 = vmatprep.subr.bf16.mxu0 0
      %4990 = vmatpush1.bf16.msra.mxu0 %v4943
      %4991 = vmatprep.subr.bf16.mxu0 0
      %4992 = vmatpush1.bf16.msra.mxu0 %v4944
      %4993 = vmatprep.mubr.bf16.mxu0 %v4802
      %4994 = vmatmul.mubr.bf16.gmra.mrb[0].mxu0 %v4801
      %v4995 = vpop.f32.mrb[0].mxu0
      %v4996 = vadd.f32 0.0, %v4995
      %v4997 = vpop.f32.mrb[0].mxu0
      %v4998 = vpop.f32.mrb[0].mxu0
      %v4999 = vadd.f32 0.0, %v4998
      %v5000 = vpop.f32.mrb[0].mxu0
      %5001 = vmatprep.mubr.bf16.mxu0 %v4804
      %5002 = vmatmul.mubr.bf16.gmra.mrb[0].mxu0 %v4803
      %v5003 = vpop.f32.mrb[0].mxu0
      %v5004 = vadd.f32 0.0, %v5003
      %v5005 = vpop.f32.mrb[0].mxu0
      %v5006 = vpop.f32.mrb[0].mxu0
      %v5007 = vadd.f32 0.0, %v5006
      %v5008 = vpop.f32.mrb[0].mxu0
      %5009 = vmatprep.mubr.bf16.mxu0 %v4806
      %5010 = vmatmul.mubr.bf16.gmra.mrb[0].mxu0 %v4805
      %v5011 = vpop.f32.mrb[0].mxu0
      %v5012 = vadd.f32 0.0, %v5011
      %v5013 = vpop.f32.mrb[0].mxu0
      %v5014 = vpop.f32.mrb[0].mxu0
      %v5015 = vadd.f32 0.0, %v5014
      %v5016 = vpop.f32.mrb[0].mxu0
      %5017 = vmatprep.mubr.bf16.mxu0 %v4808
      %5018 = vmatmul.mubr.bf16.gmra.mrb[0].mxu0 %v4807
      %v5019 = vpop.f32.mrb[0].mxu0
      %v5020 = vadd.f32 0.0, %v5019
      %v5021 = vpop.f32.mrb[0].mxu0
      %v5022 = vpop.f32.mrb[0].mxu0
      %v5023 = vadd.f32 0.0, %v5022
      %v5024 = vpop.f32.mrb[0].mxu0
      %5025 = vmatprep.mubr.bf16.mxu0 %v4810
      %5026 = vmatmul.mubr.bf16.gmra.mrb[0].mxu0 %v4809
      %v5027 = vpop.f32.mrb[0].mxu0
      %v5028 = vadd.f32 0.0, %v5027
      %v5029 = vpop.f32.mrb[0].mxu0
      %v5030 = vpop.f32.mrb[0].mxu0
      %v5031 = vadd.f32 0.0, %v5030
      %v5032 = vpop.f32.mrb[0].mxu0
      %5033 = vmatprep.mubr.bf16.mxu0 %v4812
      %5034 = vmatmul.mubr.bf16.gmra.mrb[0].mxu0 %v4811
      %v5035 = vpop.f32.mrb[0].mxu0
      %v5036 = vadd.f32 0.0, %v5035
      %v5037 = vpop.f32.mrb[0].mxu0
      %v5038 = vpop.f32.mrb[0].mxu0
      %v5039 = vadd.f32 0.0, %v5038
      %v5040 = vpop.f32.mrb[0].mxu0
      %5041 = vmatprep.mubr.bf16.mxu0 %v4814
      %5042 = vmatmul.mubr.bf16.gmra.mrb[0].mxu0 %v4813
      %v5043 = vpop.f32.mrb[0].mxu0
      %v5044 = vadd.f32 0.0, %v5043
      %v5045 = vpop.f32.mrb[0].mxu0
      %v5046 = vpop.f32.mrb[0].mxu0
      %v5047 = vadd.f32 0.0, %v5046
      %v5048 = vpop.f32.mrb[0].mxu0
      %5049 = vmatprep.mubr.bf16.mxu0 %v4816
      %5050 = vmatmul.mubr.bf16.gmra.mrb[0].mxu0 %v4815
      %v5051 = vpop.f32.mrb[0].mxu0
      %v5052 = vadd.f32 0.0, %v5051
      %v5053 = vpop.f32.mrb[0].mxu0
      %v5054 = vpop.f32.mrb[0].mxu0
      %v5055 = vadd.f32 0.0, %v5054
      %v5056 = vpop.f32.mrb[0].mxu0
      %5057 = vmatprep.mubr.bf16.mxu0 %v4818
      %5058 = vmatmul.mubr.bf16.gmra.mrb[0].mxu0 %v4817
      %v5059 = vpop.f32.mrb[0].mxu0
      %v5060 = vadd.f32 0.0, %v5059
      %v5061 = vpop.f32.mrb[0].mxu0
      %v5062 = vpop.f32.mrb[0].mxu0
      %v5063 = vadd.f32 0.0, %v5062
      %v5064 = vpop.f32.mrb[0].mxu0
      %5065 = vmatprep.mubr.bf16.mxu0 %v4820
      %5066 = vmatmul.mubr.bf16.gmra.mrb[0].mxu0 %v4819
      %v5067 = vpop.f32.mrb[0].mxu0
      %v5068 = vadd.f32 0.0, %v5067
      %v5069 = vpop.f32.mrb[0].mxu0
      %v5070 = vpop.f32.mrb[0].mxu0
      %v5071 = vadd.f32 0.0, %v5070
      %v5072 = vpop.f32.mrb[0].mxu0
      %5073 = vmatprep.mubr.bf16.mxu0 %v4822
      %5074 = vmatmul.mubr.bf16.gmra.mrb[0].mxu0 %v4821
      %v5075 = vpop.f32.mrb[0].mxu0
      %v5076 = vadd.f32 0.0, %v5075
      %v5077 = vpop.f32.mrb[0].mxu0
      %v5078 = vpop.f32.mrb[0].mxu0
      %v5079 = vadd.f32 0.0, %v5078
      %v5080 = vpop.f32.mrb[0].mxu0
      %5081 = vmatprep.mubr.bf16.mxu0 %v4824
      %5082 = vmatmul.mubr.bf16.gmra.mrb[0].mxu0 %v4823
      %v5083 = vpop.f32.mrb[0].mxu0
      %v5084 = vadd.f32 0.0, %v5083
      %v5085 = vpop.f32.mrb[0].mxu0
      %v5086 = vpop.f32.mrb[0].mxu0
      %v5087 = vadd.f32 0.0, %v5086
      %v5088 = vpop.f32.mrb[0].mxu0
      %5089 = vmatprep.mubr.bf16.mxu0 %v4826
      %5090 = vmatmul.mubr.bf16.gmra.mrb[0].mxu0 %v4825
      %v5091 = vpop.f32.mrb[0].mxu0
      %v5092 = vadd.f32 0.0, %v5091
      %v5093 = vpop.f32.mrb[0].mxu0
      %v5094 = vpop.f32.mrb[0].mxu0
      %v5095 = vadd.f32 0.0, %v5094
      %v5096 = vpop.f32.mrb[0].mxu0
      %5097 = vmatprep.mubr.bf16.mxu0 %v4828
      %5098 = vmatmul.mubr.bf16.gmra.mrb[0].mxu0 %v4827
      %v5099 = vpop.f32.mrb[0].mxu0
      %v5100 = vadd.f32 0.0, %v5099
      %v5101 = vpop.f32.mrb[0].mxu0
      %v5102 = vpop.f32.mrb[0].mxu0
      %v5103 = vadd.f32 0.0, %v5102
      %v5104 = vpop.f32.mrb[0].mxu0
      %5105 = vmatprep.mubr.bf16.mxu0 %v4830
      %5106 = vmatmul.mubr.bf16.gmra.mrb[0].mxu0 %v4829
      %v5107 = vpop.f32.mrb[0].mxu0
      %v5108 = vadd.f32 0.0, %v5107
      %v5109 = vpop.f32.mrb[0].mxu0
      %v5110 = vpop.f32.mrb[0].mxu0
      %v5111 = vadd.f32 0.0, %v5110
      %v5112 = vpop.f32.mrb[0].mxu0
      %5113 = vmatprep.mubr.bf16.mxu0 %v4832
      %5114 = vmatmul.mubr.bf16.gmra.mrb[0].mxu0 %v4831
      %v5115 = vpop.f32.mrb[0].mxu0
      %v5116 = vadd.f32 0.0, %v5115
      %v5117 = vpop.f32.mrb[0].mxu0
      %v5118 = vpop.f32.mrb[0].mxu0
      %v5119 = vadd.f32 0.0, %v5118
      %v5120 = vpop.f32.mrb[0].mxu0
      %5121 = vdwg.mxu0
      %v5122 = vld [vmem:[#allocation2] sm:$0xff]
      %v5123 = vld [vmem:[#allocation2 + $0x8] sm:$0xff]
      %v5124 = vld [vmem:[#allocation2 + $0x10] sm:$0xff]
      %v5125 = vld [vmem:[#allocation2 + $0x18] sm:$0xff]
      %v5126 = vld [vmem:[#allocation2 + $0x20] sm:$0xff]
      %v5127 = vld [vmem:[#allocation2 + $0x28] sm:$0xff]
      %v5128 = vld [vmem:[#allocation2 + $0x30] sm:$0xff]
      %v5129 = vld [vmem:[#allocation2 + $0x38] sm:$0xff]
      %v5130 = vld [vmem:[#allocation2 + $0x40] sm:$0xff]
      %v5131 = vld [vmem:[#allocation2 + $0x48] sm:$0xff]
      %v5132 = vld [vmem:[#allocation2 + $0x50] sm:$0xff]
      %v5133 = vld [vmem:[#allocation2 + $0x58] sm:$0xff]
      %v5134 = vld [vmem:[#allocation2 + $0x60] sm:$0xff]
      %v5135 = vld [vmem:[#allocation2 + $0x68] sm:$0xff]
      %v5136 = vld [vmem:[#allocation2 + $0x70] sm:$0xff]
      %v5137 = vld [vmem:[#allocation2 + $0x78] sm:$0xff]
      %v5138 = vld [vmem:[#allocation2 + $0x80] sm:$0xff]
      %v5139 = vld [vmem:[#allocation2 + $0x88] sm:$0xff]
      %v5140 = vld [vmem:[#allocation2 + $0x90] sm:$0xff]
      %v5141 = vld [vmem:[#allocation2 + $0x98] sm:$0xff]
      %v5142 = vld [vmem:[#allocation2 + $0xa0] sm:$0xff]
      %v5143 = vld [vmem:[#allocation2 + $0xa8] sm:$0xff]
      %v5144 = vld [vmem:[#allocation2 + $0xb0] sm:$0xff]
      %v5145 = vld [vmem:[#allocation2 + $0xb8] sm:$0xff]
      %v5146 = vld [vmem:[#allocation2 + $0xc0] sm:$0xff]
      %v5147 = vld [vmem:[#allocation2 + $0xc8] sm:$0xff]
      %v5148 = vld [vmem:[#allocation2 + $0xd0] sm:$0xff]
      %v5149 = vld [vmem:[#allocation2 + $0xd8] sm:$0xff]
      %v5150 = vld [vmem:[#allocation2 + $0xe0] sm:$0xff]
      %v5151 = vld [vmem:[#allocation2 + $0xe8] sm:$0xff]
      %v5152 = vld [vmem:[#allocation2 + $0xf0] sm:$0xff]
      %v5153 = vld [vmem:[#allocation2 + $0xf8] sm:$0xff]
      %v5154 = vadd.f32 %v5122, %v4996
      %v5155 = vadd.f32 %v5123, %v4999
      %v5156 = vadd.f32 %v5124, %v5004
      %v5157 = vadd.f32 %v5125, %v5007
      %v5158 = vadd.f32 %v5126, %v5012
      %v5159 = vadd.f32 %v5127, %v5015
      %v5160 = vadd.f32 %v5128, %v5020
      %v5161 = vadd.f32 %v5129, %v5023
      %v5162 = vadd.f32 %v5130, %v5028
      %v5163 = vadd.f32 %v5131, %v5031
      %v5164 = vadd.f32 %v5132, %v5036
      %v5165 = vadd.f32 %v5133, %v5039
      %v5166 = vadd.f32 %v5134, %v5044
      %v5167 = vadd.f32 %v5135, %v5047
      %v5168 = vadd.f32 %v5136, %v5052
      %v5169 = vadd.f32 %v5137, %v5055
      %v5170 = vadd.f32 %v5138, %v5060
      %v5171 = vadd.f32 %v5139, %v5063
      %v5172 = vadd.f32 %v5140, %v5068
      %v5173 = vadd.f32 %v5141, %v5071
      %v5174 = vadd.f32 %v5142, %v5076
      %v5175 = vadd.f32 %v5143, %v5079
      %v5176 = vadd.f32 %v5144, %v5084
      %v5177 = vadd.f32 %v5145, %v5087
      %v5178 = vadd.f32 %v5146, %v5092
      %v5179 = vadd.f32 %v5147, %v5095
      %v5180 = vadd.f32 %v5148, %v5100
      %v5181 = vadd.f32 %v5149, %v5103
      %v5182 = vadd.f32 %v5150, %v5108
      %v5183 = vadd.f32 %v5151, %v5111
      %v5184 = vadd.f32 %v5152, %v5116
      %v5185 = vadd.f32 %v5153, %v5119
      %5186 = vst [vmem:[#allocation2] sm:$0xff] %v5154
      %5187 = vst [vmem:[#allocation2 + $0x8] sm:$0xff] %v5155
      %5188 = vst [vmem:[#allocation2 + $0x10] sm:$0xff] %v5156
      %5189 = vst [vmem:[#allocation2 + $0x18] sm:$0xff] %v5157
      %5190 = vst [vmem:[#allocation2 + $0x20] sm:$0xff] %v5158
      %5191 = vst [vmem:[#allocation2 + $0x28] sm:$0xff] %v5159
      %5192 = vst [vmem:[#allocation2 + $0x30] sm:$0xff] %v5160
      %5193 = vst [vmem:[#allocation2 + $0x38] sm:$0xff] %v5161
      %5194 = vst [vmem:[#allocation2 + $0x40] sm:$0xff] %v5162
      %5195 = vst [vmem:[#allocation2 + $0x48] sm:$0xff] %v5163
      %5196 = vst [vmem:[#allocation2 + $0x50] sm:$0xff] %v5164
      %5197 = vst [vmem:[#allocation2 + $0x58] sm:$0xff] %v5165
      %5198 = vst [vmem:[#allocation2 + $0x60] sm:$0xff] %v5166
      %5199 = vst [vmem:[#allocation2 + $0x68] sm:$0xff] %v5167
      %5200 = vst [vmem:[#allocation2 + $0x70] sm:$0xff] %v5168
      %5201 = vst [vmem:[#allocation2 + $0x78] sm:$0xff] %v5169
      %5202 = vst [vmem:[#allocation2 + $0x80] sm:$0xff] %v5170
      %5203 = vst [vmem:[#allocation2 + $0x88] sm:$0xff] %v5171
      %5204 = vst [vmem:[#allocation2 + $0x90] sm:$0xff] %v5172
      %5205 = vst [vmem:[#allocation2 + $0x98] sm:$0xff] %v5173
      %5206 = vst [vmem:[#allocation2 + $0xa0] sm:$0xff] %v5174
      %5207 = vst [vmem:[#allocation2 + $0xa8] sm:$0xff] %v5175
      %5208 = vst [vmem:[#allocation2 + $0xb0] sm:$0xff] %v5176
      %5209 = vst [vmem:[#allocation2 + $0xb8] sm:$0xff] %v5177
      %5210 = vst [vmem:[#allocation2 + $0xc0] sm:$0xff] %v5178
      %5211 = vst [vmem:[#allocation2 + $0xc8] sm:$0xff] %v5179
      %5212 = vst [vmem:[#allocation2 + $0xd0] sm:$0xff] %v5180
      %5213 = vst [vmem:[#allocation2 + $0xd8] sm:$0xff] %v5181
      %5214 = vst [vmem:[#allocation2 + $0xe0] sm:$0xff] %v5182
      %5215 = vst [vmem:[#allocation2 + $0xe8] sm:$0xff] %v5183
      %5216 = vst [vmem:[#allocation2 + $0xf0] sm:$0xff] %v5184
      %5217 = vst [vmem:[#allocation2 + $0xf8] sm:$0xff] %v5185
      %v5218 = vld [vmem:[%s4639] sm:$0xff]
      %v5219 = vld [vmem:[%s4639 + $0x8] sm:$0xff]
      %v5220 = vld [vmem:[%s4639 + $0x10] sm:$0x11]
      %v5221 = vld [vmem:[%s4639 + $0x18] sm:$0xff]
      %v5222 = vld [vmem:[%s4639 + $0x20] sm:$0xff]
      %v5223 = vld [vmem:[%s4639 + $0x28] sm:$0x11]
      %v5224 = vld [vmem:[%s4639 + $0x30] sm:$0xff]
      %v5225 = vld [vmem:[%s4639 + $0x38] sm:$0xff]
      %v5226 = vld [vmem:[%s4639 + $0x40] sm:$0x11]
      %v5227 = vld [vmem:[%s4639 + $0x48] sm:$0xff]
      %v5228 = vld [vmem:[%s4639 + $0x50] sm:$0xff]
      %v5229 = vld [vmem:[%s4639 + $0x58] sm:$0x11]
      %v5230 = vld [vmem:[%s4639 + $0x60] sm:$0xff]
      %v5231 = vld [vmem:[%s4639 + $0x68] sm:$0xff]
      %v5232 = vld [vmem:[%s4639 + $0x70] sm:$0x11]
      %v5233 = vld [vmem:[%s4639 + $0x78] sm:$0xff]
      %v5234 = vld [vmem:[%s4639 + $0x80] sm:$0xff]
      %v5235 = vld [vmem:[%s4639 + $0x88] sm:$0x11]
      %v5236 = vld [vmem:[%s4639 + $0x90] sm:$0xff]
      %v5237 = vld [vmem:[%s4639 + $0x98] sm:$0xff]
      %v5238 = vld [vmem:[%s4639 + $0xa0] sm:$0x11]
      %v5239 = vld [vmem:[%s4639 + $0xa8] sm:$0xff]
      %v5240 = vld [vmem:[%s4639 + $0xb0] sm:$0xff]
      %v5241 = vld [vmem:[%s4639 + $0xb8] sm:$0x11]
      %v5242 = vld [vmem:[%s4639 + $0xc0] sm:$0xff]
      %v5243 = vld [vmem:[%s4639 + $0xc8] sm:$0xff]
      %v5244 = vld [vmem:[%s4639 + $0xd0] sm:$0x11]
      %v5245 = vld [vmem:[%s4639 + $0xd8] sm:$0xff]
      %v5246 = vld [vmem:[%s4639 + $0xe0] sm:$0xff]
      %v5247 = vld [vmem:[%s4639 + $0xe8] sm:$0x11]
      %v5248 = vld [vmem:[%s4639 + $0xf0] sm:$0xff]
      %v5249 = vld [vmem:[%s4639 + $0xf8] sm:$0xff]
      %v5250 = vld [vmem:[%s4639 + $0x100] sm:$0x11]
      %v5251 = vld [vmem:[%s4639 + $0x108] sm:$0xff]
      %v5252 = vld [vmem:[%s4639 + $0x110] sm:$0xff]
      %v5253 = vld [vmem:[%s4639 + $0x118] sm:$0x11]
      %v5254 = vld [vmem:[%s4639 + $0x120] sm:$0xff]
      %v5255 = vld [vmem:[%s4639 + $0x128] sm:$0xff]
      %v5256 = vld [vmem:[%s4639 + $0x130] sm:$0x11]
      %v5257 = vld [vmem:[%s4639 + $0x138] sm:$0xff]
      %v5258 = vld [vmem:[%s4639 + $0x140] sm:$0xff]
      %v5259 = vld [vmem:[%s4639 + $0x148] sm:$0x11]
      %v5260 = vld [vmem:[%s4639 + $0x150] sm:$0xff]
      %v5261 = vld [vmem:[%s4639 + $0x158] sm:$0xff]
      %v5262 = vld [vmem:[%s4639 + $0x160] sm:$0x11]
      %v5263 = vld [vmem:[%s4639 + $0x168] sm:$0xff]
      %v5264 = vld [vmem:[%s4639 + $0x170] sm:$0xff]
      %v5265 = vld [vmem:[%s4639 + $0x178] sm:$0x11]
      %v5267 = vshrl.u32 %v5218, 16
      %v5269 = vrot.slane %v5267, 4
      %v5270 = vshll.u32 %v5218, 16
      %v5272 = vrot.slane %v5270, 5
      %v5273 = vor.u32 %v5269, %v5272
      %v5274 = vrot.slane %v5273, 4
      %v5276 = vshll.u32 %v5219, 16
      %v5278 = vrot.slane %v5276, 5
      %v5279 = vsel %vm762, %v5274, %v5278
      %v5280 = vshrl.u32 %v5219, 16
      %v5282 = vrot.slane %v5280, 4
      %v5283 = vor.u32 %v5282, %v5278
      %v5284 = vrot.slane %v5283, 4
      %v5286 = vshll.u32 %v5220, 16
      %v5288 = vrot.slane %v5286, 5
      %v5289 = vsel %vm762, %v5284, %v5288
      %v5291 = vshrl.u32 %v5221, 16
      %v5293 = vrot.slane %v5291, 4
      %v5294 = vshll.u32 %v5221, 16
      %v5296 = vrot.slane %v5294, 5
      %v5297 = vor.u32 %v5293, %v5296
      %v5298 = vrot.slane %v5297, 4
      %v5300 = vshll.u32 %v5222, 16
      %v5302 = vrot.slane %v5300, 5
      %v5303 = vsel %vm762, %v5298, %v5302
      %v5304 = vshrl.u32 %v5222, 16
      %v5306 = vrot.slane %v5304, 4
      %v5307 = vor.u32 %v5306, %v5302
      %v5308 = vrot.slane %v5307, 4
      %v5310 = vshll.u32 %v5223, 16
      %v5312 = vrot.slane %v5310, 5
      %v5313 = vsel %vm762, %v5308, %v5312
      %v5315 = vshrl.u32 %v5224, 16
      %v5317 = vrot.slane %v5315, 4
      %v5318 = vshll.u32 %v5224, 16
      %v5320 = vrot.slane %v5318, 5
      %v5321 = vor.u32 %v5317, %v5320
      %v5322 = vrot.slane %v5321, 4
      %v5324 = vshll.u32 %v5225, 16
      %v5326 = vrot.slane %v5324, 5
      %v5327 = vsel %vm762, %v5322, %v5326
      %v5328 = vshrl.u32 %v5225, 16
      %v5330 = vrot.slane %v5328, 4
      %v5331 = vor.u32 %v5330, %v5326
      %v5332 = vrot.slane %v5331, 4
      %v5334 = vshll.u32 %v5226, 16
      %v5336 = vrot.slane %v5334, 5
      %v5337 = vsel %vm762, %v5332, %v5336
      %v5339 = vshrl.u32 %v5227, 16
      %v5341 = vrot.slane %v5339, 4
      %v5342 = vshll.u32 %v5227, 16
      %v5344 = vrot.slane %v5342, 5
      %v5345 = vor.u32 %v5341, %v5344
      %v5346 = vrot.slane %v5345, 4
      %v5348 = vshll.u32 %v5228, 16
      %v5350 = vrot.slane %v5348, 5
      %v5351 = vsel %vm762, %v5346, %v5350
      %v5352 = vshrl.u32 %v5228, 16
      %v5354 = vrot.slane %v5352, 4
      %v5355 = vor.u32 %v5354, %v5350
      %v5356 = vrot.slane %v5355, 4
      %v5358 = vshll.u32 %v5229, 16
      %v5360 = vrot.slane %v5358, 5
      %v5361 = vsel %vm762, %v5356, %v5360
      %v5363 = vshrl.u32 %v5230, 16
      %v5365 = vrot.slane %v5363, 4
      %v5366 = vshll.u32 %v5230, 16
      %v5368 = vrot.slane %v5366, 5
      %v5369 = vor.u32 %v5365, %v5368
      %v5370 = vrot.slane %v5369, 4
      %v5372 = vshll.u32 %v5231, 16
      %v5374 = vrot.slane %v5372, 5
      %v5375 = vsel %vm762, %v5370, %v5374
      %v5376 = vshrl.u32 %v5231, 16
      %v5378 = vrot.slane %v5376, 4
      %v5379 = vor.u32 %v5378, %v5374
      %v5380 = vrot.slane %v5379, 4
      %v5382 = vshll.u32 %v5232, 16
      %v5384 = vrot.slane %v5382, 5
      %v5385 = vsel %vm762, %v5380, %v5384
      %v5387 = vshrl.u32 %v5233, 16
      %v5389 = vrot.slane %v5387, 4
      %v5390 = vshll.u32 %v5233, 16
      %v5392 = vrot.slane %v5390, 5
      %v5393 = vor.u32 %v5389, %v5392
      %v5394 = vrot.slane %v5393, 4
      %v5396 = vshll.u32 %v5234, 16
      %v5398 = vrot.slane %v5396, 5
      %v5399 = vsel %vm762, %v5394, %v5398
      %v5400 = vshrl.u32 %v5234, 16
      %v5402 = vrot.slane %v5400, 4
      %v5403 = vor.u32 %v5402, %v5398
      %v5404 = vrot.slane %v5403, 4
      %v5406 = vshll.u32 %v5235, 16
      %v5408 = vrot.slane %v5406, 5
      %v5409 = vsel %vm762, %v5404, %v5408
      %v5411 = vshrl.u32 %v5236, 16
      %v5413 = vrot.slane %v5411, 4
      %v5414 = vshll.u32 %v5236, 16
      %v5416 = vrot.slane %v5414, 5
      %v5417 = vor.u32 %v5413, %v5416
      %v5418 = vrot.slane %v5417, 4
      %v5420 = vshll.u32 %v5237, 16
      %v5422 = vrot.slane %v5420, 5
      %v5423 = vsel %vm762, %v5418, %v5422
      %v5424 = vshrl.u32 %v5237, 16
      %v5426 = vrot.slane %v5424, 4
      %v5427 = vor.u32 %v5426, %v5422
      %v5428 = vrot.slane %v5427, 4
      %v5430 = vshll.u32 %v5238, 16
      %v5432 = vrot.slane %v5430, 5
      %v5433 = vsel %vm762, %v5428, %v5432
      %v5435 = vshrl.u32 %v5239, 16
      %v5437 = vrot.slane %v5435, 4
      %v5438 = vshll.u32 %v5239, 16
      %v5440 = vrot.slane %v5438, 5
      %v5441 = vor.u32 %v5437, %v5440
      %v5442 = vrot.slane %v5441, 4
      %v5444 = vshll.u32 %v5240, 16
      %v5446 = vrot.slane %v5444, 5
      %v5447 = vsel %vm762, %v5442, %v5446
      %v5448 = vshrl.u32 %v5240, 16
      %v5450 = vrot.slane %v5448, 4
      %v5451 = vor.u32 %v5450, %v5446
      %v5452 = vrot.slane %v5451, 4
      %v5454 = vshll.u32 %v5241, 16
      %v5456 = vrot.slane %v5454, 5
      %v5457 = vsel %vm762, %v5452, %v5456
      %v5459 = vshrl.u32 %v5242, 16
      %v5461 = vrot.slane %v5459, 4
      %v5462 = vshll.u32 %v5242, 16
      %v5464 = vrot.slane %v5462, 5
      %v5465 = vor.u32 %v5461, %v5464
      %v5466 = vrot.slane %v5465, 4
      %v5468 = vshll.u32 %v5243, 16
      %v5470 = vrot.slane %v5468, 5
      %v5471 = vsel %vm762, %v5466, %v5470
      %v5472 = vshrl.u32 %v5243, 16
      %v5474 = vrot.slane %v5472, 4
      %v5475 = vor.u32 %v5474, %v5470
      %v5476 = vrot.slane %v5475, 4
      %v5478 = vshll.u32 %v5244, 16
      %v5480 = vrot.slane %v5478, 5
      %v5481 = vsel %vm762, %v5476, %v5480
      %v5483 = vshrl.u32 %v5245, 16
      %v5485 = vrot.slane %v5483, 4
      %v5486 = vshll.u32 %v5245, 16
      %v5488 = vrot.slane %v5486, 5
      %v5489 = vor.u32 %v5485, %v5488
      %v5490 = vrot.slane %v5489, 4
      %v5492 = vshll.u32 %v5246, 16
      %v5494 = vrot.slane %v5492, 5
      %v5495 = vsel %vm762, %v5490, %v5494
      %v5496 = vshrl.u32 %v5246, 16
      %v5498 = vrot.slane %v5496, 4
      %v5499 = vor.u32 %v5498, %v5494
      %v5500 = vrot.slane %v5499, 4
      %v5502 = vshll.u32 %v5247, 16
      %v5504 = vrot.slane %v5502, 5
      %v5505 = vsel %vm762, %v5500, %v5504
      %v5507 = vshrl.u32 %v5248, 16
      %v5509 = vrot.slane %v5507, 4
      %v5510 = vshll.u32 %v5248, 16
      %v5512 = vrot.slane %v5510, 5
      %v5513 = vor.u32 %v5509, %v5512
      %v5514 = vrot.slane %v5513, 4
      %v5516 = vshll.u32 %v5249, 16
      %v5518 = vrot.slane %v5516, 5
      %v5519 = vsel %vm762, %v5514, %v5518
      %v5520 = vshrl.u32 %v5249, 16
      %v5522 = vrot.slane %v5520, 4
      %v5523 = vor.u32 %v5522, %v5518
      %v5524 = vrot.slane %v5523, 4
      %v5526 = vshll.u32 %v5250, 16
      %v5528 = vrot.slane %v5526, 5
      %v5529 = vsel %vm762, %v5524, %v5528
      %v5531 = vshrl.u32 %v5251, 16
      %v5533 = vrot.slane %v5531, 4
      %v5534 = vshll.u32 %v5251, 16
      %v5536 = vrot.slane %v5534, 5
      %v5537 = vor.u32 %v5533, %v5536
      %v5538 = vrot.slane %v5537, 4
      %v5540 = vshll.u32 %v5252, 16
      %v5542 = vrot.slane %v5540, 5
      %v5543 = vsel %vm762, %v5538, %v5542
      %v5544 = vshrl.u32 %v5252, 16
      %v5546 = vrot.slane %v5544, 4
      %v5547 = vor.u32 %v5546, %v5542
      %v5548 = vrot.slane %v5547, 4
      %v5550 = vshll.u32 %v5253, 16
      %v5552 = vrot.slane %v5550, 5
      %v5553 = vsel %vm762, %v5548, %v5552
      %v5555 = vshrl.u32 %v5254, 16
      %v5557 = vrot.slane %v5555, 4
      %v5558 = vshll.u32 %v5254, 16
      %v5560 = vrot.slane %v5558, 5
      %v5561 = vor.u32 %v5557, %v5560
      %v5562 = vrot.slane %v5561, 4
      %v5564 = vshll.u32 %v5255, 16
      %v5566 = vrot.slane %v5564, 5
      %v5567 = vsel %vm762, %v5562, %v5566
      %v5568 = vshrl.u32 %v5255, 16
      %v5570 = vrot.slane %v5568, 4
      %v5571 = vor.u32 %v5570, %v5566
      %v5572 = vrot.slane %v5571, 4
      %v5574 = vshll.u32 %v5256, 16
      %v5576 = vrot.slane %v5574, 5
      %v5577 = vsel %vm762, %v5572, %v5576
      %v5579 = vshrl.u32 %v5257, 16
      %v5581 = vrot.slane %v5579, 4
      %v5582 = vshll.u32 %v5257, 16
      %v5584 = vrot.slane %v5582, 5
      %v5585 = vor.u32 %v5581, %v5584
      %v5586 = vrot.slane %v5585, 4
      %v5588 = vshll.u32 %v5258, 16
      %v5590 = vrot.slane %v5588, 5
      %v5591 = vsel %vm762, %v5586, %v5590
      %v5592 = vshrl.u32 %v5258, 16
      %v5594 = vrot.slane %v5592, 4
      %v5595 = vor.u32 %v5594, %v5590
      %v5596 = vrot.slane %v5595, 4
      %v5598 = vshll.u32 %v5259, 16
      %v5600 = vrot.slane %v5598, 5
      %v5601 = vsel %vm762, %v5596, %v5600
      %v5603 = vshrl.u32 %v5260, 16
      %v5605 = vrot.slane %v5603, 4
      %v5606 = vshll.u32 %v5260, 16
      %v5608 = vrot.slane %v5606, 5
      %v5609 = vor.u32 %v5605, %v5608
      %v5610 = vrot.slane %v5609, 4
      %v5612 = vshll.u32 %v5261, 16
      %v5614 = vrot.slane %v5612, 5
      %v5615 = vsel %vm762, %v5610, %v5614
      %v5616 = vshrl.u32 %v5261, 16
      %v5618 = vrot.slane %v5616, 4
      %v5619 = vor.u32 %v5618, %v5614
      %v5620 = vrot.slane %v5619, 4
      %v5622 = vshll.u32 %v5262, 16
      %v5624 = vrot.slane %v5622, 5
      %v5625 = vsel %vm762, %v5620, %v5624
      %v5627 = vshrl.u32 %v5263, 16
      %v5629 = vrot.slane %v5627, 4
      %v5630 = vshll.u32 %v5263, 16
      %v5632 = vrot.slane %v5630, 5
      %v5633 = vor.u32 %v5629, %v5632
      %v5634 = vrot.slane %v5633, 4
      %v5636 = vshll.u32 %v5264, 16
      %v5638 = vrot.slane %v5636, 5
      %v5639 = vsel %vm762, %v5634, %v5638
      %v5640 = vshrl.u32 %v5264, 16
      %v5642 = vrot.slane %v5640, 4
      %v5643 = vor.u32 %v5642, %v5638
      %v5644 = vrot.slane %v5643, 4
      %v5646 = vshll.u32 %v5265, 16
      %v5648 = vrot.slane %v5646, 5
      %v5649 = vsel %vm762, %v5644, %v5648
      %s5650 = scalar_lea.vmem %s1, 896
      %v5651 = vld [vmem:[%s5650] sm:$0xf]
      %v5652 = vld [vmem:[%s5650 + $0x4] sm:$0xf]
      %v5653 = vld [vmem:[%s5650 + $0x8] sm:$0xf]
      %v5654 = vld [vmem:[%s5650 + $0xc] sm:$0xf]
      %v5655 = vld [vmem:[%s5650 + $0x10] sm:$0xf]
      %v5656 = vld [vmem:[%s5650 + $0x14] sm:$0xf]
      %v5657 = vld [vmem:[%s5650 + $0x18] sm:$0xf]
      %v5658 = vld [vmem:[%s5650 + $0x1c] sm:$0xf]
      %v5659 = vld [vmem:[%s5650 + $0x20] sm:$0xf]
      %v5660 = vld [vmem:[%s5650 + $0x24] sm:$0xf]
      %v5661 = vld [vmem:[%s5650 + $0x28] sm:$0xf]
      %v5662 = vld [vmem:[%s5650 + $0x2c] sm:$0xf]
      %v5663 = vld [vmem:[%s5650 + $0x30] sm:$0xf]
      %v5664 = vld [vmem:[%s5650 + $0x34] sm:$0xf]
      %v5665 = vld [vmem:[%s5650 + $0x38] sm:$0xf]
      %v5666 = vld [vmem:[%s5650 + $0x3c] sm:$0xf]
      %v5667 = vld [vmem:[%s5650 + $0x40] sm:$0xf]
      %v5668 = vld [vmem:[%s5650 + $0x44] sm:$0xf]
      %v5669 = vld [vmem:[%s5650 + $0x48] sm:$0xf]
      %v5670 = vld [vmem:[%s5650 + $0x4c] sm:$0xf]
      %v5671 = vld [vmem:[%s5650 + $0x50] sm:$0xf]
      %v5672 = vld [vmem:[%s5650 + $0x54] sm:$0xf]
      %v5673 = vld [vmem:[%s5650 + $0x58] sm:$0xf]
      %v5674 = vld [vmem:[%s5650 + $0x5c] sm:$0xf]
      %v5675 = vld [vmem:[%s5650 + $0x60] sm:$0xf]
      %v5676 = vld [vmem:[%s5650 + $0x64] sm:$0xf]
      %v5677 = vld [vmem:[%s5650 + $0x68] sm:$0xf]
      %v5678 = vld [vmem:[%s5650 + $0x6c] sm:$0xf]
      %v5679 = vld [vmem:[%s5650 + $0x70] sm:$0xf]
      %v5680 = vld [vmem:[%s5650 + $0x74] sm:$0xf]
      %v5681 = vld [vmem:[%s5650 + $0x78] sm:$0xf]
      %v5682 = vld [vmem:[%s5650 + $0x7c] sm:$0xf]
      %v5683 = vunpack.c.l.b16 %v5279
      %v5684 = vunpack.c.h.b16 %v5279
      %v5685 = vunpack.c.l.b16 %v5289
      %v5686 = vunpack.c.h.b16 %v5289
      %v5687 = vunpack.c.l.b16 %v5303
      %v5688 = vunpack.c.h.b16 %v5303
      %v5689 = vunpack.c.l.b16 %v5313
      %v5690 = vunpack.c.h.b16 %v5313
      %v5691 = vunpack.c.l.b16 %v5327
      %v5692 = vunpack.c.h.b16 %v5327
      %v5693 = vunpack.c.l.b16 %v5337
      %v5694 = vunpack.c.h.b16 %v5337
      %v5695 = vunpack.c.l.b16 %v5351
      %v5696 = vunpack.c.h.b16 %v5351
      %v5697 = vunpack.c.l.b16 %v5361
      %v5698 = vunpack.c.h.b16 %v5361
      %v5699 = vunpack.c.l.b16 %v5375
      %v5700 = vunpack.c.h.b16 %v5375
      %v5701 = vunpack.c.l.b16 %v5385
      %v5702 = vunpack.c.h.b16 %v5385
      %v5703 = vunpack.c.l.b16 %v5399
      %v5704 = vunpack.c.h.b16 %v5399
      %v5705 = vunpack.c.l.b16 %v5409
      %v5706 = vunpack.c.h.b16 %v5409
      %v5707 = vunpack.c.l.b16 %v5423
      %v5708 = vunpack.c.h.b16 %v5423
      %v5709 = vunpack.c.l.b16 %v5433
      %v5710 = vunpack.c.h.b16 %v5433
      %v5711 = vunpack.c.l.b16 %v5447
      %v5712 = vunpack.c.h.b16 %v5447
      %v5713 = vunpack.c.l.b16 %v5457
      %v5714 = vunpack.c.h.b16 %v5457
      %v5715 = vunpack.c.l.b16 %v5471
      %v5716 = vunpack.c.h.b16 %v5471
      %v5717 = vunpack.c.l.b16 %v5481
      %v5718 = vunpack.c.h.b16 %v5481
      %v5719 = vunpack.c.l.b16 %v5495
      %v5720 = vunpack.c.h.b16 %v5495
      %v5721 = vunpack.c.l.b16 %v5505
      %v5722 = vunpack.c.h.b16 %v5505
      %v5723 = vunpack.c.l.b16 %v5519
      %v5724 = vunpack.c.h.b16 %v5519
      %v5725 = vunpack.c.l.b16 %v5529
      %v5726 = vunpack.c.h.b16 %v5529
      %v5727 = vunpack.c.l.b16 %v5543
      %v5728 = vunpack.c.h.b16 %v5543
      %v5729 = vunpack.c.l.b16 %v5553
      %v5730 = vunpack.c.h.b16 %v5553
      %v5731 = vunpack.c.l.b16 %v5567
      %v5732 = vunpack.c.h.b16 %v5567
      %v5733 = vunpack.c.l.b16 %v5577
      %v5734 = vunpack.c.h.b16 %v5577
      %v5735 = vunpack.c.l.b16 %v5591
      %v5736 = vunpack.c.h.b16 %v5591
      %v5737 = vunpack.c.l.b16 %v5601
      %v5738 = vunpack.c.h.b16 %v5601
      %v5739 = vunpack.c.l.b16 %v5615
      %v5740 = vunpack.c.h.b16 %v5615
      %v5741 = vunpack.c.l.b16 %v5625
      %v5742 = vunpack.c.h.b16 %v5625
      %v5743 = vunpack.c.l.b16 %v5639
      %v5744 = vunpack.c.h.b16 %v5639
      %v5745 = vunpack.c.l.b16 %v5649
      %v5746 = vunpack.c.h.b16 %v5649
      %v5747 = vpack.c.b16 %v5685, %v5683
      %v5748 = vpack.c.b16 %v5686, %v5684
      %v5749 = vpack.c.b16 %v5689, %v5687
      %v5750 = vpack.c.b16 %v5690, %v5688
      %v5751 = vpack.c.b16 %v5693, %v5691
      %v5752 = vpack.c.b16 %v5694, %v5692
      %v5753 = vpack.c.b16 %v5697, %v5695
      %v5754 = vpack.c.b16 %v5698, %v5696
      %v5755 = vpack.c.b16 %v5701, %v5699
      %v5756 = vpack.c.b16 %v5702, %v5700
      %v5757 = vpack.c.b16 %v5705, %v5703
      %v5758 = vpack.c.b16 %v5706, %v5704
      %v5759 = vpack.c.b16 %v5709, %v5707
      %v5760 = vpack.c.b16 %v5710, %v5708
      %v5761 = vpack.c.b16 %v5713, %v5711
      %v5762 = vpack.c.b16 %v5714, %v5712
      %v5763 = vpack.c.b16 %v5717, %v5715
      %v5764 = vpack.c.b16 %v5718, %v5716
      %v5765 = vpack.c.b16 %v5721, %v5719
      %v5766 = vpack.c.b16 %v5722, %v5720
      %v5767 = vpack.c.b16 %v5725, %v5723
      %v5768 = vpack.c.b16 %v5726, %v5724
      %v5769 = vpack.c.b16 %v5729, %v5727
      %v5770 = vpack.c.b16 %v5730, %v5728
      %v5771 = vpack.c.b16 %v5733, %v5731
      %v5772 = vpack.c.b16 %v5734, %v5732
      %v5773 = vpack.c.b16 %v5737, %v5735
      %v5774 = vpack.c.b16 %v5738, %v5736
      %v5775 = vpack.c.b16 %v5741, %v5739
      %v5776 = vpack.c.b16 %v5742, %v5740
      %v5777 = vpack.c.b16 %v5745, %v5743
      %v5778 = vpack.c.b16 %v5746, %v5744
      %v5843 = vunpack.c.l.b16 %v5651
      %v5844 = vunpack.c.l.b16 %v5652
      %v5845 = vunpack.c.l.b16 %v5653
      %v5846 = vunpack.c.l.b16 %v5654
      %v5847 = vunpack.c.l.b16 %v5655
      %v5848 = vunpack.c.l.b16 %v5656
      %v5849 = vunpack.c.l.b16 %v5657
      %v5850 = vunpack.c.l.b16 %v5658
      %v5851 = vunpack.c.l.b16 %v5659
      %v5852 = vunpack.c.l.b16 %v5660
      %v5853 = vunpack.c.l.b16 %v5661
      %v5854 = vunpack.c.l.b16 %v5662
      %v5855 = vunpack.c.l.b16 %v5663
      %v5856 = vunpack.c.l.b16 %v5664
      %v5857 = vunpack.c.l.b16 %v5665
      %v5858 = vunpack.c.l.b16 %v5666
      %v5859 = vunpack.c.l.b16 %v5667
      %v5860 = vunpack.c.l.b16 %v5668
      %v5861 = vunpack.c.l.b16 %v5669
      %v5862 = vunpack.c.l.b16 %v5670
      %v5863 = vunpack.c.l.b16 %v5671
      %v5864 = vunpack.c.l.b16 %v5672
      %v5865 = vunpack.c.l.b16 %v5673
      %v5866 = vunpack.c.l.b16 %v5674
      %v5867 = vunpack.c.l.b16 %v5675
      %v5868 = vunpack.c.l.b16 %v5676
      %v5869 = vunpack.c.l.b16 %v5677
      %v5870 = vunpack.c.l.b16 %v5678
      %v5871 = vunpack.c.l.b16 %v5679
      %v5872 = vunpack.c.l.b16 %v5680
      %v5873 = vunpack.c.l.b16 %v5681
      %v5874 = vunpack.c.l.b16 %v5682
      %v5875 = vpack.c.b16 %v5844, %v5843
      %v5876 = vpack.c.b16 %v5846, %v5845
      %v5877 = vpack.c.b16 %v5848, %v5847
      %v5878 = vpack.c.b16 %v5850, %v5849
      %v5879 = vpack.c.b16 %v5852, %v5851
      %v5880 = vpack.c.b16 %v5854, %v5853
      %v5881 = vpack.c.b16 %v5856, %v5855
      %v5882 = vpack.c.b16 %v5858, %v5857
      %v5883 = vpack.c.b16 %v5860, %v5859
      %v5884 = vpack.c.b16 %v5862, %v5861
      %v5885 = vpack.c.b16 %v5864, %v5863
      %v5886 = vpack.c.b16 %v5866, %v5865
      %v5887 = vpack.c.b16 %v5868, %v5867
      %v5888 = vpack.c.b16 %v5870, %v5869
      %v5889 = vpack.c.b16 %v5872, %v5871
      %v5890 = vpack.c.b16 %v5874, %v5873
      %5907 = vmatprep.subr.bf16.mxu0 0
      %5908 = vmatpush1.bf16.msra.mxu0 %v5875
      %5909 = vmatprep.subr.bf16.mxu0 0
      %5910 = vmatpush1.bf16.msra.mxu0 %v5876
      %5911 = vmatprep.subr.bf16.mxu0 0
      %5912 = vmatpush1.bf16.msra.mxu0 %v5877
      %5913 = vmatprep.subr.bf16.mxu0 0
      %5914 = vmatpush1.bf16.msra.mxu0 %v5878
      %5915 = vmatprep.subr.bf16.mxu0 0
      %5916 = vmatpush1.bf16.msra.mxu0 %v5879
      %5917 = vmatprep.subr.bf16.mxu0 0
      %5918 = vmatpush1.bf16.msra.mxu0 %v5880
      %5919 = vmatprep.subr.bf16.mxu0 0
      %5920 = vmatpush1.bf16.msra.mxu0 %v5881
      %5921 = vmatprep.subr.bf16.mxu0 0
      %5922 = vmatpush1.bf16.msra.mxu0 %v5882
      %5923 = vmatprep.subr.bf16.mxu0 0
      %5924 = vmatpush1.bf16.msra.mxu0 %v5883
      %5925 = vmatprep.subr.bf16.mxu0 0
      %5926 = vmatpush1.bf16.msra.mxu0 %v5884
      %5927 = vmatprep.subr.bf16.mxu0 0
      %5928 = vmatpush1.bf16.msra.mxu0 %v5885
      %5929 = vmatprep.subr.bf16.mxu0 0
      %5930 = vmatpush1.bf16.msra.mxu0 %v5886
      %5931 = vmatprep.subr.bf16.mxu0 0
      %5932 = vmatpush1.bf16.msra.mxu0 %v5887
      %5933 = vmatprep.subr.bf16.mxu0 0
      %5934 = vmatpush1.bf16.msra.mxu0 %v5888
      %5935 = vmatprep.subr.bf16.mxu0 0
      %5936 = vmatpush1.bf16.msra.mxu0 %v5889
      %5937 = vmatprep.subr.bf16.mxu0 0
      %5938 = vmatpush1.bf16.msra.mxu0 %v5890
      %5939 = vmatprep.mubr.bf16.mxu0 %v5748
      %5940 = vmatmul.mubr.bf16.gmra.mrb[0].mxu0 %v5747
      %v5941 = vpop.f32.mrb[0].mxu0
      %v5942 = vadd.f32 0.0, %v5941
      %v5943 = vpop.f32.mrb[0].mxu0
      %v5944 = vpop.f32.mrb[0].mxu0
      %v5945 = vadd.f32 0.0, %v5944
      %v5946 = vpop.f32.mrb[0].mxu0
      %5947 = vmatprep.mubr.bf16.mxu0 %v5750
      %5948 = vmatmul.mubr.bf16.gmra.mrb[0].mxu0 %v5749
      %v5949 = vpop.f32.mrb[0].mxu0
      %v5950 = vadd.f32 0.0, %v5949
      %v5951 = vpop.f32.mrb[0].mxu0
      %v5952 = vpop.f32.mrb[0].mxu0
      %v5953 = vadd.f32 0.0, %v5952
      %v5954 = vpop.f32.mrb[0].mxu0
      %5955 = vmatprep.mubr.bf16.mxu0 %v5752
      %5956 = vmatmul.mubr.bf16.gmra.mrb[0].mxu0 %v5751
      %v5957 = vpop.f32.mrb[0].mxu0
      %v5958 = vadd.f32 0.0, %v5957
      %v5959 = vpop.f32.mrb[0].mxu0
      %v5960 = vpop.f32.mrb[0].mxu0
      %v5961 = vadd.f32 0.0, %v5960
      %v5962 = vpop.f32.mrb[0].mxu0
      %5963 = vmatprep.mubr.bf16.mxu0 %v5754
      %5964 = vmatmul.mubr.bf16.gmra.mrb[0].mxu0 %v5753
      %v5965 = vpop.f32.mrb[0].mxu0
      %v5966 = vadd.f32 0.0, %v5965
      %v5967 = vpop.f32.mrb[0].mxu0
      %v5968 = vpop.f32.mrb[0].mxu0
      %v5969 = vadd.f32 0.0, %v5968
      %v5970 = vpop.f32.mrb[0].mxu0
      %5971 = vmatprep.mubr.bf16.mxu0 %v5756
      %5972 = vmatmul.mubr.bf16.gmra.mrb[0].mxu0 %v5755
      %v5973 = vpop.f32.mrb[0].mxu0
      %v5974 = vadd.f32 0.0, %v5973
      %v5975 = vpop.f32.mrb[0].mxu0
      %v5976 = vpop.f32.mrb[0].mxu0
      %v5977 = vadd.f32 0.0, %v5976
      %v5978 = vpop.f32.mrb[0].mxu0
      %5979 = vmatprep.mubr.bf16.mxu0 %v5758
      %5980 = vmatmul.mubr.bf16.gmra.mrb[0].mxu0 %v5757
      %v5981 = vpop.f32.mrb[0].mxu0
      %v5982 = vadd.f32 0.0, %v5981
      %v5983 = vpop.f32.mrb[0].mxu0
      %v5984 = vpop.f32.mrb[0].mxu0
      %v5985 = vadd.f32 0.0, %v5984
      %v5986 = vpop.f32.mrb[0].mxu0
      %5987 = vmatprep.mubr.bf16.mxu0 %v5760
      %5988 = vmatmul.mubr.bf16.gmra.mrb[0].mxu0 %v5759
      %v5989 = vpop.f32.mrb[0].mxu0
      %v5990 = vadd.f32 0.0, %v5989
      %v5991 = vpop.f32.mrb[0].mxu0
      %v5992 = vpop.f32.mrb[0].mxu0
      %v5993 = vadd.f32 0.0, %v5992
      %v5994 = vpop.f32.mrb[0].mxu0
      %5995 = vmatprep.mubr.bf16.mxu0 %v5762
      %5996 = vmatmul.mubr.bf16.gmra.mrb[0].mxu0 %v5761
      %v5997 = vpop.f32.mrb[0].mxu0
      %v5998 = vadd.f32 0.0, %v5997
      %v5999 = vpop.f32.mrb[0].mxu0
      %v6000 = vpop.f32.mrb[0].mxu0
      %v6001 = vadd.f32 0.0, %v6000
      %v6002 = vpop.f32.mrb[0].mxu0
      %6003 = vmatprep.mubr.bf16.mxu0 %v5764
      %6004 = vmatmul.mubr.bf16.gmra.mrb[0].mxu0 %v5763
      %v6005 = vpop.f32.mrb[0].mxu0
      %v6006 = vadd.f32 0.0, %v6005
      %v6007 = vpop.f32.mrb[0].mxu0
      %v6008 = vpop.f32.mrb[0].mxu0
      %v6009 = vadd.f32 0.0, %v6008
      %v6010 = vpop.f32.mrb[0].mxu0
      %6011 = vmatprep.mubr.bf16.mxu0 %v5766
      %6012 = vmatmul.mubr.bf16.gmra.mrb[0].mxu0 %v5765
      %v6013 = vpop.f32.mrb[0].mxu0
      %v6014 = vadd.f32 0.0, %v6013
      %v6015 = vpop.f32.mrb[0].mxu0
      %v6016 = vpop.f32.mrb[0].mxu0
      %v6017 = vadd.f32 0.0, %v6016
      %v6018 = vpop.f32.mrb[0].mxu0
      %6019 = vmatprep.mubr.bf16.mxu0 %v5768
      %6020 = vmatmul.mubr.bf16.gmra.mrb[0].mxu0 %v5767
      %v6021 = vpop.f32.mrb[0].mxu0
      %v6022 = vadd.f32 0.0, %v6021
      %v6023 = vpop.f32.mrb[0].mxu0
      %v6024 = vpop.f32.mrb[0].mxu0
      %v6025 = vadd.f32 0.0, %v6024
      %v6026 = vpop.f32.mrb[0].mxu0
      %6027 = vmatprep.mubr.bf16.mxu0 %v5770
      %6028 = vmatmul.mubr.bf16.gmra.mrb[0].mxu0 %v5769
      %v6029 = vpop.f32.mrb[0].mxu0
      %v6030 = vadd.f32 0.0, %v6029
      %v6031 = vpop.f32.mrb[0].mxu0
      %v6032 = vpop.f32.mrb[0].mxu0
      %v6033 = vadd.f32 0.0, %v6032
      %v6034 = vpop.f32.mrb[0].mxu0
      %6035 = vmatprep.mubr.bf16.mxu0 %v5772
      %6036 = vmatmul.mubr.bf16.gmra.mrb[0].mxu0 %v5771
      %v6037 = vpop.f32.mrb[0].mxu0
      %v6038 = vadd.f32 0.0, %v6037
      %v6039 = vpop.f32.mrb[0].mxu0
      %v6040 = vpop.f32.mrb[0].mxu0
      %v6041 = vadd.f32 0.0, %v6040
      %v6042 = vpop.f32.mrb[0].mxu0
      %6043 = vmatprep.mubr.bf16.mxu0 %v5774
      %6044 = vmatmul.mubr.bf16.gmra.mrb[0].mxu0 %v5773
      %v6045 = vpop.f32.mrb[0].mxu0
      %v6046 = vadd.f32 0.0, %v6045
      %v6047 = vpop.f32.mrb[0].mxu0
      %v6048 = vpop.f32.mrb[0].mxu0
      %v6049 = vadd.f32 0.0, %v6048
      %v6050 = vpop.f32.mrb[0].mxu0
      %6051 = vmatprep.mubr.bf16.mxu0 %v5776
      %6052 = vmatmul.mubr.bf16.gmra.mrb[0].mxu0 %v5775
      %v6053 = vpop.f32.mrb[0].mxu0
      %v6054 = vadd.f32 0.0, %v6053
      %v6055 = vpop.f32.mrb[0].mxu0
      %v6056 = vpop.f32.mrb[0].mxu0
      %v6057 = vadd.f32 0.0, %v6056
      %v6058 = vpop.f32.mrb[0].mxu0
      %6059 = vmatprep.mubr.bf16.mxu0 %v5778
      %6060 = vmatmul.mubr.bf16.gmra.mrb[0].mxu0 %v5777
      %v6061 = vpop.f32.mrb[0].mxu0
      %v6062 = vadd.f32 0.0, %v6061
      %v6063 = vpop.f32.mrb[0].mxu0
      %v6064 = vpop.f32.mrb[0].mxu0
      %v6065 = vadd.f32 0.0, %v6064
      %v6066 = vpop.f32.mrb[0].mxu0
      %6067 = vdwg.mxu0
      %v6068 = vld [vmem:[#allocation2] sm:$0xff]
      %v6069 = vld [vmem:[#allocation2 + $0x8] sm:$0xff]
      %v6070 = vld [vmem:[#allocation2 + $0x10] sm:$0xff]
      %v6071 = vld [vmem:[#allocation2 + $0x18] sm:$0xff]
      %v6072 = vld [vmem:[#allocation2 + $0x20] sm:$0xff]
      %v6073 = vld [vmem:[#allocation2 + $0x28] sm:$0xff]
      %v6074 = vld [vmem:[#allocation2 + $0x30] sm:$0xff]
      %v6075 = vld [vmem:[#allocation2 + $0x38] sm:$0xff]
      %v6076 = vld [vmem:[#allocation2 + $0x40] sm:$0xff]
      %v6077 = vld [vmem:[#allocation2 + $0x48] sm:$0xff]
      %v6078 = vld [vmem:[#allocation2 + $0x50] sm:$0xff]
      %v6079 = vld [vmem:[#allocation2 + $0x58] sm:$0xff]
      %v6080 = vld [vmem:[#allocation2 + $0x60] sm:$0xff]
      %v6081 = vld [vmem:[#allocation2 + $0x68] sm:$0xff]
      %v6082 = vld [vmem:[#allocation2 + $0x70] sm:$0xff]
      %v6083 = vld [vmem:[#allocation2 + $0x78] sm:$0xff]
      %v6084 = vld [vmem:[#allocation2 + $0x80] sm:$0xff]
      %v6085 = vld [vmem:[#allocation2 + $0x88] sm:$0xff]
      %v6086 = vld [vmem:[#allocation2 + $0x90] sm:$0xff]
      %v6087 = vld [vmem:[#allocation2 + $0x98] sm:$0xff]
      %v6088 = vld [vmem:[#allocation2 + $0xa0] sm:$0xff]
      %v6089 = vld [vmem:[#allocation2 + $0xa8] sm:$0xff]
      %v6090 = vld [vmem:[#allocation2 + $0xb0] sm:$0xff]
      %v6091 = vld [vmem:[#allocation2 + $0xb8] sm:$0xff]
      %v6092 = vld [vmem:[#allocation2 + $0xc0] sm:$0xff]
      %v6093 = vld [vmem:[#allocation2 + $0xc8] sm:$0xff]
      %v6094 = vld [vmem:[#allocation2 + $0xd0] sm:$0xff]
      %v6095 = vld [vmem:[#allocation2 + $0xd8] sm:$0xff]
      %v6096 = vld [vmem:[#allocation2 + $0xe0] sm:$0xff]
      %v6097 = vld [vmem:[#allocation2 + $0xe8] sm:$0xff]
      %v6098 = vld [vmem:[#allocation2 + $0xf0] sm:$0xff]
      %v6099 = vld [vmem:[#allocation2 + $0xf8] sm:$0xff]
      %v6100 = vadd.f32 %v6068, %v5942
      %v6101 = vadd.f32 %v6069, %v5945
      %v6102 = vadd.f32 %v6070, %v5950
      %v6103 = vadd.f32 %v6071, %v5953
      %v6104 = vadd.f32 %v6072, %v5958
      %v6105 = vadd.f32 %v6073, %v5961
      %v6106 = vadd.f32 %v6074, %v5966
      %v6107 = vadd.f32 %v6075, %v5969
      %v6108 = vadd.f32 %v6076, %v5974
      %v6109 = vadd.f32 %v6077, %v5977
      %v6110 = vadd.f32 %v6078, %v5982
      %v6111 = vadd.f32 %v6079, %v5985
      %v6112 = vadd.f32 %v6080, %v5990
      %v6113 = vadd.f32 %v6081, %v5993
      %v6114 = vadd.f32 %v6082, %v5998
      %v6115 = vadd.f32 %v6083, %v6001
      %v6116 = vadd.f32 %v6084, %v6006
      %v6117 = vadd.f32 %v6085, %v6009
      %v6118 = vadd.f32 %v6086, %v6014
      %v6119 = vadd.f32 %v6087, %v6017
      %v6120 = vadd.f32 %v6088, %v6022
      %v6121 = vadd.f32 %v6089, %v6025
      %v6122 = vadd.f32 %v6090, %v6030
      %v6123 = vadd.f32 %v6091, %v6033
      %v6124 = vadd.f32 %v6092, %v6038
      %v6125 = vadd.f32 %v6093, %v6041
      %v6126 = vadd.f32 %v6094, %v6046
      %v6127 = vadd.f32 %v6095, %v6049
      %v6128 = vadd.f32 %v6096, %v6054
      %v6129 = vadd.f32 %v6097, %v6057
      %v6130 = vadd.f32 %v6098, %v6062
      %v6131 = vadd.f32 %v6099, %v6065
      %6132 = vst [vmem:[#allocation2] sm:$0xff] %v6100
      %6133 = vst [vmem:[#allocation2 + $0x8] sm:$0xff] %v6101
      %6134 = vst [vmem:[#allocation2 + $0x10] sm:$0xff] %v6102
      %6135 = vst [vmem:[#allocation2 + $0x18] sm:$0xff] %v6103
      %6136 = vst [vmem:[#allocation2 + $0x20] sm:$0xff] %v6104
      %6137 = vst [vmem:[#allocation2 + $0x28] sm:$0xff] %v6105
      %6138 = vst [vmem:[#allocation2 + $0x30] sm:$0xff] %v6106
      %6139 = vst [vmem:[#allocation2 + $0x38] sm:$0xff] %v6107
      %6140 = vst [vmem:[#allocation2 + $0x40] sm:$0xff] %v6108
      %6141 = vst [vmem:[#allocation2 + $0x48] sm:$0xff] %v6109
      %6142 = vst [vmem:[#allocation2 + $0x50] sm:$0xff] %v6110
      %6143 = vst [vmem:[#allocation2 + $0x58] sm:$0xff] %v6111
      %6144 = vst [vmem:[#allocation2 + $0x60] sm:$0xff] %v6112
      %6145 = vst [vmem:[#allocation2 + $0x68] sm:$0xff] %v6113
      %6146 = vst [vmem:[#allocation2 + $0x70] sm:$0xff] %v6114
      %6147 = vst [vmem:[#allocation2 + $0x78] sm:$0xff] %v6115
      %6148 = vst [vmem:[#allocation2 + $0x80] sm:$0xff] %v6116
      %6149 = vst [vmem:[#allocation2 + $0x88] sm:$0xff] %v6117
      %6150 = vst [vmem:[#allocation2 + $0x90] sm:$0xff] %v6118
      %6151 = vst [vmem:[#allocation2 + $0x98] sm:$0xff] %v6119
      %6152 = vst [vmem:[#allocation2 + $0xa0] sm:$0xff] %v6120
      %6153 = vst [vmem:[#allocation2 + $0xa8] sm:$0xff] %v6121
      %6154 = vst [vmem:[#allocation2 + $0xb0] sm:$0xff] %v6122
      %6155 = vst [vmem:[#allocation2 + $0xb8] sm:$0xff] %v6123
      %6156 = vst [vmem:[#allocation2 + $0xc0] sm:$0xff] %v6124
      %6157 = vst [vmem:[#allocation2 + $0xc8] sm:$0xff] %v6125
      %6158 = vst [vmem:[#allocation2 + $0xd0] sm:$0xff] %v6126
      %6159 = vst [vmem:[#allocation2 + $0xd8] sm:$0xff] %v6127
      %6160 = vst [vmem:[#allocation2 + $0xe0] sm:$0xff] %v6128
      %6161 = vst [vmem:[#allocation2 + $0xe8] sm:$0xff] %v6129
      %6162 = vst [vmem:[#allocation2 + $0xf0] sm:$0xff] %v6130
      %6163 = vst [vmem:[#allocation2 + $0xf8] sm:$0xff] %v6131
      %v6164 = vld [vmem:[%s4639] sm:$0xee]
      %v6165 = vld [vmem:[%s4639 + $0x8] sm:$0xff]
      %v6166 = vld [vmem:[%s4639 + $0x10] sm:$0x11]
      %v6167 = vld [vmem:[%s4639 + $0x18] sm:$0xee]
      %v6168 = vld [vmem:[%s4639 + $0x20] sm:$0xff]
      %v6169 = vld [vmem:[%s4639 + $0x28] sm:$0x11]
      %v6170 = vld [vmem:[%s4639 + $0x30] sm:$0xee]
      %v6171 = vld [vmem:[%s4639 + $0x38] sm:$0xff]
      %v6172 = vld [vmem:[%s4639 + $0x40] sm:$0x11]
      %v6173 = vld [vmem:[%s4639 + $0x48] sm:$0xee]
      %v6174 = vld [vmem:[%s4639 + $0x50] sm:$0xff]
      %v6175 = vld [vmem:[%s4639 + $0x58] sm:$0x11]
      %v6176 = vld [vmem:[%s4639 + $0x60] sm:$0xee]
      %v6177 = vld [vmem:[%s4639 + $0x68] sm:$0xff]
      %v6178 = vld [vmem:[%s4639 + $0x70] sm:$0x11]
      %v6179 = vld [vmem:[%s4639 + $0x78] sm:$0xee]
      %v6180 = vld [vmem:[%s4639 + $0x80] sm:$0xff]
      %v6181 = vld [vmem:[%s4639 + $0x88] sm:$0x11]
      %v6182 = vld [vmem:[%s4639 + $0x90] sm:$0xee]
      %v6183 = vld [vmem:[%s4639 + $0x98] sm:$0xff]
      %v6184 = vld [vmem:[%s4639 + $0xa0] sm:$0x11]
      %v6185 = vld [vmem:[%s4639 + $0xa8] sm:$0xee]
      %v6186 = vld [vmem:[%s4639 + $0xb0] sm:$0xff]
      %v6187 = vld [vmem:[%s4639 + $0xb8] sm:$0x11]
      %v6188 = vld [vmem:[%s4639 + $0xc0] sm:$0xee]
      %v6189 = vld [vmem:[%s4639 + $0xc8] sm:$0xff]
      %v6190 = vld [vmem:[%s4639 + $0xd0] sm:$0x11]
      %v6191 = vld [vmem:[%s4639 + $0xd8] sm:$0xee]
      %v6192 = vld [vmem:[%s4639 + $0xe0] sm:$0xff]
      %v6193 = vld [vmem:[%s4639 + $0xe8] sm:$0x11]
      %v6194 = vld [vmem:[%s4639 + $0xf0] sm:$0xee]
      %v6195 = vld [vmem:[%s4639 + $0xf8] sm:$0xff]
      %v6196 = vld [vmem:[%s4639 + $0x100] sm:$0x11]
      %v6197 = vld [vmem:[%s4639 + $0x108] sm:$0xee]
      %v6198 = vld [vmem:[%s4639 + $0x110] sm:$0xff]
      %v6199 = vld [vmem:[%s4639 + $0x118] sm:$0x11]
      %v6200 = vld [vmem:[%s4639 + $0x120] sm:$0xee]
      %v6201 = vld [vmem:[%s4639 + $0x128] sm:$0xff]
      %v6202 = vld [vmem:[%s4639 + $0x130] sm:$0x11]
      %v6203 = vld [vmem:[%s4639 + $0x138] sm:$0xee]
      %v6204 = vld [vmem:[%s4639 + $0x140] sm:$0xff]
      %v6205 = vld [vmem:[%s4639 + $0x148] sm:$0x11]
      %v6206 = vld [vmem:[%s4639 + $0x150] sm:$0xee]
      %v6207 = vld [vmem:[%s4639 + $0x158] sm:$0xff]
      %v6208 = vld [vmem:[%s4639 + $0x160] sm:$0x11]
      %v6209 = vld [vmem:[%s4639 + $0x168] sm:$0xee]
      %v6210 = vld [vmem:[%s4639 + $0x170] sm:$0xff]
      %v6211 = vld [vmem:[%s4639 + $0x178] sm:$0x11]
      %v6260 = vrot.slane %v6164, 5
      %v6261 = vrot.slane %v6260, 4
      %v6262 = vrot.slane %v6165, 5
      %v6263 = vsel %vm1759, %v6261, %v6262
      %v6264 = vrot.slane %v6262, 4
      %v6265 = vrot.slane %v6166, 5
      %v6266 = vsel %vm1759, %v6264, %v6265
      %v6267 = vrot.slane %v6167, 5
      %v6268 = vrot.slane %v6267, 4
      %v6269 = vrot.slane %v6168, 5
      %v6270 = vsel %vm1759, %v6268, %v6269
      %v6271 = vrot.slane %v6269, 4
      %v6272 = vrot.slane %v6169, 5
      %v6273 = vsel %vm1759, %v6271, %v6272
      %v6274 = vrot.slane %v6170, 5
      %v6275 = vrot.slane %v6274, 4
      %v6276 = vrot.slane %v6171, 5
      %v6277 = vsel %vm1759, %v6275, %v6276
      %v6278 = vrot.slane %v6276, 4
      %v6279 = vrot.slane %v6172, 5
      %v6280 = vsel %vm1759, %v6278, %v6279
      %v6281 = vrot.slane %v6173, 5
      %v6282 = vrot.slane %v6281, 4
      %v6283 = vrot.slane %v6174, 5
      %v6284 = vsel %vm1759, %v6282, %v6283
      %v6285 = vrot.slane %v6283, 4
      %v6286 = vrot.slane %v6175, 5
      %v6287 = vsel %vm1759, %v6285, %v6286
      %v6288 = vrot.slane %v6176, 5
      %v6289 = vrot.slane %v6288, 4
      %v6290 = vrot.slane %v6177, 5
      %v6291 = vsel %vm1759, %v6289, %v6290
      %v6292 = vrot.slane %v6290, 4
      %v6293 = vrot.slane %v6178, 5
      %v6294 = vsel %vm1759, %v6292, %v6293
      %v6295 = vrot.slane %v6179, 5
      %v6296 = vrot.slane %v6295, 4
      %v6297 = vrot.slane %v6180, 5
      %v6298 = vsel %vm1759, %v6296, %v6297
      %v6299 = vrot.slane %v6297, 4
      %v6300 = vrot.slane %v6181, 5
      %v6301 = vsel %vm1759, %v6299, %v6300
      %v6302 = vrot.slane %v6182, 5
      %v6303 = vrot.slane %v6302, 4
      %v6304 = vrot.slane %v6183, 5
      %v6305 = vsel %vm1759, %v6303, %v6304
      %v6306 = vrot.slane %v6304, 4
      %v6307 = vrot.slane %v6184, 5
      %v6308 = vsel %vm1759, %v6306, %v6307
      %v6309 = vrot.slane %v6185, 5
      %v6310 = vrot.slane %v6309, 4
      %v6311 = vrot.slane %v6186, 5
      %v6312 = vsel %vm1759, %v6310, %v6311
      %v6313 = vrot.slane %v6311, 4
      %v6314 = vrot.slane %v6187, 5
      %v6315 = vsel %vm1759, %v6313, %v6314
      %v6316 = vrot.slane %v6188, 5
      %v6317 = vrot.slane %v6316, 4
      %v6318 = vrot.slane %v6189, 5
      %v6319 = vsel %vm1759, %v6317, %v6318
      %v6320 = vrot.slane %v6318, 4
      %v6321 = vrot.slane %v6190, 5
      %v6322 = vsel %vm1759, %v6320, %v6321
      %v6323 = vrot.slane %v6191, 5
      %v6324 = vrot.slane %v6323, 4
      %v6325 = vrot.slane %v6192, 5
      %v6326 = vsel %vm1759, %v6324, %v6325
      %v6327 = vrot.slane %v6325, 4
      %v6328 = vrot.slane %v6193, 5
      %v6329 = vsel %vm1759, %v6327, %v6328
      %v6330 = vrot.slane %v6194, 5
      %v6331 = vrot.slane %v6330, 4
      %v6332 = vrot.slane %v6195, 5
      %v6333 = vsel %vm1759, %v6331, %v6332
      %v6334 = vrot.slane %v6332, 4
      %v6335 = vrot.slane %v6196, 5
      %v6336 = vsel %vm1759, %v6334, %v6335
      %v6337 = vrot.slane %v6197, 5
      %v6338 = vrot.slane %v6337, 4
      %v6339 = vrot.slane %v6198, 5
      %v6340 = vsel %vm1759, %v6338, %v6339
      %v6341 = vrot.slane %v6339, 4
      %v6342 = vrot.slane %v6199, 5
      %v6343 = vsel %vm1759, %v6341, %v6342
      %v6344 = vrot.slane %v6200, 5
      %v6345 = vrot.slane %v6344, 4
      %v6346 = vrot.slane %v6201, 5
      %v6347 = vsel %vm1759, %v6345, %v6346
      %v6348 = vrot.slane %v6346, 4
      %v6349 = vrot.slane %v6202, 5
      %v6350 = vsel %vm1759, %v6348, %v6349
      %v6351 = vrot.slane %v6203, 5
      %v6352 = vrot.slane %v6351, 4
      %v6353 = vrot.slane %v6204, 5
      %v6354 = vsel %vm1759, %v6352, %v6353
      %v6355 = vrot.slane %v6353, 4
      %v6356 = vrot.slane %v6205, 5
      %v6357 = vsel %vm1759, %v6355, %v6356
      %v6358 = vrot.slane %v6206, 5
      %v6359 = vrot.slane %v6358, 4
      %v6360 = vrot.slane %v6207, 5
      %v6361 = vsel %vm1759, %v6359, %v6360
      %v6362 = vrot.slane %v6360, 4
      %v6363 = vrot.slane %v6208, 5
      %v6364 = vsel %vm1759, %v6362, %v6363
      %v6365 = vrot.slane %v6209, 5
      %v6366 = vrot.slane %v6365, 4
      %v6367 = vrot.slane %v6210, 5
      %v6368 = vsel %vm1759, %v6366, %v6367
      %v6369 = vrot.slane %v6367, 4
      %v6370 = vrot.slane %v6211, 5
      %v6371 = vsel %vm1759, %v6369, %v6370
      %s6372 = scalar_lea.vmem %s1, 1024
      %v6373 = vld [vmem:[%s6372] sm:$0xf]
      %v6374 = vld [vmem:[%s6372 + $0x4] sm:$0xf]
      %v6375 = vld [vmem:[%s6372 + $0x8] sm:$0xf]
      %v6376 = vld [vmem:[%s6372 + $0xc] sm:$0xf]
      %v6377 = vld [vmem:[%s6372 + $0x10] sm:$0xf]
      %v6378 = vld [vmem:[%s6372 + $0x14] sm:$0xf]
      %v6379 = vld [vmem:[%s6372 + $0x18] sm:$0xf]
      %v6380 = vld [vmem:[%s6372 + $0x1c] sm:$0xf]
      %v6381 = vld [vmem:[%s6372 + $0x20] sm:$0xf]
      %v6382 = vld [vmem:[%s6372 + $0x24] sm:$0xf]
      %v6383 = vld [vmem:[%s6372 + $0x28] sm:$0xf]
      %v6384 = vld [vmem:[%s6372 + $0x2c] sm:$0xf]
      %v6385 = vld [vmem:[%s6372 + $0x30] sm:$0xf]
      %v6386 = vld [vmem:[%s6372 + $0x34] sm:$0xf]
      %v6387 = vld [vmem:[%s6372 + $0x38] sm:$0xf]
      %v6388 = vld [vmem:[%s6372 + $0x3c] sm:$0xf]
      %v6389 = vld [vmem:[%s6372 + $0x40] sm:$0xf]
      %v6390 = vld [vmem:[%s6372 + $0x44] sm:$0xf]
      %v6391 = vld [vmem:[%s6372 + $0x48] sm:$0xf]
      %v6392 = vld [vmem:[%s6372 + $0x4c] sm:$0xf]
      %v6393 = vld [vmem:[%s6372 + $0x50] sm:$0xf]
      %v6394 = vld [vmem:[%s6372 + $0x54] sm:$0xf]
      %v6395 = vld [vmem:[%s6372 + $0x58] sm:$0xf]
      %v6396 = vld [vmem:[%s6372 + $0x5c] sm:$0xf]
      %v6397 = vld [vmem:[%s6372 + $0x60] sm:$0xf]
      %v6398 = vld [vmem:[%s6372 + $0x64] sm:$0xf]
      %v6399 = vld [vmem:[%s6372 + $0x68] sm:$0xf]
      %v6400 = vld [vmem:[%s6372 + $0x6c] sm:$0xf]
      %v6401 = vld [vmem:[%s6372 + $0x70] sm:$0xf]
      %v6402 = vld [vmem:[%s6372 + $0x74] sm:$0xf]
      %v6403 = vld [vmem:[%s6372 + $0x78] sm:$0xf]
      %v6404 = vld [vmem:[%s6372 + $0x7c] sm:$0xf]
      %v6405 = vunpack.c.l.b16 %v6263
      %v6406 = vunpack.c.h.b16 %v6263
      %v6407 = vunpack.c.l.b16 %v6266
      %v6408 = vunpack.c.h.b16 %v6266
      %v6409 = vunpack.c.l.b16 %v6270
      %v6410 = vunpack.c.h.b16 %v6270
      %v6411 = vunpack.c.l.b16 %v6273
      %v6412 = vunpack.c.h.b16 %v6273
      %v6413 = vunpack.c.l.b16 %v6277
      %v6414 = vunpack.c.h.b16 %v6277
      %v6415 = vunpack.c.l.b16 %v6280
      %v6416 = vunpack.c.h.b16 %v6280
      %v6417 = vunpack.c.l.b16 %v6284
      %v6418 = vunpack.c.h.b16 %v6284
      %v6419 = vunpack.c.l.b16 %v6287
      %v6420 = vunpack.c.h.b16 %v6287
      %v6421 = vunpack.c.l.b16 %v6291
      %v6422 = vunpack.c.h.b16 %v6291
      %v6423 = vunpack.c.l.b16 %v6294
      %v6424 = vunpack.c.h.b16 %v6294
      %v6425 = vunpack.c.l.b16 %v6298
      %v6426 = vunpack.c.h.b16 %v6298
      %v6427 = vunpack.c.l.b16 %v6301
      %v6428 = vunpack.c.h.b16 %v6301
      %v6429 = vunpack.c.l.b16 %v6305
      %v6430 = vunpack.c.h.b16 %v6305
      %v6431 = vunpack.c.l.b16 %v6308
      %v6432 = vunpack.c.h.b16 %v6308
      %v6433 = vunpack.c.l.b16 %v6312
      %v6434 = vunpack.c.h.b16 %v6312
      %v6435 = vunpack.c.l.b16 %v6315
      %v6436 = vunpack.c.h.b16 %v6315
      %v6437 = vunpack.c.l.b16 %v6319
      %v6438 = vunpack.c.h.b16 %v6319
      %v6439 = vunpack.c.l.b16 %v6322
      %v6440 = vunpack.c.h.b16 %v6322
      %v6441 = vunpack.c.l.b16 %v6326
      %v6442 = vunpack.c.h.b16 %v6326
      %v6443 = vunpack.c.l.b16 %v6329
      %v6444 = vunpack.c.h.b16 %v6329
      %v6445 = vunpack.c.l.b16 %v6333
      %v6446 = vunpack.c.h.b16 %v6333
      %v6447 = vunpack.c.l.b16 %v6336
      %v6448 = vunpack.c.h.b16 %v6336
      %v6449 = vunpack.c.l.b16 %v6340
      %v6450 = vunpack.c.h.b16 %v6340
      %v6451 = vunpack.c.l.b16 %v6343
      %v6452 = vunpack.c.h.b16 %v6343
      %v6453 = vunpack.c.l.b16 %v6347
      %v6454 = vunpack.c.h.b16 %v6347
      %v6455 = vunpack.c.l.b16 %v6350
      %v6456 = vunpack.c.h.b16 %v6350
      %v6457 = vunpack.c.l.b16 %v6354
      %v6458 = vunpack.c.h.b16 %v6354
      %v6459 = vunpack.c.l.b16 %v6357
      %v6460 = vunpack.c.h.b16 %v6357
      %v6461 = vunpack.c.l.b16 %v6361
      %v6462 = vunpack.c.h.b16 %v6361
      %v6463 = vunpack.c.l.b16 %v6364
      %v6464 = vunpack.c.h.b16 %v6364
      %v6465 = vunpack.c.l.b16 %v6368
      %v6466 = vunpack.c.h.b16 %v6368
      %v6467 = vunpack.c.l.b16 %v6371
      %v6468 = vunpack.c.h.b16 %v6371
      %v6469 = vpack.c.b16 %v6407, %v6405
      %v6470 = vpack.c.b16 %v6408, %v6406
      %v6471 = vpack.c.b16 %v6411, %v6409
      %v6472 = vpack.c.b16 %v6412, %v6410
      %v6473 = vpack.c.b16 %v6415, %v6413
      %v6474 = vpack.c.b16 %v6416, %v6414
      %v6475 = vpack.c.b16 %v6419, %v6417
      %v6476 = vpack.c.b16 %v6420, %v6418
      %v6477 = vpack.c.b16 %v6423, %v6421
      %v6478 = vpack.c.b16 %v6424, %v6422
      %v6479 = vpack.c.b16 %v6427, %v6425
      %v6480 = vpack.c.b16 %v6428, %v6426
      %v6481 = vpack.c.b16 %v6431, %v6429
      %v6482 = vpack.c.b16 %v6432, %v6430
      %v6483 = vpack.c.b16 %v6435, %v6433
      %v6484 = vpack.c.b16 %v6436, %v6434
      %v6485 = vpack.c.b16 %v6439, %v6437
      %v6486 = vpack.c.b16 %v6440, %v6438
      %v6487 = vpack.c.b16 %v6443, %v6441
      %v6488 = vpack.c.b16 %v6444, %v6442
      %v6489 = vpack.c.b16 %v6447, %v6445
      %v6490 = vpack.c.b16 %v6448, %v6446
      %v6491 = vpack.c.b16 %v6451, %v6449
      %v6492 = vpack.c.b16 %v6452, %v6450
      %v6493 = vpack.c.b16 %v6455, %v6453
      %v6494 = vpack.c.b16 %v6456, %v6454
      %v6495 = vpack.c.b16 %v6459, %v6457
      %v6496 = vpack.c.b16 %v6460, %v6458
      %v6497 = vpack.c.b16 %v6463, %v6461
      %v6498 = vpack.c.b16 %v6464, %v6462
      %v6499 = vpack.c.b16 %v6467, %v6465
      %v6500 = vpack.c.b16 %v6468, %v6466
      %v6565 = vunpack.c.l.b16 %v6373
      %v6566 = vunpack.c.l.b16 %v6374
      %v6567 = vunpack.c.l.b16 %v6375
      %v6568 = vunpack.c.l.b16 %v6376
      %v6569 = vunpack.c.l.b16 %v6377
      %v6570 = vunpack.c.l.b16 %v6378
      %v6571 = vunpack.c.l.b16 %v6379
      %v6572 = vunpack.c.l.b16 %v6380
      %v6573 = vunpack.c.l.b16 %v6381
      %v6574 = vunpack.c.l.b16 %v6382
      %v6575 = vunpack.c.l.b16 %v6383
      %v6576 = vunpack.c.l.b16 %v6384
      %v6577 = vunpack.c.l.b16 %v6385
      %v6578 = vunpack.c.l.b16 %v6386
      %v6579 = vunpack.c.l.b16 %v6387
      %v6580 = vunpack.c.l.b16 %v6388
      %v6581 = vunpack.c.l.b16 %v6389
      %v6582 = vunpack.c.l.b16 %v6390
      %v6583 = vunpack.c.l.b16 %v6391
      %v6584 = vunpack.c.l.b16 %v6392
      %v6585 = vunpack.c.l.b16 %v6393
      %v6586 = vunpack.c.l.b16 %v6394
      %v6587 = vunpack.c.l.b16 %v6395
      %v6588 = vunpack.c.l.b16 %v6396
      %v6589 = vunpack.c.l.b16 %v6397
      %v6590 = vunpack.c.l.b16 %v6398
      %v6591 = vunpack.c.l.b16 %v6399
      %v6592 = vunpack.c.l.b16 %v6400
      %v6593 = vunpack.c.l.b16 %v6401
      %v6594 = vunpack.c.l.b16 %v6402
      %v6595 = vunpack.c.l.b16 %v6403
      %v6596 = vunpack.c.l.b16 %v6404
      %v6597 = vpack.c.b16 %v6566, %v6565
      %v6598 = vpack.c.b16 %v6568, %v6567
      %v6599 = vpack.c.b16 %v6570, %v6569
      %v6600 = vpack.c.b16 %v6572, %v6571
      %v6601 = vpack.c.b16 %v6574, %v6573
      %v6602 = vpack.c.b16 %v6576, %v6575
      %v6603 = vpack.c.b16 %v6578, %v6577
      %v6604 = vpack.c.b16 %v6580, %v6579
      %v6605 = vpack.c.b16 %v6582, %v6581
      %v6606 = vpack.c.b16 %v6584, %v6583
      %v6607 = vpack.c.b16 %v6586, %v6585
      %v6608 = vpack.c.b16 %v6588, %v6587
      %v6609 = vpack.c.b16 %v6590, %v6589
      %v6610 = vpack.c.b16 %v6592, %v6591
      %v6611 = vpack.c.b16 %v6594, %v6593
      %v6612 = vpack.c.b16 %v6596, %v6595
      %6629 = vmatprep.subr.bf16.mxu0 0
      %6630 = vmatpush1.bf16.msra.mxu0 %v6597
      %6631 = vmatprep.subr.bf16.mxu0 0
      %6632 = vmatpush1.bf16.msra.mxu0 %v6598
      %6633 = vmatprep.subr.bf16.mxu0 0
      %6634 = vmatpush1.bf16.msra.mxu0 %v6599
      %6635 = vmatprep.subr.bf16.mxu0 0
      %6636 = vmatpush1.bf16.msra.mxu0 %v6600
      %6637 = vmatprep.subr.bf16.mxu0 0
      %6638 = vmatpush1.bf16.msra.mxu0 %v6601
      %6639 = vmatprep.subr.bf16.mxu0 0
      %6640 = vmatpush1.bf16.msra.mxu0 %v6602
      %6641 = vmatprep.subr.bf16.mxu0 0
      %6642 = vmatpush1.bf16.msra.mxu0 %v6603
      %6643 = vmatprep.subr.bf16.mxu0 0
      %6644 = vmatpush1.bf16.msra.mxu0 %v6604
      %6645 = vmatprep.subr.bf16.mxu0 0
      %6646 = vmatpush1.bf16.msra.mxu0 %v6605
      %6647 = vmatprep.subr.bf16.mxu0 0
      %6648 = vmatpush1.bf16.msra.mxu0 %v6606
      %6649 = vmatprep.subr.bf16.mxu0 0
      %6650 = vmatpush1.bf16.msra.mxu0 %v6607
      %6651 = vmatprep.subr.bf16.mxu0 0
      %6652 = vmatpush1.bf16.msra.mxu0 %v6608
      %6653 = vmatprep.subr.bf16.mxu0 0
      %6654 = vmatpush1.bf16.msra.mxu0 %v6609
      %6655 = vmatprep.subr.bf16.mxu0 0
      %6656 = vmatpush1.bf16.msra.mxu0 %v6610
      %6657 = vmatprep.subr.bf16.mxu0 0
      %6658 = vmatpush1.bf16.msra.mxu0 %v6611
      %6659 = vmatprep.subr.bf16.mxu0 0
      %6660 = vmatpush1.bf16.msra.mxu0 %v6612
      %6661 = vmatprep.mubr.bf16.mxu0 %v6470
      %6662 = vmatmul.mubr.bf16.gmra.mrb[0].mxu0 %v6469
      %v6663 = vpop.f32.mrb[0].mxu0
      %v6664 = vadd.f32 0.0, %v6663
      %v6665 = vpop.f32.mrb[0].mxu0
      %v6666 = vpop.f32.mrb[0].mxu0
      %v6667 = vadd.f32 0.0, %v6666
      %v6668 = vpop.f32.mrb[0].mxu0
      %6669 = vmatprep.mubr.bf16.mxu0 %v6472
      %6670 = vmatmul.mubr.bf16.gmra.mrb[0].mxu0 %v6471
      %v6671 = vpop.f32.mrb[0].mxu0
      %v6672 = vadd.f32 0.0, %v6671
      %v6673 = vpop.f32.mrb[0].mxu0
      %v6674 = vpop.f32.mrb[0].mxu0
      %v6675 = vadd.f32 0.0, %v6674
      %v6676 = vpop.f32.mrb[0].mxu0
      %6677 = vmatprep.mubr.bf16.mxu0 %v6474
      %6678 = vmatmul.mubr.bf16.gmra.mrb[0].mxu0 %v6473
      %v6679 = vpop.f32.mrb[0].mxu0
      %v6680 = vadd.f32 0.0, %v6679
      %v6681 = vpop.f32.mrb[0].mxu0
      %v6682 = vpop.f32.mrb[0].mxu0
      %v6683 = vadd.f32 0.0, %v6682
      %v6684 = vpop.f32.mrb[0].mxu0
      %6685 = vmatprep.mubr.bf16.mxu0 %v6476
      %6686 = vmatmul.mubr.bf16.gmra.mrb[0].mxu0 %v6475
      %v6687 = vpop.f32.mrb[0].mxu0
      %v6688 = vadd.f32 0.0, %v6687
      %v6689 = vpop.f32.mrb[0].mxu0
      %v6690 = vpop.f32.mrb[0].mxu0
      %v6691 = vadd.f32 0.0, %v6690
      %v6692 = vpop.f32.mrb[0].mxu0
      %6693 = vmatprep.mubr.bf16.mxu0 %v6478
      %6694 = vmatmul.mubr.bf16.gmra.mrb[0].mxu0 %v6477
      %v6695 = vpop.f32.mrb[0].mxu0
      %v6696 = vadd.f32 0.0, %v6695
      %v6697 = vpop.f32.mrb[0].mxu0
      %v6698 = vpop.f32.mrb[0].mxu0
      %v6699 = vadd.f32 0.0, %v6698
      %v6700 = vpop.f32.mrb[0].mxu0
      %6701 = vmatprep.mubr.bf16.mxu0 %v6480
      %6702 = vmatmul.mubr.bf16.gmra.mrb[0].mxu0 %v6479
      %v6703 = vpop.f32.mrb[0].mxu0
      %v6704 = vadd.f32 0.0, %v6703
      %v6705 = vpop.f32.mrb[0].mxu0
      %v6706 = vpop.f32.mrb[0].mxu0
      %v6707 = vadd.f32 0.0, %v6706
      %v6708 = vpop.f32.mrb[0].mxu0
      %6709 = vmatprep.mubr.bf16.mxu0 %v6482
      %6710 = vmatmul.mubr.bf16.gmra.mrb[0].mxu0 %v6481
      %v6711 = vpop.f32.mrb[0].mxu0
      %v6712 = vadd.f32 0.0, %v6711
      %v6713 = vpop.f32.mrb[0].mxu0
      %v6714 = vpop.f32.mrb[0].mxu0
      %v6715 = vadd.f32 0.0, %v6714
      %v6716 = vpop.f32.mrb[0].mxu0
      %6717 = vmatprep.mubr.bf16.mxu0 %v6484
      %6718 = vmatmul.mubr.bf16.gmra.mrb[0].mxu0 %v6483
      %v6719 = vpop.f32.mrb[0].mxu0
      %v6720 = vadd.f32 0.0, %v6719
      %v6721 = vpop.f32.mrb[0].mxu0
      %v6722 = vpop.f32.mrb[0].mxu0
      %v6723 = vadd.f32 0.0, %v6722
      %v6724 = vpop.f32.mrb[0].mxu0
      %6725 = vmatprep.mubr.bf16.mxu0 %v6486
      %6726 = vmatmul.mubr.bf16.gmra.mrb[0].mxu0 %v6485
      %v6727 = vpop.f32.mrb[0].mxu0
      %v6728 = vadd.f32 0.0, %v6727
      %v6729 = vpop.f32.mrb[0].mxu0
      %v6730 = vpop.f32.mrb[0].mxu0
      %v6731 = vadd.f32 0.0, %v6730
      %v6732 = vpop.f32.mrb[0].mxu0
      %6733 = vmatprep.mubr.bf16.mxu0 %v6488
      %6734 = vmatmul.mubr.bf16.gmra.mrb[0].mxu0 %v6487
      %v6735 = vpop.f32.mrb[0].mxu0
      %v6736 = vadd.f32 0.0, %v6735
      %v6737 = vpop.f32.mrb[0].mxu0
      %v6738 = vpop.f32.mrb[0].mxu0
      %v6739 = vadd.f32 0.0, %v6738
      %v6740 = vpop.f32.mrb[0].mxu0
      %6741 = vmatprep.mubr.bf16.mxu0 %v6490
      %6742 = vmatmul.mubr.bf16.gmra.mrb[0].mxu0 %v6489
      %v6743 = vpop.f32.mrb[0].mxu0
      %v6744 = vadd.f32 0.0, %v6743
      %v6745 = vpop.f32.mrb[0].mxu0
      %v6746 = vpop.f32.mrb[0].mxu0
      %v6747 = vadd.f32 0.0, %v6746
      %v6748 = vpop.f32.mrb[0].mxu0
      %6749 = vmatprep.mubr.bf16.mxu0 %v6492
      %6750 = vmatmul.mubr.bf16.gmra.mrb[0].mxu0 %v6491
      %v6751 = vpop.f32.mrb[0].mxu0
      %v6752 = vadd.f32 0.0, %v6751
      %v6753 = vpop.f32.mrb[0].mxu0
      %v6754 = vpop.f32.mrb[0].mxu0
      %v6755 = vadd.f32 0.0, %v6754
      %v6756 = vpop.f32.mrb[0].mxu0
      %6757 = vmatprep.mubr.bf16.mxu0 %v6494
      %6758 = vmatmul.mubr.bf16.gmra.mrb[0].mxu0 %v6493
      %v6759 = vpop.f32.mrb[0].mxu0
      %v6760 = vadd.f32 0.0, %v6759
      %v6761 = vpop.f32.mrb[0].mxu0
      %v6762 = vpop.f32.mrb[0].mxu0
      %v6763 = vadd.f32 0.0, %v6762
      %v6764 = vpop.f32.mrb[0].mxu0
      %6765 = vmatprep.mubr.bf16.mxu0 %v6496
      %6766 = vmatmul.mubr.bf16.gmra.mrb[0].mxu0 %v6495
      %v6767 = vpop.f32.mrb[0].mxu0
      %v6768 = vadd.f32 0.0, %v6767
      %v6769 = vpop.f32.mrb[0].mxu0
      %v6770 = vpop.f32.mrb[0].mxu0
      %v6771 = vadd.f32 0.0, %v6770
      %v6772 = vpop.f32.mrb[0].mxu0
      %6773 = vmatprep.mubr.bf16.mxu0 %v6498
      %6774 = vmatmul.mubr.bf16.gmra.mrb[0].mxu0 %v6497
      %v6775 = vpop.f32.mrb[0].mxu0
      %v6776 = vadd.f32 0.0, %v6775
      %v6777 = vpop.f32.mrb[0].mxu0
      %v6778 = vpop.f32.mrb[0].mxu0
      %v6779 = vadd.f32 0.0, %v6778
      %v6780 = vpop.f32.mrb[0].mxu0
      %6781 = vmatprep.mubr.bf16.mxu0 %v6500
      %6782 = vmatmul.mubr.bf16.gmra.mrb[0].mxu0 %v6499
      %v6783 = vpop.f32.mrb[0].mxu0
      %v6784 = vadd.f32 0.0, %v6783
      %v6785 = vpop.f32.mrb[0].mxu0
      %v6786 = vpop.f32.mrb[0].mxu0
      %v6787 = vadd.f32 0.0, %v6786
      %v6788 = vpop.f32.mrb[0].mxu0
      %6789 = vdwg.mxu0
      %v6790 = vld [vmem:[#allocation2] sm:$0xff]
      %v6791 = vld [vmem:[#allocation2 + $0x8] sm:$0xff]
      %v6792 = vld [vmem:[#allocation2 + $0x10] sm:$0xff]
      %v6793 = vld [vmem:[#allocation2 + $0x18] sm:$0xff]
      %v6794 = vld [vmem:[#allocation2 + $0x20] sm:$0xff]
      %v6795 = vld [vmem:[#allocation2 + $0x28] sm:$0xff]
      %v6796 = vld [vmem:[#allocation2 + $0x30] sm:$0xff]
      %v6797 = vld [vmem:[#allocation2 + $0x38] sm:$0xff]
      %v6798 = vld [vmem:[#allocation2 + $0x40] sm:$0xff]
      %v6799 = vld [vmem:[#allocation2 + $0x48] sm:$0xff]
      %v6800 = vld [vmem:[#allocation2 + $0x50] sm:$0xff]
      %v6801 = vld [vmem:[#allocation2 + $0x58] sm:$0xff]
      %v6802 = vld [vmem:[#allocation2 + $0x60] sm:$0xff]
      %v6803 = vld [vmem:[#allocation2 + $0x68] sm:$0xff]
      %v6804 = vld [vmem:[#allocation2 + $0x70] sm:$0xff]
      %v6805 = vld [vmem:[#allocation2 + $0x78] sm:$0xff]
      %v6806 = vld [vmem:[#allocation2 + $0x80] sm:$0xff]
      %v6807 = vld [vmem:[#allocation2 + $0x88] sm:$0xff]
      %v6808 = vld [vmem:[#allocation2 + $0x90] sm:$0xff]
      %v6809 = vld [vmem:[#allocation2 + $0x98] sm:$0xff]
      %v6810 = vld [vmem:[#allocation2 + $0xa0] sm:$0xff]
      %v6811 = vld [vmem:[#allocation2 + $0xa8] sm:$0xff]
      %v6812 = vld [vmem:[#allocation2 + $0xb0] sm:$0xff]
      %v6813 = vld [vmem:[#allocation2 + $0xb8] sm:$0xff]
      %v6814 = vld [vmem:[#allocation2 + $0xc0] sm:$0xff]
      %v6815 = vld [vmem:[#allocation2 + $0xc8] sm:$0xff]
      %v6816 = vld [vmem:[#allocation2 + $0xd0] sm:$0xff]
      %v6817 = vld [vmem:[#allocation2 + $0xd8] sm:$0xff]
      %v6818 = vld [vmem:[#allocation2 + $0xe0] sm:$0xff]
      %v6819 = vld [vmem:[#allocation2 + $0xe8] sm:$0xff]
      %v6820 = vld [vmem:[#allocation2 + $0xf0] sm:$0xff]
      %v6821 = vld [vmem:[#allocation2 + $0xf8] sm:$0xff]
      %v6822 = vadd.f32 %v6790, %v6664
      %v6823 = vadd.f32 %v6791, %v6667
      %v6824 = vadd.f32 %v6792, %v6672
      %v6825 = vadd.f32 %v6793, %v6675
      %v6826 = vadd.f32 %v6794, %v6680
      %v6827 = vadd.f32 %v6795, %v6683
      %v6828 = vadd.f32 %v6796, %v6688
      %v6829 = vadd.f32 %v6797, %v6691
      %v6830 = vadd.f32 %v6798, %v6696
      %v6831 = vadd.f32 %v6799, %v6699
      %v6832 = vadd.f32 %v6800, %v6704
      %v6833 = vadd.f32 %v6801, %v6707
      %v6834 = vadd.f32 %v6802, %v6712
      %v6835 = vadd.f32 %v6803, %v6715
      %v6836 = vadd.f32 %v6804, %v6720
      %v6837 = vadd.f32 %v6805, %v6723
      %v6838 = vadd.f32 %v6806, %v6728
      %v6839 = vadd.f32 %v6807, %v6731
      %v6840 = vadd.f32 %v6808, %v6736
      %v6841 = vadd.f32 %v6809, %v6739
      %v6842 = vadd.f32 %v6810, %v6744
      %v6843 = vadd.f32 %v6811, %v6747
      %v6844 = vadd.f32 %v6812, %v6752
      %v6845 = vadd.f32 %v6813, %v6755
      %v6846 = vadd.f32 %v6814, %v6760
      %v6847 = vadd.f32 %v6815, %v6763
      %v6848 = vadd.f32 %v6816, %v6768
      %v6849 = vadd.f32 %v6817, %v6771
      %v6850 = vadd.f32 %v6818, %v6776
      %v6851 = vadd.f32 %v6819, %v6779
      %v6852 = vadd.f32 %v6820, %v6784
      %v6853 = vadd.f32 %v6821, %v6787
      %6854 = vst [vmem:[#allocation2] sm:$0xff] %v6822
      %6855 = vst [vmem:[#allocation2 + $0x8] sm:$0xff] %v6823
      %6856 = vst [vmem:[#allocation2 + $0x10] sm:$0xff] %v6824
      %6857 = vst [vmem:[#allocation2 + $0x18] sm:$0xff] %v6825
      %6858 = vst [vmem:[#allocation2 + $0x20] sm:$0xff] %v6826
      %6859 = vst [vmem:[#allocation2 + $0x28] sm:$0xff] %v6827
      %6860 = vst [vmem:[#allocation2 + $0x30] sm:$0xff] %v6828
      %6861 = vst [vmem:[#allocation2 + $0x38] sm:$0xff] %v6829
      %6862 = vst [vmem:[#allocation2 + $0x40] sm:$0xff] %v6830
      %6863 = vst [vmem:[#allocation2 + $0x48] sm:$0xff] %v6831
      %6864 = vst [vmem:[#allocation2 + $0x50] sm:$0xff] %v6832
      %6865 = vst [vmem:[#allocation2 + $0x58] sm:$0xff] %v6833
      %6866 = vst [vmem:[#allocation2 + $0x60] sm:$0xff] %v6834
      %6867 = vst [vmem:[#allocation2 + $0x68] sm:$0xff] %v6835
      %6868 = vst [vmem:[#allocation2 + $0x70] sm:$0xff] %v6836
      %6869 = vst [vmem:[#allocation2 + $0x78] sm:$0xff] %v6837
      %6870 = vst [vmem:[#allocation2 + $0x80] sm:$0xff] %v6838
      %6871 = vst [vmem:[#allocation2 + $0x88] sm:$0xff] %v6839
      %6872 = vst [vmem:[#allocation2 + $0x90] sm:$0xff] %v6840
      %6873 = vst [vmem:[#allocation2 + $0x98] sm:$0xff] %v6841
      %6874 = vst [vmem:[#allocation2 + $0xa0] sm:$0xff] %v6842
      %6875 = vst [vmem:[#allocation2 + $0xa8] sm:$0xff] %v6843
      %6876 = vst [vmem:[#allocation2 + $0xb0] sm:$0xff] %v6844
      %6877 = vst [vmem:[#allocation2 + $0xb8] sm:$0xff] %v6845
      %6878 = vst [vmem:[#allocation2 + $0xc0] sm:$0xff] %v6846
      %6879 = vst [vmem:[#allocation2 + $0xc8] sm:$0xff] %v6847
      %6880 = vst [vmem:[#allocation2 + $0xd0] sm:$0xff] %v6848
      %6881 = vst [vmem:[#allocation2 + $0xd8] sm:$0xff] %v6849
      %6882 = vst [vmem:[#allocation2 + $0xe0] sm:$0xff] %v6850
      %6883 = vst [vmem:[#allocation2 + $0xe8] sm:$0xff] %v6851
      %6884 = vst [vmem:[#allocation2 + $0xf0] sm:$0xff] %v6852
      %6885 = vst [vmem:[#allocation2 + $0xf8] sm:$0xff] %v6853
      %v6886 = vld [vmem:[#allocation2] sm:$0xff]
      %v6887 = vld [vmem:[#allocation2 + $0x8] sm:$0xff]
      %v6888 = vld [vmem:[#allocation2 + $0x10] sm:$0xff]
      %v6889 = vld [vmem:[#allocation2 + $0x18] sm:$0xff]
      %v6890 = vld [vmem:[#allocation2 + $0x20] sm:$0xff]
      %v6891 = vld [vmem:[#allocation2 + $0x28] sm:$0xff]
      %v6892 = vld [vmem:[#allocation2 + $0x30] sm:$0xff]
      %v6893 = vld [vmem:[#allocation2 + $0x38] sm:$0xff]
      %v6894 = vld [vmem:[#allocation2 + $0x40] sm:$0xff]
      %v6895 = vld [vmem:[#allocation2 + $0x48] sm:$0xff]
      %v6896 = vld [vmem:[#allocation2 + $0x50] sm:$0xff]
      %v6897 = vld [vmem:[#allocation2 + $0x58] sm:$0xff]
      %v6898 = vld [vmem:[#allocation2 + $0x60] sm:$0xff]
      %v6899 = vld [vmem:[#allocation2 + $0x68] sm:$0xff]
      %v6900 = vld [vmem:[#allocation2 + $0x70] sm:$0xff]
      %v6901 = vld [vmem:[#allocation2 + $0x78] sm:$0xff]
      %v6902 = vld [vmem:[#allocation2 + $0x80] sm:$0xff]
      %v6903 = vld [vmem:[#allocation2 + $0x88] sm:$0xff]
      %v6904 = vld [vmem:[#allocation2 + $0x90] sm:$0xff]
      %v6905 = vld [vmem:[#allocation2 + $0x98] sm:$0xff]
      %v6906 = vld [vmem:[#allocation2 + $0xa0] sm:$0xff]
      %v6907 = vld [vmem:[#allocation2 + $0xa8] sm:$0xff]
      %v6908 = vld [vmem:[#allocation2 + $0xb0] sm:$0xff]
      %v6909 = vld [vmem:[#allocation2 + $0xb8] sm:$0xff]
      %v6910 = vld [vmem:[#allocation2 + $0xc0] sm:$0xff]
      %v6911 = vld [vmem:[#allocation2 + $0xc8] sm:$0xff]
      %v6912 = vld [vmem:[#allocation2 + $0xd0] sm:$0xff]
      %v6913 = vld [vmem:[#allocation2 + $0xd8] sm:$0xff]
      %v6914 = vld [vmem:[#allocation2 + $0xe0] sm:$0xff]
      %v6915 = vld [vmem:[#allocation2 + $0xe8] sm:$0xff]
      %v6916 = vld [vmem:[#allocation2 + $0xf0] sm:$0xff]
      %v6917 = vld [vmem:[#allocation2 + $0xf8] sm:$0xff]
      %v6918 = vld [vmem:[%s2] sm:$0x1]
      %v6920 = vlaneseq
      %v6921 = vshrl.u32 %v6920, 7
      %v6922 = vsub.s32 0, %v6921
      %v6923 = vrot.slane %v6918, %v6922
      %v6925 = vadd.f32 %v6886, %v6923
      %v6926 = vadd.f32 %v6887, %v6923
      %v6927 = vadd.f32 %v6888, %v6923
      %v6928 = vadd.f32 %v6889, %v6923
      %v6929 = vadd.f32 %v6890, %v6923
      %v6930 = vadd.f32 %v6891, %v6923
      %v6931 = vadd.f32 %v6892, %v6923
      %v6932 = vadd.f32 %v6893, %v6923
      %v6933 = vadd.f32 %v6894, %v6923
      %v6934 = vadd.f32 %v6895, %v6923
      %v6935 = vadd.f32 %v6896, %v6923
      %v6936 = vadd.f32 %v6897, %v6923
      %v6937 = vadd.f32 %v6898, %v6923
      %v6938 = vadd.f32 %v6899, %v6923
      %v6939 = vadd.f32 %v6900, %v6923
      %v6940 = vadd.f32 %v6901, %v6923
      %v6941 = vadd.f32 %v6902, %v6923
      %v6942 = vadd.f32 %v6903, %v6923
      %v6943 = vadd.f32 %v6904, %v6923
      %v6944 = vadd.f32 %v6905, %v6923
      %v6945 = vadd.f32 %v6906, %v6923
      %v6946 = vadd.f32 %v6907, %v6923
      %v6947 = vadd.f32 %v6908, %v6923
      %v6948 = vadd.f32 %v6909, %v6923
      %v6949 = vadd.f32 %v6910, %v6923
      %v6950 = vadd.f32 %v6911, %v6923
      %v6951 = vadd.f32 %v6912, %v6923
      %v6952 = vadd.f32 %v6913, %v6923
      %v6953 = vadd.f32 %v6914, %v6923
      %v6954 = vadd.f32 %v6915, %v6923
      %v6955 = vadd.f32 %v6916, %v6923
      %v6956 = vadd.f32 %v6917, %v6923
      %v6957 = vpack.c.bf16 %v6926, %v6925
      %v6958 = vpack.c.bf16 %v6928, %v6927
      %v6959 = vpack.c.bf16 %v6930, %v6929
      %v6960 = vpack.c.bf16 %v6932, %v6931
      %v6961 = vpack.c.bf16 %v6934, %v6933
      %v6962 = vpack.c.bf16 %v6936, %v6935
      %v6963 = vpack.c.bf16 %v6938, %v6937
      %v6964 = vpack.c.bf16 %v6940, %v6939
      %v6965 = vpack.c.bf16 %v6942, %v6941
      %v6966 = vpack.c.bf16 %v6944, %v6943
      %v6967 = vpack.c.bf16 %v6946, %v6945
      %v6968 = vpack.c.bf16 %v6948, %v6947
      %v6969 = vpack.c.bf16 %v6950, %v6949
      %v6970 = vpack.c.bf16 %v6952, %v6951
      %v6971 = vpack.c.bf16 %v6954, %v6953
      %v6972 = vpack.c.bf16 %v6956, %v6955
      %v6989 = vunpack.c.l.b16 %v6957
      %v6990 = vunpack.c.h.b16 %v6957
      %v6991 = vunpack.c.l.b16 %v6958
      %v6992 = vunpack.c.h.b16 %v6958
      %v6993 = vunpack.c.l.b16 %v6959
      %v6994 = vunpack.c.h.b16 %v6959
      %v6995 = vunpack.c.l.b16 %v6960
      %v6996 = vunpack.c.h.b16 %v6960
      %v6997 = vunpack.c.l.b16 %v6961
      %v6998 = vunpack.c.h.b16 %v6961
      %v6999 = vunpack.c.l.b16 %v6962
      %v7000 = vunpack.c.h.b16 %v6962
      %v7001 = vunpack.c.l.b16 %v6963
      %v7002 = vunpack.c.h.b16 %v6963
      %v7003 = vunpack.c.l.b16 %v6964
      %v7004 = vunpack.c.h.b16 %v6964
      %v7005 = vunpack.c.l.b16 %v6965
      %v7006 = vunpack.c.h.b16 %v6965
      %v7007 = vunpack.c.l.b16 %v6966
      %v7008 = vunpack.c.h.b16 %v6966
      %v7009 = vunpack.c.l.b16 %v6967
      %v7010 = vunpack.c.h.b16 %v6967
      %v7011 = vunpack.c.l.b16 %v6968
      %v7012 = vunpack.c.h.b16 %v6968
      %v7013 = vunpack.c.l.b16 %v6969
      %v7014 = vunpack.c.h.b16 %v6969
      %v7015 = vunpack.c.l.b16 %v6970
      %v7016 = vunpack.c.h.b16 %v6970
      %v7017 = vunpack.c.l.b16 %v6971
      %v7018 = vunpack.c.h.b16 %v6971
      %v7019 = vunpack.c.l.b16 %v6972
      %v7020 = vunpack.c.h.b16 %v6972
      %v7021 = vpack.c.b16 %v6989, %v6989
      %v7022 = vpack.c.b16 %v6990, %v6990
      %v7023 = vpack.c.b16 %v6991, %v6991
      %v7024 = vpack.c.b16 %v6992, %v6992
      %v7025 = vpack.c.b16 %v6993, %v6993
      %v7026 = vpack.c.b16 %v6994, %v6994
      %v7027 = vpack.c.b16 %v6995, %v6995
      %v7028 = vpack.c.b16 %v6996, %v6996
      %v7029 = vpack.c.b16 %v6997, %v6997
      %v7030 = vpack.c.b16 %v6998, %v6998
      %v7031 = vpack.c.b16 %v6999, %v6999
      %v7032 = vpack.c.b16 %v7000, %v7000
      %v7033 = vpack.c.b16 %v7001, %v7001
      %v7034 = vpack.c.b16 %v7002, %v7002
      %v7035 = vpack.c.b16 %v7003, %v7003
      %v7036 = vpack.c.b16 %v7004, %v7004
      %v7037 = vpack.c.b16 %v7005, %v7005
      %v7038 = vpack.c.b16 %v7006, %v7006
      %v7039 = vpack.c.b16 %v7007, %v7007
      %v7040 = vpack.c.b16 %v7008, %v7008
      %v7041 = vpack.c.b16 %v7009, %v7009
      %v7042 = vpack.c.b16 %v7010, %v7010
      %v7043 = vpack.c.b16 %v7011, %v7011
      %v7044 = vpack.c.b16 %v7012, %v7012
      %v7045 = vpack.c.b16 %v7013, %v7013
      %v7046 = vpack.c.b16 %v7014, %v7014
      %v7047 = vpack.c.b16 %v7015, %v7015
      %v7048 = vpack.c.b16 %v7016, %v7016
      %v7049 = vpack.c.b16 %v7017, %v7017
      %v7050 = vpack.c.b16 %v7018, %v7018
      %v7051 = vpack.c.b16 %v7019, %v7019
      %v7052 = vpack.c.b16 %v7020, %v7020
      %7085 = vst [vmem:[%s192] sm:$0xf] %v7021
      %7086 = vst [vmem:[%s192 + $0x4] sm:$0xf] %v7022
      %7087 = vst [vmem:[%s192 + $0x8] sm:$0xf] %v7023
      %7088 = vst [vmem:[%s192 + $0xc] sm:$0xf] %v7024
      %7089 = vst [vmem:[%s192 + $0x10] sm:$0xf] %v7025
      %7090 = vst [vmem:[%s192 + $0x14] sm:$0xf] %v7026
      %7091 = vst [vmem:[%s192 + $0x18] sm:$0xf] %v7027
      %7092 = vst [vmem:[%s192 + $0x1c] sm:$0xf] %v7028
      %7093 = vst [vmem:[%s192 + $0x20] sm:$0xf] %v7029
      %7094 = vst [vmem:[%s192 + $0x24] sm:$0xf] %v7030
      %7095 = vst [vmem:[%s192 + $0x28] sm:$0xf] %v7031
      %7096 = vst [vmem:[%s192 + $0x2c] sm:$0xf] %v7032
      %7097 = vst [vmem:[%s192 + $0x30] sm:$0xf] %v7033
      %7098 = vst [vmem:[%s192 + $0x34] sm:$0xf] %v7034
      %7099 = vst [vmem:[%s192 + $0x38] sm:$0xf] %v7035
      %7100 = vst [vmem:[%s192 + $0x3c] sm:$0xf] %v7036
      %7101 = vst [vmem:[%s192 + $0x40] sm:$0xf] %v7037
      %7102 = vst [vmem:[%s192 + $0x44] sm:$0xf] %v7038
      %7103 = vst [vmem:[%s192 + $0x48] sm:$0xf] %v7039
      %7104 = vst [vmem:[%s192 + $0x4c] sm:$0xf] %v7040
      %7105 = vst [vmem:[%s192 + $0x50] sm:$0xf] %v7041
      %7106 = vst [vmem:[%s192 + $0x54] sm:$0xf] %v7042
      %7107 = vst [vmem:[%s192 + $0x58] sm:$0xf] %v7043
      %7108 = vst [vmem:[%s192 + $0x5c] sm:$0xf] %v7044
      %7109 = vst [vmem:[%s192 + $0x60] sm:$0xf] %v7045
      %7110 = vst [vmem:[%s192 + $0x64] sm:$0xf] %v7046
      %7111 = vst [vmem:[%s192 + $0x68] sm:$0xf] %v7047
      %7112 = vst [vmem:[%s192 + $0x6c] sm:$0xf] %v7048
      %7113 = vst [vmem:[%s192 + $0x70] sm:$0xf] %v7049
      %7114 = vst [vmem:[%s192 + $0x74] sm:$0xf] %v7050
      %7115 = vst [vmem:[%s192 + $0x78] sm:$0xf] %v7051
      %7116 = vst [vmem:[%s192 + $0x7c] sm:$0xf] %v7052
      %s7117 = smul.u32 32, %s19
      %p7118 = scmp.lt.s32.totalorder %s18, 1
      %s7119 = scalar_select %p7118, %s18, 1
      %p7120 = scmp.lt.s32.totalorder %s7117, 31
      %s7121 = scalar_select %p7120, %s7117, 31
      %s7122 = smul.addr %s7119, 32
      %s7123 = sadd.s32 %s7121, %s7122
      %s7124 = smul.addr %s7123, 4
      %s7125 = scalar_lea.vmem %s3, %s7124
      // Predicated region
      $region33: #{_lambda_.1} parent=31 // pred_check
        %p7126 = pneg %p114
      $region34: #{_lambda_.1} parent=31 // pred_check_branch
        %7128 = sbr.rel (%p7126) target = $region36
      $region35: #{_lambda_.1} parent=31 // pred_region
        %s7129 = smul.u32 32, %s19
      $region36: #{_lambda_.1} parent=31 // pred_fallthru
        _
    $region32: #{_lambda_.1} parent=5 // pred_fallthru
      _
    %p7130 = scmp.le.s32.totalorder 2, %s9
    // Predicated region
    $region37: #{_lambda_.1} parent=5 // pred_check
      %p7131 = pneg %p7130
    $region38: #{_lambda_.1} parent=5 // pred_check_branch
      %7133 = sbr.rel (%p7131) target = $region40
    $region39: #{_lambda_.1} parent=5 // pred_region
      %s7134 = ssub.s32 %s9, 2
      // Predicated region
      $region41: #{_lambda_.1} parent=39 // pred_check
        %p7135 = pneg %p120
      $region42: #{_lambda_.1} parent=39 // pred_check_branch
        %7137 = sbr.rel (%p7135) target = $region44
      $region43: #{_lambda_.1} parent=39 // pred_region
        %s7138 = smul.u32 32, %s21
        %p7139 = scmp.lt.s32.totalorder %s20, 1
        %s7140 = scalar_select %p7139, %s20, 1
        %p7141 = scmp.lt.s32.totalorder %s7138, 31
        %s7142 = scalar_select %p7141, %s7138, 31
        %s7143 = smul.addr %s7140, 32
        %s7144 = sadd.s32 %s7142, %s7143
        %s7145 = smul.addr %s7144, 4
        %s7146 = scalar_lea.vmem %s3, %s7145
      $region44: #{_lambda_.1} parent=39 // pred_fallthru
        _
    $region40: #{_lambda_.1} parent=5 // pred_fallthru
      _
  $region6: #{_lambda_.1} parent=0 // loop_footer
    %s13 = sadd.s32 1, %s9
  $region7: #{_lambda_.1} parent=0 // loop_footer_branch
    %8 = sbr.rel target = $region3
  $region8: #{_lambda_.1} parent=0 // loop_exit
    _

</llo_original>
